<compile_context>
chip_gen: v7x
topology: tpu7x:2x2x1
jax: 0.10.0
libtpu: 0.0.40
codegen_flags: <defaults>
</compile_context>

<pallas_src>
import jax
import jax.numpy as jnp
from jax.experimental import pallas as pl
from jax.experimental.pallas import tpu as pltpu


def mlp_kernel(x_ref, wg_ref, wu_ref, thr_ref, wd_ref, o_ref, acc_ref):
    """One (row-tile i, intermediate-tile k) grid step.

    x:(tm,D)  wg/wu:(D,ti)  thr:(1,ti)  wd:(ti,N)  o:(tm,N)  acc scratch:(tm,N) f32.
    """
    k = pl.program_id(1)
    half = o_ref.dtype

    @pl.when(k == 0)
    def _():
        acc_ref[...] = jnp.zeros_like(acc_ref)

    x = x_ref[...]                                                     # bf16 (tm, D)

    # gate/up projections for this I-slice: half operands into MXU, f32 accumulation.
    gate = jnp.dot(x, wg_ref[...], preferred_element_type=jnp.float32)  # f32 (tm, ti)
    up32 = jnp.dot(x, wu_ref[...], preferred_element_type=jnp.float32)  # f32 (tm, ti)

    # SiLU on the EUP, kept in f32 (no bf16 round-trips in the elementwise chain).
    gate_act = gate * jax.nn.sigmoid(gate)                              # f32 (tm, ti)

    # Threshold in half precision to mirror the fp16 Linear output compared in PyTorch:
    # up_proj_states = where(|up| > up_threshold, up, 0)
    up = up32.astype(half)
    thr = thr_ref[...]                                                  # (1, ti), broadcasts
    up_gated = jnp.where(jnp.abs(up) > thr, up, jnp.zeros_like(up))

    # true_value slice, rounded once to half, then partial down-proj into the
    # resident f32 accumulator (down weight slice streamed per I-tile).
    h = (up_gated.astype(jnp.float32) * gate_act).astype(half)          # (tm, ti)
    acc_ref[...] += jnp.dot(h, wd_ref[...], preferred_element_type=jnp.float32)

    @pl.when(k == pl.num_programs(1) - 1)
    def _():
        o_ref[...] = acc_ref[...].astype(half)


def mlp_layer_forward(x, wg_t, wu_t, thr, wd_t, *, tm=256, ti=512):
    """x:(M,D); wg_t/wu_t:(D,I) = gate/up weight.T; thr:(1,I); wd_t:(I,N) = down weight.T.

    tm defaults: ~256 is at/near the HBM/MXU balance point on v5e and safe on
    v7x's 64 MiB VMEM; raise to 512 on v6e (128 MiB) for large-M prefill.
    """
    M, D = x.shape
    _, I = wg_t.shape
    _, N = wd_t.shape
    tm = min(tm, M)
    ti = min(ti, I)
    assert M % tm == 0, "row tile must divide M"
    assert I % ti == 0, "intermediate tile must divide I"
    grid = (M // tm, I // ti)

    elt = jnp.dtype(x.dtype).itemsize
    n_row_tiles = M // tm
    cost = pl.CostEstimate(
        flops=2 * M * D * I * 2 + 2 * M * I * N,
        transcendentals=M * I,
        # x read once per row-tile (resident across k), all three weights (+thr)
        # re-streamed once per row-tile, output written once.
        bytes_accessed=elt * (M * D + n_row_tiles * (2 * D * I + I + I * N) + M * N),
    )

    # Double-buffered streamed tiles + resident f32 accumulator, with headroom.
    tile_bytes = 2 * (tm * D + 2 * D * ti + ti + ti * N + tm * N) * elt + tm * N * 4
    vmem_limit = min(max(tile_bytes * 5 // 4 + (4 << 20), 32 << 20), 100 << 20)

    return pl.pallas_call(
        mlp_kernel,
        out_shape=jax.ShapeDtypeStruct((M, N), x.dtype),
        grid_spec=pltpu.PrefetchScalarGridSpec(
            num_scalar_prefetch=0,
            grid=grid,
            in_specs=[
                pl.BlockSpec((tm, D), lambda i, k: (i, 0)),   # x row-tile (resident over k)
                pl.BlockSpec((D, ti), lambda i, k: (0, k)),   # gate_proj.weight.T I-slice
                pl.BlockSpec((D, ti), lambda i, k: (0, k)),   # up_proj.weight.T I-slice
                pl.BlockSpec((1, ti), lambda i, k: (0, k)),   # up_threshold I-slice
                pl.BlockSpec((ti, N), lambda i, k: (k, 0)),   # down_proj.weight.T I-slice
            ],
            out_specs=pl.BlockSpec((tm, N), lambda i, k: (i, 0)),
            scratch_shapes=[pltpu.VMEM((tm, N), jnp.float32)],  # f32 output accumulator
        ),
        compiler_params=pltpu.CompilerParams(
            # k (intermediate reduction) must stay sequential/"arbitrary": the
            # accumulator persists across it. i row-tiles are independent.
            dimension_semantics=("parallel", "arbitrary"),
            vmem_limit_bytes=int(vmem_limit),
        ),
        cost_estimate=cost,
    )(x, wg_t, wu_t, thr, wd_t)


def reference(x, w_gate, w_up, w_down, thr):
    """Pure-JAX reference mirroring the PyTorch forward (same precision recipe)."""
    f32 = jnp.float32
    half = x.dtype
    gate = jnp.dot(x.astype(f32), w_gate.T.astype(f32))                  # f32
    up = jnp.dot(x.astype(f32), w_up.T.astype(f32)).astype(half)         # half
    gate_act = gate * jax.nn.sigmoid(gate)                               # SiLU, f32
    up_gated = jnp.where(jnp.abs(up) > thr, up, jnp.zeros_like(up))
    h = (up_gated.astype(f32) * gate_act).astype(half)
    return jnp.dot(h.astype(f32), w_down.T.astype(f32)).astype(half)


if __name__ == "__main__":
    # Small shapes consistent with the module (real: hidden 4096, intermediate 14336).
    M, hidden, inter = 256, 512, 1024
    dtype = jnp.bfloat16  # TPU-native half precision (stands in for the CUDA fp16 weights)

    key = jax.random.PRNGKey(0)
    kx, kg, ku, kd, kt = jax.random.split(key, 5)
    x = (jax.random.normal(kx, (M, hidden), dtype=jnp.float32) * 0.5).astype(dtype)
    # nn.Linear weight layout: (out_features, in_features)
    w_gate = (jax.random.normal(kg, (inter, hidden), dtype=jnp.float32) * 0.02).astype(dtype)
    w_up = (jax.random.normal(ku, (inter, hidden), dtype=jnp.float32) * 0.02).astype(dtype)
    w_down = (jax.random.normal(kd, (hidden, inter), dtype=jnp.float32) * 0.02).astype(dtype)
    up_threshold = jax.random.uniform(kt, (1, inter), jnp.float32, 0.05, 0.25).astype(dtype)

    # Pre-transpose the weights once, outside the kernel call path.
    wg_t = jnp.asarray(w_gate.T)   # (hidden, inter)
    wu_t = jnp.asarray(w_up.T)     # (hidden, inter)
    wd_t = jnp.asarray(w_down.T)   # (inter, hidden)

    out = mlp_layer_forward(x, wg_t, wu_t, up_threshold, wd_t)
    out = jax.block_until_ready(out)

    ref = reference(x, w_gate, w_up, w_down, up_threshold)
    assert out.shape == (M, hidden) and out.dtype == dtype
    assert jnp.allclose(out.astype(jnp.float32), ref.astype(jnp.float32),
                        atol=1e-2, rtol=1e-2)
    print("KERNEL_OK")
</pallas_src>

<mosaic_0001>
module attributes {stable_mosaic.version = 11 : i64} {
  func.func @mlp_kernel(%arg0: i32, %arg1: i32, %arg2: memref<256x512xbf16, #tpu.memory_space<vmem>>, %arg3: memref<512x512xbf16, #tpu.memory_space<vmem>>, %arg4: memref<512x512xbf16, #tpu.memory_space<vmem>>, %arg5: memref<1x512xbf16, #tpu.memory_space<vmem>>, %arg6: memref<512x512xbf16, #tpu.memory_space<vmem>>, %arg7: memref<256x512xbf16, #tpu.memory_space<vmem>>, %arg8: memref<256x512xf32, #tpu.memory_space<vmem>>) attributes {dimension_semantics = [#tpu.dimension_semantics<parallel>, #tpu.dimension_semantics<arbitrary>], iteration_bounds = array<i64: 1, 2>, scalar_prefetch = 0 : i64, scratch_operands = 1 : i64, tpu.core_type = #tpu.core_type<tc>, window_params = [{transform_indices = @transform_0, window_bounds = array<i64: 256, 512>}, {transform_indices = @transform_1, window_bounds = array<i64: 512, 512>}, {transform_indices = @transform_2, window_bounds = array<i64: 512, 512>}, {transform_indices = @transform_3, window_bounds = array<i64: 1, 512>}, {transform_indices = @transform_4, window_bounds = array<i64: 512, 512>}, {transform_indices = @transform_5, window_bounds = array<i64: 256, 512>}]} {
    %c0_i32 = arith.constant 0 : i32
    %0 = arith.cmpi eq, %arg1, %c0_i32 : i32
    %1 = arith.extui %0 : i1 to i32
    %c0_i32_0 = arith.constant 0 : i32
    %2 = arith.cmpi ne, %1, %c0_i32_0 : i32
    scf.if %2 {
      %cst_19 = arith.constant 0.000000e+00 : f32
      %32 = vector.broadcast %cst_19 : f32 to vector<256x512xf32>
      %c0_20 = arith.constant 0 : index
      %c0_21 = arith.constant 0 : index
      %33 = vector.load %arg8[%c0_20, %c0_21] : memref<256x512xf32, #tpu.memory_space<vmem>>, vector<256x512xf32>
      tpu.vector_store %arg8[%c0_20, %c0_21], %32 {strides = array<i32>} : memref<256x512xf32, #tpu.memory_space<vmem>>, vector<256x512xf32>,
    } else {
    }
    %c0 = arith.constant 0 : index
    %c0_1 = arith.constant 0 : index
    %3 = vector.load %arg2[%c0, %c0_1] : memref<256x512xbf16, #tpu.memory_space<vmem>>, vector<256x512xbf16>
    %c0_2 = arith.constant 0 : index
    %c0_3 = arith.constant 0 : index
    %4 = vector.load %arg3[%c0_2, %c0_3] : memref<512x512xbf16, #tpu.memory_space<vmem>>, vector<512x512xbf16>
    %cst = arith.constant dense<0.000000e+00> : vector<256x512xf32>
    %5 = tpu.matmul %3, %4, %cst {dimension_numbers = #tpu.dot_dimension_numbers<[1], [0], [0], [1], [0, 0, 1, 1], [], []>} : vector<256x512xbf16>, vector<512x512xbf16>, vector<256x512xf32> -> vector<256x512xf32>
    %c0_4 = arith.constant 0 : index
    %c0_5 = arith.constant 0 : index
    %6 = vector.load %arg4[%c0_4, %c0_5] : memref<512x512xbf16, #tpu.memory_space<vmem>>, vector<512x512xbf16>
    %cst_6 = arith.constant dense<0.000000e+00> : vector<256x512xf32>
    %7 = tpu.matmul %3, %6, %cst_6 {dimension_numbers = #tpu.dot_dimension_numbers<[1], [0], [0], [1], [0, 0, 1, 1], [], []>} : vector<256x512xbf16>, vector<512x512xbf16>, vector<256x512xf32> -> vector<256x512xf32>
    %8 = arith.negf %5 : vector<256x512xf32>
    %9 = math.exp %8 : vector<256x512xf32>
    %cst_7 = arith.constant 1.000000e+00 : f32
    %10 = vector.broadcast %cst_7 : f32 to vector<256x512xf32>
    %11 = arith.addf %10, %9 : vector<256x512xf32>
    %12 = arith.divf %10, %11 : vector<256x512xf32>
    %13 = arith.mulf %5, %12 : vector<256x512xf32>
    %14 = arith.truncf %7 : vector<256x512xf32> to vector<256x512xbf16>
    %c0_8 = arith.constant 0 : index
    %c0_9 = arith.constant 0 : index
    %15 = vector.load %arg5[%c0_8, %c0_9] : memref<1x512xbf16, #tpu.memory_space<vmem>>, vector<1x512xbf16>
    %16 = math.absf %14 : vector<256x512xbf16>
    %17 = vector.broadcast %15 : vector<1x512xbf16> to vector<256x512xbf16>
    %18 = arith.cmpf ogt, %16, %17 : vector<256x512xbf16>
    %cst_10 = arith.constant 0.000000e+00 : bf16
    %19 = vector.broadcast %cst_10 : bf16 to vector<256x512xbf16>
    %20 = arith.select %18, %14, %19 : vector<256x512xi1>, vector<256x512xbf16>
    %21 = arith.extf %20 : vector<256x512xbf16> to vector<256x512xf32>
    %22 = arith.mulf %21, %13 : vector<256x512xf32>
    %23 = arith.truncf %22 : vector<256x512xf32> to vector<256x512xbf16>
    %c0_11 = arith.constant 0 : index
    %c0_12 = arith.constant 0 : index
    %24 = vector.load %arg8[%c0_11, %c0_12] : memref<256x512xf32, #tpu.memory_space<vmem>>, vector<256x512xf32>
    %c0_13 = arith.constant 0 : index
    %c0_14 = arith.constant 0 : index
    %25 = vector.load %arg6[%c0_13, %c0_14] : memref<512x512xbf16, #tpu.memory_space<vmem>>, vector<512x512xbf16>
    %cst_15 = arith.constant dense<0.000000e+00> : vector<256x512xf32>
    %26 = tpu.matmul %23, %25, %cst_15 {dimension_numbers = #tpu.dot_dimension_numbers<[1], [0], [0], [1], [0, 0, 1, 1], [], []>} : vector<256x512xbf16>, vector<512x512xbf16>, vector<256x512xf32> -> vector<256x512xf32>
    %27 = arith.addf %24, %26 : vector<256x512xf32>
    %c0_16 = arith.constant 0 : index
    %c0_17 = arith.constant 0 : index
    %28 = vector.load %arg8[%c0_16, %c0_17] : memref<256x512xf32, #tpu.memory_space<vmem>>, vector<256x512xf32>
    tpu.vector_store %arg8[%c0_16, %c0_17], %27 {strides = array<i32>} : memref<256x512xf32, #tpu.memory_space<vmem>>, vector<256x512xf32>,
    %c1_i32 = arith.constant 1 : i32
    %29 = arith.cmpi eq, %arg1, %c1_i32 : i32
    %30 = arith.extui %29 : i1 to i32
    %c0_i32_18 = arith.constant 0 : i32
    %31 = arith.cmpi ne, %30, %c0_i32_18 : i32
    scf.if %31 {
      %c0_19 = arith.constant 0 : index
      %c0_20 = arith.constant 0 : index
      %32 = vector.load %arg8[%c0_19, %c0_20] : memref<256x512xf32, #tpu.memory_space<vmem>>, vector<256x512xf32>
      %33 = arith.truncf %32 : vector<256x512xf32> to vector<256x512xbf16>
      %c0_21 = arith.constant 0 : index
      %c0_22 = arith.constant 0 : index
      %34 = vector.load %arg7[%c0_21, %c0_22] : memref<256x512xbf16, #tpu.memory_space<vmem>>, vector<256x512xbf16>
      tpu.vector_store %arg7[%c0_21, %c0_22], %33 {strides = array<i32>} : memref<256x512xbf16, #tpu.memory_space<vmem>>, vector<256x512xbf16>,
    } else {
    }
    return
  }
  func.func @transform_0(%arg0: i32, %arg1: i32) -> (i32, i32) {
    %c0_i32 = arith.constant 0 : i32
    %c0_i32_0 = arith.constant 0 : i32
    return %arg0, %c0_i32 : i32, i32
  }
  func.func @transform_1(%arg0: i32, %arg1: i32) -> (i32, i32) {
    %c0_i32 = arith.constant 0 : i32
    %c0_i32_0 = arith.constant 0 : i32
    return %c0_i32, %arg1 : i32, i32
  }
  func.func @transform_2(%arg0: i32, %arg1: i32) -> (i32, i32) {
    %c0_i32 = arith.constant 0 : i32
    %c0_i32_0 = arith.constant 0 : i32
    return %c0_i32, %arg1 : i32, i32
  }
  func.func @transform_3(%arg0: i32, %arg1: i32) -> (i32, i32) {
    %c0_i32 = arith.constant 0 : i32
    %c0_i32_0 = arith.constant 0 : i32
    return %c0_i32, %arg1 : i32, i32
  }
  func.func @transform_4(%arg0: i32, %arg1: i32) -> (i32, i32) {
    %c0_i32 = arith.constant 0 : i32
    %c0_i32_0 = arith.constant 0 : i32
    return %arg1, %c0_i32 : i32, i32
  }
  func.func @transform_5(%arg0: i32, %arg1: i32) -> (i32, i32) {
    %c0_i32 = arith.constant 0 : i32
    %c0_i32_0 = arith.constant 0 : i32
    return %arg0, %c0_i32 : i32, i32
  }
}

</mosaic_0001>

<llo_original>
// kernel: tpu_custom_call.1
$region0: #{tpu_custom_call.1}
  #allocation0 [shape = 'u32[]', space=smem, size = 0x4, offset = 0x4, fixed_abs, tag = 'smem constant byte address 0x4 - core index']
  #allocation1 [shape = 'u32[144,128]{1,0:T(1,128)}', space=vmem, size = 0x12000, scoped, tag = 'internal scratch']
  #allocation2 [shape = 'f32[256,512]{1,0:T(8,128)}', space=vmem, size = 0x80000, scoped, tag = 'scratch operand']
  %s0 = inlined_call_operand.hbm [shape: bf16[256,512], index: 0, kind: input, shape index: {}]
  %s1 = inlined_call_operand.hbm [shape: bf16[512,1024], index: 1, kind: input, shape index: {}]
  %s2 = inlined_call_operand.hbm [shape: bf16[512,1024], index: 2, kind: input, shape index: {}]
  %s3 = inlined_call_operand.vmem [shape: bf16[1,1024], index: 3, kind: input, shape index: {}]
  %s4 = inlined_call_operand.hbm [shape: bf16[1024,512], index: 4, kind: input, shape index: {}]
  %s5 = inlined_call_operand.hbm [shape: bf16[256,512], index: 5, kind: output, shape index: {}]
  %s6 = sld [smem:[#allocation0]]
  $region77: #{tpu_custom_call.1} parent=0
    _
  %s8 = ssub.s32 1, %s6
  %s9 = scalar_select 0, %s8, %s6
  $region1: #{tpu_custom_call.1} parent=0
    #allocation3 [shape = 'u8[262144]{0}', space=vmem, size = 0x40000, scoped, tag = 'input window, operand 0, single buffered']
    #allocation4 [shape = 's32[2]{0}', space=sflag, size = 0x8, scoped, tag = 'scoped memory for tpu_custom_call.1']
    #allocation5 [shape = 's32[2]{0}', space=sflag, size = 0x8, scoped, tag = 'scoped memory for tpu_custom_call.1']
    #allocation6 [shape = 'u8[1048576]{0}', space=vmem, size = 0x100000, scoped, tag = 'input window, operand 1']
    #allocation7 [shape = 's32[2]{0}', space=sflag, size = 0x8, scoped, tag = 'scoped memory for tpu_custom_call.1']
    #allocation8 [shape = 'u8[1048576]{0}', space=vmem, size = 0x100000, scoped, tag = 'input window, operand 2']
    #allocation9 [shape = 'u8[1048576]{0}', space=vmem, size = 0x100000, scoped, tag = 'input window, operand 4']
    #allocation10 [shape = 's32[2]{0}', space=sflag, size = 0x8, scoped, tag = 'scoped memory for tpu_custom_call.1']
    #allocation11 [shape = 'u8[262144]{0}', space=vmem, size = 0x40000, scoped, tag = 'output window, operand 0, single buffered']
    %10 = vsyncpa [#allocation4], 0
    %11 = vsyncpa [#allocation7], 0
    %s12 = scalar_lea.sflag [#allocation7], 1
    %13 = vsyncpa %s12, 0
    %14 = vsyncpa [#allocation10], 0
    %s15 = scalar_lea.sflag [#allocation10], 1
    %16 = vsyncpa %s15, 0
    %17 = vsyncpa [#allocation5], 0
    loop: start=0, step=1, limit=4
    $region2: #{tpu_custom_call.1} parent=1 // loop_pre_header
      _
    $region3: #{tpu_custom_call.1} parent=1 // loop_header
      %s19 = sphi 0, %s23
      %p20 = scmp.ge.s32.totalorder %s19, 4
      %s26 = sphi 0, %s38
      %s27 = sphi 0, %s34
      %s28 = sphi 0, %s26
      %s29 = sphi 0, %s27
      %s30 = sphi 0, %s28
      %s31 = sphi 0, %s29
      %s41 = sphi 0, %s43
      %s44 = sphi 0, %s41
      %s45 = sphi 0, %s44
      %s61 = sphi 0, %s45
      %s67 = sphi 0, %s69
      %s70 = sphi 0, %s67
      %s71 = sphi 0, %s70
      %s87 = sphi 0, %s71
      %s93 = sphi 0, %s95
      %s96 = sphi 0, %s93
      %s97 = sphi 0, %s96
      %s113 = sphi 0, %s97
      %s119 = sphi 0, %s121
      %s122 = sphi 0, %s119
      %s123 = sphi 0, %s122
      %s139 = sphi 0, %s123
      %s145 = sphi 0, %s147
      %s148 = sphi 0, %s145
      %s149 = sphi 0, %s148
      %s165 = sphi 0, %s149
      %s171 = sphi 0, %s173
      %s174 = sphi 0, %s171
      %s175 = sphi 0, %s174
      %s191 = sphi 0, %s175
    $region4: #{tpu_custom_call.1} parent=1 // loop_header_branch
      %22 = sbr.rel (%p20) target = $region8
    $region5: #{tpu_custom_call.1} parent=1 // loop_body
      %s24 = ssub.s32 %s19, 1
      %s25 = ssub.s32 %s19, 2
      %s32 = sadd.s32 1, %s27
      %p33 = scmp.ge.s32.totalorder %s32, 2
      %s34 = scalar_select %p33, 0, %s32
      %s35 = sadd.s32 1, %s26
      %s36 = scalar_select %p33, %s35, %s26
      %p37 = scmp.ge.s32.totalorder %s36, 1
      %s38 = scalar_select %p37, 0, %s36
      %s39 = ssub.s32 %s26, %s38
      %p40 = scmp.eq.s32.totalorder %s39, 0
      %s42 = sadd.s32 %s41, 1
      %s43 = scalar_select %p40, %s41, %s42
      %p46 = pneg %p40
      %p47 = scmp.eq.s32.totalorder %s19, 1
      %p48 = por %p46, %p47
      %p49 = scmp.ne.s32.totalorder %s41, %s44
      %p50 = scmp.eq.s32.totalorder %s19, 0
      %p51 = por %p49, %p50
      %p52 = scmp.ne.s32.totalorder %s41, %s44
      %p53 = scmp.eq.s32.totalorder %s24, 1
      %p54 = por %p52, %p53
      %p55 = scmp.ne.s32.totalorder %s44, %s45
      %p56 = scmp.eq.s32.totalorder %s24, 0
      %p57 = por %p55, %p56
      %p58 = scmp.ne.s32.totalorder %s44, %s45
      %p59 = scmp.eq.s32.totalorder %s25, 1
      %p60 = por %p58, %p59
      %p62 = scmp.ne.s32.totalorder %s45, %s61
      %p63 = scmp.eq.s32.totalorder %s25, 0
      %p64 = por %p62, %p63
      %s65 = ssub.s32 %s27, %s34
      %p66 = scmp.eq.s32.totalorder %s65, 0
      %s68 = sadd.s32 %s67, 1
      %s69 = scalar_select %p66, %s67, %s68
      %p72 = pneg %p66
      %p73 = scmp.eq.s32.totalorder %s19, 1
      %p74 = por %p72, %p73
      %p75 = scmp.ne.s32.totalorder %s67, %s70
      %p76 = scmp.eq.s32.totalorder %s19, 0
      %p77 = por %p75, %p76
      %p78 = scmp.ne.s32.totalorder %s67, %s70
      %p79 = scmp.eq.s32.totalorder %s24, 1
      %p80 = por %p78, %p79
      %p81 = scmp.ne.s32.totalorder %s70, %s71
      %p82 = scmp.eq.s32.totalorder %s24, 0
      %p83 = por %p81, %p82
      %p84 = scmp.ne.s32.totalorder %s70, %s71
      %p85 = scmp.eq.s32.totalorder %s25, 1
      %p86 = por %p84, %p85
      %p88 = scmp.ne.s32.totalorder %s71, %s87
      %p89 = scmp.eq.s32.totalorder %s25, 0
      %p90 = por %p88, %p89
      %s91 = ssub.s32 %s27, %s34
      %p92 = scmp.eq.s32.totalorder %s91, 0
      %s94 = sadd.s32 %s93, 1
      %s95 = scalar_select %p92, %s93, %s94
      %p98 = pneg %p92
      %p99 = scmp.eq.s32.totalorder %s19, 1
      %p100 = por %p98, %p99
      %p101 = scmp.ne.s32.totalorder %s93, %s96
      %p102 = scmp.eq.s32.totalorder %s19, 0
      %p103 = por %p101, %p102
      %p104 = scmp.ne.s32.totalorder %s93, %s96
      %p105 = scmp.eq.s32.totalorder %s24, 1
      %p106 = por %p104, %p105
      %p107 = scmp.ne.s32.totalorder %s96, %s97
      %p108 = scmp.eq.s32.totalorder %s24, 0
      %p109 = por %p107, %p108
      %p110 = scmp.ne.s32.totalorder %s96, %s97
      %p111 = scmp.eq.s32.totalorder %s25, 1
      %p112 = por %p110, %p111
      %p114 = scmp.ne.s32.totalorder %s97, %s113
      %p115 = scmp.eq.s32.totalorder %s25, 0
      %p116 = por %p114, %p115
      %s117 = ssub.s32 %s27, %s34
      %p118 = scmp.eq.s32.totalorder %s117, 0
      %s120 = sadd.s32 %s119, 1
      %s121 = scalar_select %p118, %s119, %s120
      %p124 = pneg %p118
      %p125 = scmp.eq.s32.totalorder %s19, 1
      %p126 = por %p124, %p125
      %p127 = scmp.ne.s32.totalorder %s119, %s122
      %p128 = scmp.eq.s32.totalorder %s19, 0
      %p129 = por %p127, %p128
      %p130 = scmp.ne.s32.totalorder %s119, %s122
      %p131 = scmp.eq.s32.totalorder %s24, 1
      %p132 = por %p130, %p131
      %p133 = scmp.ne.s32.totalorder %s122, %s123
      %p134 = scmp.eq.s32.totalorder %s24, 0
      %p135 = por %p133, %p134
      %p136 = scmp.ne.s32.totalorder %s122, %s123
      %p137 = scmp.eq.s32.totalorder %s25, 1
      %p138 = por %p136, %p137
      %p140 = scmp.ne.s32.totalorder %s123, %s139
      %p141 = scmp.eq.s32.totalorder %s25, 0
      %p142 = por %p140, %p141
      %s143 = ssub.s32 %s27, %s34
      %p144 = scmp.eq.s32.totalorder %s143, 0
      %s146 = sadd.s32 %s145, 1
      %s147 = scalar_select %p144, %s145, %s146
      %p150 = pneg %p144
      %p151 = scmp.eq.s32.totalorder %s19, 1
      %p152 = por %p150, %p151
      %p153 = scmp.ne.s32.totalorder %s145, %s148
      %p154 = scmp.eq.s32.totalorder %s19, 0
      %p155 = por %p153, %p154
      %p156 = scmp.ne.s32.totalorder %s145, %s148
      %p157 = scmp.eq.s32.totalorder %s24, 1
      %p158 = por %p156, %p157
      %p159 = scmp.ne.s32.totalorder %s148, %s149
      %p160 = scmp.eq.s32.totalorder %s24, 0
      %p161 = por %p159, %p160
      %p162 = scmp.ne.s32.totalorder %s148, %s149
      %p163 = scmp.eq.s32.totalorder %s25, 1
      %p164 = por %p162, %p163
      %p166 = scmp.ne.s32.totalorder %s149, %s165
      %p167 = scmp.eq.s32.totalorder %s25, 0
      %p168 = por %p166, %p167
      %s169 = ssub.s32 %s26, %s38
      %p170 = scmp.eq.s32.totalorder %s169, 0
      %s172 = sadd.s32 %s171, 1
      %s173 = scalar_select %p170, %s171, %s172
      %p176 = pneg %p170
      %p177 = scmp.eq.s32.totalorder %s19, 1
      %p178 = por %p176, %p177
      %p179 = scmp.ne.s32.totalorder %s171, %s174
      %p180 = scmp.eq.s32.totalorder %s19, 0
      %p181 = por %p179, %p180
      %p182 = scmp.ne.s32.totalorder %s171, %s174
      %p183 = scmp.eq.s32.totalorder %s24, 1
      %p184 = por %p182, %p183
      %p185 = scmp.ne.s32.totalorder %s174, %s175
      %p186 = scmp.eq.s32.totalorder %s24, 0
      %p187 = por %p185, %p186
      %p188 = scmp.ne.s32.totalorder %s174, %s175
      %p189 = scmp.eq.s32.totalorder %s25, 1
      %p190 = por %p188, %p189
      %p192 = scmp.ne.s32.totalorder %s175, %s191
      %p193 = scmp.eq.s32.totalorder %s25, 0
      %p194 = por %p192, %p193
      %p195 = scmp.le.s32.totalorder 1, %s19
      %p196 = scmp.lt.s32.totalorder %s19, 3
      %p197 = pnand %p195, %p196
      %p198 = pneg %p197
      // Predicated region
      $region9: #{tpu_custom_call.1} parent=5 // pred_check
        _
      $region10: #{tpu_custom_call.1} parent=5 // pred_check_branch
        %200 = sbr.rel (%p197) target = $region12
      $region11: #{tpu_custom_call.1} parent=5 // pred_region
        %s201 = ssub.s32 %s19, 1
        // Predicated region
        $region13: #{tpu_custom_call.1} parent=11 // pred_check
          %p202 = pneg %p57
        $region14: #{tpu_custom_call.1} parent=11 // pred_check_branch
          %204 = sbr.rel (%p202) target = $region16
        $region15: #{tpu_custom_call.1} parent=11 // pred_region
          %s205 = smul.u32 32, %s28
          %s207 = ssub.s32 8192, 8192
          %208 = vsyncadd [#allocation4], %s207
          %s209 = smul.addr %s205, 4
          %s210 = smul.addr %s209, 64
          %s211 = scalar_lea.hbm %s0, %s210
          %s212 = sshll.u32 [#allocation3], 4
          %s213 = int_to_ptr.vmem [resolvable:$true] %s212
          %218 = dma.hbm_to_vmem [thread:$0]  %s211, 8192, %s213, [#allocation4], 256, 256, 16
        $region16: #{tpu_custom_call.1} parent=11 // pred_fallthru
          _
      $region12: #{tpu_custom_call.1} parent=5 // pred_fallthru
        _
      %p219 = scmp.lt.s32.totalorder %s19, 2
      // Predicated region
      $region17: #{tpu_custom_call.1} parent=5 // pred_check
        %p220 = pneg %p219
      $region18: #{tpu_custom_call.1} parent=5 // pred_check_branch
        %222 = sbr.rel (%p220) target = $region20
      $region19: #{tpu_custom_call.1} parent=5 // pred_region
        // Predicated region
        $region21: #{tpu_custom_call.1} parent=19 // pred_check
          %p223 = pneg %p77
        $region22: #{tpu_custom_call.1} parent=19 // pred_check_branch
          %225 = sbr.rel (%p223) target = $region24
        $region23: #{tpu_custom_call.1} parent=19 // pred_region
          %s226 = sand.u32 %s19, 1
          %s227 = scalar_lea.sflag [#allocation7], %s226
          %s228 = sand.u32 %s67, 1
          %s229 = smul.addr %s228, 1024
          %s230 = scalar_lea.vmem [#allocation6], %s229
          %s231 = smul.u32 4, %s27
          %s233 = ssub.s32 16384, 16384
          %234 = vsyncadd %s227, %s233
          %s235 = smul.addr %s231, 64
          %s236 = scalar_lea.hbm %s1, %s235
          %s237 = sshll.u32 %s230, 4
          %s238 = int_to_ptr.vmem [resolvable:$true] %s237
          %243 = dma.hbm_to_vmem [thread:$0]  %s236, 16384, %s238, %s227, 512, 256, 16
        $region24: #{tpu_custom_call.1} parent=19 // pred_fallthru
          _
        // Predicated region
        $region25: #{tpu_custom_call.1} parent=19 // pred_check
          %p244 = pneg %p103
        $region26: #{tpu_custom_call.1} parent=19 // pred_check_branch
          %246 = sbr.rel (%p244) target = $region28
        $region27: #{tpu_custom_call.1} parent=19 // pred_region
          %s247 = sand.u32 %s19, 1
          %s248 = scalar_lea.sflag [#allocation7], %s247
          %s249 = sand.u32 %s93, 1
          %s250 = smul.addr %s249, 1024
          %s251 = scalar_lea.vmem [#allocation8], %s250
          %s252 = smul.u32 4, %s27
          %s254 = ssub.s32 16384, 16384
          %255 = vsyncadd %s248, %s254
          %s256 = smul.addr %s252, 64
          %s257 = scalar_lea.hbm %s2, %s256
          %s258 = sshll.u32 %s251, 4
          %s259 = int_to_ptr.vmem [resolvable:$true] %s258
          %264 = dma.hbm_to_vmem [thread:$0]  %s257, 16384, %s259, %s248, 512, 256, 16
        $region28: #{tpu_custom_call.1} parent=19 // pred_fallthru
          _
        // Predicated region
        $region29: #{tpu_custom_call.1} parent=19 // pred_check
          %p265 = pneg %p129
        $region30: #{tpu_custom_call.1} parent=19 // pred_check_branch
          %267 = sbr.rel (%p265) target = $region32
        $region31: #{tpu_custom_call.1} parent=19 // pred_region
          %s268 = smul.u32 4, %s27
          %p269 = scmp.lt.s32.totalorder %s268, 7
          %s270 = scalar_select %p269, %s268, 7
          %s271 = scalar_lea.vmem %s3, %s270
          %s272 = smul.u32 4, %s27
        $region32: #{tpu_custom_call.1} parent=19 // pred_fallthru
          _
        // Predicated region
        $region33: #{tpu_custom_call.1} parent=19 // pred_check
          %p273 = pneg %p155
        $region34: #{tpu_custom_call.1} parent=19 // pred_check_branch
          %275 = sbr.rel (%p273) target = $region36
        $region35: #{tpu_custom_call.1} parent=19 // pred_region
          %s276 = sand.u32 %s145, 1
          %s277 = scalar_lea.sflag [#allocation10], %s276
          %s278 = sand.u32 %s145, 1
          %s279 = smul.addr %s278, 1024
          %s280 = scalar_lea.vmem [#allocation9], %s279
          %s281 = smul.u32 64, %s27
          %s283 = ssub.s32 16384, 16384
          %284 = vsyncadd %s277, %s283
          %s285 = smul.addr %s281, 4
          %s286 = smul.addr %s285, 64
          %s287 = scalar_lea.hbm %s4, %s286
          %s288 = sshll.u32 %s280, 4
          %s289 = int_to_ptr.vmem [resolvable:$true] %s288
          %294 = dma.hbm_to_vmem [thread:$0]  %s287, 16384, %s289, %s277, 256, 256, 16
        $region36: #{tpu_custom_call.1} parent=19 // pred_fallthru
          _
      $region20: #{tpu_custom_call.1} parent=5 // pred_fallthru
        _
      %p295 = scmp.le.s32.totalorder 1, %s19
      %p296 = scmp.lt.s32.totalorder %s19, 3
      %p297 = pnand %p295, %p296
      %p298 = pneg %p297
      // Predicated region
      $region37: #{tpu_custom_call.1} parent=5 // pred_check
        _
      $region38: #{tpu_custom_call.1} parent=5 // pred_check_branch
        %300 = sbr.rel (%p297) target = $region40
      $region39: #{tpu_custom_call.1} parent=5 // pred_region
        %s301 = ssub.s32 %s19, 1
        // Predicated region
        $region41: #{tpu_custom_call.1} parent=39 // pred_check
          %p302 = pneg %p57
        $region42: #{tpu_custom_call.1} parent=39 // pred_check_branch
          %304 = sbr.rel (%p302) target = $region44
        $region43: #{tpu_custom_call.1} parent=39 // pred_region
          %305 = dma.done [#allocation4], 8192
        $region44: #{tpu_custom_call.1} parent=39 // pred_fallthru
          _
        %s306 = sand.u32 %s24, 1
        %s307 = scalar_lea.sflag [#allocation7], %s306
        %s308 = sand.u32 %s70, 1
        %s309 = smul.addr %s308, 1024
        %s310 = scalar_lea.vmem [#allocation6], %s309
        // Predicated region
        $region45: #{tpu_custom_call.1} parent=39 // pred_check
          %p311 = pneg %p83
        $region46: #{tpu_custom_call.1} parent=39 // pred_check_branch
          %313 = sbr.rel (%p311) target = $region48
        $region47: #{tpu_custom_call.1} parent=39 // pred_region
          %314 = dma.done %s307, 16384
        $region48: #{tpu_custom_call.1} parent=39 // pred_fallthru
          _
        %s315 = sand.u32 %s24, 1
        %s316 = scalar_lea.sflag [#allocation7], %s315
        %s317 = sand.u32 %s96, 1
        %s318 = smul.addr %s317, 1024
        %s319 = scalar_lea.vmem [#allocation8], %s318
        // Predicated region
        $region49: #{tpu_custom_call.1} parent=39 // pred_check
          %p320 = pneg %p109
        $region50: #{tpu_custom_call.1} parent=39 // pred_check_branch
          %322 = sbr.rel (%p320) target = $region52
        $region51: #{tpu_custom_call.1} parent=39 // pred_region
          %323 = dma.done %s316, 16384
        $region52: #{tpu_custom_call.1} parent=39 // pred_fallthru
          _
        %s324 = sand.u32 %s148, 1
        %s325 = scalar_lea.sflag [#allocation10], %s324
        %s326 = sand.u32 %s148, 1
        %s327 = smul.addr %s326, 1024
        %s328 = scalar_lea.vmem [#allocation9], %s327
        // Predicated region
        $region53: #{tpu_custom_call.1} parent=39 // pred_check
          %p329 = pneg %p161
        $region54: #{tpu_custom_call.1} parent=39 // pred_check_branch
          %331 = sbr.rel (%p329) target = $region56
        $region55: #{tpu_custom_call.1} parent=39 // pred_region
          %332 = dma.done %s325, 16384
        $region56: #{tpu_custom_call.1} parent=39 // pred_fallthru
          _
        %p333 = pneg %p57
        %p334 = pneg %p54
        %s335 = sand.u32 %s24, 1
        %s336 = scalar_lea.sflag [#allocation7], %s335
        %s337 = sand.u32 %s70, 1
        %s338 = smul.addr %s337, 1024
        %s339 = scalar_lea.vmem [#allocation6], %s338
        %p340 = pneg %p83
        %p341 = pneg %p80
        %s342 = sand.u32 %s24, 1
        %s343 = scalar_lea.sflag [#allocation7], %s342
        %s344 = sand.u32 %s96, 1
        %s345 = smul.addr %s344, 1024
        %s346 = scalar_lea.vmem [#allocation8], %s345
        %p347 = pneg %p109
        %p348 = pneg %p106
        %s349 = smul.u32 4, %s29
        %p350 = scmp.lt.s32.totalorder %s349, 7
        %s351 = scalar_select %p350, %s349, 7
        %s352 = scalar_lea.vmem %s3, %s351
        %p353 = pneg %p135
        %p354 = pneg %p132
        %s355 = sand.u32 %s148, 1
        %s356 = scalar_lea.sflag [#allocation10], %s355
        %s357 = sand.u32 %s148, 1
        %s358 = smul.addr %s357, 1024
        %s359 = scalar_lea.vmem [#allocation9], %s358
        %p360 = pneg %p161
        %p361 = pneg %p158
        %p362 = pneg %p187
        %p363 = pneg %p184
        %s364 = smul.u32 32, %s28
        %s365 = smul.u32 4, %s29
        %s366 = smul.u32 4, %s29
        %s367 = smul.u32 4, %s29
        %p368 = scmp.lt.s32.totalorder %s367, 7
        %s369 = scalar_select %p368, %s367, 7
        %s370 = scalar_lea.vmem %s3, %s369
        %s371 = smul.u32 4, %s29
        %s372 = smul.u32 64, %s29
        %s373 = smul.u32 32, %s28
        %p375 = scmp.eq.s32.totalorder %s29, 0
        // Predicated region
        $region57: #{tpu_custom_call.1} parent=39 // pred_check
          %p376 = pneg %p375
        $region58: #{tpu_custom_call.1} parent=39 // pred_check_branch
          %378 = sbr.rel (%p376) target = $region60
        $region59: #{tpu_custom_call.1} parent=39 // pred_region
          %379 = vst [vmem:[#allocation2] sm:$0xff] 0.0
          %380 = vst [vmem:[#allocation2 + $0x8] sm:$0xff] 0.0
          %381 = vst [vmem:[#allocation2 + $0x10] sm:$0xff] 0.0
          %382 = vst [vmem:[#allocation2 + $0x18] sm:$0xff] 0.0
          %383 = vst [vmem:[#allocation2 + $0x20] sm:$0xff] 0.0
          %384 = vst [vmem:[#allocation2 + $0x28] sm:$0xff] 0.0
          %385 = vst [vmem:[#allocation2 + $0x30] sm:$0xff] 0.0
          %386 = vst [vmem:[#allocation2 + $0x38] sm:$0xff] 0.0
          %387 = vst [vmem:[#allocation2 + $0x40] sm:$0xff] 0.0
          %388 = vst [vmem:[#allocation2 + $0x48] sm:$0xff] 0.0
          %389 = vst [vmem:[#allocation2 + $0x50] sm:$0xff] 0.0
          %390 = vst [vmem:[#allocation2 + $0x58] sm:$0xff] 0.0
          %391 = vst [vmem:[#allocation2 + $0x60] sm:$0xff] 0.0
          %392 = vst [vmem:[#allocation2 + $0x68] sm:$0xff] 0.0
          %393 = vst [vmem:[#allocation2 + $0x70] sm:$0xff] 0.0
          %394 = vst [vmem:[#allocation2 + $0x78] sm:$0xff] 0.0
          %395 = vst [vmem:[#allocation2 + $0x80] sm:$0xff] 0.0
          %396 = vst [vmem:[#allocation2 + $0x88] sm:$0xff] 0.0
          %397 = vst [vmem:[#allocation2 + $0x90] sm:$0xff] 0.0
          %398 = vst [vmem:[#allocation2 + $0x98] sm:$0xff] 0.0
          %399 = vst [vmem:[#allocation2 + $0xa0] sm:$0xff] 0.0
          %400 = vst [vmem:[#allocation2 + $0xa8] sm:$0xff] 0.0
          %401 = vst [vmem:[#allocation2 + $0xb0] sm:$0xff] 0.0
          %402 = vst [vmem:[#allocation2 + $0xb8] sm:$0xff] 0.0
          %403 = vst [vmem:[#allocation2 + $0xc0] sm:$0xff] 0.0
          %404 = vst [vmem:[#allocation2 + $0xc8] sm:$0xff] 0.0
          %405 = vst [vmem:[#allocation2 + $0xd0] sm:$0xff] 0.0
          %406 = vst [vmem:[#allocation2 + $0xd8] sm:$0xff] 0.0
          %407 = vst [vmem:[#allocation2 + $0xe0] sm:$0xff] 0.0
          %408 = vst [vmem:[#allocation2 + $0xe8] sm:$0xff] 0.0
          %409 = vst [vmem:[#allocation2 + $0xf0] sm:$0xff] 0.0
          %410 = vst [vmem:[#allocation2 + $0xf8] sm:$0xff] 0.0
          %411 = vst [vmem:[#allocation2 + $0x100] sm:$0xff] 0.0
          %412 = vst [vmem:[#allocation2 + $0x108] sm:$0xff] 0.0
          %413 = vst [vmem:[#allocation2 + $0x110] sm:$0xff] 0.0
          %414 = vst [vmem:[#allocation2 + $0x118] sm:$0xff] 0.0
          %415 = vst [vmem:[#allocation2 + $0x120] sm:$0xff] 0.0
          %416 = vst [vmem:[#allocation2 + $0x128] sm:$0xff] 0.0
          %417 = vst [vmem:[#allocation2 + $0x130] sm:$0xff] 0.0
          %418 = vst [vmem:[#allocation2 + $0x138] sm:$0xff] 0.0
          %419 = vst [vmem:[#allocation2 + $0x140] sm:$0xff] 0.0
          %420 = vst [vmem:[#allocation2 + $0x148] sm:$0xff] 0.0
          %421 = vst [vmem:[#allocation2 + $0x150] sm:$0xff] 0.0
          %422 = vst [vmem:[#allocation2 + $0x158] sm:$0xff] 0.0
          %423 = vst [vmem:[#allocation2 + $0x160] sm:$0xff] 0.0
          %424 = vst [vmem:[#allocation2 + $0x168] sm:$0xff] 0.0
          %425 = vst [vmem:[#allocation2 + $0x170] sm:$0xff] 0.0
          %426 = vst [vmem:[#allocation2 + $0x178] sm:$0xff] 0.0
          %427 = vst [vmem:[#allocation2 + $0x180] sm:$0xff] 0.0
          %428 = vst [vmem:[#allocation2 + $0x188] sm:$0xff] 0.0
          %429 = vst [vmem:[#allocation2 + $0x190] sm:$0xff] 0.0
          %430 = vst [vmem:[#allocation2 + $0x198] sm:$0xff] 0.0
          %431 = vst [vmem:[#allocation2 + $0x1a0] sm:$0xff] 0.0
          %432 = vst [vmem:[#allocation2 + $0x1a8] sm:$0xff] 0.0
          %433 = vst [vmem:[#allocation2 + $0x1b0] sm:$0xff] 0.0
          %434 = vst [vmem:[#allocation2 + $0x1b8] sm:$0xff] 0.0
          %435 = vst [vmem:[#allocation2 + $0x1c0] sm:$0xff] 0.0
          %436 = vst [vmem:[#allocation2 + $0x1c8] sm:$0xff] 0.0
          %437 = vst [vmem:[#allocation2 + $0x1d0] sm:$0xff] 0.0
          %438 = vst [vmem:[#allocation2 + $0x1d8] sm:$0xff] 0.0
          %439 = vst [vmem:[#allocation2 + $0x1e0] sm:$0xff] 0.0
          %440 = vst [vmem:[#allocation2 + $0x1e8] sm:$0xff] 0.0
          %441 = vst [vmem:[#allocation2 + $0x1f0] sm:$0xff] 0.0
          %442 = vst [vmem:[#allocation2 + $0x1f8] sm:$0xff] 0.0
          %443 = vst [vmem:[#allocation2 + $0x200] sm:$0xff] 0.0
          %444 = vst [vmem:[#allocation2 + $0x208] sm:$0xff] 0.0
          %445 = vst [vmem:[#allocation2 + $0x210] sm:$0xff] 0.0
          %446 = vst [vmem:[#allocation2 + $0x218] sm:$0xff] 0.0
          %447 = vst [vmem:[#allocation2 + $0x220] sm:$0xff] 0.0
          %448 = vst [vmem:[#allocation2 + $0x228] sm:$0xff] 0.0
          %449 = vst [vmem:[#allocation2 + $0x230] sm:$0xff] 0.0
          %450 = vst [vmem:[#allocation2 + $0x238] sm:$0xff] 0.0
          %451 = vst [vmem:[#allocation2 + $0x240] sm:$0xff] 0.0
          %452 = vst [vmem:[#allocation2 + $0x248] sm:$0xff] 0.0
          %453 = vst [vmem:[#allocation2 + $0x250] sm:$0xff] 0.0
          %454 = vst [vmem:[#allocation2 + $0x258] sm:$0xff] 0.0
          %455 = vst [vmem:[#allocation2 + $0x260] sm:$0xff] 0.0
          %456 = vst [vmem:[#allocation2 + $0x268] sm:$0xff] 0.0
          %457 = vst [vmem:[#allocation2 + $0x270] sm:$0xff] 0.0
          %458 = vst [vmem:[#allocation2 + $0x278] sm:$0xff] 0.0
          %459 = vst [vmem:[#allocation2 + $0x280] sm:$0xff] 0.0
          %460 = vst [vmem:[#allocation2 + $0x288] sm:$0xff] 0.0
          %461 = vst [vmem:[#allocation2 + $0x290] sm:$0xff] 0.0
          %462 = vst [vmem:[#allocation2 + $0x298] sm:$0xff] 0.0
          %463 = vst [vmem:[#allocation2 + $0x2a0] sm:$0xff] 0.0
          %464 = vst [vmem:[#allocation2 + $0x2a8] sm:$0xff] 0.0
          %465 = vst [vmem:[#allocation2 + $0x2b0] sm:$0xff] 0.0
          %466 = vst [vmem:[#allocation2 + $0x2b8] sm:$0xff] 0.0
          %467 = vst [vmem:[#allocation2 + $0x2c0] sm:$0xff] 0.0
          %468 = vst [vmem:[#allocation2 + $0x2c8] sm:$0xff] 0.0
          %469 = vst [vmem:[#allocation2 + $0x2d0] sm:$0xff] 0.0
          %470 = vst [vmem:[#allocation2 + $0x2d8] sm:$0xff] 0.0
          %471 = vst [vmem:[#allocation2 + $0x2e0] sm:$0xff] 0.0
          %472 = vst [vmem:[#allocation2 + $0x2e8] sm:$0xff] 0.0
          %473 = vst [vmem:[#allocation2 + $0x2f0] sm:$0xff] 0.0
          %474 = vst [vmem:[#allocation2 + $0x2f8] sm:$0xff] 0.0
          %475 = vst [vmem:[#allocation2 + $0x300] sm:$0xff] 0.0
          %476 = vst [vmem:[#allocation2 + $0x308] sm:$0xff] 0.0
          %477 = vst [vmem:[#allocation2 + $0x310] sm:$0xff] 0.0
          %478 = vst [vmem:[#allocation2 + $0x318] sm:$0xff] 0.0
          %479 = vst [vmem:[#allocation2 + $0x320] sm:$0xff] 0.0
          %480 = vst [vmem:[#allocation2 + $0x328] sm:$0xff] 0.0
          %481 = vst [vmem:[#allocation2 + $0x330] sm:$0xff] 0.0
          %482 = vst [vmem:[#allocation2 + $0x338] sm:$0xff] 0.0
          %483 = vst [vmem:[#allocation2 + $0x340] sm:$0xff] 0.0
          %484 = vst [vmem:[#allocation2 + $0x348] sm:$0xff] 0.0
          %485 = vst [vmem:[#allocation2 + $0x350] sm:$0xff] 0.0
          %486 = vst [vmem:[#allocation2 + $0x358] sm:$0xff] 0.0
          %487 = vst [vmem:[#allocation2 + $0x360] sm:$0xff] 0.0
          %488 = vst [vmem:[#allocation2 + $0x368] sm:$0xff] 0.0
          %489 = vst [vmem:[#allocation2 + $0x370] sm:$0xff] 0.0
          %490 = vst [vmem:[#allocation2 + $0x378] sm:$0xff] 0.0
          %491 = vst [vmem:[#allocation2 + $0x380] sm:$0xff] 0.0
          %492 = vst [vmem:[#allocation2 + $0x388] sm:$0xff] 0.0
          %493 = vst [vmem:[#allocation2 + $0x390] sm:$0xff] 0.0
          %494 = vst [vmem:[#allocation2 + $0x398] sm:$0xff] 0.0
          %495 = vst [vmem:[#allocation2 + $0x3a0] sm:$0xff] 0.0
          %496 = vst [vmem:[#allocation2 + $0x3a8] sm:$0xff] 0.0
          %497 = vst [vmem:[#allocation2 + $0x3b0] sm:$0xff] 0.0
          %498 = vst [vmem:[#allocation2 + $0x3b8] sm:$0xff] 0.0
          %499 = vst [vmem:[#allocation2 + $0x3c0] sm:$0xff] 0.0
          %500 = vst [vmem:[#allocation2 + $0x3c8] sm:$0xff] 0.0
          %501 = vst [vmem:[#allocation2 + $0x3d0] sm:$0xff] 0.0
          %502 = vst [vmem:[#allocation2 + $0x3d8] sm:$0xff] 0.0
          %503 = vst [vmem:[#allocation2 + $0x3e0] sm:$0xff] 0.0
          %504 = vst [vmem:[#allocation2 + $0x3e8] sm:$0xff] 0.0
          %505 = vst [vmem:[#allocation2 + $0x3f0] sm:$0xff] 0.0
          %506 = vst [vmem:[#allocation2 + $0x3f8] sm:$0xff] 0.0
        $region60: #{tpu_custom_call.1} parent=39 // pred_fallthru
          _
        %v507 = vld [vmem:[#allocation3] sm:$0xff]
        %v508 = vld [vmem:[#allocation3 + $0x8] sm:$0xff]
        %v509 = vld [vmem:[#allocation3 + $0x10] sm:$0xff]
        %v510 = vld [vmem:[#allocation3 + $0x18] sm:$0xff]
        %v511 = vld [vmem:[#allocation3 + $0x20] sm:$0xff]
        %v512 = vld [vmem:[#allocation3 + $0x28] sm:$0xff]
        %v513 = vld [vmem:[#allocation3 + $0x30] sm:$0xff]
        %v514 = vld [vmem:[#allocation3 + $0x38] sm:$0xff]
        %v515 = vld [vmem:[#allocation3 + $0x40] sm:$0xff]
        %v516 = vld [vmem:[#allocation3 + $0x48] sm:$0xff]
        %v517 = vld [vmem:[#allocation3 + $0x50] sm:$0xff]
        %v518 = vld [vmem:[#allocation3 + $0x58] sm:$0xff]
        %v519 = vld [vmem:[#allocation3 + $0x60] sm:$0xff]
        %v520 = vld [vmem:[#allocation3 + $0x68] sm:$0xff]
        %v521 = vld [vmem:[#allocation3 + $0x70] sm:$0xff]
        %v522 = vld [vmem:[#allocation3 + $0x78] sm:$0xff]
        %v523 = vld [vmem:[#allocation3 + $0x80] sm:$0xff]
        %v524 = vld [vmem:[#allocation3 + $0x88] sm:$0xff]
        %v525 = vld [vmem:[#allocation3 + $0x90] sm:$0xff]
        %v526 = vld [vmem:[#allocation3 + $0x98] sm:$0xff]
        %v527 = vld [vmem:[#allocation3 + $0xa0] sm:$0xff]
        %v528 = vld [vmem:[#allocation3 + $0xa8] sm:$0xff]
        %v529 = vld [vmem:[#allocation3 + $0xb0] sm:$0xff]
        %v530 = vld [vmem:[#allocation3 + $0xb8] sm:$0xff]
        %v531 = vld [vmem:[#allocation3 + $0xc0] sm:$0xff]
        %v532 = vld [vmem:[#allocation3 + $0xc8] sm:$0xff]
        %v533 = vld [vmem:[#allocation3 + $0xd0] sm:$0xff]
        %v534 = vld [vmem:[#allocation3 + $0xd8] sm:$0xff]
        %v535 = vld [vmem:[#allocation3 + $0xe0] sm:$0xff]
        %v536 = vld [vmem:[#allocation3 + $0xe8] sm:$0xff]
        %v537 = vld [vmem:[#allocation3 + $0xf0] sm:$0xff]
        %v538 = vld [vmem:[#allocation3 + $0xf8] sm:$0xff]
        %v539 = vld [vmem:[#allocation3 + $0x100] sm:$0xff]
        %v540 = vld [vmem:[#allocation3 + $0x108] sm:$0xff]
        %v541 = vld [vmem:[#allocation3 + $0x110] sm:$0xff]
        %v542 = vld [vmem:[#allocation3 + $0x118] sm:$0xff]
        %v543 = vld [vmem:[#allocation3 + $0x120] sm:$0xff]
        %v544 = vld [vmem:[#allocation3 + $0x128] sm:$0xff]
        %v545 = vld [vmem:[#allocation3 + $0x130] sm:$0xff]
        %v546 = vld [vmem:[#allocation3 + $0x138] sm:$0xff]
        %v547 = vld [vmem:[#allocation3 + $0x140] sm:$0xff]
        %v548 = vld [vmem:[#allocation3 + $0x148] sm:$0xff]
        %v549 = vld [vmem:[#allocation3 + $0x150] sm:$0xff]
        %v550 = vld [vmem:[#allocation3 + $0x158] sm:$0xff]
        %v551 = vld [vmem:[#allocation3 + $0x160] sm:$0xff]
        %v552 = vld [vmem:[#allocation3 + $0x168] sm:$0xff]
        %v553 = vld [vmem:[#allocation3 + $0x170] sm:$0xff]
        %v554 = vld [vmem:[#allocation3 + $0x178] sm:$0xff]
        %v555 = vld [vmem:[#allocation3 + $0x180] sm:$0xff]
        %v556 = vld [vmem:[#allocation3 + $0x188] sm:$0xff]
        %v557 = vld [vmem:[#allocation3 + $0x190] sm:$0xff]
        %v558 = vld [vmem:[#allocation3 + $0x198] sm:$0xff]
        %v559 = vld [vmem:[#allocation3 + $0x1a0] sm:$0xff]
        %v560 = vld [vmem:[#allocation3 + $0x1a8] sm:$0xff]
        %v561 = vld [vmem:[#allocation3 + $0x1b0] sm:$0xff]
        %v562 = vld [vmem:[#allocation3 + $0x1b8] sm:$0xff]
        %v563 = vld [vmem:[#allocation3 + $0x1c0] sm:$0xff]
        %v564 = vld [vmem:[#allocation3 + $0x1c8] sm:$0xff]
        %v565 = vld [vmem:[#allocation3 + $0x1d0] sm:$0xff]
        %v566 = vld [vmem:[#allocation3 + $0x1d8] sm:$0xff]
        %v567 = vld [vmem:[#allocation3 + $0x1e0] sm:$0xff]
        %v568 = vld [vmem:[#allocation3 + $0x1e8] sm:$0xff]
        %v569 = vld [vmem:[#allocation3 + $0x1f0] sm:$0xff]
        %v570 = vld [vmem:[#allocation3 + $0x1f8] sm:$0xff]
        %v571 = vld [vmem:[%s310] sm:$0xff]
        %v572 = vld [vmem:[%s310 + $0x8] sm:$0xff]
        %v573 = vld [vmem:[%s310 + $0x10] sm:$0xff]
        %v574 = vld [vmem:[%s310 + $0x18] sm:$0xff]
        %v575 = vld [vmem:[%s310 + $0x20] sm:$0xff]
        %v576 = vld [vmem:[%s310 + $0x28] sm:$0xff]
        %v577 = vld [vmem:[%s310 + $0x30] sm:$0xff]
        %v578 = vld [vmem:[%s310 + $0x38] sm:$0xff]
        %v579 = vld [vmem:[%s310 + $0x40] sm:$0xff]
        %v580 = vld [vmem:[%s310 + $0x48] sm:$0xff]
        %v581 = vld [vmem:[%s310 + $0x50] sm:$0xff]
        %v582 = vld [vmem:[%s310 + $0x58] sm:$0xff]
        %v583 = vld [vmem:[%s310 + $0x60] sm:$0xff]
        %v584 = vld [vmem:[%s310 + $0x68] sm:$0xff]
        %v585 = vld [vmem:[%s310 + $0x70] sm:$0xff]
        %v586 = vld [vmem:[%s310 + $0x78] sm:$0xff]
        %v587 = vld [vmem:[%s310 + $0x80] sm:$0xff]
        %v588 = vld [vmem:[%s310 + $0x88] sm:$0xff]
        %v589 = vld [vmem:[%s310 + $0x90] sm:$0xff]
        %v590 = vld [vmem:[%s310 + $0x98] sm:$0xff]
        %v591 = vld [vmem:[%s310 + $0xa0] sm:$0xff]
        %v592 = vld [vmem:[%s310 + $0xa8] sm:$0xff]
        %v593 = vld [vmem:[%s310 + $0xb0] sm:$0xff]
        %v594 = vld [vmem:[%s310 + $0xb8] sm:$0xff]
        %v595 = vld [vmem:[%s310 + $0xc0] sm:$0xff]
        %v596 = vld [vmem:[%s310 + $0xc8] sm:$0xff]
        %v597 = vld [vmem:[%s310 + $0xd0] sm:$0xff]
        %v598 = vld [vmem:[%s310 + $0xd8] sm:$0xff]
        %v599 = vld [vmem:[%s310 + $0xe0] sm:$0xff]
        %v600 = vld [vmem:[%s310 + $0xe8] sm:$0xff]
        %v601 = vld [vmem:[%s310 + $0xf0] sm:$0xff]
        %v602 = vld [vmem:[%s310 + $0xf8] sm:$0xff]
        %v603 = vld [vmem:[%s310 + $0x100] sm:$0xff]
        %v604 = vld [vmem:[%s310 + $0x108] sm:$0xff]
        %v605 = vld [vmem:[%s310 + $0x110] sm:$0xff]
        %v606 = vld [vmem:[%s310 + $0x118] sm:$0xff]
        %v607 = vld [vmem:[%s310 + $0x120] sm:$0xff]
        %v608 = vld [vmem:[%s310 + $0x128] sm:$0xff]
        %v609 = vld [vmem:[%s310 + $0x130] sm:$0xff]
        %v610 = vld [vmem:[%s310 + $0x138] sm:$0xff]
        %v611 = vld [vmem:[%s310 + $0x140] sm:$0xff]
        %v612 = vld [vmem:[%s310 + $0x148] sm:$0xff]
        %v613 = vld [vmem:[%s310 + $0x150] sm:$0xff]
        %v614 = vld [vmem:[%s310 + $0x158] sm:$0xff]
        %v615 = vld [vmem:[%s310 + $0x160] sm:$0xff]
        %v616 = vld [vmem:[%s310 + $0x168] sm:$0xff]
        %v617 = vld [vmem:[%s310 + $0x170] sm:$0xff]
        %v618 = vld [vmem:[%s310 + $0x178] sm:$0xff]
        %v619 = vld [vmem:[%s310 + $0x180] sm:$0xff]
        %v620 = vld [vmem:[%s310 + $0x188] sm:$0xff]
        %v621 = vld [vmem:[%s310 + $0x190] sm:$0xff]
        %v622 = vld [vmem:[%s310 + $0x198] sm:$0xff]
        %v623 = vld [vmem:[%s310 + $0x1a0] sm:$0xff]
        %v624 = vld [vmem:[%s310 + $0x1a8] sm:$0xff]
        %v625 = vld [vmem:[%s310 + $0x1b0] sm:$0xff]
        %v626 = vld [vmem:[%s310 + $0x1b8] sm:$0xff]
        %v627 = vld [vmem:[%s310 + $0x1c0] sm:$0xff]
        %v628 = vld [vmem:[%s310 + $0x1c8] sm:$0xff]
        %v629 = vld [vmem:[%s310 + $0x1d0] sm:$0xff]
        %v630 = vld [vmem:[%s310 + $0x1d8] sm:$0xff]
        %v631 = vld [vmem:[%s310 + $0x1e0] sm:$0xff]
        %v632 = vld [vmem:[%s310 + $0x1e8] sm:$0xff]
        %v633 = vld [vmem:[%s310 + $0x1f0] sm:$0xff]
        %v634 = vld [vmem:[%s310 + $0x1f8] sm:$0xff]
        %v635 = vld [vmem:[%s310 + $0x200] sm:$0xff]
        %v636 = vld [vmem:[%s310 + $0x208] sm:$0xff]
        %v637 = vld [vmem:[%s310 + $0x210] sm:$0xff]
        %v638 = vld [vmem:[%s310 + $0x218] sm:$0xff]
        %v639 = vld [vmem:[%s310 + $0x220] sm:$0xff]
        %v640 = vld [vmem:[%s310 + $0x228] sm:$0xff]
        %v641 = vld [vmem:[%s310 + $0x230] sm:$0xff]
        %v642 = vld [vmem:[%s310 + $0x238] sm:$0xff]
        %v643 = vld [vmem:[%s310 + $0x240] sm:$0xff]
        %v644 = vld [vmem:[%s310 + $0x248] sm:$0xff]
        %v645 = vld [vmem:[%s310 + $0x250] sm:$0xff]
        %v646 = vld [vmem:[%s310 + $0x258] sm:$0xff]
        %v647 = vld [vmem:[%s310 + $0x260] sm:$0xff]
        %v648 = vld [vmem:[%s310 + $0x268] sm:$0xff]
        %v649 = vld [vmem:[%s310 + $0x270] sm:$0xff]
        %v650 = vld [vmem:[%s310 + $0x278] sm:$0xff]
        %v651 = vld [vmem:[%s310 + $0x280] sm:$0xff]
        %v652 = vld [vmem:[%s310 + $0x288] sm:$0xff]
        %v653 = vld [vmem:[%s310 + $0x290] sm:$0xff]
        %v654 = vld [vmem:[%s310 + $0x298] sm:$0xff]
        %v655 = vld [vmem:[%s310 + $0x2a0] sm:$0xff]
        %v656 = vld [vmem:[%s310 + $0x2a8] sm:$0xff]
        %v657 = vld [vmem:[%s310 + $0x2b0] sm:$0xff]
        %v658 = vld [vmem:[%s310 + $0x2b8] sm:$0xff]
        %v659 = vld [vmem:[%s310 + $0x2c0] sm:$0xff]
        %v660 = vld [vmem:[%s310 + $0x2c8] sm:$0xff]
        %v661 = vld [vmem:[%s310 + $0x2d0] sm:$0xff]
        %v662 = vld [vmem:[%s310 + $0x2d8] sm:$0xff]
        %v663 = vld [vmem:[%s310 + $0x2e0] sm:$0xff]
        %v664 = vld [vmem:[%s310 + $0x2e8] sm:$0xff]
        %v665 = vld [vmem:[%s310 + $0x2f0] sm:$0xff]
        %v666 = vld [vmem:[%s310 + $0x2f8] sm:$0xff]
        %v667 = vld [vmem:[%s310 + $0x300] sm:$0xff]
        %v668 = vld [vmem:[%s310 + $0x308] sm:$0xff]
        %v669 = vld [vmem:[%s310 + $0x310] sm:$0xff]
        %v670 = vld [vmem:[%s310 + $0x318] sm:$0xff]
        %v671 = vld [vmem:[%s310 + $0x320] sm:$0xff]
        %v672 = vld [vmem:[%s310 + $0x328] sm:$0xff]
        %v673 = vld [vmem:[%s310 + $0x330] sm:$0xff]
        %v674 = vld [vmem:[%s310 + $0x338] sm:$0xff]
        %v675 = vld [vmem:[%s310 + $0x340] sm:$0xff]
        %v676 = vld [vmem:[%s310 + $0x348] sm:$0xff]
        %v677 = vld [vmem:[%s310 + $0x350] sm:$0xff]
        %v678 = vld [vmem:[%s310 + $0x358] sm:$0xff]
        %v679 = vld [vmem:[%s310 + $0x360] sm:$0xff]
        %v680 = vld [vmem:[%s310 + $0x368] sm:$0xff]
        %v681 = vld [vmem:[%s310 + $0x370] sm:$0xff]
        %v682 = vld [vmem:[%s310 + $0x378] sm:$0xff]
        %v683 = vld [vmem:[%s310 + $0x380] sm:$0xff]
        %v684 = vld [vmem:[%s310 + $0x388] sm:$0xff]
        %v685 = vld [vmem:[%s310 + $0x390] sm:$0xff]
        %v686 = vld [vmem:[%s310 + $0x398] sm:$0xff]
        %v687 = vld [vmem:[%s310 + $0x3a0] sm:$0xff]
        %v688 = vld [vmem:[%s310 + $0x3a8] sm:$0xff]
        %v689 = vld [vmem:[%s310 + $0x3b0] sm:$0xff]
        %v690 = vld [vmem:[%s310 + $0x3b8] sm:$0xff]
        %v691 = vld [vmem:[%s310 + $0x3c0] sm:$0xff]
        %v692 = vld [vmem:[%s310 + $0x3c8] sm:$0xff]
        %v693 = vld [vmem:[%s310 + $0x3d0] sm:$0xff]
        %v694 = vld [vmem:[%s310 + $0x3d8] sm:$0xff]
        %v695 = vld [vmem:[%s310 + $0x3e0] sm:$0xff]
        %v696 = vld [vmem:[%s310 + $0x3e8] sm:$0xff]
        %v697 = vld [vmem:[%s310 + $0x3f0] sm:$0xff]
        %v698 = vld [vmem:[%s310 + $0x3f8] sm:$0xff]
        %v763 = vunpack.c.l.b16 %v507
        %v764 = vunpack.c.h.b16 %v507
        %v765 = vunpack.c.l.b16 %v508
        %v766 = vunpack.c.h.b16 %v508
        %v767 = vunpack.c.l.b16 %v509
        %v768 = vunpack.c.h.b16 %v509
        %v769 = vunpack.c.l.b16 %v510
        %v770 = vunpack.c.h.b16 %v510
        %v771 = vunpack.c.l.b16 %v511
        %v772 = vunpack.c.h.b16 %v511
        %v773 = vunpack.c.l.b16 %v512
        %v774 = vunpack.c.h.b16 %v512
        %v775 = vunpack.c.l.b16 %v513
        %v776 = vunpack.c.h.b16 %v513
        %v777 = vunpack.c.l.b16 %v514
        %v778 = vunpack.c.h.b16 %v514
        %v779 = vunpack.c.l.b16 %v515
        %v780 = vunpack.c.h.b16 %v515
        %v781 = vunpack.c.l.b16 %v516
        %v782 = vunpack.c.h.b16 %v516
        %v783 = vunpack.c.l.b16 %v517
        %v784 = vunpack.c.h.b16 %v517
        %v785 = vunpack.c.l.b16 %v518
        %v786 = vunpack.c.h.b16 %v518
        %v787 = vunpack.c.l.b16 %v519
        %v788 = vunpack.c.h.b16 %v519
        %v789 = vunpack.c.l.b16 %v520
        %v790 = vunpack.c.h.b16 %v520
        %v791 = vunpack.c.l.b16 %v521
        %v792 = vunpack.c.h.b16 %v521
        %v793 = vunpack.c.l.b16 %v522
        %v794 = vunpack.c.h.b16 %v522
        %v795 = vunpack.c.l.b16 %v523
        %v796 = vunpack.c.h.b16 %v523
        %v797 = vunpack.c.l.b16 %v524
        %v798 = vunpack.c.h.b16 %v524
        %v799 = vunpack.c.l.b16 %v525
        %v800 = vunpack.c.h.b16 %v525
        %v801 = vunpack.c.l.b16 %v526
        %v802 = vunpack.c.h.b16 %v526
        %v803 = vunpack.c.l.b16 %v527
        %v804 = vunpack.c.h.b16 %v527
        %v805 = vunpack.c.l.b16 %v528
        %v806 = vunpack.c.h.b16 %v528
        %v807 = vunpack.c.l.b16 %v529
        %v808 = vunpack.c.h.b16 %v529
        %v809 = vunpack.c.l.b16 %v530
        %v810 = vunpack.c.h.b16 %v530
        %v811 = vunpack.c.l.b16 %v531
        %v812 = vunpack.c.h.b16 %v531
        %v813 = vunpack.c.l.b16 %v532
        %v814 = vunpack.c.h.b16 %v532
        %v815 = vunpack.c.l.b16 %v533
        %v816 = vunpack.c.h.b16 %v533
        %v817 = vunpack.c.l.b16 %v534
        %v818 = vunpack.c.h.b16 %v534
        %v819 = vunpack.c.l.b16 %v535
        %v820 = vunpack.c.h.b16 %v535
        %v821 = vunpack.c.l.b16 %v536
        %v822 = vunpack.c.h.b16 %v536
        %v823 = vunpack.c.l.b16 %v537
        %v824 = vunpack.c.h.b16 %v537
        %v825 = vunpack.c.l.b16 %v538
        %v826 = vunpack.c.h.b16 %v538
        %v827 = vunpack.c.l.b16 %v539
        %v828 = vunpack.c.h.b16 %v539
        %v829 = vunpack.c.l.b16 %v540
        %v830 = vunpack.c.h.b16 %v540
        %v831 = vunpack.c.l.b16 %v541
        %v832 = vunpack.c.h.b16 %v541
        %v833 = vunpack.c.l.b16 %v542
        %v834 = vunpack.c.h.b16 %v542
        %v835 = vunpack.c.l.b16 %v543
        %v836 = vunpack.c.h.b16 %v543
        %v837 = vunpack.c.l.b16 %v544
        %v838 = vunpack.c.h.b16 %v544
        %v839 = vunpack.c.l.b16 %v545
        %v840 = vunpack.c.h.b16 %v545
        %v841 = vunpack.c.l.b16 %v546
        %v842 = vunpack.c.h.b16 %v546
        %v843 = vunpack.c.l.b16 %v547
        %v844 = vunpack.c.h.b16 %v547
        %v845 = vunpack.c.l.b16 %v548
        %v846 = vunpack.c.h.b16 %v548
        %v847 = vunpack.c.l.b16 %v549
        %v848 = vunpack.c.h.b16 %v549
        %v849 = vunpack.c.l.b16 %v550
        %v850 = vunpack.c.h.b16 %v550
        %v851 = vunpack.c.l.b16 %v551
        %v852 = vunpack.c.h.b16 %v551
        %v853 = vunpack.c.l.b16 %v552
        %v854 = vunpack.c.h.b16 %v552
        %v855 = vunpack.c.l.b16 %v553
        %v856 = vunpack.c.h.b16 %v553
        %v857 = vunpack.c.l.b16 %v554
        %v858 = vunpack.c.h.b16 %v554
        %v859 = vunpack.c.l.b16 %v555
        %v860 = vunpack.c.h.b16 %v555
        %v861 = vunpack.c.l.b16 %v556
        %v862 = vunpack.c.h.b16 %v556
        %v863 = vunpack.c.l.b16 %v557
        %v864 = vunpack.c.h.b16 %v557
        %v865 = vunpack.c.l.b16 %v558
        %v866 = vunpack.c.h.b16 %v558
        %v867 = vunpack.c.l.b16 %v559
        %v868 = vunpack.c.h.b16 %v559
        %v869 = vunpack.c.l.b16 %v560
        %v870 = vunpack.c.h.b16 %v560
        %v871 = vunpack.c.l.b16 %v561
        %v872 = vunpack.c.h.b16 %v561
        %v873 = vunpack.c.l.b16 %v562
        %v874 = vunpack.c.h.b16 %v562
        %v875 = vunpack.c.l.b16 %v563
        %v876 = vunpack.c.h.b16 %v563
        %v877 = vunpack.c.l.b16 %v564
        %v878 = vunpack.c.h.b16 %v564
        %v879 = vunpack.c.l.b16 %v565
        %v880 = vunpack.c.h.b16 %v565
        %v881 = vunpack.c.l.b16 %v566
        %v882 = vunpack.c.h.b16 %v566
        %v883 = vunpack.c.l.b16 %v567
        %v884 = vunpack.c.h.b16 %v567
        %v885 = vunpack.c.l.b16 %v568
        %v886 = vunpack.c.h.b16 %v568
        %v887 = vunpack.c.l.b16 %v569
        %v888 = vunpack.c.h.b16 %v569
        %v889 = vunpack.c.l.b16 %v570
        %v890 = vunpack.c.h.b16 %v570
        %v891 = vpack.c.b16 %v767, %v763
        %v892 = vpack.c.b16 %v768, %v764
        %v893 = vpack.c.b16 %v769, %v765
        %v894 = vpack.c.b16 %v770, %v766
        %v895 = vpack.c.b16 %v775, %v771
        %v896 = vpack.c.b16 %v776, %v772
        %v897 = vpack.c.b16 %v777, %v773
        %v898 = vpack.c.b16 %v778, %v774
        %v899 = vpack.c.b16 %v783, %v779
        %v900 = vpack.c.b16 %v784, %v780
        %v901 = vpack.c.b16 %v785, %v781
        %v902 = vpack.c.b16 %v786, %v782
        %v903 = vpack.c.b16 %v791, %v787
        %v904 = vpack.c.b16 %v792, %v788
        %v905 = vpack.c.b16 %v793, %v789
        %v906 = vpack.c.b16 %v794, %v790
        %v907 = vpack.c.b16 %v799, %v795
        %v908 = vpack.c.b16 %v800, %v796
        %v909 = vpack.c.b16 %v801, %v797
        %v910 = vpack.c.b16 %v802, %v798
        %v911 = vpack.c.b16 %v807, %v803
        %v912 = vpack.c.b16 %v808, %v804
        %v913 = vpack.c.b16 %v809, %v805
        %v914 = vpack.c.b16 %v810, %v806
        %v915 = vpack.c.b16 %v815, %v811
        %v916 = vpack.c.b16 %v816, %v812
        %v917 = vpack.c.b16 %v817, %v813
        %v918 = vpack.c.b16 %v818, %v814
        %v919 = vpack.c.b16 %v823, %v819
        %v920 = vpack.c.b16 %v824, %v820
        %v921 = vpack.c.b16 %v825, %v821
        %v922 = vpack.c.b16 %v826, %v822
        %v923 = vpack.c.b16 %v831, %v827
        %v924 = vpack.c.b16 %v832, %v828
        %v925 = vpack.c.b16 %v833, %v829
        %v926 = vpack.c.b16 %v834, %v830
        %v927 = vpack.c.b16 %v839, %v835
        %v928 = vpack.c.b16 %v840, %v836
        %v929 = vpack.c.b16 %v841, %v837
        %v930 = vpack.c.b16 %v842, %v838
        %v931 = vpack.c.b16 %v847, %v843
        %v932 = vpack.c.b16 %v848, %v844
        %v933 = vpack.c.b16 %v849, %v845
        %v934 = vpack.c.b16 %v850, %v846
        %v935 = vpack.c.b16 %v855, %v851
        %v936 = vpack.c.b16 %v856, %v852
        %v937 = vpack.c.b16 %v857, %v853
        %v938 = vpack.c.b16 %v858, %v854
        %v939 = vpack.c.b16 %v863, %v859
        %v940 = vpack.c.b16 %v864, %v860
        %v941 = vpack.c.b16 %v865, %v861
        %v942 = vpack.c.b16 %v866, %v862
        %v943 = vpack.c.b16 %v871, %v867
        %v944 = vpack.c.b16 %v872, %v868
        %v945 = vpack.c.b16 %v873, %v869
        %v946 = vpack.c.b16 %v874, %v870
        %v947 = vpack.c.b16 %v879, %v875
        %v948 = vpack.c.b16 %v880, %v876
        %v949 = vpack.c.b16 %v881, %v877
        %v950 = vpack.c.b16 %v882, %v878
        %v951 = vpack.c.b16 %v887, %v883
        %v952 = vpack.c.b16 %v888, %v884
        %v953 = vpack.c.b16 %v889, %v885
        %v954 = vpack.c.b16 %v890, %v886
        %v1147 = vunpack.c.l.b16 %v571
        %v1148 = vunpack.c.h.b16 %v571
        %v1149 = vunpack.c.l.b16 %v572
        %v1150 = vunpack.c.h.b16 %v572
        %v1151 = vunpack.c.l.b16 %v573
        %v1152 = vunpack.c.h.b16 %v573
        %v1153 = vunpack.c.l.b16 %v574
        %v1154 = vunpack.c.h.b16 %v574
        %v1155 = vunpack.c.l.b16 %v575
        %v1156 = vunpack.c.h.b16 %v575
        %v1157 = vunpack.c.l.b16 %v576
        %v1158 = vunpack.c.h.b16 %v576
        %v1159 = vunpack.c.l.b16 %v577
        %v1160 = vunpack.c.h.b16 %v577
        %v1161 = vunpack.c.l.b16 %v578
        %v1162 = vunpack.c.h.b16 %v578
        %v1163 = vunpack.c.l.b16 %v579
        %v1164 = vunpack.c.h.b16 %v579
        %v1165 = vunpack.c.l.b16 %v580
        %v1166 = vunpack.c.h.b16 %v580
        %v1167 = vunpack.c.l.b16 %v581
        %v1168 = vunpack.c.h.b16 %v581
        %v1169 = vunpack.c.l.b16 %v582
        %v1170 = vunpack.c.h.b16 %v582
        %v1171 = vunpack.c.l.b16 %v583
        %v1172 = vunpack.c.h.b16 %v583
        %v1173 = vunpack.c.l.b16 %v584
        %v1174 = vunpack.c.h.b16 %v584
        %v1175 = vunpack.c.l.b16 %v585
        %v1176 = vunpack.c.h.b16 %v585
        %v1177 = vunpack.c.l.b16 %v586
        %v1178 = vunpack.c.h.b16 %v586
        %v1179 = vunpack.c.l.b16 %v587
        %v1180 = vunpack.c.h.b16 %v587
        %v1181 = vunpack.c.l.b16 %v588
        %v1182 = vunpack.c.h.b16 %v588
        %v1183 = vunpack.c.l.b16 %v589
        %v1184 = vunpack.c.h.b16 %v589
        %v1185 = vunpack.c.l.b16 %v590
        %v1186 = vunpack.c.h.b16 %v590
        %v1187 = vunpack.c.l.b16 %v591
        %v1188 = vunpack.c.h.b16 %v591
        %v1189 = vunpack.c.l.b16 %v592
        %v1190 = vunpack.c.h.b16 %v592
        %v1191 = vunpack.c.l.b16 %v593
        %v1192 = vunpack.c.h.b16 %v593
        %v1193 = vunpack.c.l.b16 %v594
        %v1194 = vunpack.c.h.b16 %v594
        %v1195 = vunpack.c.l.b16 %v595
        %v1196 = vunpack.c.h.b16 %v595
        %v1197 = vunpack.c.l.b16 %v596
        %v1198 = vunpack.c.h.b16 %v596
        %v1199 = vunpack.c.l.b16 %v597
        %v1200 = vunpack.c.h.b16 %v597
        %v1201 = vunpack.c.l.b16 %v598
        %v1202 = vunpack.c.h.b16 %v598
        %v1203 = vunpack.c.l.b16 %v599
        %v1204 = vunpack.c.h.b16 %v599
        %v1205 = vunpack.c.l.b16 %v600
        %v1206 = vunpack.c.h.b16 %v600
        %v1207 = vunpack.c.l.b16 %v601
        %v1208 = vunpack.c.h.b16 %v601
        %v1209 = vunpack.c.l.b16 %v602
        %v1210 = vunpack.c.h.b16 %v602
        %v1211 = vunpack.c.l.b16 %v603
        %v1212 = vunpack.c.h.b16 %v603
        %v1213 = vunpack.c.l.b16 %v604
        %v1214 = vunpack.c.h.b16 %v604
        %v1215 = vunpack.c.l.b16 %v605
        %v1216 = vunpack.c.h.b16 %v605
        %v1217 = vunpack.c.l.b16 %v606
        %v1218 = vunpack.c.h.b16 %v606
        %v1219 = vunpack.c.l.b16 %v607
        %v1220 = vunpack.c.h.b16 %v607
        %v1221 = vunpack.c.l.b16 %v608
        %v1222 = vunpack.c.h.b16 %v608
        %v1223 = vunpack.c.l.b16 %v609
        %v1224 = vunpack.c.h.b16 %v609
        %v1225 = vunpack.c.l.b16 %v610
        %v1226 = vunpack.c.h.b16 %v610
        %v1227 = vunpack.c.l.b16 %v611
        %v1228 = vunpack.c.h.b16 %v611
        %v1229 = vunpack.c.l.b16 %v612
        %v1230 = vunpack.c.h.b16 %v612
        %v1231 = vunpack.c.l.b16 %v613
        %v1232 = vunpack.c.h.b16 %v613
        %v1233 = vunpack.c.l.b16 %v614
        %v1234 = vunpack.c.h.b16 %v614
        %v1235 = vunpack.c.l.b16 %v615
        %v1236 = vunpack.c.h.b16 %v615
        %v1237 = vunpack.c.l.b16 %v616
        %v1238 = vunpack.c.h.b16 %v616
        %v1239 = vunpack.c.l.b16 %v617
        %v1240 = vunpack.c.h.b16 %v617
        %v1241 = vunpack.c.l.b16 %v618
        %v1242 = vunpack.c.h.b16 %v618
        %v1243 = vunpack.c.l.b16 %v619
        %v1244 = vunpack.c.h.b16 %v619
        %v1245 = vunpack.c.l.b16 %v620
        %v1246 = vunpack.c.h.b16 %v620
        %v1247 = vunpack.c.l.b16 %v621
        %v1248 = vunpack.c.h.b16 %v621
        %v1249 = vunpack.c.l.b16 %v622
        %v1250 = vunpack.c.h.b16 %v622
        %v1251 = vunpack.c.l.b16 %v623
        %v1252 = vunpack.c.h.b16 %v623
        %v1253 = vunpack.c.l.b16 %v624
        %v1254 = vunpack.c.h.b16 %v624
        %v1255 = vunpack.c.l.b16 %v625
        %v1256 = vunpack.c.h.b16 %v625
        %v1257 = vunpack.c.l.b16 %v626
        %v1258 = vunpack.c.h.b16 %v626
        %v1259 = vunpack.c.l.b16 %v627
        %v1260 = vunpack.c.h.b16 %v627
        %v1261 = vunpack.c.l.b16 %v628
        %v1262 = vunpack.c.h.b16 %v628
        %v1263 = vunpack.c.l.b16 %v629
        %v1264 = vunpack.c.h.b16 %v629
        %v1265 = vunpack.c.l.b16 %v630
        %v1266 = vunpack.c.h.b16 %v630
        %v1267 = vunpack.c.l.b16 %v631
        %v1268 = vunpack.c.h.b16 %v631
        %v1269 = vunpack.c.l.b16 %v632
        %v1270 = vunpack.c.h.b16 %v632
        %v1271 = vunpack.c.l.b16 %v633
        %v1272 = vunpack.c.h.b16 %v633
        %v1273 = vunpack.c.l.b16 %v634
        %v1274 = vunpack.c.h.b16 %v634
        %v1275 = vunpack.c.l.b16 %v635
        %v1276 = vunpack.c.h.b16 %v635
        %v1277 = vunpack.c.l.b16 %v636
        %v1278 = vunpack.c.h.b16 %v636
        %v1279 = vunpack.c.l.b16 %v637
        %v1280 = vunpack.c.h.b16 %v637
        %v1281 = vunpack.c.l.b16 %v638
        %v1282 = vunpack.c.h.b16 %v638
        %v1283 = vunpack.c.l.b16 %v639
        %v1284 = vunpack.c.h.b16 %v639
        %v1285 = vunpack.c.l.b16 %v640
        %v1286 = vunpack.c.h.b16 %v640
        %v1287 = vunpack.c.l.b16 %v641
        %v1288 = vunpack.c.h.b16 %v641
        %v1289 = vunpack.c.l.b16 %v642
        %v1290 = vunpack.c.h.b16 %v642
        %v1291 = vunpack.c.l.b16 %v643
        %v1292 = vunpack.c.h.b16 %v643
        %v1293 = vunpack.c.l.b16 %v644
        %v1294 = vunpack.c.h.b16 %v644
        %v1295 = vunpack.c.l.b16 %v645
        %v1296 = vunpack.c.h.b16 %v645
        %v1297 = vunpack.c.l.b16 %v646
        %v1298 = vunpack.c.h.b16 %v646
        %v1299 = vunpack.c.l.b16 %v647
        %v1300 = vunpack.c.h.b16 %v647
        %v1301 = vunpack.c.l.b16 %v648
        %v1302 = vunpack.c.h.b16 %v648
        %v1303 = vunpack.c.l.b16 %v649
        %v1304 = vunpack.c.h.b16 %v649
        %v1305 = vunpack.c.l.b16 %v650
        %v1306 = vunpack.c.h.b16 %v650
        %v1307 = vunpack.c.l.b16 %v651
        %v1308 = vunpack.c.h.b16 %v651
        %v1309 = vunpack.c.l.b16 %v652
        %v1310 = vunpack.c.h.b16 %v652
        %v1311 = vunpack.c.l.b16 %v653
        %v1312 = vunpack.c.h.b16 %v653
        %v1313 = vunpack.c.l.b16 %v654
        %v1314 = vunpack.c.h.b16 %v654
        %v1315 = vunpack.c.l.b16 %v655
        %v1316 = vunpack.c.h.b16 %v655
        %v1317 = vunpack.c.l.b16 %v656
        %v1318 = vunpack.c.h.b16 %v656
        %v1319 = vunpack.c.l.b16 %v657
        %v1320 = vunpack.c.h.b16 %v657
        %v1321 = vunpack.c.l.b16 %v658
        %v1322 = vunpack.c.h.b16 %v658
        %v1323 = vunpack.c.l.b16 %v659
        %v1324 = vunpack.c.h.b16 %v659
        %v1325 = vunpack.c.l.b16 %v660
        %v1326 = vunpack.c.h.b16 %v660
        %v1327 = vunpack.c.l.b16 %v661
        %v1328 = vunpack.c.h.b16 %v661
        %v1329 = vunpack.c.l.b16 %v662
        %v1330 = vunpack.c.h.b16 %v662
        %v1331 = vunpack.c.l.b16 %v663
        %v1332 = vunpack.c.h.b16 %v663
        %v1333 = vunpack.c.l.b16 %v664
        %v1334 = vunpack.c.h.b16 %v664
        %v1335 = vunpack.c.l.b16 %v665
        %v1336 = vunpack.c.h.b16 %v665
        %v1337 = vunpack.c.l.b16 %v666
        %v1338 = vunpack.c.h.b16 %v666
        %v1339 = vunpack.c.l.b16 %v667
        %v1340 = vunpack.c.h.b16 %v667
        %v1341 = vunpack.c.l.b16 %v668
        %v1342 = vunpack.c.h.b16 %v668
        %v1343 = vunpack.c.l.b16 %v669
        %v1344 = vunpack.c.h.b16 %v669
        %v1345 = vunpack.c.l.b16 %v670
        %v1346 = vunpack.c.h.b16 %v670
        %v1347 = vunpack.c.l.b16 %v671
        %v1348 = vunpack.c.h.b16 %v671
        %v1349 = vunpack.c.l.b16 %v672
        %v1350 = vunpack.c.h.b16 %v672
        %v1351 = vunpack.c.l.b16 %v673
        %v1352 = vunpack.c.h.b16 %v673
        %v1353 = vunpack.c.l.b16 %v674
        %v1354 = vunpack.c.h.b16 %v674
        %v1355 = vunpack.c.l.b16 %v675
        %v1356 = vunpack.c.h.b16 %v675
        %v1357 = vunpack.c.l.b16 %v676
        %v1358 = vunpack.c.h.b16 %v676
        %v1359 = vunpack.c.l.b16 %v677
        %v1360 = vunpack.c.h.b16 %v677
        %v1361 = vunpack.c.l.b16 %v678
        %v1362 = vunpack.c.h.b16 %v678
        %v1363 = vunpack.c.l.b16 %v679
        %v1364 = vunpack.c.h.b16 %v679
        %v1365 = vunpack.c.l.b16 %v680
        %v1366 = vunpack.c.h.b16 %v680
        %v1367 = vunpack.c.l.b16 %v681
        %v1368 = vunpack.c.h.b16 %v681
        %v1369 = vunpack.c.l.b16 %v682
        %v1370 = vunpack.c.h.b16 %v682
        %v1371 = vunpack.c.l.b16 %v683
        %v1372 = vunpack.c.h.b16 %v683
        %v1373 = vunpack.c.l.b16 %v684
        %v1374 = vunpack.c.h.b16 %v684
        %v1375 = vunpack.c.l.b16 %v685
        %v1376 = vunpack.c.h.b16 %v685
        %v1377 = vunpack.c.l.b16 %v686
        %v1378 = vunpack.c.h.b16 %v686
        %v1379 = vunpack.c.l.b16 %v687
        %v1380 = vunpack.c.h.b16 %v687
        %v1381 = vunpack.c.l.b16 %v688
        %v1382 = vunpack.c.h.b16 %v688
        %v1383 = vunpack.c.l.b16 %v689
        %v1384 = vunpack.c.h.b16 %v689
        %v1385 = vunpack.c.l.b16 %v690
        %v1386 = vunpack.c.h.b16 %v690
        %v1387 = vunpack.c.l.b16 %v691
        %v1388 = vunpack.c.h.b16 %v691
        %v1389 = vunpack.c.l.b16 %v692
        %v1390 = vunpack.c.h.b16 %v692
        %v1391 = vunpack.c.l.b16 %v693
        %v1392 = vunpack.c.h.b16 %v693
        %v1393 = vunpack.c.l.b16 %v694
        %v1394 = vunpack.c.h.b16 %v694
        %v1395 = vunpack.c.l.b16 %v695
        %v1396 = vunpack.c.h.b16 %v695
        %v1397 = vunpack.c.l.b16 %v696
        %v1398 = vunpack.c.h.b16 %v696
        %v1399 = vunpack.c.l.b16 %v697
        %v1400 = vunpack.c.h.b16 %v697
        %v1401 = vunpack.c.l.b16 %v698
        %v1402 = vunpack.c.h.b16 %v698
        %v1403 = vpack.c.b16 %v1151, %v1147
        %v1404 = vpack.c.b16 %v1152, %v1148
        %v1405 = vpack.c.b16 %v1153, %v1149
        %v1406 = vpack.c.b16 %v1154, %v1150
        %v1407 = vpack.c.b16 %v1159, %v1155
        %v1408 = vpack.c.b16 %v1160, %v1156
        %v1409 = vpack.c.b16 %v1161, %v1157
        %v1410 = vpack.c.b16 %v1162, %v1158
        %v1411 = vpack.c.b16 %v1167, %v1163
        %v1412 = vpack.c.b16 %v1168, %v1164
        %v1413 = vpack.c.b16 %v1169, %v1165
        %v1414 = vpack.c.b16 %v1170, %v1166
        %v1415 = vpack.c.b16 %v1175, %v1171
        %v1416 = vpack.c.b16 %v1176, %v1172
        %v1417 = vpack.c.b16 %v1177, %v1173
        %v1418 = vpack.c.b16 %v1178, %v1174
        %v1419 = vpack.c.b16 %v1183, %v1179
        %v1420 = vpack.c.b16 %v1184, %v1180
        %v1421 = vpack.c.b16 %v1185, %v1181
        %v1422 = vpack.c.b16 %v1186, %v1182
        %v1423 = vpack.c.b16 %v1191, %v1187
        %v1424 = vpack.c.b16 %v1192, %v1188
        %v1425 = vpack.c.b16 %v1193, %v1189
        %v1426 = vpack.c.b16 %v1194, %v1190
        %v1427 = vpack.c.b16 %v1199, %v1195
        %v1428 = vpack.c.b16 %v1200, %v1196
        %v1429 = vpack.c.b16 %v1201, %v1197
        %v1430 = vpack.c.b16 %v1202, %v1198
        %v1431 = vpack.c.b16 %v1207, %v1203
        %v1432 = vpack.c.b16 %v1208, %v1204
        %v1433 = vpack.c.b16 %v1209, %v1205
        %v1434 = vpack.c.b16 %v1210, %v1206
        %v1435 = vpack.c.b16 %v1215, %v1211
        %v1436 = vpack.c.b16 %v1216, %v1212
        %v1437 = vpack.c.b16 %v1217, %v1213
        %v1438 = vpack.c.b16 %v1218, %v1214
        %v1439 = vpack.c.b16 %v1223, %v1219
        %v1440 = vpack.c.b16 %v1224, %v1220
        %v1441 = vpack.c.b16 %v1225, %v1221
        %v1442 = vpack.c.b16 %v1226, %v1222
        %v1443 = vpack.c.b16 %v1231, %v1227
        %v1444 = vpack.c.b16 %v1232, %v1228
        %v1445 = vpack.c.b16 %v1233, %v1229
        %v1446 = vpack.c.b16 %v1234, %v1230
        %v1447 = vpack.c.b16 %v1239, %v1235
        %v1448 = vpack.c.b16 %v1240, %v1236
        %v1449 = vpack.c.b16 %v1241, %v1237
        %v1450 = vpack.c.b16 %v1242, %v1238
        %v1451 = vpack.c.b16 %v1247, %v1243
        %v1452 = vpack.c.b16 %v1248, %v1244
        %v1453 = vpack.c.b16 %v1249, %v1245
        %v1454 = vpack.c.b16 %v1250, %v1246
        %v1455 = vpack.c.b16 %v1255, %v1251
        %v1456 = vpack.c.b16 %v1256, %v1252
        %v1457 = vpack.c.b16 %v1257, %v1253
        %v1458 = vpack.c.b16 %v1258, %v1254
        %v1459 = vpack.c.b16 %v1263, %v1259
        %v1460 = vpack.c.b16 %v1264, %v1260
        %v1461 = vpack.c.b16 %v1265, %v1261
        %v1462 = vpack.c.b16 %v1266, %v1262
        %v1463 = vpack.c.b16 %v1271, %v1267
        %v1464 = vpack.c.b16 %v1272, %v1268
        %v1465 = vpack.c.b16 %v1273, %v1269
        %v1466 = vpack.c.b16 %v1274, %v1270
        %v1467 = vpack.c.b16 %v1279, %v1275
        %v1468 = vpack.c.b16 %v1280, %v1276
        %v1469 = vpack.c.b16 %v1281, %v1277
        %v1470 = vpack.c.b16 %v1282, %v1278
        %v1471 = vpack.c.b16 %v1287, %v1283
        %v1472 = vpack.c.b16 %v1288, %v1284
        %v1473 = vpack.c.b16 %v1289, %v1285
        %v1474 = vpack.c.b16 %v1290, %v1286
        %v1475 = vpack.c.b16 %v1295, %v1291
        %v1476 = vpack.c.b16 %v1296, %v1292
        %v1477 = vpack.c.b16 %v1297, %v1293
        %v1478 = vpack.c.b16 %v1298, %v1294
        %v1479 = vpack.c.b16 %v1303, %v1299
        %v1480 = vpack.c.b16 %v1304, %v1300
        %v1481 = vpack.c.b16 %v1305, %v1301
        %v1482 = vpack.c.b16 %v1306, %v1302
        %v1483 = vpack.c.b16 %v1311, %v1307
        %v1484 = vpack.c.b16 %v1312, %v1308
        %v1485 = vpack.c.b16 %v1313, %v1309
        %v1486 = vpack.c.b16 %v1314, %v1310
        %v1487 = vpack.c.b16 %v1319, %v1315
        %v1488 = vpack.c.b16 %v1320, %v1316
        %v1489 = vpack.c.b16 %v1321, %v1317
        %v1490 = vpack.c.b16 %v1322, %v1318
        %v1491 = vpack.c.b16 %v1327, %v1323
        %v1492 = vpack.c.b16 %v1328, %v1324
        %v1493 = vpack.c.b16 %v1329, %v1325
        %v1494 = vpack.c.b16 %v1330, %v1326
        %v1495 = vpack.c.b16 %v1335, %v1331
        %v1496 = vpack.c.b16 %v1336, %v1332
        %v1497 = vpack.c.b16 %v1337, %v1333
        %v1498 = vpack.c.b16 %v1338, %v1334
        %v1499 = vpack.c.b16 %v1343, %v1339
        %v1500 = vpack.c.b16 %v1344, %v1340
        %v1501 = vpack.c.b16 %v1345, %v1341
        %v1502 = vpack.c.b16 %v1346, %v1342
        %v1503 = vpack.c.b16 %v1351, %v1347
        %v1504 = vpack.c.b16 %v1352, %v1348
        %v1505 = vpack.c.b16 %v1353, %v1349
        %v1506 = vpack.c.b16 %v1354, %v1350
        %v1507 = vpack.c.b16 %v1359, %v1355
        %v1508 = vpack.c.b16 %v1360, %v1356
        %v1509 = vpack.c.b16 %v1361, %v1357
        %v1510 = vpack.c.b16 %v1362, %v1358
        %v1511 = vpack.c.b16 %v1367, %v1363
        %v1512 = vpack.c.b16 %v1368, %v1364
        %v1513 = vpack.c.b16 %v1369, %v1365
        %v1514 = vpack.c.b16 %v1370, %v1366
        %v1515 = vpack.c.b16 %v1375, %v1371
        %v1516 = vpack.c.b16 %v1376, %v1372
        %v1517 = vpack.c.b16 %v1377, %v1373
        %v1518 = vpack.c.b16 %v1378, %v1374
        %v1519 = vpack.c.b16 %v1383, %v1379
        %v1520 = vpack.c.b16 %v1384, %v1380
        %v1521 = vpack.c.b16 %v1385, %v1381
        %v1522 = vpack.c.b16 %v1386, %v1382
        %v1523 = vpack.c.b16 %v1391, %v1387
        %v1524 = vpack.c.b16 %v1392, %v1388
        %v1525 = vpack.c.b16 %v1393, %v1389
        %v1526 = vpack.c.b16 %v1394, %v1390
        %v1527 = vpack.c.b16 %v1399, %v1395
        %v1528 = vpack.c.b16 %v1400, %v1396
        %v1529 = vpack.c.b16 %v1401, %v1397
        %v1530 = vpack.c.b16 %v1402, %v1398
        %1659 = vmatprep.subr.bf16.mxu0 %v1404
        %1660 = vmatpush1.bf16.msra.mxu0 %v1403
        %1661 = vmatprep.subr.bf16.mxu0 %v1408
        %1662 = vmatpush1.bf16.msra.mxu0 %v1407
        %1663 = vmatprep.subr.bf16.mxu0 %v1412
        %1664 = vmatpush1.bf16.msra.mxu0 %v1411
        %1665 = vmatprep.subr.bf16.mxu0 %v1416
        %1666 = vmatpush1.bf16.msra.mxu0 %v1415
        %1667 = vmatprep.subr.bf16.mxu0 %v1420
        %1668 = vmatpush1.bf16.msra.mxu0 %v1419
        %1669 = vmatprep.subr.bf16.mxu0 %v1424
        %1670 = vmatpush1.bf16.msra.mxu0 %v1423
        %1671 = vmatprep.subr.bf16.mxu0 %v1428
        %1672 = vmatpush1.bf16.msra.mxu0 %v1427
        %1673 = vmatprep.subr.bf16.mxu0 %v1432
        %1674 = vmatpush1.bf16.msra.mxu0 %v1431
        %1675 = vmatprep.subr.bf16.mxu0 %v1436
        %1676 = vmatpush1.bf16.msra.mxu0 %v1435
        %1677 = vmatprep.subr.bf16.mxu0 %v1440
        %1678 = vmatpush1.bf16.msra.mxu0 %v1439
        %1679 = vmatprep.subr.bf16.mxu0 %v1444
        %1680 = vmatpush1.bf16.msra.mxu0 %v1443
        %1681 = vmatprep.subr.bf16.mxu0 %v1448
        %1682 = vmatpush1.bf16.msra.mxu0 %v1447
        %1683 = vmatprep.subr.bf16.mxu0 %v1452
        %1684 = vmatpush1.bf16.msra.mxu0 %v1451
        %1685 = vmatprep.subr.bf16.mxu0 %v1456
        %1686 = vmatpush1.bf16.msra.mxu0 %v1455
        %1687 = vmatprep.subr.bf16.mxu0 %v1460
        %1688 = vmatpush1.bf16.msra.mxu0 %v1459
        %1689 = vmatprep.subr.bf16.mxu0 %v1464
        %1690 = vmatpush1.bf16.msra.mxu0 %v1463
        %1691 = vmatprep.mubr.bf16.mxu0 %v892
        %1692 = vmatmul.mubr.bf16.gmra.mrb[0].mxu0 %v891
        %v1693 = vpop.f32.mrb[0].mxu0
        %v1694 = vadd.f32 0.0, %v1693
        %v1695 = vpop.f32.mrb[0].mxu0
        %v1696 = vadd.f32 0.0, %v1695
        %v1697 = vpop.f32.mrb[0].mxu0
        %v1698 = vadd.f32 0.0, %v1697
        %v1699 = vpop.f32.mrb[0].mxu0
        %v1700 = vadd.f32 0.0, %v1699
        %1701 = vmatprep.mubr.bf16.mxu0 %v896
        %1702 = vmatmul.mubr.bf16.gmra.mrb[0].mxu0 %v895
        %v1703 = vpop.f32.mrb[0].mxu0
        %v1704 = vadd.f32 0.0, %v1703
        %v1705 = vpop.f32.mrb[0].mxu0
        %v1706 = vadd.f32 0.0, %v1705
        %v1707 = vpop.f32.mrb[0].mxu0
        %v1708 = vadd.f32 0.0, %v1707
        %v1709 = vpop.f32.mrb[0].mxu0
        %v1710 = vadd.f32 0.0, %v1709
        %1711 = vmatprep.mubr.bf16.mxu0 %v900
        %1712 = vmatmul.mubr.bf16.gmra.mrb[0].mxu0 %v899
        %v1713 = vpop.f32.mrb[0].mxu0
        %v1714 = vadd.f32 0.0, %v1713
        %v1715 = vpop.f32.mrb[0].mxu0
        %v1716 = vadd.f32 0.0, %v1715
        %v1717 = vpop.f32.mrb[0].mxu0
        %v1718 = vadd.f32 0.0, %v1717
        %v1719 = vpop.f32.mrb[0].mxu0
        %v1720 = vadd.f32 0.0, %v1719
        %1721 = vmatprep.mubr.bf16.mxu0 %v904
        %1722 = vmatmul.mubr.bf16.gmra.mrb[0].mxu0 %v903
        %v1723 = vpop.f32.mrb[0].mxu0
        %v1724 = vadd.f32 0.0, %v1723
        %v1725 = vpop.f32.mrb[0].mxu0
        %v1726 = vadd.f32 0.0, %v1725
        %v1727 = vpop.f32.mrb[0].mxu0
        %v1728 = vadd.f32 0.0, %v1727
        %v1729 = vpop.f32.mrb[0].mxu0
        %v1730 = vadd.f32 0.0, %v1729
        %1731 = vmatprep.mubr.bf16.mxu0 %v908
        %1732 = vmatmul.mubr.bf16.gmra.mrb[0].mxu0 %v907
        %v1733 = vpop.f32.mrb[0].mxu0
        %v1734 = vadd.f32 0.0, %v1733
        %v1735 = vpop.f32.mrb[0].mxu0
        %v1736 = vadd.f32 0.0, %v1735
        %v1737 = vpop.f32.mrb[0].mxu0
        %v1738 = vadd.f32 0.0, %v1737
        %v1739 = vpop.f32.mrb[0].mxu0
        %v1740 = vadd.f32 0.0, %v1739
        %1741 = vmatprep.mubr.bf16.mxu0 %v912
        %1742 = vmatmul.mubr.bf16.gmra.mrb[0].mxu0 %v911
        %v1743 = vpop.f32.mrb[0].mxu0
        %v1744 = vadd.f32 0.0, %v1743
        %v1745 = vpop.f32.mrb[0].mxu0
        %v1746 = vadd.f32 0.0, %v1745
        %v1747 = vpop.f32.mrb[0].mxu0
        %v1748 = vadd.f32 0.0, %v1747
        %v1749 = vpop.f32.mrb[0].mxu0
        %v1750 = vadd.f32 0.0, %v1749
        %1751 = vmatprep.mubr.bf16.mxu0 %v916
        %1752 = vmatmul.mubr.bf16.gmra.mrb[0].mxu0 %v915
        %v1753 = vpop.f32.mrb[0].mxu0
        %v1754 = vadd.f32 0.0, %v1753
        %v1755 = vpop.f32.mrb[0].mxu0
        %v1756 = vadd.f32 0.0, %v1755
        %v1757 = vpop.f32.mrb[0].mxu0
        %v1758 = vadd.f32 0.0, %v1757
        %v1759 = vpop.f32.mrb[0].mxu0
        %v1760 = vadd.f32 0.0, %v1759
        %1761 = vmatprep.mubr.bf16.mxu0 %v920
        %1762 = vmatmul.mubr.bf16.gmra.mrb[0].mxu0 %v919
        %v1763 = vpop.f32.mrb[0].mxu0
        %v1764 = vadd.f32 0.0, %v1763
        %v1765 = vpop.f32.mrb[0].mxu0
        %v1766 = vadd.f32 0.0, %v1765
        %v1767 = vpop.f32.mrb[0].mxu0
        %v1768 = vadd.f32 0.0, %v1767
        %v1769 = vpop.f32.mrb[0].mxu0
        %v1770 = vadd.f32 0.0, %v1769
        %1771 = vmatprep.mubr.bf16.mxu0 %v924
        %1772 = vmatmul.mubr.bf16.gmra.mrb[0].mxu0 %v923
        %v1773 = vpop.f32.mrb[0].mxu0
        %v1774 = vadd.f32 0.0, %v1773
        %v1775 = vpop.f32.mrb[0].mxu0
        %v1776 = vadd.f32 0.0, %v1775
        %v1777 = vpop.f32.mrb[0].mxu0
        %v1778 = vadd.f32 0.0, %v1777
        %v1779 = vpop.f32.mrb[0].mxu0
        %v1780 = vadd.f32 0.0, %v1779
        %1781 = vmatprep.mubr.bf16.mxu0 %v928
        %1782 = vmatmul.mubr.bf16.gmra.mrb[0].mxu0 %v927
        %v1783 = vpop.f32.mrb[0].mxu0
        %v1784 = vadd.f32 0.0, %v1783
        %v1785 = vpop.f32.mrb[0].mxu0
        %v1786 = vadd.f32 0.0, %v1785
        %v1787 = vpop.f32.mrb[0].mxu0
        %v1788 = vadd.f32 0.0, %v1787
        %v1789 = vpop.f32.mrb[0].mxu0
        %v1790 = vadd.f32 0.0, %v1789
        %1791 = vmatprep.mubr.bf16.mxu0 %v932
        %1792 = vmatmul.mubr.bf16.gmra.mrb[0].mxu0 %v931
        %v1793 = vpop.f32.mrb[0].mxu0
        %v1794 = vadd.f32 0.0, %v1793
        %v1795 = vpop.f32.mrb[0].mxu0
        %v1796 = vadd.f32 0.0, %v1795
        %v1797 = vpop.f32.mrb[0].mxu0
        %v1798 = vadd.f32 0.0, %v1797
        %v1799 = vpop.f32.mrb[0].mxu0
        %v1800 = vadd.f32 0.0, %v1799
        %1801 = vmatprep.mubr.bf16.mxu0 %v936
        %1802 = vmatmul.mubr.bf16.gmra.mrb[0].mxu0 %v935
        %v1803 = vpop.f32.mrb[0].mxu0
        %v1804 = vadd.f32 0.0, %v1803
        %v1805 = vpop.f32.mrb[0].mxu0
        %v1806 = vadd.f32 0.0, %v1805
        %v1807 = vpop.f32.mrb[0].mxu0
        %v1808 = vadd.f32 0.0, %v1807
        %v1809 = vpop.f32.mrb[0].mxu0
        %v1810 = vadd.f32 0.0, %v1809
        %1811 = vmatprep.mubr.bf16.mxu0 %v940
        %1812 = vmatmul.mubr.bf16.gmra.mrb[0].mxu0 %v939
        %v1813 = vpop.f32.mrb[0].mxu0
        %v1814 = vadd.f32 0.0, %v1813
        %v1815 = vpop.f32.mrb[0].mxu0
        %v1816 = vadd.f32 0.0, %v1815
        %v1817 = vpop.f32.mrb[0].mxu0
        %v1818 = vadd.f32 0.0, %v1817
        %v1819 = vpop.f32.mrb[0].mxu0
        %v1820 = vadd.f32 0.0, %v1819
        %1821 = vmatprep.mubr.bf16.mxu0 %v944
        %1822 = vmatmul.mubr.bf16.gmra.mrb[0].mxu0 %v943
        %v1823 = vpop.f32.mrb[0].mxu0
        %v1824 = vadd.f32 0.0, %v1823
        %v1825 = vpop.f32.mrb[0].mxu0
        %v1826 = vadd.f32 0.0, %v1825
        %v1827 = vpop.f32.mrb[0].mxu0
        %v1828 = vadd.f32 0.0, %v1827
        %v1829 = vpop.f32.mrb[0].mxu0
        %v1830 = vadd.f32 0.0, %v1829
        %1831 = vmatprep.mubr.bf16.mxu0 %v948
        %1832 = vmatmul.mubr.bf16.gmra.mrb[0].mxu0 %v947
        %v1833 = vpop.f32.mrb[0].mxu0
        %v1834 = vadd.f32 0.0, %v1833
        %v1835 = vpop.f32.mrb[0].mxu0
        %v1836 = vadd.f32 0.0, %v1835
        %v1837 = vpop.f32.mrb[0].mxu0
        %v1838 = vadd.f32 0.0, %v1837
        %v1839 = vpop.f32.mrb[0].mxu0
        %v1840 = vadd.f32 0.0, %v1839
        %1841 = vmatprep.mubr.bf16.mxu0 %v952
        %1842 = vmatmul.mubr.bf16.gmra.mrb[0].mxu0 %v951
        %v1843 = vpop.f32.mrb[0].mxu0
        %v1844 = vadd.f32 0.0, %v1843
        %v1845 = vpop.f32.mrb[0].mxu0
        %v1846 = vadd.f32 0.0, %v1845
        %v1847 = vpop.f32.mrb[0].mxu0
        %v1848 = vadd.f32 0.0, %v1847
        %v1849 = vpop.f32.mrb[0].mxu0
        %v1850 = vadd.f32 0.0, %v1849
        %1851 = vdwg.mxu0
        %1852 = vmatprep.subr.bf16.mxu0 %v1468
        %1853 = vmatpush1.bf16.msra.mxu0 %v1467
        %1854 = vmatprep.subr.bf16.mxu0 %v1472
        %1855 = vmatpush1.bf16.msra.mxu0 %v1471
        %1856 = vmatprep.subr.bf16.mxu0 %v1476
        %1857 = vmatpush1.bf16.msra.mxu0 %v1475
        %1858 = vmatprep.subr.bf16.mxu0 %v1480
        %1859 = vmatpush1.bf16.msra.mxu0 %v1479
        %1860 = vmatprep.subr.bf16.mxu0 %v1484
        %1861 = vmatpush1.bf16.msra.mxu0 %v1483
        %1862 = vmatprep.subr.bf16.mxu0 %v1488
        %1863 = vmatpush1.bf16.msra.mxu0 %v1487
        %1864 = vmatprep.subr.bf16.mxu0 %v1492
        %1865 = vmatpush1.bf16.msra.mxu0 %v1491
        %1866 = vmatprep.subr.bf16.mxu0 %v1496
        %1867 = vmatpush1.bf16.msra.mxu0 %v1495
        %1868 = vmatprep.subr.bf16.mxu0 %v1500
        %1869 = vmatpush1.bf16.msra.mxu0 %v1499
        %1870 = vmatprep.subr.bf16.mxu0 %v1504
        %1871 = vmatpush1.bf16.msra.mxu0 %v1503
        %1872 = vmatprep.subr.bf16.mxu0 %v1508
        %1873 = vmatpush1.bf16.msra.mxu0 %v1507
        %1874 = vmatprep.subr.bf16.mxu0 %v1512
        %1875 = vmatpush1.bf16.msra.mxu0 %v1511
        %1876 = vmatprep.subr.bf16.mxu0 %v1516
        %1877 = vmatpush1.bf16.msra.mxu0 %v1515
        %1878 = vmatprep.subr.bf16.mxu0 %v1520
        %1879 = vmatpush1.bf16.msra.mxu0 %v1519
        %1880 = vmatprep.subr.bf16.mxu0 %v1524
        %1881 = vmatpush1.bf16.msra.mxu0 %v1523
        %1882 = vmatprep.subr.bf16.mxu0 %v1528
        %1883 = vmatpush1.bf16.msra.mxu0 %v1527
        %1884 = vmatprep.mubr.bf16.mxu0 %v894
        %1885 = vmatmul.mubr.bf16.gmra.mrb[0].mxu0 %v893
        %v1886 = vpop.f32.mrb[0].mxu0
        %v1887 = vadd.f32 %v1694, %v1886
        %v1888 = vpop.f32.mrb[0].mxu0
        %v1889 = vadd.f32 %v1696, %v1888
        %v1890 = vpop.f32.mrb[0].mxu0
        %v1891 = vadd.f32 %v1698, %v1890
        %v1892 = vpop.f32.mrb[0].mxu0
        %v1893 = vadd.f32 %v1700, %v1892
        %1894 = vmatprep.mubr.bf16.mxu0 %v898
        %1895 = vmatmul.mubr.bf16.gmra.mrb[0].mxu0 %v897
        %v1896 = vpop.f32.mrb[0].mxu0
        %v1897 = vadd.f32 %v1704, %v1896
        %v1898 = vpop.f32.mrb[0].mxu0
        %v1899 = vadd.f32 %v1706, %v1898
        %v1900 = vpop.f32.mrb[0].mxu0
        %v1901 = vadd.f32 %v1708, %v1900
        %v1902 = vpop.f32.mrb[0].mxu0
        %v1903 = vadd.f32 %v1710, %v1902
        %1904 = vmatprep.mubr.bf16.mxu0 %v902
        %1905 = vmatmul.mubr.bf16.gmra.mrb[0].mxu0 %v901
        %v1906 = vpop.f32.mrb[0].mxu0
        %v1907 = vadd.f32 %v1714, %v1906
        %v1908 = vpop.f32.mrb[0].mxu0
        %v1909 = vadd.f32 %v1716, %v1908
        %v1910 = vpop.f32.mrb[0].mxu0
        %v1911 = vadd.f32 %v1718, %v1910
        %v1912 = vpop.f32.mrb[0].mxu0
        %v1913 = vadd.f32 %v1720, %v1912
        %1914 = vmatprep.mubr.bf16.mxu0 %v906
        %1915 = vmatmul.mubr.bf16.gmra.mrb[0].mxu0 %v905
        %v1916 = vpop.f32.mrb[0].mxu0
        %v1917 = vadd.f32 %v1724, %v1916
        %v1918 = vpop.f32.mrb[0].mxu0
        %v1919 = vadd.f32 %v1726, %v1918
        %v1920 = vpop.f32.mrb[0].mxu0
        %v1921 = vadd.f32 %v1728, %v1920
        %v1922 = vpop.f32.mrb[0].mxu0
        %v1923 = vadd.f32 %v1730, %v1922
        %1924 = vmatprep.mubr.bf16.mxu0 %v910
        %1925 = vmatmul.mubr.bf16.gmra.mrb[0].mxu0 %v909
        %v1926 = vpop.f32.mrb[0].mxu0
        %v1927 = vadd.f32 %v1734, %v1926
        %v1928 = vpop.f32.mrb[0].mxu0
        %v1929 = vadd.f32 %v1736, %v1928
        %v1930 = vpop.f32.mrb[0].mxu0
        %v1931 = vadd.f32 %v1738, %v1930
        %v1932 = vpop.f32.mrb[0].mxu0
        %v1933 = vadd.f32 %v1740, %v1932
        %1934 = vmatprep.mubr.bf16.mxu0 %v914
        %1935 = vmatmul.mubr.bf16.gmra.mrb[0].mxu0 %v913
        %v1936 = vpop.f32.mrb[0].mxu0
        %v1937 = vadd.f32 %v1744, %v1936
        %v1938 = vpop.f32.mrb[0].mxu0
        %v1939 = vadd.f32 %v1746, %v1938
        %v1940 = vpop.f32.mrb[0].mxu0
        %v1941 = vadd.f32 %v1748, %v1940
        %v1942 = vpop.f32.mrb[0].mxu0
        %v1943 = vadd.f32 %v1750, %v1942
        %1944 = vmatprep.mubr.bf16.mxu0 %v918
        %1945 = vmatmul.mubr.bf16.gmra.mrb[0].mxu0 %v917
        %v1946 = vpop.f32.mrb[0].mxu0
        %v1947 = vadd.f32 %v1754, %v1946
        %v1948 = vpop.f32.mrb[0].mxu0
        %v1949 = vadd.f32 %v1756, %v1948
        %v1950 = vpop.f32.mrb[0].mxu0
        %v1951 = vadd.f32 %v1758, %v1950
        %v1952 = vpop.f32.mrb[0].mxu0
        %v1953 = vadd.f32 %v1760, %v1952
        %1954 = vmatprep.mubr.bf16.mxu0 %v922
        %1955 = vmatmul.mubr.bf16.gmra.mrb[0].mxu0 %v921
        %v1956 = vpop.f32.mrb[0].mxu0
        %v1957 = vadd.f32 %v1764, %v1956
        %v1958 = vpop.f32.mrb[0].mxu0
        %v1959 = vadd.f32 %v1766, %v1958
        %v1960 = vpop.f32.mrb[0].mxu0
        %v1961 = vadd.f32 %v1768, %v1960
        %v1962 = vpop.f32.mrb[0].mxu0
        %v1963 = vadd.f32 %v1770, %v1962
        %1964 = vmatprep.mubr.bf16.mxu0 %v926
        %1965 = vmatmul.mubr.bf16.gmra.mrb[0].mxu0 %v925
        %v1966 = vpop.f32.mrb[0].mxu0
        %v1967 = vadd.f32 %v1774, %v1966
        %v1968 = vpop.f32.mrb[0].mxu0
        %v1969 = vadd.f32 %v1776, %v1968
        %v1970 = vpop.f32.mrb[0].mxu0
        %v1971 = vadd.f32 %v1778, %v1970
        %v1972 = vpop.f32.mrb[0].mxu0
        %v1973 = vadd.f32 %v1780, %v1972
        %1974 = vmatprep.mubr.bf16.mxu0 %v930
        %1975 = vmatmul.mubr.bf16.gmra.mrb[0].mxu0 %v929
        %v1976 = vpop.f32.mrb[0].mxu0
        %v1977 = vadd.f32 %v1784, %v1976
        %v1978 = vpop.f32.mrb[0].mxu0
        %v1979 = vadd.f32 %v1786, %v1978
        %v1980 = vpop.f32.mrb[0].mxu0
        %v1981 = vadd.f32 %v1788, %v1980
        %v1982 = vpop.f32.mrb[0].mxu0
        %v1983 = vadd.f32 %v1790, %v1982
        %1984 = vmatprep.mubr.bf16.mxu0 %v934
        %1985 = vmatmul.mubr.bf16.gmra.mrb[0].mxu0 %v933
        %v1986 = vpop.f32.mrb[0].mxu0
        %v1987 = vadd.f32 %v1794, %v1986
        %v1988 = vpop.f32.mrb[0].mxu0
        %v1989 = vadd.f32 %v1796, %v1988
        %v1990 = vpop.f32.mrb[0].mxu0
        %v1991 = vadd.f32 %v1798, %v1990
        %v1992 = vpop.f32.mrb[0].mxu0
        %v1993 = vadd.f32 %v1800, %v1992
        %1994 = vmatprep.mubr.bf16.mxu0 %v938
        %1995 = vmatmul.mubr.bf16.gmra.mrb[0].mxu0 %v937
        %v1996 = vpop.f32.mrb[0].mxu0
        %v1997 = vadd.f32 %v1804, %v1996
        %v1998 = vpop.f32.mrb[0].mxu0
        %v1999 = vadd.f32 %v1806, %v1998
        %v2000 = vpop.f32.mrb[0].mxu0
        %v2001 = vadd.f32 %v1808, %v2000
        %v2002 = vpop.f32.mrb[0].mxu0
        %v2003 = vadd.f32 %v1810, %v2002
        %2004 = vmatprep.mubr.bf16.mxu0 %v942
        %2005 = vmatmul.mubr.bf16.gmra.mrb[0].mxu0 %v941
        %v2006 = vpop.f32.mrb[0].mxu0
        %v2007 = vadd.f32 %v1814, %v2006
        %v2008 = vpop.f32.mrb[0].mxu0
        %v2009 = vadd.f32 %v1816, %v2008
        %v2010 = vpop.f32.mrb[0].mxu0
        %v2011 = vadd.f32 %v1818, %v2010
        %v2012 = vpop.f32.mrb[0].mxu0
        %v2013 = vadd.f32 %v1820, %v2012
        %2014 = vmatprep.mubr.bf16.mxu0 %v946
        %2015 = vmatmul.mubr.bf16.gmra.mrb[0].mxu0 %v945
        %v2016 = vpop.f32.mrb[0].mxu0
        %v2017 = vadd.f32 %v1824, %v2016
        %v2018 = vpop.f32.mrb[0].mxu0
        %v2019 = vadd.f32 %v1826, %v2018
        %v2020 = vpop.f32.mrb[0].mxu0
        %v2021 = vadd.f32 %v1828, %v2020
        %v2022 = vpop.f32.mrb[0].mxu0
        %v2023 = vadd.f32 %v1830, %v2022
        %2024 = vmatprep.mubr.bf16.mxu0 %v950
        %2025 = vmatmul.mubr.bf16.gmra.mrb[0].mxu0 %v949
        %v2026 = vpop.f32.mrb[0].mxu0
        %v2027 = vadd.f32 %v1834, %v2026
        %v2028 = vpop.f32.mrb[0].mxu0
        %v2029 = vadd.f32 %v1836, %v2028
        %v2030 = vpop.f32.mrb[0].mxu0
        %v2031 = vadd.f32 %v1838, %v2030
        %v2032 = vpop.f32.mrb[0].mxu0
        %v2033 = vadd.f32 %v1840, %v2032
        %2034 = vmatprep.mubr.bf16.mxu0 %v954
        %2035 = vmatmul.mubr.bf16.gmra.mrb[0].mxu0 %v953
        %v2036 = vpop.f32.mrb[0].mxu0
        %v2037 = vadd.f32 %v1844, %v2036
        %v2038 = vpop.f32.mrb[0].mxu0
        %v2039 = vadd.f32 %v1846, %v2038
        %v2040 = vpop.f32.mrb[0].mxu0
        %v2041 = vadd.f32 %v1848, %v2040
        %v2042 = vpop.f32.mrb[0].mxu0
        %v2043 = vadd.f32 %v1850, %v2042
        %2044 = vdwg.mxu0
        %2045 = vmatprep.subr.bf16.mxu0 %v1406
        %2046 = vmatpush1.bf16.msra.mxu0 %v1405
        %2047 = vmatprep.subr.bf16.mxu0 %v1410
        %2048 = vmatpush1.bf16.msra.mxu0 %v1409
        %2049 = vmatprep.subr.bf16.mxu0 %v1414
        %2050 = vmatpush1.bf16.msra.mxu0 %v1413
        %2051 = vmatprep.subr.bf16.mxu0 %v1418
        %2052 = vmatpush1.bf16.msra.mxu0 %v1417
        %2053 = vmatprep.subr.bf16.mxu0 %v1422
        %2054 = vmatpush1.bf16.msra.mxu0 %v1421
        %2055 = vmatprep.subr.bf16.mxu0 %v1426
        %2056 = vmatpush1.bf16.msra.mxu0 %v1425
        %2057 = vmatprep.subr.bf16.mxu0 %v1430
        %2058 = vmatpush1.bf16.msra.mxu0 %v1429
        %2059 = vmatprep.subr.bf16.mxu0 %v1434
        %2060 = vmatpush1.bf16.msra.mxu0 %v1433
        %2061 = vmatprep.subr.bf16.mxu0 %v1438
        %2062 = vmatpush1.bf16.msra.mxu0 %v1437
        %2063 = vmatprep.subr.bf16.mxu0 %v1442
        %2064 = vmatpush1.bf16.msra.mxu0 %v1441
        %2065 = vmatprep.subr.bf16.mxu0 %v1446
        %2066 = vmatpush1.bf16.msra.mxu0 %v1445
        %2067 = vmatprep.subr.bf16.mxu0 %v1450
        %2068 = vmatpush1.bf16.msra.mxu0 %v1449
        %2069 = vmatprep.subr.bf16.mxu0 %v1454
        %2070 = vmatpush1.bf16.msra.mxu0 %v1453
        %2071 = vmatprep.subr.bf16.mxu0 %v1458
        %2072 = vmatpush1.bf16.msra.mxu0 %v1457
        %2073 = vmatprep.subr.bf16.mxu0 %v1462
        %2074 = vmatpush1.bf16.msra.mxu0 %v1461
        %2075 = vmatprep.subr.bf16.mxu0 %v1466
        %2076 = vmatpush1.bf16.msra.mxu0 %v1465
        %2077 = vmatprep.mubr.bf16.mxu0 %v892
        %2078 = vmatmul.mubr.bf16.gmra.mrb[0].mxu0 %v891
        %v2079 = vpop.f32.mrb[0].mxu0
        %v2080 = vadd.f32 0.0, %v2079
        %v2081 = vpop.f32.mrb[0].mxu0
        %v2082 = vadd.f32 0.0, %v2081
        %v2083 = vpop.f32.mrb[0].mxu0
        %v2084 = vadd.f32 0.0, %v2083
        %v2085 = vpop.f32.mrb[0].mxu0
        %v2086 = vadd.f32 0.0, %v2085
        %2087 = vmatprep.mubr.bf16.mxu0 %v896
        %2088 = vmatmul.mubr.bf16.gmra.mrb[0].mxu0 %v895
        %v2089 = vpop.f32.mrb[0].mxu0
        %v2090 = vadd.f32 0.0, %v2089
        %v2091 = vpop.f32.mrb[0].mxu0
        %v2092 = vadd.f32 0.0, %v2091
        %v2093 = vpop.f32.mrb[0].mxu0
        %v2094 = vadd.f32 0.0, %v2093
        %v2095 = vpop.f32.mrb[0].mxu0
        %v2096 = vadd.f32 0.0, %v2095
        %2097 = vmatprep.mubr.bf16.mxu0 %v900
        %2098 = vmatmul.mubr.bf16.gmra.mrb[0].mxu0 %v899
        %v2099 = vpop.f32.mrb[0].mxu0
        %v2100 = vadd.f32 0.0, %v2099
        %v2101 = vpop.f32.mrb[0].mxu0
        %v2102 = vadd.f32 0.0, %v2101
        %v2103 = vpop.f32.mrb[0].mxu0
        %v2104 = vadd.f32 0.0, %v2103
        %v2105 = vpop.f32.mrb[0].mxu0
        %v2106 = vadd.f32 0.0, %v2105
        %2107 = vmatprep.mubr.bf16.mxu0 %v904
        %2108 = vmatmul.mubr.bf16.gmra.mrb[0].mxu0 %v903
        %v2109 = vpop.f32.mrb[0].mxu0
        %v2110 = vadd.f32 0.0, %v2109
        %v2111 = vpop.f32.mrb[0].mxu0
        %v2112 = vadd.f32 0.0, %v2111
        %v2113 = vpop.f32.mrb[0].mxu0
        %v2114 = vadd.f32 0.0, %v2113
        %v2115 = vpop.f32.mrb[0].mxu0
        %v2116 = vadd.f32 0.0, %v2115
        %2117 = vmatprep.mubr.bf16.mxu0 %v908
        %2118 = vmatmul.mubr.bf16.gmra.mrb[0].mxu0 %v907
        %v2119 = vpop.f32.mrb[0].mxu0
        %v2120 = vadd.f32 0.0, %v2119
        %v2121 = vpop.f32.mrb[0].mxu0
        %v2122 = vadd.f32 0.0, %v2121
        %v2123 = vpop.f32.mrb[0].mxu0
        %v2124 = vadd.f32 0.0, %v2123
        %v2125 = vpop.f32.mrb[0].mxu0
        %v2126 = vadd.f32 0.0, %v2125
        %2127 = vmatprep.mubr.bf16.mxu0 %v912
        %2128 = vmatmul.mubr.bf16.gmra.mrb[0].mxu0 %v911
        %v2129 = vpop.f32.mrb[0].mxu0
        %v2130 = vadd.f32 0.0, %v2129
        %v2131 = vpop.f32.mrb[0].mxu0
        %v2132 = vadd.f32 0.0, %v2131
        %v2133 = vpop.f32.mrb[0].mxu0
        %v2134 = vadd.f32 0.0, %v2133
        %v2135 = vpop.f32.mrb[0].mxu0
        %v2136 = vadd.f32 0.0, %v2135
        %2137 = vmatprep.mubr.bf16.mxu0 %v916
        %2138 = vmatmul.mubr.bf16.gmra.mrb[0].mxu0 %v915
        %v2139 = vpop.f32.mrb[0].mxu0
        %v2140 = vadd.f32 0.0, %v2139
        %v2141 = vpop.f32.mrb[0].mxu0
        %v2142 = vadd.f32 0.0, %v2141
        %v2143 = vpop.f32.mrb[0].mxu0
        %v2144 = vadd.f32 0.0, %v2143
        %v2145 = vpop.f32.mrb[0].mxu0
        %v2146 = vadd.f32 0.0, %v2145
        %2147 = vmatprep.mubr.bf16.mxu0 %v920
        %2148 = vmatmul.mubr.bf16.gmra.mrb[0].mxu0 %v919
        %v2149 = vpop.f32.mrb[0].mxu0
        %v2150 = vadd.f32 0.0, %v2149
        %v2151 = vpop.f32.mrb[0].mxu0
        %v2152 = vadd.f32 0.0, %v2151
        %v2153 = vpop.f32.mrb[0].mxu0
        %v2154 = vadd.f32 0.0, %v2153
        %v2155 = vpop.f32.mrb[0].mxu0
        %v2156 = vadd.f32 0.0, %v2155
        %2157 = vmatprep.mubr.bf16.mxu0 %v924
        %2158 = vmatmul.mubr.bf16.gmra.mrb[0].mxu0 %v923
        %v2159 = vpop.f32.mrb[0].mxu0
        %v2160 = vadd.f32 0.0, %v2159
        %v2161 = vpop.f32.mrb[0].mxu0
        %v2162 = vadd.f32 0.0, %v2161
        %v2163 = vpop.f32.mrb[0].mxu0
        %v2164 = vadd.f32 0.0, %v2163
        %v2165 = vpop.f32.mrb[0].mxu0
        %v2166 = vadd.f32 0.0, %v2165
        %2167 = vmatprep.mubr.bf16.mxu0 %v928
        %2168 = vmatmul.mubr.bf16.gmra.mrb[0].mxu0 %v927
        %v2169 = vpop.f32.mrb[0].mxu0
        %v2170 = vadd.f32 0.0, %v2169
        %v2171 = vpop.f32.mrb[0].mxu0
        %v2172 = vadd.f32 0.0, %v2171
        %v2173 = vpop.f32.mrb[0].mxu0
        %v2174 = vadd.f32 0.0, %v2173
        %v2175 = vpop.f32.mrb[0].mxu0
        %v2176 = vadd.f32 0.0, %v2175
        %2177 = vmatprep.mubr.bf16.mxu0 %v932
        %2178 = vmatmul.mubr.bf16.gmra.mrb[0].mxu0 %v931
        %v2179 = vpop.f32.mrb[0].mxu0
        %v2180 = vadd.f32 0.0, %v2179
        %v2181 = vpop.f32.mrb[0].mxu0
        %v2182 = vadd.f32 0.0, %v2181
        %v2183 = vpop.f32.mrb[0].mxu0
        %v2184 = vadd.f32 0.0, %v2183
        %v2185 = vpop.f32.mrb[0].mxu0
        %v2186 = vadd.f32 0.0, %v2185
        %2187 = vmatprep.mubr.bf16.mxu0 %v936
        %2188 = vmatmul.mubr.bf16.gmra.mrb[0].mxu0 %v935
        %v2189 = vpop.f32.mrb[0].mxu0
        %v2190 = vadd.f32 0.0, %v2189
        %v2191 = vpop.f32.mrb[0].mxu0
        %v2192 = vadd.f32 0.0, %v2191
        %v2193 = vpop.f32.mrb[0].mxu0
        %v2194 = vadd.f32 0.0, %v2193
        %v2195 = vpop.f32.mrb[0].mxu0
        %v2196 = vadd.f32 0.0, %v2195
        %2197 = vmatprep.mubr.bf16.mxu0 %v940
        %2198 = vmatmul.mubr.bf16.gmra.mrb[0].mxu0 %v939
        %v2199 = vpop.f32.mrb[0].mxu0
        %v2200 = vadd.f32 0.0, %v2199
        %v2201 = vpop.f32.mrb[0].mxu0
        %v2202 = vadd.f32 0.0, %v2201
        %v2203 = vpop.f32.mrb[0].mxu0
        %v2204 = vadd.f32 0.0, %v2203
        %v2205 = vpop.f32.mrb[0].mxu0
        %v2206 = vadd.f32 0.0, %v2205
        %2207 = vmatprep.mubr.bf16.mxu0 %v944
        %2208 = vmatmul.mubr.bf16.gmra.mrb[0].mxu0 %v943
        %v2209 = vpop.f32.mrb[0].mxu0
        %v2210 = vadd.f32 0.0, %v2209
        %v2211 = vpop.f32.mrb[0].mxu0
        %v2212 = vadd.f32 0.0, %v2211
        %v2213 = vpop.f32.mrb[0].mxu0
        %v2214 = vadd.f32 0.0, %v2213
        %v2215 = vpop.f32.mrb[0].mxu0
        %v2216 = vadd.f32 0.0, %v2215
        %2217 = vmatprep.mubr.bf16.mxu0 %v948
        %2218 = vmatmul.mubr.bf16.gmra.mrb[0].mxu0 %v947
        %v2219 = vpop.f32.mrb[0].mxu0
        %v2220 = vadd.f32 0.0, %v2219
        %v2221 = vpop.f32.mrb[0].mxu0
        %v2222 = vadd.f32 0.0, %v2221
        %v2223 = vpop.f32.mrb[0].mxu0
        %v2224 = vadd.f32 0.0, %v2223
        %v2225 = vpop.f32.mrb[0].mxu0
        %v2226 = vadd.f32 0.0, %v2225
        %2227 = vmatprep.mubr.bf16.mxu0 %v952
        %2228 = vmatmul.mubr.bf16.gmra.mrb[0].mxu0 %v951
        %v2229 = vpop.f32.mrb[0].mxu0
        %v2230 = vadd.f32 0.0, %v2229
        %v2231 = vpop.f32.mrb[0].mxu0
        %v2232 = vadd.f32 0.0, %v2231
        %v2233 = vpop.f32.mrb[0].mxu0
        %v2234 = vadd.f32 0.0, %v2233
        %v2235 = vpop.f32.mrb[0].mxu0
        %v2236 = vadd.f32 0.0, %v2235
        %2237 = vdwg.mxu0
        %2238 = vmatprep.subr.bf16.mxu0 %v1470
        %2239 = vmatpush1.bf16.msra.mxu0 %v1469
        %2240 = vmatprep.subr.bf16.mxu0 %v1474
        %2241 = vmatpush1.bf16.msra.mxu0 %v1473
        %2242 = vmatprep.subr.bf16.mxu0 %v1478
        %2243 = vmatpush1.bf16.msra.mxu0 %v1477
        %2244 = vmatprep.subr.bf16.mxu0 %v1482
        %2245 = vmatpush1.bf16.msra.mxu0 %v1481
        %2246 = vmatprep.subr.bf16.mxu0 %v1486
        %2247 = vmatpush1.bf16.msra.mxu0 %v1485
        %2248 = vmatprep.subr.bf16.mxu0 %v1490
        %2249 = vmatpush1.bf16.msra.mxu0 %v1489
        %2250 = vmatprep.subr.bf16.mxu0 %v1494
        %2251 = vmatpush1.bf16.msra.mxu0 %v1493
        %2252 = vmatprep.subr.bf16.mxu0 %v1498
        %2253 = vmatpush1.bf16.msra.mxu0 %v1497
        %2254 = vmatprep.subr.bf16.mxu0 %v1502
        %2255 = vmatpush1.bf16.msra.mxu0 %v1501
        %2256 = vmatprep.subr.bf16.mxu0 %v1506
        %2257 = vmatpush1.bf16.msra.mxu0 %v1505
        %2258 = vmatprep.subr.bf16.mxu0 %v1510
        %2259 = vmatpush1.bf16.msra.mxu0 %v1509
        %2260 = vmatprep.subr.bf16.mxu0 %v1514
        %2261 = vmatpush1.bf16.msra.mxu0 %v1513
        %2262 = vmatprep.subr.bf16.mxu0 %v1518
        %2263 = vmatpush1.bf16.msra.mxu0 %v1517
        %2264 = vmatprep.subr.bf16.mxu0 %v1522
        %2265 = vmatpush1.bf16.msra.mxu0 %v1521
        %2266 = vmatprep.subr.bf16.mxu0 %v1526
        %2267 = vmatpush1.bf16.msra.mxu0 %v1525
        %2268 = vmatprep.subr.bf16.mxu0 %v1530
        %2269 = vmatpush1.bf16.msra.mxu0 %v1529
        %2270 = vmatprep.mubr.bf16.mxu0 %v894
        %2271 = vmatmul.mubr.bf16.gmra.mrb[0].mxu0 %v893
        %v2272 = vpop.f32.mrb[0].mxu0
        %v2273 = vadd.f32 %v2080, %v2272
        %v2274 = vpop.f32.mrb[0].mxu0
        %v2275 = vadd.f32 %v2082, %v2274
        %v2276 = vpop.f32.mrb[0].mxu0
        %v2277 = vadd.f32 %v2084, %v2276
        %v2278 = vpop.f32.mrb[0].mxu0
        %v2279 = vadd.f32 %v2086, %v2278
        %2280 = vmatprep.mubr.bf16.mxu0 %v898
        %2281 = vmatmul.mubr.bf16.gmra.mrb[0].mxu0 %v897
        %v2282 = vpop.f32.mrb[0].mxu0
        %v2283 = vadd.f32 %v2090, %v2282
        %v2284 = vpop.f32.mrb[0].mxu0
        %v2285 = vadd.f32 %v2092, %v2284
        %v2286 = vpop.f32.mrb[0].mxu0
        %v2287 = vadd.f32 %v2094, %v2286
        %v2288 = vpop.f32.mrb[0].mxu0
        %v2289 = vadd.f32 %v2096, %v2288
        %2290 = vmatprep.mubr.bf16.mxu0 %v902
        %2291 = vmatmul.mubr.bf16.gmra.mrb[0].mxu0 %v901
        %v2292 = vpop.f32.mrb[0].mxu0
        %v2293 = vadd.f32 %v2100, %v2292
        %v2294 = vpop.f32.mrb[0].mxu0
        %v2295 = vadd.f32 %v2102, %v2294
        %v2296 = vpop.f32.mrb[0].mxu0
        %v2297 = vadd.f32 %v2104, %v2296
        %v2298 = vpop.f32.mrb[0].mxu0
        %v2299 = vadd.f32 %v2106, %v2298
        %2300 = vmatprep.mubr.bf16.mxu0 %v906
        %2301 = vmatmul.mubr.bf16.gmra.mrb[0].mxu0 %v905
        %v2302 = vpop.f32.mrb[0].mxu0
        %v2303 = vadd.f32 %v2110, %v2302
        %v2304 = vpop.f32.mrb[0].mxu0
        %v2305 = vadd.f32 %v2112, %v2304
        %v2306 = vpop.f32.mrb[0].mxu0
        %v2307 = vadd.f32 %v2114, %v2306
        %v2308 = vpop.f32.mrb[0].mxu0
        %v2309 = vadd.f32 %v2116, %v2308
        %2310 = vmatprep.mubr.bf16.mxu0 %v910
        %2311 = vmatmul.mubr.bf16.gmra.mrb[0].mxu0 %v909
        %v2312 = vpop.f32.mrb[0].mxu0
        %v2313 = vadd.f32 %v2120, %v2312
        %v2314 = vpop.f32.mrb[0].mxu0
        %v2315 = vadd.f32 %v2122, %v2314
        %v2316 = vpop.f32.mrb[0].mxu0
        %v2317 = vadd.f32 %v2124, %v2316
        %v2318 = vpop.f32.mrb[0].mxu0
        %v2319 = vadd.f32 %v2126, %v2318
        %2320 = vmatprep.mubr.bf16.mxu0 %v914
        %2321 = vmatmul.mubr.bf16.gmra.mrb[0].mxu0 %v913
        %v2322 = vpop.f32.mrb[0].mxu0
        %v2323 = vadd.f32 %v2130, %v2322
        %v2324 = vpop.f32.mrb[0].mxu0
        %v2325 = vadd.f32 %v2132, %v2324
        %v2326 = vpop.f32.mrb[0].mxu0
        %v2327 = vadd.f32 %v2134, %v2326
        %v2328 = vpop.f32.mrb[0].mxu0
        %v2329 = vadd.f32 %v2136, %v2328
        %2330 = vmatprep.mubr.bf16.mxu0 %v918
        %2331 = vmatmul.mubr.bf16.gmra.mrb[0].mxu0 %v917
        %v2332 = vpop.f32.mrb[0].mxu0
        %v2333 = vadd.f32 %v2140, %v2332
        %v2334 = vpop.f32.mrb[0].mxu0
        %v2335 = vadd.f32 %v2142, %v2334
        %v2336 = vpop.f32.mrb[0].mxu0
        %v2337 = vadd.f32 %v2144, %v2336
        %v2338 = vpop.f32.mrb[0].mxu0
        %v2339 = vadd.f32 %v2146, %v2338
        %2340 = vmatprep.mubr.bf16.mxu0 %v922
        %2341 = vmatmul.mubr.bf16.gmra.mrb[0].mxu0 %v921
        %v2342 = vpop.f32.mrb[0].mxu0
        %v2343 = vadd.f32 %v2150, %v2342
        %v2344 = vpop.f32.mrb[0].mxu0
        %v2345 = vadd.f32 %v2152, %v2344
        %v2346 = vpop.f32.mrb[0].mxu0
        %v2347 = vadd.f32 %v2154, %v2346
        %v2348 = vpop.f32.mrb[0].mxu0
        %v2349 = vadd.f32 %v2156, %v2348
        %2350 = vmatprep.mubr.bf16.mxu0 %v926
        %2351 = vmatmul.mubr.bf16.gmra.mrb[0].mxu0 %v925
        %v2352 = vpop.f32.mrb[0].mxu0
        %v2353 = vadd.f32 %v2160, %v2352
        %v2354 = vpop.f32.mrb[0].mxu0
        %v2355 = vadd.f32 %v2162, %v2354
        %v2356 = vpop.f32.mrb[0].mxu0
        %v2357 = vadd.f32 %v2164, %v2356
        %v2358 = vpop.f32.mrb[0].mxu0
        %v2359 = vadd.f32 %v2166, %v2358
        %2360 = vmatprep.mubr.bf16.mxu0 %v930
        %2361 = vmatmul.mubr.bf16.gmra.mrb[0].mxu0 %v929
        %v2362 = vpop.f32.mrb[0].mxu0
        %v2363 = vadd.f32 %v2170, %v2362
        %v2364 = vpop.f32.mrb[0].mxu0
        %v2365 = vadd.f32 %v2172, %v2364
        %v2366 = vpop.f32.mrb[0].mxu0
        %v2367 = vadd.f32 %v2174, %v2366
        %v2368 = vpop.f32.mrb[0].mxu0
        %v2369 = vadd.f32 %v2176, %v2368
        %2370 = vmatprep.mubr.bf16.mxu0 %v934
        %2371 = vmatmul.mubr.bf16.gmra.mrb[0].mxu0 %v933
        %v2372 = vpop.f32.mrb[0].mxu0
        %v2373 = vadd.f32 %v2180, %v2372
        %v2374 = vpop.f32.mrb[0].mxu0
        %v2375 = vadd.f32 %v2182, %v2374
        %v2376 = vpop.f32.mrb[0].mxu0
        %v2377 = vadd.f32 %v2184, %v2376
        %v2378 = vpop.f32.mrb[0].mxu0
        %v2379 = vadd.f32 %v2186, %v2378
        %2380 = vmatprep.mubr.bf16.mxu0 %v938
        %2381 = vmatmul.mubr.bf16.gmra.mrb[0].mxu0 %v937
        %v2382 = vpop.f32.mrb[0].mxu0
        %v2383 = vadd.f32 %v2190, %v2382
        %v2384 = vpop.f32.mrb[0].mxu0
        %v2385 = vadd.f32 %v2192, %v2384
        %v2386 = vpop.f32.mrb[0].mxu0
        %v2387 = vadd.f32 %v2194, %v2386
        %v2388 = vpop.f32.mrb[0].mxu0
        %v2389 = vadd.f32 %v2196, %v2388
        %2390 = vmatprep.mubr.bf16.mxu0 %v942
        %2391 = vmatmul.mubr.bf16.gmra.mrb[0].mxu0 %v941
        %v2392 = vpop.f32.mrb[0].mxu0
        %v2393 = vadd.f32 %v2200, %v2392
        %v2394 = vpop.f32.mrb[0].mxu0
        %v2395 = vadd.f32 %v2202, %v2394
        %v2396 = vpop.f32.mrb[0].mxu0
        %v2397 = vadd.f32 %v2204, %v2396
        %v2398 = vpop.f32.mrb[0].mxu0
        %v2399 = vadd.f32 %v2206, %v2398
        %2400 = vmatprep.mubr.bf16.mxu0 %v946
        %2401 = vmatmul.mubr.bf16.gmra.mrb[0].mxu0 %v945
        %v2402 = vpop.f32.mrb[0].mxu0
        %v2403 = vadd.f32 %v2210, %v2402
        %v2404 = vpop.f32.mrb[0].mxu0
        %v2405 = vadd.f32 %v2212, %v2404
        %v2406 = vpop.f32.mrb[0].mxu0
        %v2407 = vadd.f32 %v2214, %v2406
        %v2408 = vpop.f32.mrb[0].mxu0
        %v2409 = vadd.f32 %v2216, %v2408
        %2410 = vmatprep.mubr.bf16.mxu0 %v950
        %2411 = vmatmul.mubr.bf16.gmra.mrb[0].mxu0 %v949
        %v2412 = vpop.f32.mrb[0].mxu0
        %v2413 = vadd.f32 %v2220, %v2412
        %v2414 = vpop.f32.mrb[0].mxu0
        %v2415 = vadd.f32 %v2222, %v2414
        %v2416 = vpop.f32.mrb[0].mxu0
        %v2417 = vadd.f32 %v2224, %v2416
        %v2418 = vpop.f32.mrb[0].mxu0
        %v2419 = vadd.f32 %v2226, %v2418
        %2420 = vmatprep.mubr.bf16.mxu0 %v954
        %2421 = vmatmul.mubr.bf16.gmra.mrb[0].mxu0 %v953
        %v2422 = vpop.f32.mrb[0].mxu0
        %v2423 = vadd.f32 %v2230, %v2422
        %v2424 = vpop.f32.mrb[0].mxu0
        %v2425 = vadd.f32 %v2232, %v2424
        %v2426 = vpop.f32.mrb[0].mxu0
        %v2427 = vadd.f32 %v2234, %v2426
        %v2428 = vpop.f32.mrb[0].mxu0
        %v2429 = vadd.f32 %v2236, %v2428
        %2430 = vdwg.mxu0
        %v2431 = vld [vmem:[%s319] sm:$0xff]
        %v2432 = vld [vmem:[%s319 + $0x8] sm:$0xff]
        %v2433 = vld [vmem:[%s319 + $0x10] sm:$0xff]
        %v2434 = vld [vmem:[%s319 + $0x18] sm:$0xff]
        %v2435 = vld [vmem:[%s319 + $0x20] sm:$0xff]
        %v2436 = vld [vmem:[%s319 + $0x28] sm:$0xff]
        %v2437 = vld [vmem:[%s319 + $0x30] sm:$0xff]
        %v2438 = vld [vmem:[%s319 + $0x38] sm:$0xff]
        %v2439 = vld [vmem:[%s319 + $0x40] sm:$0xff]
        %v2440 = vld [vmem:[%s319 + $0x48] sm:$0xff]
        %v2441 = vld [vmem:[%s319 + $0x50] sm:$0xff]
        %v2442 = vld [vmem:[%s319 + $0x58] sm:$0xff]
        %v2443 = vld [vmem:[%s319 + $0x60] sm:$0xff]
        %v2444 = vld [vmem:[%s319 + $0x68] sm:$0xff]
        %v2445 = vld [vmem:[%s319 + $0x70] sm:$0xff]
        %v2446 = vld [vmem:[%s319 + $0x78] sm:$0xff]
        %v2447 = vld [vmem:[%s319 + $0x80] sm:$0xff]
        %v2448 = vld [vmem:[%s319 + $0x88] sm:$0xff]
        %v2449 = vld [vmem:[%s319 + $0x90] sm:$0xff]
        %v2450 = vld [vmem:[%s319 + $0x98] sm:$0xff]
        %v2451 = vld [vmem:[%s319 + $0xa0] sm:$0xff]
        %v2452 = vld [vmem:[%s319 + $0xa8] sm:$0xff]
        %v2453 = vld [vmem:[%s319 + $0xb0] sm:$0xff]
        %v2454 = vld [vmem:[%s319 + $0xb8] sm:$0xff]
        %v2455 = vld [vmem:[%s319 + $0xc0] sm:$0xff]
        %v2456 = vld [vmem:[%s319 + $0xc8] sm:$0xff]
        %v2457 = vld [vmem:[%s319 + $0xd0] sm:$0xff]
        %v2458 = vld [vmem:[%s319 + $0xd8] sm:$0xff]
        %v2459 = vld [vmem:[%s319 + $0xe0] sm:$0xff]
        %v2460 = vld [vmem:[%s319 + $0xe8] sm:$0xff]
        %v2461 = vld [vmem:[%s319 + $0xf0] sm:$0xff]
        %v2462 = vld [vmem:[%s319 + $0xf8] sm:$0xff]
        %v2463 = vld [vmem:[%s319 + $0x100] sm:$0xff]
        %v2464 = vld [vmem:[%s319 + $0x108] sm:$0xff]
        %v2465 = vld [vmem:[%s319 + $0x110] sm:$0xff]
        %v2466 = vld [vmem:[%s319 + $0x118] sm:$0xff]
        %v2467 = vld [vmem:[%s319 + $0x120] sm:$0xff]
        %v2468 = vld [vmem:[%s319 + $0x128] sm:$0xff]
        %v2469 = vld [vmem:[%s319 + $0x130] sm:$0xff]
        %v2470 = vld [vmem:[%s319 + $0x138] sm:$0xff]
        %v2471 = vld [vmem:[%s319 + $0x140] sm:$0xff]
        %v2472 = vld [vmem:[%s319 + $0x148] sm:$0xff]
        %v2473 = vld [vmem:[%s319 + $0x150] sm:$0xff]
        %v2474 = vld [vmem:[%s319 + $0x158] sm:$0xff]
        %v2475 = vld [vmem:[%s319 + $0x160] sm:$0xff]
        %v2476 = vld [vmem:[%s319 + $0x168] sm:$0xff]
        %v2477 = vld [vmem:[%s319 + $0x170] sm:$0xff]
        %v2478 = vld [vmem:[%s319 + $0x178] sm:$0xff]
        %v2479 = vld [vmem:[%s319 + $0x180] sm:$0xff]
        %v2480 = vld [vmem:[%s319 + $0x188] sm:$0xff]
        %v2481 = vld [vmem:[%s319 + $0x190] sm:$0xff]
        %v2482 = vld [vmem:[%s319 + $0x198] sm:$0xff]
        %v2483 = vld [vmem:[%s319 + $0x1a0] sm:$0xff]
        %v2484 = vld [vmem:[%s319 + $0x1a8] sm:$0xff]
        %v2485 = vld [vmem:[%s319 + $0x1b0] sm:$0xff]
        %v2486 = vld [vmem:[%s319 + $0x1b8] sm:$0xff]
        %v2487 = vld [vmem:[%s319 + $0x1c0] sm:$0xff]
        %v2488 = vld [vmem:[%s319 + $0x1c8] sm:$0xff]
        %v2489 = vld [vmem:[%s319 + $0x1d0] sm:$0xff]
        %v2490 = vld [vmem:[%s319 + $0x1d8] sm:$0xff]
        %v2491 = vld [vmem:[%s319 + $0x1e0] sm:$0xff]
        %v2492 = vld [vmem:[%s319 + $0x1e8] sm:$0xff]
        %v2493 = vld [vmem:[%s319 + $0x1f0] sm:$0xff]
        %v2494 = vld [vmem:[%s319 + $0x1f8] sm:$0xff]
        %v2495 = vld [vmem:[%s319 + $0x200] sm:$0xff]
        %v2496 = vld [vmem:[%s319 + $0x208] sm:$0xff]
        %v2497 = vld [vmem:[%s319 + $0x210] sm:$0xff]
        %v2498 = vld [vmem:[%s319 + $0x218] sm:$0xff]
        %v2499 = vld [vmem:[%s319 + $0x220] sm:$0xff]
        %v2500 = vld [vmem:[%s319 + $0x228] sm:$0xff]
        %v2501 = vld [vmem:[%s319 + $0x230] sm:$0xff]
        %v2502 = vld [vmem:[%s319 + $0x238] sm:$0xff]
        %v2503 = vld [vmem:[%s319 + $0x240] sm:$0xff]
        %v2504 = vld [vmem:[%s319 + $0x248] sm:$0xff]
        %v2505 = vld [vmem:[%s319 + $0x250] sm:$0xff]
        %v2506 = vld [vmem:[%s319 + $0x258] sm:$0xff]
        %v2507 = vld [vmem:[%s319 + $0x260] sm:$0xff]
        %v2508 = vld [vmem:[%s319 + $0x268] sm:$0xff]
        %v2509 = vld [vmem:[%s319 + $0x270] sm:$0xff]
        %v2510 = vld [vmem:[%s319 + $0x278] sm:$0xff]
        %v2511 = vld [vmem:[%s319 + $0x280] sm:$0xff]
        %v2512 = vld [vmem:[%s319 + $0x288] sm:$0xff]
        %v2513 = vld [vmem:[%s319 + $0x290] sm:$0xff]
        %v2514 = vld [vmem:[%s319 + $0x298] sm:$0xff]
        %v2515 = vld [vmem:[%s319 + $0x2a0] sm:$0xff]
        %v2516 = vld [vmem:[%s319 + $0x2a8] sm:$0xff]
        %v2517 = vld [vmem:[%s319 + $0x2b0] sm:$0xff]
        %v2518 = vld [vmem:[%s319 + $0x2b8] sm:$0xff]
        %v2519 = vld [vmem:[%s319 + $0x2c0] sm:$0xff]
        %v2520 = vld [vmem:[%s319 + $0x2c8] sm:$0xff]
        %v2521 = vld [vmem:[%s319 + $0x2d0] sm:$0xff]
        %v2522 = vld [vmem:[%s319 + $0x2d8] sm:$0xff]
        %v2523 = vld [vmem:[%s319 + $0x2e0] sm:$0xff]
        %v2524 = vld [vmem:[%s319 + $0x2e8] sm:$0xff]
        %v2525 = vld [vmem:[%s319 + $0x2f0] sm:$0xff]
        %v2526 = vld [vmem:[%s319 + $0x2f8] sm:$0xff]
        %v2527 = vld [vmem:[%s319 + $0x300] sm:$0xff]
        %v2528 = vld [vmem:[%s319 + $0x308] sm:$0xff]
        %v2529 = vld [vmem:[%s319 + $0x310] sm:$0xff]
        %v2530 = vld [vmem:[%s319 + $0x318] sm:$0xff]
        %v2531 = vld [vmem:[%s319 + $0x320] sm:$0xff]
        %v2532 = vld [vmem:[%s319 + $0x328] sm:$0xff]
        %v2533 = vld [vmem:[%s319 + $0x330] sm:$0xff]
        %v2534 = vld [vmem:[%s319 + $0x338] sm:$0xff]
        %v2535 = vld [vmem:[%s319 + $0x340] sm:$0xff]
        %v2536 = vld [vmem:[%s319 + $0x348] sm:$0xff]
        %v2537 = vld [vmem:[%s319 + $0x350] sm:$0xff]
        %v2538 = vld [vmem:[%s319 + $0x358] sm:$0xff]
        %v2539 = vld [vmem:[%s319 + $0x360] sm:$0xff]
        %v2540 = vld [vmem:[%s319 + $0x368] sm:$0xff]
        %v2541 = vld [vmem:[%s319 + $0x370] sm:$0xff]
        %v2542 = vld [vmem:[%s319 + $0x378] sm:$0xff]
        %v2543 = vld [vmem:[%s319 + $0x380] sm:$0xff]
        %v2544 = vld [vmem:[%s319 + $0x388] sm:$0xff]
        %v2545 = vld [vmem:[%s319 + $0x390] sm:$0xff]
        %v2546 = vld [vmem:[%s319 + $0x398] sm:$0xff]
        %v2547 = vld [vmem:[%s319 + $0x3a0] sm:$0xff]
        %v2548 = vld [vmem:[%s319 + $0x3a8] sm:$0xff]
        %v2549 = vld [vmem:[%s319 + $0x3b0] sm:$0xff]
        %v2550 = vld [vmem:[%s319 + $0x3b8] sm:$0xff]
        %v2551 = vld [vmem:[%s319 + $0x3c0] sm:$0xff]
        %v2552 = vld [vmem:[%s319 + $0x3c8] sm:$0xff]
        %v2553 = vld [vmem:[%s319 + $0x3d0] sm:$0xff]
        %v2554 = vld [vmem:[%s319 + $0x3d8] sm:$0xff]
        %v2555 = vld [vmem:[%s319 + $0x3e0] sm:$0xff]
        %v2556 = vld [vmem:[%s319 + $0x3e8] sm:$0xff]
        %v2557 = vld [vmem:[%s319 + $0x3f0] sm:$0xff]
        %v2558 = vld [vmem:[%s319 + $0x3f8] sm:$0xff]
        %v2687 = vunpack.c.l.b16 %v2431
        %v2688 = vunpack.c.h.b16 %v2431
        %v2689 = vunpack.c.l.b16 %v2432
        %v2690 = vunpack.c.h.b16 %v2432
        %v2691 = vunpack.c.l.b16 %v2433
        %v2692 = vunpack.c.h.b16 %v2433
        %v2693 = vunpack.c.l.b16 %v2434
        %v2694 = vunpack.c.h.b16 %v2434
        %v2695 = vunpack.c.l.b16 %v2435
        %v2696 = vunpack.c.h.b16 %v2435
        %v2697 = vunpack.c.l.b16 %v2436
        %v2698 = vunpack.c.h.b16 %v2436
        %v2699 = vunpack.c.l.b16 %v2437
        %v2700 = vunpack.c.h.b16 %v2437
        %v2701 = vunpack.c.l.b16 %v2438
        %v2702 = vunpack.c.h.b16 %v2438
        %v2703 = vunpack.c.l.b16 %v2439
        %v2704 = vunpack.c.h.b16 %v2439
        %v2705 = vunpack.c.l.b16 %v2440
        %v2706 = vunpack.c.h.b16 %v2440
        %v2707 = vunpack.c.l.b16 %v2441
        %v2708 = vunpack.c.h.b16 %v2441
        %v2709 = vunpack.c.l.b16 %v2442
        %v2710 = vunpack.c.h.b16 %v2442
        %v2711 = vunpack.c.l.b16 %v2443
        %v2712 = vunpack.c.h.b16 %v2443
        %v2713 = vunpack.c.l.b16 %v2444
        %v2714 = vunpack.c.h.b16 %v2444
        %v2715 = vunpack.c.l.b16 %v2445
        %v2716 = vunpack.c.h.b16 %v2445
        %v2717 = vunpack.c.l.b16 %v2446
        %v2718 = vunpack.c.h.b16 %v2446
        %v2719 = vunpack.c.l.b16 %v2447
        %v2720 = vunpack.c.h.b16 %v2447
        %v2721 = vunpack.c.l.b16 %v2448
        %v2722 = vunpack.c.h.b16 %v2448
        %v2723 = vunpack.c.l.b16 %v2449
        %v2724 = vunpack.c.h.b16 %v2449
        %v2725 = vunpack.c.l.b16 %v2450
        %v2726 = vunpack.c.h.b16 %v2450
        %v2727 = vunpack.c.l.b16 %v2451
        %v2728 = vunpack.c.h.b16 %v2451
        %v2729 = vunpack.c.l.b16 %v2452
        %v2730 = vunpack.c.h.b16 %v2452
        %v2731 = vunpack.c.l.b16 %v2453
        %v2732 = vunpack.c.h.b16 %v2453
        %v2733 = vunpack.c.l.b16 %v2454
        %v2734 = vunpack.c.h.b16 %v2454
        %v2735 = vunpack.c.l.b16 %v2455
        %v2736 = vunpack.c.h.b16 %v2455
        %v2737 = vunpack.c.l.b16 %v2456
        %v2738 = vunpack.c.h.b16 %v2456
        %v2739 = vunpack.c.l.b16 %v2457
        %v2740 = vunpack.c.h.b16 %v2457
        %v2741 = vunpack.c.l.b16 %v2458
        %v2742 = vunpack.c.h.b16 %v2458
        %v2743 = vunpack.c.l.b16 %v2459
        %v2744 = vunpack.c.h.b16 %v2459
        %v2745 = vunpack.c.l.b16 %v2460
        %v2746 = vunpack.c.h.b16 %v2460
        %v2747 = vunpack.c.l.b16 %v2461
        %v2748 = vunpack.c.h.b16 %v2461
        %v2749 = vunpack.c.l.b16 %v2462
        %v2750 = vunpack.c.h.b16 %v2462
        %v2751 = vunpack.c.l.b16 %v2463
        %v2752 = vunpack.c.h.b16 %v2463
        %v2753 = vunpack.c.l.b16 %v2464
        %v2754 = vunpack.c.h.b16 %v2464
        %v2755 = vunpack.c.l.b16 %v2465
        %v2756 = vunpack.c.h.b16 %v2465
        %v2757 = vunpack.c.l.b16 %v2466
        %v2758 = vunpack.c.h.b16 %v2466
        %v2759 = vunpack.c.l.b16 %v2467
        %v2760 = vunpack.c.h.b16 %v2467
        %v2761 = vunpack.c.l.b16 %v2468
        %v2762 = vunpack.c.h.b16 %v2468
        %v2763 = vunpack.c.l.b16 %v2469
        %v2764 = vunpack.c.h.b16 %v2469
        %v2765 = vunpack.c.l.b16 %v2470
        %v2766 = vunpack.c.h.b16 %v2470
        %v2767 = vunpack.c.l.b16 %v2471
        %v2768 = vunpack.c.h.b16 %v2471
        %v2769 = vunpack.c.l.b16 %v2472
        %v2770 = vunpack.c.h.b16 %v2472
        %v2771 = vunpack.c.l.b16 %v2473
        %v2772 = vunpack.c.h.b16 %v2473
        %v2773 = vunpack.c.l.b16 %v2474
        %v2774 = vunpack.c.h.b16 %v2474
        %v2775 = vunpack.c.l.b16 %v2475
        %v2776 = vunpack.c.h.b16 %v2475
        %v2777 = vunpack.c.l.b16 %v2476
        %v2778 = vunpack.c.h.b16 %v2476
        %v2779 = vunpack.c.l.b16 %v2477
        %v2780 = vunpack.c.h.b16 %v2477
        %v2781 = vunpack.c.l.b16 %v2478
        %v2782 = vunpack.c.h.b16 %v2478
        %v2783 = vunpack.c.l.b16 %v2479
        %v2784 = vunpack.c.h.b16 %v2479
        %v2785 = vunpack.c.l.b16 %v2480
        %v2786 = vunpack.c.h.b16 %v2480
        %v2787 = vunpack.c.l.b16 %v2481
        %v2788 = vunpack.c.h.b16 %v2481
        %v2789 = vunpack.c.l.b16 %v2482
        %v2790 = vunpack.c.h.b16 %v2482
        %v2791 = vunpack.c.l.b16 %v2483
        %v2792 = vunpack.c.h.b16 %v2483
        %v2793 = vunpack.c.l.b16 %v2484
        %v2794 = vunpack.c.h.b16 %v2484
        %v2795 = vunpack.c.l.b16 %v2485
        %v2796 = vunpack.c.h.b16 %v2485
        %v2797 = vunpack.c.l.b16 %v2486
        %v2798 = vunpack.c.h.b16 %v2486
        %v2799 = vunpack.c.l.b16 %v2487
        %v2800 = vunpack.c.h.b16 %v2487
        %v2801 = vunpack.c.l.b16 %v2488
        %v2802 = vunpack.c.h.b16 %v2488
        %v2803 = vunpack.c.l.b16 %v2489
        %v2804 = vunpack.c.h.b16 %v2489
        %v2805 = vunpack.c.l.b16 %v2490
        %v2806 = vunpack.c.h.b16 %v2490
        %v2807 = vunpack.c.l.b16 %v2491
        %v2808 = vunpack.c.h.b16 %v2491
        %v2809 = vunpack.c.l.b16 %v2492
        %v2810 = vunpack.c.h.b16 %v2492
        %v2811 = vunpack.c.l.b16 %v2493
        %v2812 = vunpack.c.h.b16 %v2493
        %v2813 = vunpack.c.l.b16 %v2494
        %v2814 = vunpack.c.h.b16 %v2494
        %v2815 = vunpack.c.l.b16 %v2495
        %v2816 = vunpack.c.h.b16 %v2495
        %v2817 = vunpack.c.l.b16 %v2496
        %v2818 = vunpack.c.h.b16 %v2496
        %v2819 = vunpack.c.l.b16 %v2497
        %v2820 = vunpack.c.h.b16 %v2497
        %v2821 = vunpack.c.l.b16 %v2498
        %v2822 = vunpack.c.h.b16 %v2498
        %v2823 = vunpack.c.l.b16 %v2499
        %v2824 = vunpack.c.h.b16 %v2499
        %v2825 = vunpack.c.l.b16 %v2500
        %v2826 = vunpack.c.h.b16 %v2500
        %v2827 = vunpack.c.l.b16 %v2501
        %v2828 = vunpack.c.h.b16 %v2501
        %v2829 = vunpack.c.l.b16 %v2502
        %v2830 = vunpack.c.h.b16 %v2502
        %v2831 = vunpack.c.l.b16 %v2503
        %v2832 = vunpack.c.h.b16 %v2503
        %v2833 = vunpack.c.l.b16 %v2504
        %v2834 = vunpack.c.h.b16 %v2504
        %v2835 = vunpack.c.l.b16 %v2505
        %v2836 = vunpack.c.h.b16 %v2505
        %v2837 = vunpack.c.l.b16 %v2506
        %v2838 = vunpack.c.h.b16 %v2506
        %v2839 = vunpack.c.l.b16 %v2507
        %v2840 = vunpack.c.h.b16 %v2507
        %v2841 = vunpack.c.l.b16 %v2508
        %v2842 = vunpack.c.h.b16 %v2508
        %v2843 = vunpack.c.l.b16 %v2509
        %v2844 = vunpack.c.h.b16 %v2509
        %v2845 = vunpack.c.l.b16 %v2510
        %v2846 = vunpack.c.h.b16 %v2510
        %v2847 = vunpack.c.l.b16 %v2511
        %v2848 = vunpack.c.h.b16 %v2511
        %v2849 = vunpack.c.l.b16 %v2512
        %v2850 = vunpack.c.h.b16 %v2512
        %v2851 = vunpack.c.l.b16 %v2513
        %v2852 = vunpack.c.h.b16 %v2513
        %v2853 = vunpack.c.l.b16 %v2514
        %v2854 = vunpack.c.h.b16 %v2514
        %v2855 = vunpack.c.l.b16 %v2515
        %v2856 = vunpack.c.h.b16 %v2515
        %v2857 = vunpack.c.l.b16 %v2516
        %v2858 = vunpack.c.h.b16 %v2516
        %v2859 = vunpack.c.l.b16 %v2517
        %v2860 = vunpack.c.h.b16 %v2517
        %v2861 = vunpack.c.l.b16 %v2518
        %v2862 = vunpack.c.h.b16 %v2518
        %v2863 = vunpack.c.l.b16 %v2519
        %v2864 = vunpack.c.h.b16 %v2519
        %v2865 = vunpack.c.l.b16 %v2520
        %v2866 = vunpack.c.h.b16 %v2520
        %v2867 = vunpack.c.l.b16 %v2521
        %v2868 = vunpack.c.h.b16 %v2521
        %v2869 = vunpack.c.l.b16 %v2522
        %v2870 = vunpack.c.h.b16 %v2522
        %v2871 = vunpack.c.l.b16 %v2523
        %v2872 = vunpack.c.h.b16 %v2523
        %v2873 = vunpack.c.l.b16 %v2524
        %v2874 = vunpack.c.h.b16 %v2524
        %v2875 = vunpack.c.l.b16 %v2525
        %v2876 = vunpack.c.h.b16 %v2525
        %v2877 = vunpack.c.l.b16 %v2526
        %v2878 = vunpack.c.h.b16 %v2526
        %v2879 = vunpack.c.l.b16 %v2527
        %v2880 = vunpack.c.h.b16 %v2527
        %v2881 = vunpack.c.l.b16 %v2528
        %v2882 = vunpack.c.h.b16 %v2528
        %v2883 = vunpack.c.l.b16 %v2529
        %v2884 = vunpack.c.h.b16 %v2529
        %v2885 = vunpack.c.l.b16 %v2530
        %v2886 = vunpack.c.h.b16 %v2530
        %v2887 = vunpack.c.l.b16 %v2531
        %v2888 = vunpack.c.h.b16 %v2531
        %v2889 = vunpack.c.l.b16 %v2532
        %v2890 = vunpack.c.h.b16 %v2532
        %v2891 = vunpack.c.l.b16 %v2533
        %v2892 = vunpack.c.h.b16 %v2533
        %v2893 = vunpack.c.l.b16 %v2534
        %v2894 = vunpack.c.h.b16 %v2534
        %v2895 = vunpack.c.l.b16 %v2535
        %v2896 = vunpack.c.h.b16 %v2535
        %v2897 = vunpack.c.l.b16 %v2536
        %v2898 = vunpack.c.h.b16 %v2536
        %v2899 = vunpack.c.l.b16 %v2537
        %v2900 = vunpack.c.h.b16 %v2537
        %v2901 = vunpack.c.l.b16 %v2538
        %v2902 = vunpack.c.h.b16 %v2538
        %v2903 = vunpack.c.l.b16 %v2539
        %v2904 = vunpack.c.h.b16 %v2539
        %v2905 = vunpack.c.l.b16 %v2540
        %v2906 = vunpack.c.h.b16 %v2540
        %v2907 = vunpack.c.l.b16 %v2541
        %v2908 = vunpack.c.h.b16 %v2541
        %v2909 = vunpack.c.l.b16 %v2542
        %v2910 = vunpack.c.h.b16 %v2542
        %v2911 = vunpack.c.l.b16 %v2543
        %v2912 = vunpack.c.h.b16 %v2543
        %v2913 = vunpack.c.l.b16 %v2544
        %v2914 = vunpack.c.h.b16 %v2544
        %v2915 = vunpack.c.l.b16 %v2545
        %v2916 = vunpack.c.h.b16 %v2545
        %v2917 = vunpack.c.l.b16 %v2546
        %v2918 = vunpack.c.h.b16 %v2546
        %v2919 = vunpack.c.l.b16 %v2547
        %v2920 = vunpack.c.h.b16 %v2547
        %v2921 = vunpack.c.l.b16 %v2548
        %v2922 = vunpack.c.h.b16 %v2548
        %v2923 = vunpack.c.l.b16 %v2549
        %v2924 = vunpack.c.h.b16 %v2549
        %v2925 = vunpack.c.l.b16 %v2550
        %v2926 = vunpack.c.h.b16 %v2550
        %v2927 = vunpack.c.l.b16 %v2551
        %v2928 = vunpack.c.h.b16 %v2551
        %v2929 = vunpack.c.l.b16 %v2552
        %v2930 = vunpack.c.h.b16 %v2552
        %v2931 = vunpack.c.l.b16 %v2553
        %v2932 = vunpack.c.h.b16 %v2553
        %v2933 = vunpack.c.l.b16 %v2554
        %v2934 = vunpack.c.h.b16 %v2554
        %v2935 = vunpack.c.l.b16 %v2555
        %v2936 = vunpack.c.h.b16 %v2555
        %v2937 = vunpack.c.l.b16 %v2556
        %v2938 = vunpack.c.h.b16 %v2556
        %v2939 = vunpack.c.l.b16 %v2557
        %v2940 = vunpack.c.h.b16 %v2557
        %v2941 = vunpack.c.l.b16 %v2558
        %v2942 = vunpack.c.h.b16 %v2558
        %v2943 = vpack.c.b16 %v2691, %v2687
        %v2944 = vpack.c.b16 %v2692, %v2688
        %v2945 = vpack.c.b16 %v2693, %v2689
        %v2946 = vpack.c.b16 %v2694, %v2690
        %v2947 = vpack.c.b16 %v2699, %v2695
        %v2948 = vpack.c.b16 %v2700, %v2696
        %v2949 = vpack.c.b16 %v2701, %v2697
        %v2950 = vpack.c.b16 %v2702, %v2698
        %v2951 = vpack.c.b16 %v2707, %v2703
        %v2952 = vpack.c.b16 %v2708, %v2704
        %v2953 = vpack.c.b16 %v2709, %v2705
        %v2954 = vpack.c.b16 %v2710, %v2706
        %v2955 = vpack.c.b16 %v2715, %v2711
        %v2956 = vpack.c.b16 %v2716, %v2712
        %v2957 = vpack.c.b16 %v2717, %v2713
        %v2958 = vpack.c.b16 %v2718, %v2714
        %v2959 = vpack.c.b16 %v2723, %v2719
        %v2960 = vpack.c.b16 %v2724, %v2720
        %v2961 = vpack.c.b16 %v2725, %v2721
        %v2962 = vpack.c.b16 %v2726, %v2722
        %v2963 = vpack.c.b16 %v2731, %v2727
        %v2964 = vpack.c.b16 %v2732, %v2728
        %v2965 = vpack.c.b16 %v2733, %v2729
        %v2966 = vpack.c.b16 %v2734, %v2730
        %v2967 = vpack.c.b16 %v2739, %v2735
        %v2968 = vpack.c.b16 %v2740, %v2736
        %v2969 = vpack.c.b16 %v2741, %v2737
        %v2970 = vpack.c.b16 %v2742, %v2738
        %v2971 = vpack.c.b16 %v2747, %v2743
        %v2972 = vpack.c.b16 %v2748, %v2744
        %v2973 = vpack.c.b16 %v2749, %v2745
        %v2974 = vpack.c.b16 %v2750, %v2746
        %v2975 = vpack.c.b16 %v2755, %v2751
        %v2976 = vpack.c.b16 %v2756, %v2752
        %v2977 = vpack.c.b16 %v2757, %v2753
        %v2978 = vpack.c.b16 %v2758, %v2754
        %v2979 = vpack.c.b16 %v2763, %v2759
        %v2980 = vpack.c.b16 %v2764, %v2760
        %v2981 = vpack.c.b16 %v2765, %v2761
        %v2982 = vpack.c.b16 %v2766, %v2762
        %v2983 = vpack.c.b16 %v2771, %v2767
        %v2984 = vpack.c.b16 %v2772, %v2768
        %v2985 = vpack.c.b16 %v2773, %v2769
        %v2986 = vpack.c.b16 %v2774, %v2770
        %v2987 = vpack.c.b16 %v2779, %v2775
        %v2988 = vpack.c.b16 %v2780, %v2776
        %v2989 = vpack.c.b16 %v2781, %v2777
        %v2990 = vpack.c.b16 %v2782, %v2778
        %v2991 = vpack.c.b16 %v2787, %v2783
        %v2992 = vpack.c.b16 %v2788, %v2784
        %v2993 = vpack.c.b16 %v2789, %v2785
        %v2994 = vpack.c.b16 %v2790, %v2786
        %v2995 = vpack.c.b16 %v2795, %v2791
        %v2996 = vpack.c.b16 %v2796, %v2792
        %v2997 = vpack.c.b16 %v2797, %v2793
        %v2998 = vpack.c.b16 %v2798, %v2794
        %v2999 = vpack.c.b16 %v2803, %v2799
        %v3000 = vpack.c.b16 %v2804, %v2800
        %v3001 = vpack.c.b16 %v2805, %v2801
        %v3002 = vpack.c.b16 %v2806, %v2802
        %v3003 = vpack.c.b16 %v2811, %v2807
        %v3004 = vpack.c.b16 %v2812, %v2808
        %v3005 = vpack.c.b16 %v2813, %v2809
        %v3006 = vpack.c.b16 %v2814, %v2810
        %v3007 = vpack.c.b16 %v2819, %v2815
        %v3008 = vpack.c.b16 %v2820, %v2816
        %v3009 = vpack.c.b16 %v2821, %v2817
        %v3010 = vpack.c.b16 %v2822, %v2818
        %v3011 = vpack.c.b16 %v2827, %v2823
        %v3012 = vpack.c.b16 %v2828, %v2824
        %v3013 = vpack.c.b16 %v2829, %v2825
        %v3014 = vpack.c.b16 %v2830, %v2826
        %v3015 = vpack.c.b16 %v2835, %v2831
        %v3016 = vpack.c.b16 %v2836, %v2832
        %v3017 = vpack.c.b16 %v2837, %v2833
        %v3018 = vpack.c.b16 %v2838, %v2834
        %v3019 = vpack.c.b16 %v2843, %v2839
        %v3020 = vpack.c.b16 %v2844, %v2840
        %v3021 = vpack.c.b16 %v2845, %v2841
        %v3022 = vpack.c.b16 %v2846, %v2842
        %v3023 = vpack.c.b16 %v2851, %v2847
        %v3024 = vpack.c.b16 %v2852, %v2848
        %v3025 = vpack.c.b16 %v2853, %v2849
        %v3026 = vpack.c.b16 %v2854, %v2850
        %v3027 = vpack.c.b16 %v2859, %v2855
        %v3028 = vpack.c.b16 %v2860, %v2856
        %v3029 = vpack.c.b16 %v2861, %v2857
        %v3030 = vpack.c.b16 %v2862, %v2858
        %v3031 = vpack.c.b16 %v2867, %v2863
        %v3032 = vpack.c.b16 %v2868, %v2864
        %v3033 = vpack.c.b16 %v2869, %v2865
        %v3034 = vpack.c.b16 %v2870, %v2866
        %v3035 = vpack.c.b16 %v2875, %v2871
        %v3036 = vpack.c.b16 %v2876, %v2872
        %v3037 = vpack.c.b16 %v2877, %v2873
        %v3038 = vpack.c.b16 %v2878, %v2874
        %v3039 = vpack.c.b16 %v2883, %v2879
        %v3040 = vpack.c.b16 %v2884, %v2880
        %v3041 = vpack.c.b16 %v2885, %v2881
        %v3042 = vpack.c.b16 %v2886, %v2882
        %v3043 = vpack.c.b16 %v2891, %v2887
        %v3044 = vpack.c.b16 %v2892, %v2888
        %v3045 = vpack.c.b16 %v2893, %v2889
        %v3046 = vpack.c.b16 %v2894, %v2890
        %v3047 = vpack.c.b16 %v2899, %v2895
        %v3048 = vpack.c.b16 %v2900, %v2896
        %v3049 = vpack.c.b16 %v2901, %v2897
        %v3050 = vpack.c.b16 %v2902, %v2898
        %v3051 = vpack.c.b16 %v2907, %v2903
        %v3052 = vpack.c.b16 %v2908, %v2904
        %v3053 = vpack.c.b16 %v2909, %v2905
        %v3054 = vpack.c.b16 %v2910, %v2906
        %v3055 = vpack.c.b16 %v2915, %v2911
        %v3056 = vpack.c.b16 %v2916, %v2912
        %v3057 = vpack.c.b16 %v2917, %v2913
        %v3058 = vpack.c.b16 %v2918, %v2914
        %v3059 = vpack.c.b16 %v2923, %v2919
        %v3060 = vpack.c.b16 %v2924, %v2920
        %v3061 = vpack.c.b16 %v2925, %v2921
        %v3062 = vpack.c.b16 %v2926, %v2922
        %v3063 = vpack.c.b16 %v2931, %v2927
        %v3064 = vpack.c.b16 %v2932, %v2928
        %v3065 = vpack.c.b16 %v2933, %v2929
        %v3066 = vpack.c.b16 %v2934, %v2930
        %v3067 = vpack.c.b16 %v2939, %v2935
        %v3068 = vpack.c.b16 %v2940, %v2936
        %v3069 = vpack.c.b16 %v2941, %v2937
        %v3070 = vpack.c.b16 %v2942, %v2938
        %3199 = vmatprep.subr.bf16.mxu0 %v2944
        %3200 = vmatpush1.bf16.msra.mxu0 %v2943
        %3201 = vmatprep.subr.bf16.mxu0 %v2948
        %3202 = vmatpush1.bf16.msra.mxu0 %v2947
        %3203 = vmatprep.subr.bf16.mxu0 %v2952
        %3204 = vmatpush1.bf16.msra.mxu0 %v2951
        %3205 = vmatprep.subr.bf16.mxu0 %v2956
        %3206 = vmatpush1.bf16.msra.mxu0 %v2955
        %3207 = vmatprep.subr.bf16.mxu0 %v2960
        %3208 = vmatpush1.bf16.msra.mxu0 %v2959
        %3209 = vmatprep.subr.bf16.mxu0 %v2964
        %3210 = vmatpush1.bf16.msra.mxu0 %v2963
        %3211 = vmatprep.subr.bf16.mxu0 %v2968
        %3212 = vmatpush1.bf16.msra.mxu0 %v2967
        %3213 = vmatprep.subr.bf16.mxu0 %v2972
        %3214 = vmatpush1.bf16.msra.mxu0 %v2971
        %3215 = vmatprep.subr.bf16.mxu0 %v2976
        %3216 = vmatpush1.bf16.msra.mxu0 %v2975
        %3217 = vmatprep.subr.bf16.mxu0 %v2980
        %3218 = vmatpush1.bf16.msra.mxu0 %v2979
        %3219 = vmatprep.subr.bf16.mxu0 %v2984
        %3220 = vmatpush1.bf16.msra.mxu0 %v2983
        %3221 = vmatprep.subr.bf16.mxu0 %v2988
        %3222 = vmatpush1.bf16.msra.mxu0 %v2987
        %3223 = vmatprep.subr.bf16.mxu0 %v2992
        %3224 = vmatpush1.bf16.msra.mxu0 %v2991
        %3225 = vmatprep.subr.bf16.mxu0 %v2996
        %3226 = vmatpush1.bf16.msra.mxu0 %v2995
        %3227 = vmatprep.subr.bf16.mxu0 %v3000
        %3228 = vmatpush1.bf16.msra.mxu0 %v2999
        %3229 = vmatprep.subr.bf16.mxu0 %v3004
        %3230 = vmatpush1.bf16.msra.mxu0 %v3003
        %3231 = vmatprep.mubr.bf16.mxu0 %v892
        %3232 = vmatmul.mubr.bf16.gmra.mrb[0].mxu0 %v891
        %v3233 = vpop.f32.mrb[0].mxu0
        %v3234 = vadd.f32 0.0, %v3233
        %v3235 = vpop.f32.mrb[0].mxu0
        %v3236 = vadd.f32 0.0, %v3235
        %v3237 = vpop.f32.mrb[0].mxu0
        %v3238 = vadd.f32 0.0, %v3237
        %v3239 = vpop.f32.mrb[0].mxu0
        %v3240 = vadd.f32 0.0, %v3239
        %3241 = vmatprep.mubr.bf16.mxu0 %v896
        %3242 = vmatmul.mubr.bf16.gmra.mrb[0].mxu0 %v895
        %v3243 = vpop.f32.mrb[0].mxu0
        %v3244 = vadd.f32 0.0, %v3243
        %v3245 = vpop.f32.mrb[0].mxu0
        %v3246 = vadd.f32 0.0, %v3245
        %v3247 = vpop.f32.mrb[0].mxu0
        %v3248 = vadd.f32 0.0, %v3247
        %v3249 = vpop.f32.mrb[0].mxu0
        %v3250 = vadd.f32 0.0, %v3249
        %3251 = vmatprep.mubr.bf16.mxu0 %v900
        %3252 = vmatmul.mubr.bf16.gmra.mrb[0].mxu0 %v899
        %v3253 = vpop.f32.mrb[0].mxu0
        %v3254 = vadd.f32 0.0, %v3253
        %v3255 = vpop.f32.mrb[0].mxu0
        %v3256 = vadd.f32 0.0, %v3255
        %v3257 = vpop.f32.mrb[0].mxu0
        %v3258 = vadd.f32 0.0, %v3257
        %v3259 = vpop.f32.mrb[0].mxu0
        %v3260 = vadd.f32 0.0, %v3259
        %3261 = vmatprep.mubr.bf16.mxu0 %v904
        %3262 = vmatmul.mubr.bf16.gmra.mrb[0].mxu0 %v903
        %v3263 = vpop.f32.mrb[0].mxu0
        %v3264 = vadd.f32 0.0, %v3263
        %v3265 = vpop.f32.mrb[0].mxu0
        %v3266 = vadd.f32 0.0, %v3265
        %v3267 = vpop.f32.mrb[0].mxu0
        %v3268 = vadd.f32 0.0, %v3267
        %v3269 = vpop.f32.mrb[0].mxu0
        %v3270 = vadd.f32 0.0, %v3269
        %3271 = vmatprep.mubr.bf16.mxu0 %v908
        %3272 = vmatmul.mubr.bf16.gmra.mrb[0].mxu0 %v907
        %v3273 = vpop.f32.mrb[0].mxu0
        %v3274 = vadd.f32 0.0, %v3273
        %v3275 = vpop.f32.mrb[0].mxu0
        %v3276 = vadd.f32 0.0, %v3275
        %v3277 = vpop.f32.mrb[0].mxu0
        %v3278 = vadd.f32 0.0, %v3277
        %v3279 = vpop.f32.mrb[0].mxu0
        %v3280 = vadd.f32 0.0, %v3279
        %3281 = vmatprep.mubr.bf16.mxu0 %v912
        %3282 = vmatmul.mubr.bf16.gmra.mrb[0].mxu0 %v911
        %v3283 = vpop.f32.mrb[0].mxu0
        %v3284 = vadd.f32 0.0, %v3283
        %v3285 = vpop.f32.mrb[0].mxu0
        %v3286 = vadd.f32 0.0, %v3285
        %v3287 = vpop.f32.mrb[0].mxu0
        %v3288 = vadd.f32 0.0, %v3287
        %v3289 = vpop.f32.mrb[0].mxu0
        %v3290 = vadd.f32 0.0, %v3289
        %3291 = vmatprep.mubr.bf16.mxu0 %v916
        %3292 = vmatmul.mubr.bf16.gmra.mrb[0].mxu0 %v915
        %v3293 = vpop.f32.mrb[0].mxu0
        %v3294 = vadd.f32 0.0, %v3293
        %v3295 = vpop.f32.mrb[0].mxu0
        %v3296 = vadd.f32 0.0, %v3295
        %v3297 = vpop.f32.mrb[0].mxu0
        %v3298 = vadd.f32 0.0, %v3297
        %v3299 = vpop.f32.mrb[0].mxu0
        %v3300 = vadd.f32 0.0, %v3299
        %3301 = vmatprep.mubr.bf16.mxu0 %v920
        %3302 = vmatmul.mubr.bf16.gmra.mrb[0].mxu0 %v919
        %v3303 = vpop.f32.mrb[0].mxu0
        %v3304 = vadd.f32 0.0, %v3303
        %v3305 = vpop.f32.mrb[0].mxu0
        %v3306 = vadd.f32 0.0, %v3305
        %v3307 = vpop.f32.mrb[0].mxu0
        %v3308 = vadd.f32 0.0, %v3307
        %v3309 = vpop.f32.mrb[0].mxu0
        %v3310 = vadd.f32 0.0, %v3309
        %3311 = vmatprep.mubr.bf16.mxu0 %v924
        %3312 = vmatmul.mubr.bf16.gmra.mrb[0].mxu0 %v923
        %v3313 = vpop.f32.mrb[0].mxu0
        %v3314 = vadd.f32 0.0, %v3313
        %v3315 = vpop.f32.mrb[0].mxu0
        %v3316 = vadd.f32 0.0, %v3315
        %v3317 = vpop.f32.mrb[0].mxu0
        %v3318 = vadd.f32 0.0, %v3317
        %v3319 = vpop.f32.mrb[0].mxu0
        %v3320 = vadd.f32 0.0, %v3319
        %3321 = vmatprep.mubr.bf16.mxu0 %v928
        %3322 = vmatmul.mubr.bf16.gmra.mrb[0].mxu0 %v927
        %v3323 = vpop.f32.mrb[0].mxu0
        %v3324 = vadd.f32 0.0, %v3323
        %v3325 = vpop.f32.mrb[0].mxu0
        %v3326 = vadd.f32 0.0, %v3325
        %v3327 = vpop.f32.mrb[0].mxu0
        %v3328 = vadd.f32 0.0, %v3327
        %v3329 = vpop.f32.mrb[0].mxu0
        %v3330 = vadd.f32 0.0, %v3329
        %3331 = vmatprep.mubr.bf16.mxu0 %v932
        %3332 = vmatmul.mubr.bf16.gmra.mrb[0].mxu0 %v931
        %v3333 = vpop.f32.mrb[0].mxu0
        %v3334 = vadd.f32 0.0, %v3333
        %v3335 = vpop.f32.mrb[0].mxu0
        %v3336 = vadd.f32 0.0, %v3335
        %v3337 = vpop.f32.mrb[0].mxu0
        %v3338 = vadd.f32 0.0, %v3337
        %v3339 = vpop.f32.mrb[0].mxu0
        %v3340 = vadd.f32 0.0, %v3339
        %3341 = vmatprep.mubr.bf16.mxu0 %v936
        %3342 = vmatmul.mubr.bf16.gmra.mrb[0].mxu0 %v935
        %v3343 = vpop.f32.mrb[0].mxu0
        %v3344 = vadd.f32 0.0, %v3343
        %v3345 = vpop.f32.mrb[0].mxu0
        %v3346 = vadd.f32 0.0, %v3345
        %v3347 = vpop.f32.mrb[0].mxu0
        %v3348 = vadd.f32 0.0, %v3347
        %v3349 = vpop.f32.mrb[0].mxu0
        %v3350 = vadd.f32 0.0, %v3349
        %3351 = vmatprep.mubr.bf16.mxu0 %v940
        %3352 = vmatmul.mubr.bf16.gmra.mrb[0].mxu0 %v939
        %v3353 = vpop.f32.mrb[0].mxu0
        %v3354 = vadd.f32 0.0, %v3353
        %v3355 = vpop.f32.mrb[0].mxu0
        %v3356 = vadd.f32 0.0, %v3355
        %v3357 = vpop.f32.mrb[0].mxu0
        %v3358 = vadd.f32 0.0, %v3357
        %v3359 = vpop.f32.mrb[0].mxu0
        %v3360 = vadd.f32 0.0, %v3359
        %3361 = vmatprep.mubr.bf16.mxu0 %v944
        %3362 = vmatmul.mubr.bf16.gmra.mrb[0].mxu0 %v943
        %v3363 = vpop.f32.mrb[0].mxu0
        %v3364 = vadd.f32 0.0, %v3363
        %v3365 = vpop.f32.mrb[0].mxu0
        %v3366 = vadd.f32 0.0, %v3365
        %v3367 = vpop.f32.mrb[0].mxu0
        %v3368 = vadd.f32 0.0, %v3367
        %v3369 = vpop.f32.mrb[0].mxu0
        %v3370 = vadd.f32 0.0, %v3369
        %3371 = vmatprep.mubr.bf16.mxu0 %v948
        %3372 = vmatmul.mubr.bf16.gmra.mrb[0].mxu0 %v947
        %v3373 = vpop.f32.mrb[0].mxu0
        %v3374 = vadd.f32 0.0, %v3373
        %v3375 = vpop.f32.mrb[0].mxu0
        %v3376 = vadd.f32 0.0, %v3375
        %v3377 = vpop.f32.mrb[0].mxu0
        %v3378 = vadd.f32 0.0, %v3377
        %v3379 = vpop.f32.mrb[0].mxu0
        %v3380 = vadd.f32 0.0, %v3379
        %3381 = vmatprep.mubr.bf16.mxu0 %v952
        %3382 = vmatmul.mubr.bf16.gmra.mrb[0].mxu0 %v951
        %v3383 = vpop.f32.mrb[0].mxu0
        %v3384 = vadd.f32 0.0, %v3383
        %v3385 = vpop.f32.mrb[0].mxu0
        %v3386 = vadd.f32 0.0, %v3385
        %v3387 = vpop.f32.mrb[0].mxu0
        %v3388 = vadd.f32 0.0, %v3387
        %v3389 = vpop.f32.mrb[0].mxu0
        %v3390 = vadd.f32 0.0, %v3389
        %3391 = vdwg.mxu0
        %3392 = vmatprep.subr.bf16.mxu0 %v3008
        %3393 = vmatpush1.bf16.msra.mxu0 %v3007
        %3394 = vmatprep.subr.bf16.mxu0 %v3012
        %3395 = vmatpush1.bf16.msra.mxu0 %v3011
        %3396 = vmatprep.subr.bf16.mxu0 %v3016
        %3397 = vmatpush1.bf16.msra.mxu0 %v3015
        %3398 = vmatprep.subr.bf16.mxu0 %v3020
        %3399 = vmatpush1.bf16.msra.mxu0 %v3019
        %3400 = vmatprep.subr.bf16.mxu0 %v3024
        %3401 = vmatpush1.bf16.msra.mxu0 %v3023
        %3402 = vmatprep.subr.bf16.mxu0 %v3028
        %3403 = vmatpush1.bf16.msra.mxu0 %v3027
        %3404 = vmatprep.subr.bf16.mxu0 %v3032
        %3405 = vmatpush1.bf16.msra.mxu0 %v3031
        %3406 = vmatprep.subr.bf16.mxu0 %v3036
        %3407 = vmatpush1.bf16.msra.mxu0 %v3035
        %3408 = vmatprep.subr.bf16.mxu0 %v3040
        %3409 = vmatpush1.bf16.msra.mxu0 %v3039
        %3410 = vmatprep.subr.bf16.mxu0 %v3044
        %3411 = vmatpush1.bf16.msra.mxu0 %v3043
        %3412 = vmatprep.subr.bf16.mxu0 %v3048
        %3413 = vmatpush1.bf16.msra.mxu0 %v3047
        %3414 = vmatprep.subr.bf16.mxu0 %v3052
        %3415 = vmatpush1.bf16.msra.mxu0 %v3051
        %3416 = vmatprep.subr.bf16.mxu0 %v3056
        %3417 = vmatpush1.bf16.msra.mxu0 %v3055
        %3418 = vmatprep.subr.bf16.mxu0 %v3060
        %3419 = vmatpush1.bf16.msra.mxu0 %v3059
        %3420 = vmatprep.subr.bf16.mxu0 %v3064
        %3421 = vmatpush1.bf16.msra.mxu0 %v3063
        %3422 = vmatprep.subr.bf16.mxu0 %v3068
        %3423 = vmatpush1.bf16.msra.mxu0 %v3067
        %3424 = vmatprep.mubr.bf16.mxu0 %v894
        %3425 = vmatmul.mubr.bf16.gmra.mrb[0].mxu0 %v893
        %v3426 = vpop.f32.mrb[0].mxu0
        %v3427 = vadd.f32 %v3234, %v3426
        %v3428 = vpop.f32.mrb[0].mxu0
        %v3429 = vadd.f32 %v3236, %v3428
        %v3430 = vpop.f32.mrb[0].mxu0
        %v3431 = vadd.f32 %v3238, %v3430
        %v3432 = vpop.f32.mrb[0].mxu0
        %v3433 = vadd.f32 %v3240, %v3432
        %3434 = vmatprep.mubr.bf16.mxu0 %v898
        %3435 = vmatmul.mubr.bf16.gmra.mrb[0].mxu0 %v897
        %v3436 = vpop.f32.mrb[0].mxu0
        %v3437 = vadd.f32 %v3244, %v3436
        %v3438 = vpop.f32.mrb[0].mxu0
        %v3439 = vadd.f32 %v3246, %v3438
        %v3440 = vpop.f32.mrb[0].mxu0
        %v3441 = vadd.f32 %v3248, %v3440
        %v3442 = vpop.f32.mrb[0].mxu0
        %v3443 = vadd.f32 %v3250, %v3442
        %3444 = vmatprep.mubr.bf16.mxu0 %v902
        %3445 = vmatmul.mubr.bf16.gmra.mrb[0].mxu0 %v901
        %v3446 = vpop.f32.mrb[0].mxu0
        %v3447 = vadd.f32 %v3254, %v3446
        %v3448 = vpop.f32.mrb[0].mxu0
        %v3449 = vadd.f32 %v3256, %v3448
        %v3450 = vpop.f32.mrb[0].mxu0
        %v3451 = vadd.f32 %v3258, %v3450
        %v3452 = vpop.f32.mrb[0].mxu0
        %v3453 = vadd.f32 %v3260, %v3452
        %3454 = vmatprep.mubr.bf16.mxu0 %v906
        %3455 = vmatmul.mubr.bf16.gmra.mrb[0].mxu0 %v905
        %v3456 = vpop.f32.mrb[0].mxu0
        %v3457 = vadd.f32 %v3264, %v3456
        %v3458 = vpop.f32.mrb[0].mxu0
        %v3459 = vadd.f32 %v3266, %v3458
        %v3460 = vpop.f32.mrb[0].mxu0
        %v3461 = vadd.f32 %v3268, %v3460
        %v3462 = vpop.f32.mrb[0].mxu0
        %v3463 = vadd.f32 %v3270, %v3462
        %3464 = vmatprep.mubr.bf16.mxu0 %v910
        %3465 = vmatmul.mubr.bf16.gmra.mrb[0].mxu0 %v909
        %v3466 = vpop.f32.mrb[0].mxu0
        %v3467 = vadd.f32 %v3274, %v3466
        %v3468 = vpop.f32.mrb[0].mxu0
        %v3469 = vadd.f32 %v3276, %v3468
        %v3470 = vpop.f32.mrb[0].mxu0
        %v3471 = vadd.f32 %v3278, %v3470
        %v3472 = vpop.f32.mrb[0].mxu0
        %v3473 = vadd.f32 %v3280, %v3472
        %3474 = vmatprep.mubr.bf16.mxu0 %v914
        %3475 = vmatmul.mubr.bf16.gmra.mrb[0].mxu0 %v913
        %v3476 = vpop.f32.mrb[0].mxu0
        %v3477 = vadd.f32 %v3284, %v3476
        %v3478 = vpop.f32.mrb[0].mxu0
        %v3479 = vadd.f32 %v3286, %v3478
        %v3480 = vpop.f32.mrb[0].mxu0
        %v3481 = vadd.f32 %v3288, %v3480
        %v3482 = vpop.f32.mrb[0].mxu0
        %v3483 = vadd.f32 %v3290, %v3482
        %3484 = vmatprep.mubr.bf16.mxu0 %v918
        %3485 = vmatmul.mubr.bf16.gmra.mrb[0].mxu0 %v917
        %v3486 = vpop.f32.mrb[0].mxu0
        %v3487 = vadd.f32 %v3294, %v3486
        %v3488 = vpop.f32.mrb[0].mxu0
        %v3489 = vadd.f32 %v3296, %v3488
        %v3490 = vpop.f32.mrb[0].mxu0
        %v3491 = vadd.f32 %v3298, %v3490
        %v3492 = vpop.f32.mrb[0].mxu0
        %v3493 = vadd.f32 %v3300, %v3492
        %3494 = vmatprep.mubr.bf16.mxu0 %v922
        %3495 = vmatmul.mubr.bf16.gmra.mrb[0].mxu0 %v921
        %v3496 = vpop.f32.mrb[0].mxu0
        %v3497 = vadd.f32 %v3304, %v3496
        %v3498 = vpop.f32.mrb[0].mxu0
        %v3499 = vadd.f32 %v3306, %v3498
        %v3500 = vpop.f32.mrb[0].mxu0
        %v3501 = vadd.f32 %v3308, %v3500
        %v3502 = vpop.f32.mrb[0].mxu0
        %v3503 = vadd.f32 %v3310, %v3502
        %3504 = vmatprep.mubr.bf16.mxu0 %v926
        %3505 = vmatmul.mubr.bf16.gmra.mrb[0].mxu0 %v925
        %v3506 = vpop.f32.mrb[0].mxu0
        %v3507 = vadd.f32 %v3314, %v3506
        %v3508 = vpop.f32.mrb[0].mxu0
        %v3509 = vadd.f32 %v3316, %v3508
        %v3510 = vpop.f32.mrb[0].mxu0
        %v3511 = vadd.f32 %v3318, %v3510
        %v3512 = vpop.f32.mrb[0].mxu0
        %v3513 = vadd.f32 %v3320, %v3512
        %3514 = vmatprep.mubr.bf16.mxu0 %v930
        %3515 = vmatmul.mubr.bf16.gmra.mrb[0].mxu0 %v929
        %v3516 = vpop.f32.mrb[0].mxu0
        %v3517 = vadd.f32 %v3324, %v3516
        %v3518 = vpop.f32.mrb[0].mxu0
        %v3519 = vadd.f32 %v3326, %v3518
        %v3520 = vpop.f32.mrb[0].mxu0
        %v3521 = vadd.f32 %v3328, %v3520
        %v3522 = vpop.f32.mrb[0].mxu0
        %v3523 = vadd.f32 %v3330, %v3522
        %3524 = vmatprep.mubr.bf16.mxu0 %v934
        %3525 = vmatmul.mubr.bf16.gmra.mrb[0].mxu0 %v933
        %v3526 = vpop.f32.mrb[0].mxu0
        %v3527 = vadd.f32 %v3334, %v3526
        %v3528 = vpop.f32.mrb[0].mxu0
        %v3529 = vadd.f32 %v3336, %v3528
        %v3530 = vpop.f32.mrb[0].mxu0
        %v3531 = vadd.f32 %v3338, %v3530
        %v3532 = vpop.f32.mrb[0].mxu0
        %v3533 = vadd.f32 %v3340, %v3532
        %3534 = vmatprep.mubr.bf16.mxu0 %v938
        %3535 = vmatmul.mubr.bf16.gmra.mrb[0].mxu0 %v937
        %v3536 = vpop.f32.mrb[0].mxu0
        %v3537 = vadd.f32 %v3344, %v3536
        %v3538 = vpop.f32.mrb[0].mxu0
        %v3539 = vadd.f32 %v3346, %v3538
        %v3540 = vpop.f32.mrb[0].mxu0
        %v3541 = vadd.f32 %v3348, %v3540
        %v3542 = vpop.f32.mrb[0].mxu0
        %v3543 = vadd.f32 %v3350, %v3542
        %3544 = vmatprep.mubr.bf16.mxu0 %v942
        %3545 = vmatmul.mubr.bf16.gmra.mrb[0].mxu0 %v941
        %v3546 = vpop.f32.mrb[0].mxu0
        %v3547 = vadd.f32 %v3354, %v3546
        %v3548 = vpop.f32.mrb[0].mxu0
        %v3549 = vadd.f32 %v3356, %v3548
        %v3550 = vpop.f32.mrb[0].mxu0
        %v3551 = vadd.f32 %v3358, %v3550
        %v3552 = vpop.f32.mrb[0].mxu0
        %v3553 = vadd.f32 %v3360, %v3552
        %3554 = vmatprep.mubr.bf16.mxu0 %v946
        %3555 = vmatmul.mubr.bf16.gmra.mrb[0].mxu0 %v945
        %v3556 = vpop.f32.mrb[0].mxu0
        %v3557 = vadd.f32 %v3364, %v3556
        %v3558 = vpop.f32.mrb[0].mxu0
        %v3559 = vadd.f32 %v3366, %v3558
        %v3560 = vpop.f32.mrb[0].mxu0
        %v3561 = vadd.f32 %v3368, %v3560
        %v3562 = vpop.f32.mrb[0].mxu0
        %v3563 = vadd.f32 %v3370, %v3562
        %3564 = vmatprep.mubr.bf16.mxu0 %v950
        %3565 = vmatmul.mubr.bf16.gmra.mrb[0].mxu0 %v949
        %v3566 = vpop.f32.mrb[0].mxu0
        %v3567 = vadd.f32 %v3374, %v3566
        %v3568 = vpop.f32.mrb[0].mxu0
        %v3569 = vadd.f32 %v3376, %v3568
        %v3570 = vpop.f32.mrb[0].mxu0
        %v3571 = vadd.f32 %v3378, %v3570
        %v3572 = vpop.f32.mrb[0].mxu0
        %v3573 = vadd.f32 %v3380, %v3572
        %3574 = vmatprep.mubr.bf16.mxu0 %v954
        %3575 = vmatmul.mubr.bf16.gmra.mrb[0].mxu0 %v953
        %v3576 = vpop.f32.mrb[0].mxu0
        %v3577 = vadd.f32 %v3384, %v3576
        %v3578 = vpop.f32.mrb[0].mxu0
        %v3579 = vadd.f32 %v3386, %v3578
        %v3580 = vpop.f32.mrb[0].mxu0
        %v3581 = vadd.f32 %v3388, %v3580
        %v3582 = vpop.f32.mrb[0].mxu0
        %v3583 = vadd.f32 %v3390, %v3582
        %3584 = vdwg.mxu0
        %3585 = vmatprep.subr.bf16.mxu0 %v2946
        %3586 = vmatpush1.bf16.msra.mxu0 %v2945
        %3587 = vmatprep.subr.bf16.mxu0 %v2950
        %3588 = vmatpush1.bf16.msra.mxu0 %v2949
        %3589 = vmatprep.subr.bf16.mxu0 %v2954
        %3590 = vmatpush1.bf16.msra.mxu0 %v2953
        %3591 = vmatprep.subr.bf16.mxu0 %v2958
        %3592 = vmatpush1.bf16.msra.mxu0 %v2957
        %3593 = vmatprep.subr.bf16.mxu0 %v2962
        %3594 = vmatpush1.bf16.msra.mxu0 %v2961
        %3595 = vmatprep.subr.bf16.mxu0 %v2966
        %3596 = vmatpush1.bf16.msra.mxu0 %v2965
        %3597 = vmatprep.subr.bf16.mxu0 %v2970
        %3598 = vmatpush1.bf16.msra.mxu0 %v2969
        %3599 = vmatprep.subr.bf16.mxu0 %v2974
        %3600 = vmatpush1.bf16.msra.mxu0 %v2973
        %3601 = vmatprep.subr.bf16.mxu0 %v2978
        %3602 = vmatpush1.bf16.msra.mxu0 %v2977
        %3603 = vmatprep.subr.bf16.mxu0 %v2982
        %3604 = vmatpush1.bf16.msra.mxu0 %v2981
        %3605 = vmatprep.subr.bf16.mxu0 %v2986
        %3606 = vmatpush1.bf16.msra.mxu0 %v2985
        %3607 = vmatprep.subr.bf16.mxu0 %v2990
        %3608 = vmatpush1.bf16.msra.mxu0 %v2989
        %3609 = vmatprep.subr.bf16.mxu0 %v2994
        %3610 = vmatpush1.bf16.msra.mxu0 %v2993
        %3611 = vmatprep.subr.bf16.mxu0 %v2998
        %3612 = vmatpush1.bf16.msra.mxu0 %v2997
        %3613 = vmatprep.subr.bf16.mxu0 %v3002
        %3614 = vmatpush1.bf16.msra.mxu0 %v3001
        %3615 = vmatprep.subr.bf16.mxu0 %v3006
        %3616 = vmatpush1.bf16.msra.mxu0 %v3005
        %3617 = vmatprep.mubr.bf16.mxu0 %v892
        %3618 = vmatmul.mubr.bf16.gmra.mrb[0].mxu0 %v891
        %v3619 = vpop.f32.mrb[0].mxu0
        %v3620 = vadd.f32 0.0, %v3619
        %v3621 = vpop.f32.mrb[0].mxu0
        %v3622 = vadd.f32 0.0, %v3621
        %v3623 = vpop.f32.mrb[0].mxu0
        %v3624 = vadd.f32 0.0, %v3623
        %v3625 = vpop.f32.mrb[0].mxu0
        %v3626 = vadd.f32 0.0, %v3625
        %3627 = vmatprep.mubr.bf16.mxu0 %v896
        %3628 = vmatmul.mubr.bf16.gmra.mrb[0].mxu0 %v895
        %v3629 = vpop.f32.mrb[0].mxu0
        %v3630 = vadd.f32 0.0, %v3629
        %v3631 = vpop.f32.mrb[0].mxu0
        %v3632 = vadd.f32 0.0, %v3631
        %v3633 = vpop.f32.mrb[0].mxu0
        %v3634 = vadd.f32 0.0, %v3633
        %v3635 = vpop.f32.mrb[0].mxu0
        %v3636 = vadd.f32 0.0, %v3635
        %3637 = vmatprep.mubr.bf16.mxu0 %v900
        %3638 = vmatmul.mubr.bf16.gmra.mrb[0].mxu0 %v899
        %v3639 = vpop.f32.mrb[0].mxu0
        %v3640 = vadd.f32 0.0, %v3639
        %v3641 = vpop.f32.mrb[0].mxu0
        %v3642 = vadd.f32 0.0, %v3641
        %v3643 = vpop.f32.mrb[0].mxu0
        %v3644 = vadd.f32 0.0, %v3643
        %v3645 = vpop.f32.mrb[0].mxu0
        %v3646 = vadd.f32 0.0, %v3645
        %3647 = vmatprep.mubr.bf16.mxu0 %v904
        %3648 = vmatmul.mubr.bf16.gmra.mrb[0].mxu0 %v903
        %v3649 = vpop.f32.mrb[0].mxu0
        %v3650 = vadd.f32 0.0, %v3649
        %v3651 = vpop.f32.mrb[0].mxu0
        %v3652 = vadd.f32 0.0, %v3651
        %v3653 = vpop.f32.mrb[0].mxu0
        %v3654 = vadd.f32 0.0, %v3653
        %v3655 = vpop.f32.mrb[0].mxu0
        %v3656 = vadd.f32 0.0, %v3655
        %3657 = vmatprep.mubr.bf16.mxu0 %v908
        %3658 = vmatmul.mubr.bf16.gmra.mrb[0].mxu0 %v907
        %v3659 = vpop.f32.mrb[0].mxu0
        %v3660 = vadd.f32 0.0, %v3659
        %v3661 = vpop.f32.mrb[0].mxu0
        %v3662 = vadd.f32 0.0, %v3661
        %v3663 = vpop.f32.mrb[0].mxu0
        %v3664 = vadd.f32 0.0, %v3663
        %v3665 = vpop.f32.mrb[0].mxu0
        %v3666 = vadd.f32 0.0, %v3665
        %3667 = vmatprep.mubr.bf16.mxu0 %v912
        %3668 = vmatmul.mubr.bf16.gmra.mrb[0].mxu0 %v911
        %v3669 = vpop.f32.mrb[0].mxu0
        %v3670 = vadd.f32 0.0, %v3669
        %v3671 = vpop.f32.mrb[0].mxu0
        %v3672 = vadd.f32 0.0, %v3671
        %v3673 = vpop.f32.mrb[0].mxu0
        %v3674 = vadd.f32 0.0, %v3673
        %v3675 = vpop.f32.mrb[0].mxu0
        %v3676 = vadd.f32 0.0, %v3675
        %3677 = vmatprep.mubr.bf16.mxu0 %v916
        %3678 = vmatmul.mubr.bf16.gmra.mrb[0].mxu0 %v915
        %v3679 = vpop.f32.mrb[0].mxu0
        %v3680 = vadd.f32 0.0, %v3679
        %v3681 = vpop.f32.mrb[0].mxu0
        %v3682 = vadd.f32 0.0, %v3681
        %v3683 = vpop.f32.mrb[0].mxu0
        %v3684 = vadd.f32 0.0, %v3683
        %v3685 = vpop.f32.mrb[0].mxu0
        %v3686 = vadd.f32 0.0, %v3685
        %3687 = vmatprep.mubr.bf16.mxu0 %v920
        %3688 = vmatmul.mubr.bf16.gmra.mrb[0].mxu0 %v919
        %v3689 = vpop.f32.mrb[0].mxu0
        %v3690 = vadd.f32 0.0, %v3689
        %v3691 = vpop.f32.mrb[0].mxu0
        %v3692 = vadd.f32 0.0, %v3691
        %v3693 = vpop.f32.mrb[0].mxu0
        %v3694 = vadd.f32 0.0, %v3693
        %v3695 = vpop.f32.mrb[0].mxu0
        %v3696 = vadd.f32 0.0, %v3695
        %3697 = vmatprep.mubr.bf16.mxu0 %v924
        %3698 = vmatmul.mubr.bf16.gmra.mrb[0].mxu0 %v923
        %v3699 = vpop.f32.mrb[0].mxu0
        %v3700 = vadd.f32 0.0, %v3699
        %v3701 = vpop.f32.mrb[0].mxu0
        %v3702 = vadd.f32 0.0, %v3701
        %v3703 = vpop.f32.mrb[0].mxu0
        %v3704 = vadd.f32 0.0, %v3703
        %v3705 = vpop.f32.mrb[0].mxu0
        %v3706 = vadd.f32 0.0, %v3705
        %3707 = vmatprep.mubr.bf16.mxu0 %v928
        %3708 = vmatmul.mubr.bf16.gmra.mrb[0].mxu0 %v927
        %v3709 = vpop.f32.mrb[0].mxu0
        %v3710 = vadd.f32 0.0, %v3709
        %v3711 = vpop.f32.mrb[0].mxu0
        %v3712 = vadd.f32 0.0, %v3711
        %v3713 = vpop.f32.mrb[0].mxu0
        %v3714 = vadd.f32 0.0, %v3713
        %v3715 = vpop.f32.mrb[0].mxu0
        %v3716 = vadd.f32 0.0, %v3715
        %3717 = vmatprep.mubr.bf16.mxu0 %v932
        %3718 = vmatmul.mubr.bf16.gmra.mrb[0].mxu0 %v931
        %v3719 = vpop.f32.mrb[0].mxu0
        %v3720 = vadd.f32 0.0, %v3719
        %v3721 = vpop.f32.mrb[0].mxu0
        %v3722 = vadd.f32 0.0, %v3721
        %v3723 = vpop.f32.mrb[0].mxu0
        %v3724 = vadd.f32 0.0, %v3723
        %v3725 = vpop.f32.mrb[0].mxu0
        %v3726 = vadd.f32 0.0, %v3725
        %3727 = vmatprep.mubr.bf16.mxu0 %v936
        %3728 = vmatmul.mubr.bf16.gmra.mrb[0].mxu0 %v935
        %v3729 = vpop.f32.mrb[0].mxu0
        %v3730 = vadd.f32 0.0, %v3729
        %v3731 = vpop.f32.mrb[0].mxu0
        %v3732 = vadd.f32 0.0, %v3731
        %v3733 = vpop.f32.mrb[0].mxu0
        %v3734 = vadd.f32 0.0, %v3733
        %v3735 = vpop.f32.mrb[0].mxu0
        %v3736 = vadd.f32 0.0, %v3735
        %3737 = vmatprep.mubr.bf16.mxu0 %v940
        %3738 = vmatmul.mubr.bf16.gmra.mrb[0].mxu0 %v939
        %v3739 = vpop.f32.mrb[0].mxu0
        %v3740 = vadd.f32 0.0, %v3739
        %v3741 = vpop.f32.mrb[0].mxu0
        %v3742 = vadd.f32 0.0, %v3741
        %v3743 = vpop.f32.mrb[0].mxu0
        %v3744 = vadd.f32 0.0, %v3743
        %v3745 = vpop.f32.mrb[0].mxu0
        %v3746 = vadd.f32 0.0, %v3745
        %3747 = vmatprep.mubr.bf16.mxu0 %v944
        %3748 = vmatmul.mubr.bf16.gmra.mrb[0].mxu0 %v943
        %v3749 = vpop.f32.mrb[0].mxu0
        %v3750 = vadd.f32 0.0, %v3749
        %v3751 = vpop.f32.mrb[0].mxu0
        %v3752 = vadd.f32 0.0, %v3751
        %v3753 = vpop.f32.mrb[0].mxu0
        %v3754 = vadd.f32 0.0, %v3753
        %v3755 = vpop.f32.mrb[0].mxu0
        %v3756 = vadd.f32 0.0, %v3755
        %3757 = vmatprep.mubr.bf16.mxu0 %v948
        %3758 = vmatmul.mubr.bf16.gmra.mrb[0].mxu0 %v947
        %v3759 = vpop.f32.mrb[0].mxu0
        %v3760 = vadd.f32 0.0, %v3759
        %v3761 = vpop.f32.mrb[0].mxu0
        %v3762 = vadd.f32 0.0, %v3761
        %v3763 = vpop.f32.mrb[0].mxu0
        %v3764 = vadd.f32 0.0, %v3763
        %v3765 = vpop.f32.mrb[0].mxu0
        %v3766 = vadd.f32 0.0, %v3765
        %3767 = vmatprep.mubr.bf16.mxu0 %v952
        %3768 = vmatmul.mubr.bf16.gmra.mrb[0].mxu0 %v951
        %v3769 = vpop.f32.mrb[0].mxu0
        %v3770 = vadd.f32 0.0, %v3769
        %v3771 = vpop.f32.mrb[0].mxu0
        %v3772 = vadd.f32 0.0, %v3771
        %v3773 = vpop.f32.mrb[0].mxu0
        %v3774 = vadd.f32 0.0, %v3773
        %v3775 = vpop.f32.mrb[0].mxu0
        %v3776 = vadd.f32 0.0, %v3775
        %3777 = vdwg.mxu0
        %3778 = vmatprep.subr.bf16.mxu0 %v3010
        %3779 = vmatpush1.bf16.msra.mxu0 %v3009
        %3780 = vmatprep.subr.bf16.mxu0 %v3014
        %3781 = vmatpush1.bf16.msra.mxu0 %v3013
        %3782 = vmatprep.subr.bf16.mxu0 %v3018
        %3783 = vmatpush1.bf16.msra.mxu0 %v3017
        %3784 = vmatprep.subr.bf16.mxu0 %v3022
        %3785 = vmatpush1.bf16.msra.mxu0 %v3021
        %3786 = vmatprep.subr.bf16.mxu0 %v3026
        %3787 = vmatpush1.bf16.msra.mxu0 %v3025
        %3788 = vmatprep.subr.bf16.mxu0 %v3030
        %3789 = vmatpush1.bf16.msra.mxu0 %v3029
        %3790 = vmatprep.subr.bf16.mxu0 %v3034
        %3791 = vmatpush1.bf16.msra.mxu0 %v3033
        %3792 = vmatprep.subr.bf16.mxu0 %v3038
        %3793 = vmatpush1.bf16.msra.mxu0 %v3037
        %3794 = vmatprep.subr.bf16.mxu0 %v3042
        %3795 = vmatpush1.bf16.msra.mxu0 %v3041
        %3796 = vmatprep.subr.bf16.mxu0 %v3046
        %3797 = vmatpush1.bf16.msra.mxu0 %v3045
        %3798 = vmatprep.subr.bf16.mxu0 %v3050
        %3799 = vmatpush1.bf16.msra.mxu0 %v3049
        %3800 = vmatprep.subr.bf16.mxu0 %v3054
        %3801 = vmatpush1.bf16.msra.mxu0 %v3053
        %3802 = vmatprep.subr.bf16.mxu0 %v3058
        %3803 = vmatpush1.bf16.msra.mxu0 %v3057
        %3804 = vmatprep.subr.bf16.mxu0 %v3062
        %3805 = vmatpush1.bf16.msra.mxu0 %v3061
        %3806 = vmatprep.subr.bf16.mxu0 %v3066
        %3807 = vmatpush1.bf16.msra.mxu0 %v3065
        %3808 = vmatprep.subr.bf16.mxu0 %v3070
        %3809 = vmatpush1.bf16.msra.mxu0 %v3069
        %3810 = vmatprep.mubr.bf16.mxu0 %v894
        %3811 = vmatmul.mubr.bf16.gmra.mrb[0].mxu0 %v893
        %v3812 = vpop.f32.mrb[0].mxu0
        %v3813 = vadd.f32 %v3620, %v3812
        %v3814 = vpop.f32.mrb[0].mxu0
        %v3815 = vadd.f32 %v3622, %v3814
        %v3816 = vpop.f32.mrb[0].mxu0
        %v3817 = vadd.f32 %v3624, %v3816
        %v3818 = vpop.f32.mrb[0].mxu0
        %v3819 = vadd.f32 %v3626, %v3818
        %3820 = vmatprep.mubr.bf16.mxu0 %v898
        %3821 = vmatmul.mubr.bf16.gmra.mrb[0].mxu0 %v897
        %v3822 = vpop.f32.mrb[0].mxu0
        %v3823 = vadd.f32 %v3630, %v3822
        %v3824 = vpop.f32.mrb[0].mxu0
        %v3825 = vadd.f32 %v3632, %v3824
        %v3826 = vpop.f32.mrb[0].mxu0
        %v3827 = vadd.f32 %v3634, %v3826
        %v3828 = vpop.f32.mrb[0].mxu0
        %v3829 = vadd.f32 %v3636, %v3828
        %3830 = vmatprep.mubr.bf16.mxu0 %v902
        %3831 = vmatmul.mubr.bf16.gmra.mrb[0].mxu0 %v901
        %v3832 = vpop.f32.mrb[0].mxu0
        %v3833 = vadd.f32 %v3640, %v3832
        %v3834 = vpop.f32.mrb[0].mxu0
        %v3835 = vadd.f32 %v3642, %v3834
        %v3836 = vpop.f32.mrb[0].mxu0
        %v3837 = vadd.f32 %v3644, %v3836
        %v3838 = vpop.f32.mrb[0].mxu0
        %v3839 = vadd.f32 %v3646, %v3838
        %3840 = vmatprep.mubr.bf16.mxu0 %v906
        %3841 = vmatmul.mubr.bf16.gmra.mrb[0].mxu0 %v905
        %v3842 = vpop.f32.mrb[0].mxu0
        %v3843 = vadd.f32 %v3650, %v3842
        %v3844 = vpop.f32.mrb[0].mxu0
        %v3845 = vadd.f32 %v3652, %v3844
        %v3846 = vpop.f32.mrb[0].mxu0
        %v3847 = vadd.f32 %v3654, %v3846
        %v3848 = vpop.f32.mrb[0].mxu0
        %v3849 = vadd.f32 %v3656, %v3848
        %3850 = vmatprep.mubr.bf16.mxu0 %v910
        %3851 = vmatmul.mubr.bf16.gmra.mrb[0].mxu0 %v909
        %v3852 = vpop.f32.mrb[0].mxu0
        %v3853 = vadd.f32 %v3660, %v3852
        %v3854 = vpop.f32.mrb[0].mxu0
        %v3855 = vadd.f32 %v3662, %v3854
        %v3856 = vpop.f32.mrb[0].mxu0
        %v3857 = vadd.f32 %v3664, %v3856
        %v3858 = vpop.f32.mrb[0].mxu0
        %v3859 = vadd.f32 %v3666, %v3858
        %3860 = vmatprep.mubr.bf16.mxu0 %v914
        %3861 = vmatmul.mubr.bf16.gmra.mrb[0].mxu0 %v913
        %v3862 = vpop.f32.mrb[0].mxu0
        %v3863 = vadd.f32 %v3670, %v3862
        %v3864 = vpop.f32.mrb[0].mxu0
        %v3865 = vadd.f32 %v3672, %v3864
        %v3866 = vpop.f32.mrb[0].mxu0
        %v3867 = vadd.f32 %v3674, %v3866
        %v3868 = vpop.f32.mrb[0].mxu0
        %v3869 = vadd.f32 %v3676, %v3868
        %3870 = vmatprep.mubr.bf16.mxu0 %v918
        %3871 = vmatmul.mubr.bf16.gmra.mrb[0].mxu0 %v917
        %v3872 = vpop.f32.mrb[0].mxu0
        %v3873 = vadd.f32 %v3680, %v3872
        %v3874 = vpop.f32.mrb[0].mxu0
        %v3875 = vadd.f32 %v3682, %v3874
        %v3876 = vpop.f32.mrb[0].mxu0
        %v3877 = vadd.f32 %v3684, %v3876
        %v3878 = vpop.f32.mrb[0].mxu0
        %v3879 = vadd.f32 %v3686, %v3878
        %3880 = vmatprep.mubr.bf16.mxu0 %v922
        %3881 = vmatmul.mubr.bf16.gmra.mrb[0].mxu0 %v921
        %v3882 = vpop.f32.mrb[0].mxu0
        %v3883 = vadd.f32 %v3690, %v3882
        %v3884 = vpop.f32.mrb[0].mxu0
        %v3885 = vadd.f32 %v3692, %v3884
        %v3886 = vpop.f32.mrb[0].mxu0
        %v3887 = vadd.f32 %v3694, %v3886
        %v3888 = vpop.f32.mrb[0].mxu0
        %v3889 = vadd.f32 %v3696, %v3888
        %3890 = vmatprep.mubr.bf16.mxu0 %v926
        %3891 = vmatmul.mubr.bf16.gmra.mrb[0].mxu0 %v925
        %v3892 = vpop.f32.mrb[0].mxu0
        %v3893 = vadd.f32 %v3700, %v3892
        %v3894 = vpop.f32.mrb[0].mxu0
        %v3895 = vadd.f32 %v3702, %v3894
        %v3896 = vpop.f32.mrb[0].mxu0
        %v3897 = vadd.f32 %v3704, %v3896
        %v3898 = vpop.f32.mrb[0].mxu0
        %v3899 = vadd.f32 %v3706, %v3898
        %3900 = vmatprep.mubr.bf16.mxu0 %v930
        %3901 = vmatmul.mubr.bf16.gmra.mrb[0].mxu0 %v929
        %v3902 = vpop.f32.mrb[0].mxu0
        %v3903 = vadd.f32 %v3710, %v3902
        %v3904 = vpop.f32.mrb[0].mxu0
        %v3905 = vadd.f32 %v3712, %v3904
        %v3906 = vpop.f32.mrb[0].mxu0
        %v3907 = vadd.f32 %v3714, %v3906
        %v3908 = vpop.f32.mrb[0].mxu0
        %v3909 = vadd.f32 %v3716, %v3908
        %3910 = vmatprep.mubr.bf16.mxu0 %v934
        %3911 = vmatmul.mubr.bf16.gmra.mrb[0].mxu0 %v933
        %v3912 = vpop.f32.mrb[0].mxu0
        %v3913 = vadd.f32 %v3720, %v3912
        %v3914 = vpop.f32.mrb[0].mxu0
        %v3915 = vadd.f32 %v3722, %v3914
        %v3916 = vpop.f32.mrb[0].mxu0
        %v3917 = vadd.f32 %v3724, %v3916
        %v3918 = vpop.f32.mrb[0].mxu0
        %v3919 = vadd.f32 %v3726, %v3918
        %3920 = vmatprep.mubr.bf16.mxu0 %v938
        %3921 = vmatmul.mubr.bf16.gmra.mrb[0].mxu0 %v937
        %v3922 = vpop.f32.mrb[0].mxu0
        %v3923 = vadd.f32 %v3730, %v3922
        %v3924 = vpop.f32.mrb[0].mxu0
        %v3925 = vadd.f32 %v3732, %v3924
        %v3926 = vpop.f32.mrb[0].mxu0
        %v3927 = vadd.f32 %v3734, %v3926
        %v3928 = vpop.f32.mrb[0].mxu0
        %v3929 = vadd.f32 %v3736, %v3928
        %3930 = vmatprep.mubr.bf16.mxu0 %v942
        %3931 = vmatmul.mubr.bf16.gmra.mrb[0].mxu0 %v941
        %v3932 = vpop.f32.mrb[0].mxu0
        %v3933 = vadd.f32 %v3740, %v3932
        %v3934 = vpop.f32.mrb[0].mxu0
        %v3935 = vadd.f32 %v3742, %v3934
        %v3936 = vpop.f32.mrb[0].mxu0
        %v3937 = vadd.f32 %v3744, %v3936
        %v3938 = vpop.f32.mrb[0].mxu0
        %v3939 = vadd.f32 %v3746, %v3938
        %3940 = vmatprep.mubr.bf16.mxu0 %v946
        %3941 = vmatmul.mubr.bf16.gmra.mrb[0].mxu0 %v945
        %v3942 = vpop.f32.mrb[0].mxu0
        %v3943 = vadd.f32 %v3750, %v3942
        %v3944 = vpop.f32.mrb[0].mxu0
        %v3945 = vadd.f32 %v3752, %v3944
        %v3946 = vpop.f32.mrb[0].mxu0
        %v3947 = vadd.f32 %v3754, %v3946
        %v3948 = vpop.f32.mrb[0].mxu0
        %v3949 = vadd.f32 %v3756, %v3948
        %3950 = vmatprep.mubr.bf16.mxu0 %v950
        %3951 = vmatmul.mubr.bf16.gmra.mrb[0].mxu0 %v949
        %v3952 = vpop.f32.mrb[0].mxu0
        %v3953 = vadd.f32 %v3760, %v3952
        %v3954 = vpop.f32.mrb[0].mxu0
        %v3955 = vadd.f32 %v3762, %v3954
        %v3956 = vpop.f32.mrb[0].mxu0
        %v3957 = vadd.f32 %v3764, %v3956
        %v3958 = vpop.f32.mrb[0].mxu0
        %v3959 = vadd.f32 %v3766, %v3958
        %3960 = vmatprep.mubr.bf16.mxu0 %v954
        %3961 = vmatmul.mubr.bf16.gmra.mrb[0].mxu0 %v953
        %v3962 = vpop.f32.mrb[0].mxu0
        %v3963 = vadd.f32 %v3770, %v3962
        %v3964 = vpop.f32.mrb[0].mxu0
        %v3965 = vadd.f32 %v3772, %v3964
        %v3966 = vpop.f32.mrb[0].mxu0
        %v3967 = vadd.f32 %v3774, %v3966
        %v3968 = vpop.f32.mrb[0].mxu0
        %v3969 = vadd.f32 %v3776, %v3968
        %3970 = vdwg.mxu0
        %v3971 = vxor.u32 %v1887, 2147483648
        %v3972 = vxor.u32 %v1889, 2147483648
        %v3973 = vxor.u32 %v2273, 2147483648
        %v3974 = vxor.u32 %v2275, 2147483648
        %v3975 = vxor.u32 %v1891, 2147483648
        %v3976 = vxor.u32 %v1893, 2147483648
        %v3977 = vxor.u32 %v2277, 2147483648
        %v3978 = vxor.u32 %v2279, 2147483648
        %v3979 = vxor.u32 %v1897, 2147483648
        %v3980 = vxor.u32 %v1899, 2147483648
        %v3981 = vxor.u32 %v2283, 2147483648
        %v3982 = vxor.u32 %v2285, 2147483648
        %v3983 = vxor.u32 %v1901, 2147483648
        %v3984 = vxor.u32 %v1903, 2147483648
        %v3985 = vxor.u32 %v2287, 2147483648
        %v3986 = vxor.u32 %v2289, 2147483648
        %v3987 = vxor.u32 %v1907, 2147483648
        %v3988 = vxor.u32 %v1909, 2147483648
        %v3989 = vxor.u32 %v2293, 2147483648
        %v3990 = vxor.u32 %v2295, 2147483648
        %v3991 = vxor.u32 %v1911, 2147483648
        %v3992 = vxor.u32 %v1913, 2147483648
        %v3993 = vxor.u32 %v2297, 2147483648
        %v3994 = vxor.u32 %v2299, 2147483648
        %v3995 = vxor.u32 %v1917, 2147483648
        %v3996 = vxor.u32 %v1919, 2147483648
        %v3997 = vxor.u32 %v2303, 2147483648
        %v3998 = vxor.u32 %v2305, 2147483648
        %v3999 = vxor.u32 %v1921, 2147483648
        %v4000 = vxor.u32 %v1923, 2147483648
        %v4001 = vxor.u32 %v2307, 2147483648
        %v4002 = vxor.u32 %v2309, 2147483648
        %v4003 = vxor.u32 %v1927, 2147483648
        %v4004 = vxor.u32 %v1929, 2147483648
        %v4005 = vxor.u32 %v2313, 2147483648
        %v4006 = vxor.u32 %v2315, 2147483648
        %v4007 = vxor.u32 %v1931, 2147483648
        %v4008 = vxor.u32 %v1933, 2147483648
        %v4009 = vxor.u32 %v2317, 2147483648
        %v4010 = vxor.u32 %v2319, 2147483648
        %v4011 = vxor.u32 %v1937, 2147483648
        %v4012 = vxor.u32 %v1939, 2147483648
        %v4013 = vxor.u32 %v2323, 2147483648
        %v4014 = vxor.u32 %v2325, 2147483648
        %v4015 = vxor.u32 %v1941, 2147483648
        %v4016 = vxor.u32 %v1943, 2147483648
        %v4017 = vxor.u32 %v2327, 2147483648
        %v4018 = vxor.u32 %v2329, 2147483648
        %v4019 = vxor.u32 %v1947, 2147483648
        %v4020 = vxor.u32 %v1949, 2147483648
        %v4021 = vxor.u32 %v2333, 2147483648
        %v4022 = vxor.u32 %v2335, 2147483648
        %v4023 = vxor.u32 %v1951, 2147483648
        %v4024 = vxor.u32 %v1953, 2147483648
        %v4025 = vxor.u32 %v2337, 2147483648
        %v4026 = vxor.u32 %v2339, 2147483648
        %v4027 = vxor.u32 %v1957, 2147483648
        %v4028 = vxor.u32 %v1959, 2147483648
        %v4029 = vxor.u32 %v2343, 2147483648
        %v4030 = vxor.u32 %v2345, 2147483648
        %v4031 = vxor.u32 %v1961, 2147483648
        %v4032 = vxor.u32 %v1963, 2147483648
        %v4033 = vxor.u32 %v2347, 2147483648
        %v4034 = vxor.u32 %v2349, 2147483648
        %v4035 = vxor.u32 %v1967, 2147483648
        %v4036 = vxor.u32 %v1969, 2147483648
        %v4037 = vxor.u32 %v2353, 2147483648
        %v4038 = vxor.u32 %v2355, 2147483648
        %v4039 = vxor.u32 %v1971, 2147483648
        %v4040 = vxor.u32 %v1973, 2147483648
        %v4041 = vxor.u32 %v2357, 2147483648
        %v4042 = vxor.u32 %v2359, 2147483648
        %v4043 = vxor.u32 %v1977, 2147483648
        %v4044 = vxor.u32 %v1979, 2147483648
        %v4045 = vxor.u32 %v2363, 2147483648
        %v4046 = vxor.u32 %v2365, 2147483648
        %v4047 = vxor.u32 %v1981, 2147483648
        %v4048 = vxor.u32 %v1983, 2147483648
        %v4049 = vxor.u32 %v2367, 2147483648
        %v4050 = vxor.u32 %v2369, 2147483648
        %v4051 = vxor.u32 %v1987, 2147483648
        %v4052 = vxor.u32 %v1989, 2147483648
        %v4053 = vxor.u32 %v2373, 2147483648
        %v4054 = vxor.u32 %v2375, 2147483648
        %v4055 = vxor.u32 %v1991, 2147483648
        %v4056 = vxor.u32 %v1993, 2147483648
        %v4057 = vxor.u32 %v2377, 2147483648
        %v4058 = vxor.u32 %v2379, 2147483648
        %v4059 = vxor.u32 %v1997, 2147483648
        %v4060 = vxor.u32 %v1999, 2147483648
        %v4061 = vxor.u32 %v2383, 2147483648
        %v4062 = vxor.u32 %v2385, 2147483648
        %v4063 = vxor.u32 %v2001, 2147483648
        %v4064 = vxor.u32 %v2003, 2147483648
        %v4065 = vxor.u32 %v2387, 2147483648
        %v4066 = vxor.u32 %v2389, 2147483648
        %v4067 = vxor.u32 %v2007, 2147483648
        %v4068 = vxor.u32 %v2009, 2147483648
        %v4069 = vxor.u32 %v2393, 2147483648
        %v4070 = vxor.u32 %v2395, 2147483648
        %v4071 = vxor.u32 %v2011, 2147483648
        %v4072 = vxor.u32 %v2013, 2147483648
        %v4073 = vxor.u32 %v2397, 2147483648
        %v4074 = vxor.u32 %v2399, 2147483648
        %v4075 = vxor.u32 %v2017, 2147483648
        %v4076 = vxor.u32 %v2019, 2147483648
        %v4077 = vxor.u32 %v2403, 2147483648
        %v4078 = vxor.u32 %v2405, 2147483648
        %v4079 = vxor.u32 %v2021, 2147483648
        %v4080 = vxor.u32 %v2023, 2147483648
        %v4081 = vxor.u32 %v2407, 2147483648
        %v4082 = vxor.u32 %v2409, 2147483648
        %v4083 = vxor.u32 %v2027, 2147483648
        %v4084 = vxor.u32 %v2029, 2147483648
        %v4085 = vxor.u32 %v2413, 2147483648
        %v4086 = vxor.u32 %v2415, 2147483648
        %v4087 = vxor.u32 %v2031, 2147483648
        %v4088 = vxor.u32 %v2033, 2147483648
        %v4089 = vxor.u32 %v2417, 2147483648
        %v4090 = vxor.u32 %v2419, 2147483648
        %v4091 = vxor.u32 %v2037, 2147483648
        %v4092 = vxor.u32 %v2039, 2147483648
        %v4093 = vxor.u32 %v2423, 2147483648
        %v4094 = vxor.u32 %v2425, 2147483648
        %v4095 = vxor.u32 %v2041, 2147483648
        %v4096 = vxor.u32 %v2043, 2147483648
        %v4097 = vxor.u32 %v2427, 2147483648
        %v4098 = vxor.u32 %v2429, 2147483648
        %v4099 = vmul.f32 %v3971, 1.442695
        %v4100 = vpow.pop %v4099
        %v4101 = vmul.f32 %v3972, 1.442695
        %v4102 = vpow.pop %v4101
        %v4103 = vmul.f32 %v3973, 1.442695
        %v4104 = vpow.pop %v4103
        %v4105 = vmul.f32 %v3974, 1.442695
        %v4106 = vpow.pop %v4105
        %v4107 = vmul.f32 %v3975, 1.442695
        %v4108 = vpow.pop %v4107
        %v4109 = vmul.f32 %v3976, 1.442695
        %v4110 = vpow.pop %v4109
        %v4111 = vmul.f32 %v3977, 1.442695
        %v4112 = vpow.pop %v4111
        %v4113 = vmul.f32 %v3978, 1.442695
        %v4114 = vpow.pop %v4113
        %v4115 = vmul.f32 %v3979, 1.442695
        %v4116 = vpow.pop %v4115
        %v4117 = vmul.f32 %v3980, 1.442695
        %v4118 = vpow.pop %v4117
        %v4119 = vmul.f32 %v3981, 1.442695
        %v4120 = vpow.pop %v4119
        %v4121 = vmul.f32 %v3982, 1.442695
        %v4122 = vpow.pop %v4121
        %v4123 = vmul.f32 %v3983, 1.442695
        %v4124 = vpow.pop %v4123
        %v4125 = vmul.f32 %v3984, 1.442695
        %v4126 = vpow.pop %v4125
        %v4127 = vmul.f32 %v3985, 1.442695
        %v4128 = vpow.pop %v4127
        %v4129 = vmul.f32 %v3986, 1.442695
        %v4130 = vpow.pop %v4129
        %v4131 = vmul.f32 %v3987, 1.442695
        %v4132 = vpow.pop %v4131
        %v4133 = vmul.f32 %v3988, 1.442695
        %v4134 = vpow.pop %v4133
        %v4135 = vmul.f32 %v3989, 1.442695
        %v4136 = vpow.pop %v4135
        %v4137 = vmul.f32 %v3990, 1.442695
        %v4138 = vpow.pop %v4137
        %v4139 = vmul.f32 %v3991, 1.442695
        %v4140 = vpow.pop %v4139
        %v4141 = vmul.f32 %v3992, 1.442695
        %v4142 = vpow.pop %v4141
        %v4143 = vmul.f32 %v3993, 1.442695
        %v4144 = vpow.pop %v4143
        %v4145 = vmul.f32 %v3994, 1.442695
        %v4146 = vpow.pop %v4145
        %v4147 = vmul.f32 %v3995, 1.442695
        %v4148 = vpow.pop %v4147
        %v4149 = vmul.f32 %v3996, 1.442695
        %v4150 = vpow.pop %v4149
        %v4151 = vmul.f32 %v3997, 1.442695
        %v4152 = vpow.pop %v4151
        %v4153 = vmul.f32 %v3998, 1.442695
        %v4154 = vpow.pop %v4153
        %v4155 = vmul.f32 %v3999, 1.442695
        %v4156 = vpow.pop %v4155
        %v4157 = vmul.f32 %v4000, 1.442695
        %v4158 = vpow.pop %v4157
        %v4159 = vmul.f32 %v4001, 1.442695
        %v4160 = vpow.pop %v4159
        %v4161 = vmul.f32 %v4002, 1.442695
        %v4162 = vpow.pop %v4161
        %v4163 = vmul.f32 %v4003, 1.442695
        %v4164 = vpow.pop %v4163
        %v4165 = vmul.f32 %v4004, 1.442695
        %v4166 = vpow.pop %v4165
        %v4167 = vmul.f32 %v4005, 1.442695
        %v4168 = vpow.pop %v4167
        %v4169 = vmul.f32 %v4006, 1.442695
        %v4170 = vpow.pop %v4169
        %v4171 = vmul.f32 %v4007, 1.442695
        %v4172 = vpow.pop %v4171
        %v4173 = vmul.f32 %v4008, 1.442695
        %v4174 = vpow.pop %v4173
        %v4175 = vmul.f32 %v4009, 1.442695
        %v4176 = vpow.pop %v4175
        %v4177 = vmul.f32 %v4010, 1.442695
        %v4178 = vpow.pop %v4177
        %v4179 = vmul.f32 %v4011, 1.442695
        %v4180 = vpow.pop %v4179
        %v4181 = vmul.f32 %v4012, 1.442695
        %v4182 = vpow.pop %v4181
        %v4183 = vmul.f32 %v4013, 1.442695
        %v4184 = vpow.pop %v4183
        %v4185 = vmul.f32 %v4014, 1.442695
        %v4186 = vpow.pop %v4185
        %v4187 = vmul.f32 %v4015, 1.442695
        %v4188 = vpow.pop %v4187
        %v4189 = vmul.f32 %v4016, 1.442695
        %v4190 = vpow.pop %v4189
        %v4191 = vmul.f32 %v4017, 1.442695
        %v4192 = vpow.pop %v4191
        %v4193 = vmul.f32 %v4018, 1.442695
        %v4194 = vpow.pop %v4193
        %v4195 = vmul.f32 %v4019, 1.442695
        %v4196 = vpow.pop %v4195
        %v4197 = vmul.f32 %v4020, 1.442695
        %v4198 = vpow.pop %v4197
        %v4199 = vmul.f32 %v4021, 1.442695
        %v4200 = vpow.pop %v4199
        %v4201 = vmul.f32 %v4022, 1.442695
        %v4202 = vpow.pop %v4201
        %v4203 = vmul.f32 %v4023, 1.442695
        %v4204 = vpow.pop %v4203
        %v4205 = vmul.f32 %v4024, 1.442695
        %v4206 = vpow.pop %v4205
        %v4207 = vmul.f32 %v4025, 1.442695
        %v4208 = vpow.pop %v4207
        %v4209 = vmul.f32 %v4026, 1.442695
        %v4210 = vpow.pop %v4209
        %v4211 = vmul.f32 %v4027, 1.442695
        %v4212 = vpow.pop %v4211
        %v4213 = vmul.f32 %v4028, 1.442695
        %v4214 = vpow.pop %v4213
        %v4215 = vmul.f32 %v4029, 1.442695
        %v4216 = vpow.pop %v4215
        %v4217 = vmul.f32 %v4030, 1.442695
        %v4218 = vpow.pop %v4217
        %v4219 = vmul.f32 %v4031, 1.442695
        %v4220 = vpow.pop %v4219
        %v4221 = vmul.f32 %v4032, 1.442695
        %v4222 = vpow.pop %v4221
        %v4223 = vmul.f32 %v4033, 1.442695
        %v4224 = vpow.pop %v4223
        %v4225 = vmul.f32 %v4034, 1.442695
        %v4226 = vpow.pop %v4225
        %v4227 = vmul.f32 %v4035, 1.442695
        %v4228 = vpow.pop %v4227
        %v4229 = vmul.f32 %v4036, 1.442695
        %v4230 = vpow.pop %v4229
        %v4231 = vmul.f32 %v4037, 1.442695
        %v4232 = vpow.pop %v4231
        %v4233 = vmul.f32 %v4038, 1.442695
        %v4234 = vpow.pop %v4233
        %v4235 = vmul.f32 %v4039, 1.442695
        %v4236 = vpow.pop %v4235
        %v4237 = vmul.f32 %v4040, 1.442695
        %v4238 = vpow.pop %v4237
        %v4239 = vmul.f32 %v4041, 1.442695
        %v4240 = vpow.pop %v4239
        %v4241 = vmul.f32 %v4042, 1.442695
        %v4242 = vpow.pop %v4241
        %v4243 = vmul.f32 %v4043, 1.442695
        %v4244 = vpow.pop %v4243
        %v4245 = vmul.f32 %v4044, 1.442695
        %v4246 = vpow.pop %v4245
        %v4247 = vmul.f32 %v4045, 1.442695
        %v4248 = vpow.pop %v4247
        %v4249 = vmul.f32 %v4046, 1.442695
        %v4250 = vpow.pop %v4249
        %v4251 = vmul.f32 %v4047, 1.442695
        %v4252 = vpow.pop %v4251
        %v4253 = vmul.f32 %v4048, 1.442695
        %v4254 = vpow.pop %v4253
        %v4255 = vmul.f32 %v4049, 1.442695
        %v4256 = vpow.pop %v4255
        %v4257 = vmul.f32 %v4050, 1.442695
        %v4258 = vpow.pop %v4257
        %v4259 = vmul.f32 %v4051, 1.442695
        %v4260 = vpow.pop %v4259
        %v4261 = vmul.f32 %v4052, 1.442695
        %v4262 = vpow.pop %v4261
        %v4263 = vmul.f32 %v4053, 1.442695
        %v4264 = vpow.pop %v4263
        %v4265 = vmul.f32 %v4054, 1.442695
        %v4266 = vpow.pop %v4265
        %v4267 = vmul.f32 %v4055, 1.442695
        %v4268 = vpow.pop %v4267
        %v4269 = vmul.f32 %v4056, 1.442695
        %v4270 = vpow.pop %v4269
        %v4271 = vmul.f32 %v4057, 1.442695
        %v4272 = vpow.pop %v4271
        %v4273 = vmul.f32 %v4058, 1.442695
        %v4274 = vpow.pop %v4273
        %v4275 = vmul.f32 %v4059, 1.442695
        %v4276 = vpow.pop %v4275
        %v4277 = vmul.f32 %v4060, 1.442695
        %v4278 = vpow.pop %v4277
        %v4279 = vmul.f32 %v4061, 1.442695
        %v4280 = vpow.pop %v4279
        %v4281 = vmul.f32 %v4062, 1.442695
        %v4282 = vpow.pop %v4281
        %v4283 = vmul.f32 %v4063, 1.442695
        %v4284 = vpow.pop %v4283
        %v4285 = vmul.f32 %v4064, 1.442695
        %v4286 = vpow.pop %v4285
        %v4287 = vmul.f32 %v4065, 1.442695
        %v4288 = vpow.pop %v4287
        %v4289 = vmul.f32 %v4066, 1.442695
        %v4290 = vpow.pop %v4289
        %v4291 = vmul.f32 %v4067, 1.442695
        %v4292 = vpow.pop %v4291
        %v4293 = vmul.f32 %v4068, 1.442695
        %v4294 = vpow.pop %v4293
        %v4295 = vmul.f32 %v4069, 1.442695
        %v4296 = vpow.pop %v4295
        %v4297 = vmul.f32 %v4070, 1.442695
        %v4298 = vpow.pop %v4297
        %v4299 = vmul.f32 %v4071, 1.442695
        %v4300 = vpow.pop %v4299
        %v4301 = vmul.f32 %v4072, 1.442695
        %v4302 = vpow.pop %v4301
        %v4303 = vmul.f32 %v4073, 1.442695
        %v4304 = vpow.pop %v4303
        %v4305 = vmul.f32 %v4074, 1.442695
        %v4306 = vpow.pop %v4305
        %v4307 = vmul.f32 %v4075, 1.442695
        %v4308 = vpow.pop %v4307
        %v4309 = vmul.f32 %v4076, 1.442695
        %v4310 = vpow.pop %v4309
        %v4311 = vmul.f32 %v4077, 1.442695
        %v4312 = vpow.pop %v4311
        %v4313 = vmul.f32 %v4078, 1.442695
        %v4314 = vpow.pop %v4313
        %v4315 = vmul.f32 %v4079, 1.442695
        %v4316 = vpow.pop %v4315
        %v4317 = vmul.f32 %v4080, 1.442695
        %v4318 = vpow.pop %v4317
        %v4319 = vmul.f32 %v4081, 1.442695
        %v4320 = vpow.pop %v4319
        %v4321 = vmul.f32 %v4082, 1.442695
        %v4322 = vpow.pop %v4321
        %v4323 = vmul.f32 %v4083, 1.442695
        %v4324 = vpow.pop %v4323
        %v4325 = vmul.f32 %v4084, 1.442695
        %v4326 = vpow.pop %v4325
        %v4327 = vmul.f32 %v4085, 1.442695
        %v4328 = vpow.pop %v4327
        %v4329 = vmul.f32 %v4086, 1.442695
        %v4330 = vpow.pop %v4329
        %v4331 = vmul.f32 %v4087, 1.442695
        %v4332 = vpow.pop %v4331
        %v4333 = vmul.f32 %v4088, 1.442695
        %v4334 = vpow.pop %v4333
        %v4335 = vmul.f32 %v4089, 1.442695
        %v4336 = vpow.pop %v4335
        %v4337 = vmul.f32 %v4090, 1.442695
        %v4338 = vpow.pop %v4337
        %v4339 = vmul.f32 %v4091, 1.442695
        %v4340 = vpow.pop %v4339
        %v4341 = vmul.f32 %v4092, 1.442695
        %v4342 = vpow.pop %v4341
        %v4343 = vmul.f32 %v4093, 1.442695
        %v4344 = vpow.pop %v4343
        %v4345 = vmul.f32 %v4094, 1.442695
        %v4346 = vpow.pop %v4345
        %v4347 = vmul.f32 %v4095, 1.442695
        %v4348 = vpow.pop %v4347
        %v4349 = vmul.f32 %v4096, 1.442695
        %v4350 = vpow.pop %v4349
        %v4351 = vmul.f32 %v4097, 1.442695
        %v4352 = vpow.pop %v4351
        %v4353 = vmul.f32 %v4098, 1.442695
        %v4354 = vpow.pop %v4353
        %v4355 = vadd.f32 %v4100, 1.0
        %v4356 = vadd.f32 %v4102, 1.0
        %v4357 = vadd.f32 %v4104, 1.0
        %v4358 = vadd.f32 %v4106, 1.0
        %v4359 = vadd.f32 %v4108, 1.0
        %v4360 = vadd.f32 %v4110, 1.0
        %v4361 = vadd.f32 %v4112, 1.0
        %v4362 = vadd.f32 %v4114, 1.0
        %v4363 = vadd.f32 %v4116, 1.0
        %v4364 = vadd.f32 %v4118, 1.0
        %v4365 = vadd.f32 %v4120, 1.0
        %v4366 = vadd.f32 %v4122, 1.0
        %v4367 = vadd.f32 %v4124, 1.0
        %v4368 = vadd.f32 %v4126, 1.0
        %v4369 = vadd.f32 %v4128, 1.0
        %v4370 = vadd.f32 %v4130, 1.0
        %v4371 = vadd.f32 %v4132, 1.0
        %v4372 = vadd.f32 %v4134, 1.0
        %v4373 = vadd.f32 %v4136, 1.0
        %v4374 = vadd.f32 %v4138, 1.0
        %v4375 = vadd.f32 %v4140, 1.0
        %v4376 = vadd.f32 %v4142, 1.0
        %v4377 = vadd.f32 %v4144, 1.0
        %v4378 = vadd.f32 %v4146, 1.0
        %v4379 = vadd.f32 %v4148, 1.0
        %v4380 = vadd.f32 %v4150, 1.0
        %v4381 = vadd.f32 %v4152, 1.0
        %v4382 = vadd.f32 %v4154, 1.0
        %v4383 = vadd.f32 %v4156, 1.0
        %v4384 = vadd.f32 %v4158, 1.0
        %v4385 = vadd.f32 %v4160, 1.0
        %v4386 = vadd.f32 %v4162, 1.0
        %v4387 = vadd.f32 %v4164, 1.0
        %v4388 = vadd.f32 %v4166, 1.0
        %v4389 = vadd.f32 %v4168, 1.0
        %v4390 = vadd.f32 %v4170, 1.0
        %v4391 = vadd.f32 %v4172, 1.0
        %v4392 = vadd.f32 %v4174, 1.0
        %v4393 = vadd.f32 %v4176, 1.0
        %v4394 = vadd.f32 %v4178, 1.0
        %v4395 = vadd.f32 %v4180, 1.0
        %v4396 = vadd.f32 %v4182, 1.0
        %v4397 = vadd.f32 %v4184, 1.0
        %v4398 = vadd.f32 %v4186, 1.0
        %v4399 = vadd.f32 %v4188, 1.0
        %v4400 = vadd.f32 %v4190, 1.0
        %v4401 = vadd.f32 %v4192, 1.0
        %v4402 = vadd.f32 %v4194, 1.0
        %v4403 = vadd.f32 %v4196, 1.0
        %v4404 = vadd.f32 %v4198, 1.0
        %v4405 = vadd.f32 %v4200, 1.0
        %v4406 = vadd.f32 %v4202, 1.0
        %v4407 = vadd.f32 %v4204, 1.0
        %v4408 = vadd.f32 %v4206, 1.0
        %v4409 = vadd.f32 %v4208, 1.0
        %v4410 = vadd.f32 %v4210, 1.0
        %v4411 = vadd.f32 %v4212, 1.0
        %v4412 = vadd.f32 %v4214, 1.0
        %v4413 = vadd.f32 %v4216, 1.0
        %v4414 = vadd.f32 %v4218, 1.0
        %v4415 = vadd.f32 %v4220, 1.0
        %v4416 = vadd.f32 %v4222, 1.0
        %v4417 = vadd.f32 %v4224, 1.0
        %v4418 = vadd.f32 %v4226, 1.0
        %v4419 = vadd.f32 %v4228, 1.0
        %v4420 = vadd.f32 %v4230, 1.0
        %v4421 = vadd.f32 %v4232, 1.0
        %v4422 = vadd.f32 %v4234, 1.0
        %v4423 = vadd.f32 %v4236, 1.0
        %v4424 = vadd.f32 %v4238, 1.0
        %v4425 = vadd.f32 %v4240, 1.0
        %v4426 = vadd.f32 %v4242, 1.0
        %v4427 = vadd.f32 %v4244, 1.0
        %v4428 = vadd.f32 %v4246, 1.0
        %v4429 = vadd.f32 %v4248, 1.0
        %v4430 = vadd.f32 %v4250, 1.0
        %v4431 = vadd.f32 %v4252, 1.0
        %v4432 = vadd.f32 %v4254, 1.0
        %v4433 = vadd.f32 %v4256, 1.0
        %v4434 = vadd.f32 %v4258, 1.0
        %v4435 = vadd.f32 %v4260, 1.0
        %v4436 = vadd.f32 %v4262, 1.0
        %v4437 = vadd.f32 %v4264, 1.0
        %v4438 = vadd.f32 %v4266, 1.0
        %v4439 = vadd.f32 %v4268, 1.0
        %v4440 = vadd.f32 %v4270, 1.0
        %v4441 = vadd.f32 %v4272, 1.0
        %v4442 = vadd.f32 %v4274, 1.0
        %v4443 = vadd.f32 %v4276, 1.0
        %v4444 = vadd.f32 %v4278, 1.0
        %v4445 = vadd.f32 %v4280, 1.0
        %v4446 = vadd.f32 %v4282, 1.0
        %v4447 = vadd.f32 %v4284, 1.0
        %v4448 = vadd.f32 %v4286, 1.0
        %v4449 = vadd.f32 %v4288, 1.0
        %v4450 = vadd.f32 %v4290, 1.0
        %v4451 = vadd.f32 %v4292, 1.0
        %v4452 = vadd.f32 %v4294, 1.0
        %v4453 = vadd.f32 %v4296, 1.0
        %v4454 = vadd.f32 %v4298, 1.0
        %v4455 = vadd.f32 %v4300, 1.0
        %v4456 = vadd.f32 %v4302, 1.0
        %v4457 = vadd.f32 %v4304, 1.0
        %v4458 = vadd.f32 %v4306, 1.0
        %v4459 = vadd.f32 %v4308, 1.0
        %v4460 = vadd.f32 %v4310, 1.0
        %v4461 = vadd.f32 %v4312, 1.0
        %v4462 = vadd.f32 %v4314, 1.0
        %v4463 = vadd.f32 %v4316, 1.0
        %v4464 = vadd.f32 %v4318, 1.0
        %v4465 = vadd.f32 %v4320, 1.0
        %v4466 = vadd.f32 %v4322, 1.0
        %v4467 = vadd.f32 %v4324, 1.0
        %v4468 = vadd.f32 %v4326, 1.0
        %v4469 = vadd.f32 %v4328, 1.0
        %v4470 = vadd.f32 %v4330, 1.0
        %v4471 = vadd.f32 %v4332, 1.0
        %v4472 = vadd.f32 %v4334, 1.0
        %v4473 = vadd.f32 %v4336, 1.0
        %v4474 = vadd.f32 %v4338, 1.0
        %v4475 = vadd.f32 %v4340, 1.0
        %v4476 = vadd.f32 %v4342, 1.0
        %v4477 = vadd.f32 %v4344, 1.0
        %v4478 = vadd.f32 %v4346, 1.0
        %v4479 = vadd.f32 %v4348, 1.0
        %v4480 = vadd.f32 %v4350, 1.0
        %v4481 = vadd.f32 %v4352, 1.0
        %v4482 = vadd.f32 %v4354, 1.0
        %v4483 = vrcp.pop %v4355
        %v4484 = vmul.f32 1.0, %v4483
        %v4485 = vrcp.pop %v4356
        %v4486 = vmul.f32 1.0, %v4485
        %v4487 = vrcp.pop %v4357
        %v4488 = vmul.f32 1.0, %v4487
        %v4489 = vrcp.pop %v4358
        %v4490 = vmul.f32 1.0, %v4489
        %v4491 = vrcp.pop %v4359
        %v4492 = vmul.f32 1.0, %v4491
        %v4493 = vrcp.pop %v4360
        %v4494 = vmul.f32 1.0, %v4493
        %v4495 = vrcp.pop %v4361
        %v4496 = vmul.f32 1.0, %v4495
        %v4497 = vrcp.pop %v4362
        %v4498 = vmul.f32 1.0, %v4497
        %v4499 = vrcp.pop %v4363
        %v4500 = vmul.f32 1.0, %v4499
        %v4501 = vrcp.pop %v4364
        %v4502 = vmul.f32 1.0, %v4501
        %v4503 = vrcp.pop %v4365
        %v4504 = vmul.f32 1.0, %v4503
        %v4505 = vrcp.pop %v4366
        %v4506 = vmul.f32 1.0, %v4505
        %v4507 = vrcp.pop %v4367
        %v4508 = vmul.f32 1.0, %v4507
        %v4509 = vrcp.pop %v4368
        %v4510 = vmul.f32 1.0, %v4509
        %v4511 = vrcp.pop %v4369
        %v4512 = vmul.f32 1.0, %v4511
        %v4513 = vrcp.pop %v4370
        %v4514 = vmul.f32 1.0, %v4513
        %v4515 = vrcp.pop %v4371
        %v4516 = vmul.f32 1.0, %v4515
        %v4517 = vrcp.pop %v4372
        %v4518 = vmul.f32 1.0, %v4517
        %v4519 = vrcp.pop %v4373
        %v4520 = vmul.f32 1.0, %v4519
        %v4521 = vrcp.pop %v4374
        %v4522 = vmul.f32 1.0, %v4521
        %v4523 = vrcp.pop %v4375
        %v4524 = vmul.f32 1.0, %v4523
        %v4525 = vrcp.pop %v4376
        %v4526 = vmul.f32 1.0, %v4525
        %v4527 = vrcp.pop %v4377
        %v4528 = vmul.f32 1.0, %v4527
        %v4529 = vrcp.pop %v4378
        %v4530 = vmul.f32 1.0, %v4529
        %v4531 = vrcp.pop %v4379
        %v4532 = vmul.f32 1.0, %v4531
        %v4533 = vrcp.pop %v4380
        %v4534 = vmul.f32 1.0, %v4533
        %v4535 = vrcp.pop %v4381
        %v4536 = vmul.f32 1.0, %v4535
        %v4537 = vrcp.pop %v4382
        %v4538 = vmul.f32 1.0, %v4537
        %v4539 = vrcp.pop %v4383
        %v4540 = vmul.f32 1.0, %v4539
        %v4541 = vrcp.pop %v4384
        %v4542 = vmul.f32 1.0, %v4541
        %v4543 = vrcp.pop %v4385
        %v4544 = vmul.f32 1.0, %v4543
        %v4545 = vrcp.pop %v4386
        %v4546 = vmul.f32 1.0, %v4545
        %v4547 = vrcp.pop %v4387
        %v4548 = vmul.f32 1.0, %v4547
        %v4549 = vrcp.pop %v4388
        %v4550 = vmul.f32 1.0, %v4549
        %v4551 = vrcp.pop %v4389
        %v4552 = vmul.f32 1.0, %v4551
        %v4553 = vrcp.pop %v4390
        %v4554 = vmul.f32 1.0, %v4553
        %v4555 = vrcp.pop %v4391
        %v4556 = vmul.f32 1.0, %v4555
        %v4557 = vrcp.pop %v4392
        %v4558 = vmul.f32 1.0, %v4557
        %v4559 = vrcp.pop %v4393
        %v4560 = vmul.f32 1.0, %v4559
        %v4561 = vrcp.pop %v4394
        %v4562 = vmul.f32 1.0, %v4561
        %v4563 = vrcp.pop %v4395
        %v4564 = vmul.f32 1.0, %v4563
        %v4565 = vrcp.pop %v4396
        %v4566 = vmul.f32 1.0, %v4565
        %v4567 = vrcp.pop %v4397
        %v4568 = vmul.f32 1.0, %v4567
        %v4569 = vrcp.pop %v4398
        %v4570 = vmul.f32 1.0, %v4569
        %v4571 = vrcp.pop %v4399
        %v4572 = vmul.f32 1.0, %v4571
        %v4573 = vrcp.pop %v4400
        %v4574 = vmul.f32 1.0, %v4573
        %v4575 = vrcp.pop %v4401
        %v4576 = vmul.f32 1.0, %v4575
        %v4577 = vrcp.pop %v4402
        %v4578 = vmul.f32 1.0, %v4577
        %v4579 = vrcp.pop %v4403
        %v4580 = vmul.f32 1.0, %v4579
        %v4581 = vrcp.pop %v4404
        %v4582 = vmul.f32 1.0, %v4581
        %v4583 = vrcp.pop %v4405
        %v4584 = vmul.f32 1.0, %v4583
        %v4585 = vrcp.pop %v4406
        %v4586 = vmul.f32 1.0, %v4585
        %v4587 = vrcp.pop %v4407
        %v4588 = vmul.f32 1.0, %v4587
        %v4589 = vrcp.pop %v4408
        %v4590 = vmul.f32 1.0, %v4589
        %v4591 = vrcp.pop %v4409
        %v4592 = vmul.f32 1.0, %v4591
        %v4593 = vrcp.pop %v4410
        %v4594 = vmul.f32 1.0, %v4593
        %v4595 = vrcp.pop %v4411
        %v4596 = vmul.f32 1.0, %v4595
        %v4597 = vrcp.pop %v4412
        %v4598 = vmul.f32 1.0, %v4597
        %v4599 = vrcp.pop %v4413
        %v4600 = vmul.f32 1.0, %v4599
        %v4601 = vrcp.pop %v4414
        %v4602 = vmul.f32 1.0, %v4601
        %v4603 = vrcp.pop %v4415
        %v4604 = vmul.f32 1.0, %v4603
        %v4605 = vrcp.pop %v4416
        %v4606 = vmul.f32 1.0, %v4605
        %v4607 = vrcp.pop %v4417
        %v4608 = vmul.f32 1.0, %v4607
        %v4609 = vrcp.pop %v4418
        %v4610 = vmul.f32 1.0, %v4609
        %v4611 = vrcp.pop %v4419
        %v4612 = vmul.f32 1.0, %v4611
        %v4613 = vrcp.pop %v4420
        %v4614 = vmul.f32 1.0, %v4613
        %v4615 = vrcp.pop %v4421
        %v4616 = vmul.f32 1.0, %v4615
        %v4617 = vrcp.pop %v4422
        %v4618 = vmul.f32 1.0, %v4617
        %v4619 = vrcp.pop %v4423
        %v4620 = vmul.f32 1.0, %v4619
        %v4621 = vrcp.pop %v4424
        %v4622 = vmul.f32 1.0, %v4621
        %v4623 = vrcp.pop %v4425
        %v4624 = vmul.f32 1.0, %v4623
        %v4625 = vrcp.pop %v4426
        %v4626 = vmul.f32 1.0, %v4625
        %v4627 = vrcp.pop %v4427
        %v4628 = vmul.f32 1.0, %v4627
        %v4629 = vrcp.pop %v4428
        %v4630 = vmul.f32 1.0, %v4629
        %v4631 = vrcp.pop %v4429
        %v4632 = vmul.f32 1.0, %v4631
        %v4633 = vrcp.pop %v4430
        %v4634 = vmul.f32 1.0, %v4633
        %v4635 = vrcp.pop %v4431
        %v4636 = vmul.f32 1.0, %v4635
        %v4637 = vrcp.pop %v4432
        %v4638 = vmul.f32 1.0, %v4637
        %v4639 = vrcp.pop %v4433
        %v4640 = vmul.f32 1.0, %v4639
        %v4641 = vrcp.pop %v4434
        %v4642 = vmul.f32 1.0, %v4641
        %v4643 = vrcp.pop %v4435
        %v4644 = vmul.f32 1.0, %v4643
        %v4645 = vrcp.pop %v4436
        %v4646 = vmul.f32 1.0, %v4645
        %v4647 = vrcp.pop %v4437
        %v4648 = vmul.f32 1.0, %v4647
        %v4649 = vrcp.pop %v4438
        %v4650 = vmul.f32 1.0, %v4649
        %v4651 = vrcp.pop %v4439
        %v4652 = vmul.f32 1.0, %v4651
        %v4653 = vrcp.pop %v4440
        %v4654 = vmul.f32 1.0, %v4653
        %v4655 = vrcp.pop %v4441
        %v4656 = vmul.f32 1.0, %v4655
        %v4657 = vrcp.pop %v4442
        %v4658 = vmul.f32 1.0, %v4657
        %v4659 = vrcp.pop %v4443
        %v4660 = vmul.f32 1.0, %v4659
        %v4661 = vrcp.pop %v4444
        %v4662 = vmul.f32 1.0, %v4661
        %v4663 = vrcp.pop %v4445
        %v4664 = vmul.f32 1.0, %v4663
        %v4665 = vrcp.pop %v4446
        %v4666 = vmul.f32 1.0, %v4665
        %v4667 = vrcp.pop %v4447
        %v4668 = vmul.f32 1.0, %v4667
        %v4669 = vrcp.pop %v4448
        %v4670 = vmul.f32 1.0, %v4669
        %v4671 = vrcp.pop %v4449
        %v4672 = vmul.f32 1.0, %v4671
        %v4673 = vrcp.pop %v4450
        %v4674 = vmul.f32 1.0, %v4673
        %v4675 = vrcp.pop %v4451
        %v4676 = vmul.f32 1.0, %v4675
        %v4677 = vrcp.pop %v4452
        %v4678 = vmul.f32 1.0, %v4677
        %v4679 = vrcp.pop %v4453
        %v4680 = vmul.f32 1.0, %v4679
        %v4681 = vrcp.pop %v4454
        %v4682 = vmul.f32 1.0, %v4681
        %v4683 = vrcp.pop %v4455
        %v4684 = vmul.f32 1.0, %v4683
        %v4685 = vrcp.pop %v4456
        %v4686 = vmul.f32 1.0, %v4685
        %v4687 = vrcp.pop %v4457
        %v4688 = vmul.f32 1.0, %v4687
        %v4689 = vrcp.pop %v4458
        %v4690 = vmul.f32 1.0, %v4689
        %v4691 = vrcp.pop %v4459
        %v4692 = vmul.f32 1.0, %v4691
        %v4693 = vrcp.pop %v4460
        %v4694 = vmul.f32 1.0, %v4693
        %v4695 = vrcp.pop %v4461
        %v4696 = vmul.f32 1.0, %v4695
        %v4697 = vrcp.pop %v4462
        %v4698 = vmul.f32 1.0, %v4697
        %v4699 = vrcp.pop %v4463
        %v4700 = vmul.f32 1.0, %v4699
        %v4701 = vrcp.pop %v4464
        %v4702 = vmul.f32 1.0, %v4701
        %v4703 = vrcp.pop %v4465
        %v4704 = vmul.f32 1.0, %v4703
        %v4705 = vrcp.pop %v4466
        %v4706 = vmul.f32 1.0, %v4705
        %v4707 = vrcp.pop %v4467
        %v4708 = vmul.f32 1.0, %v4707
        %v4709 = vrcp.pop %v4468
        %v4710 = vmul.f32 1.0, %v4709
        %v4711 = vrcp.pop %v4469
        %v4712 = vmul.f32 1.0, %v4711
        %v4713 = vrcp.pop %v4470
        %v4714 = vmul.f32 1.0, %v4713
        %v4715 = vrcp.pop %v4471
        %v4716 = vmul.f32 1.0, %v4715
        %v4717 = vrcp.pop %v4472
        %v4718 = vmul.f32 1.0, %v4717
        %v4719 = vrcp.pop %v4473
        %v4720 = vmul.f32 1.0, %v4719
        %v4721 = vrcp.pop %v4474
        %v4722 = vmul.f32 1.0, %v4721
        %v4723 = vrcp.pop %v4475
        %v4724 = vmul.f32 1.0, %v4723
        %v4725 = vrcp.pop %v4476
        %v4726 = vmul.f32 1.0, %v4725
        %v4727 = vrcp.pop %v4477
        %v4728 = vmul.f32 1.0, %v4727
        %v4729 = vrcp.pop %v4478
        %v4730 = vmul.f32 1.0, %v4729
        %v4731 = vrcp.pop %v4479
        %v4732 = vmul.f32 1.0, %v4731
        %v4733 = vrcp.pop %v4480
        %v4734 = vmul.f32 1.0, %v4733
        %v4735 = vrcp.pop %v4481
        %v4736 = vmul.f32 1.0, %v4735
        %v4737 = vrcp.pop %v4482
        %v4738 = vmul.f32 1.0, %v4737
        %v4739 = vmul.f32 %v1887, %v4484
        %v4740 = vmul.f32 %v1889, %v4486
        %v4741 = vmul.f32 %v2273, %v4488
        %v4742 = vmul.f32 %v2275, %v4490
        %v4743 = vmul.f32 %v1891, %v4492
        %v4744 = vmul.f32 %v1893, %v4494
        %v4745 = vmul.f32 %v2277, %v4496
        %v4746 = vmul.f32 %v2279, %v4498
        %v4747 = vmul.f32 %v1897, %v4500
        %v4748 = vmul.f32 %v1899, %v4502
        %v4749 = vmul.f32 %v2283, %v4504
        %v4750 = vmul.f32 %v2285, %v4506
        %v4751 = vmul.f32 %v1901, %v4508
        %v4752 = vmul.f32 %v1903, %v4510
        %v4753 = vmul.f32 %v2287, %v4512
        %v4754 = vmul.f32 %v2289, %v4514
        %v4755 = vmul.f32 %v1907, %v4516
        %v4756 = vmul.f32 %v1909, %v4518
        %v4757 = vmul.f32 %v2293, %v4520
        %v4758 = vmul.f32 %v2295, %v4522
        %v4759 = vmul.f32 %v1911, %v4524
        %v4760 = vmul.f32 %v1913, %v4526
        %v4761 = vmul.f32 %v2297, %v4528
        %v4762 = vmul.f32 %v2299, %v4530
        %v4763 = vmul.f32 %v1917, %v4532
        %v4764 = vmul.f32 %v1919, %v4534
        %v4765 = vmul.f32 %v2303, %v4536
        %v4766 = vmul.f32 %v2305, %v4538
        %v4767 = vmul.f32 %v1921, %v4540
        %v4768 = vmul.f32 %v1923, %v4542
        %v4769 = vmul.f32 %v2307, %v4544
        %v4770 = vmul.f32 %v2309, %v4546
        %v4771 = vmul.f32 %v1927, %v4548
        %v4772 = vmul.f32 %v1929, %v4550
        %v4773 = vmul.f32 %v2313, %v4552
        %v4774 = vmul.f32 %v2315, %v4554
        %v4775 = vmul.f32 %v1931, %v4556
        %v4776 = vmul.f32 %v1933, %v4558
        %v4777 = vmul.f32 %v2317, %v4560
        %v4778 = vmul.f32 %v2319, %v4562
        %v4779 = vmul.f32 %v1937, %v4564
        %v4780 = vmul.f32 %v1939, %v4566
        %v4781 = vmul.f32 %v2323, %v4568
        %v4782 = vmul.f32 %v2325, %v4570
        %v4783 = vmul.f32 %v1941, %v4572
        %v4784 = vmul.f32 %v1943, %v4574
        %v4785 = vmul.f32 %v2327, %v4576
        %v4786 = vmul.f32 %v2329, %v4578
        %v4787 = vmul.f32 %v1947, %v4580
        %v4788 = vmul.f32 %v1949, %v4582
        %v4789 = vmul.f32 %v2333, %v4584
        %v4790 = vmul.f32 %v2335, %v4586
        %v4791 = vmul.f32 %v1951, %v4588
        %v4792 = vmul.f32 %v1953, %v4590
        %v4793 = vmul.f32 %v2337, %v4592
        %v4794 = vmul.f32 %v2339, %v4594
        %v4795 = vmul.f32 %v1957, %v4596
        %v4796 = vmul.f32 %v1959, %v4598
        %v4797 = vmul.f32 %v2343, %v4600
        %v4798 = vmul.f32 %v2345, %v4602
        %v4799 = vmul.f32 %v1961, %v4604
        %v4800 = vmul.f32 %v1963, %v4606
        %v4801 = vmul.f32 %v2347, %v4608
        %v4802 = vmul.f32 %v2349, %v4610
        %v4803 = vmul.f32 %v1967, %v4612
        %v4804 = vmul.f32 %v1969, %v4614
        %v4805 = vmul.f32 %v2353, %v4616
        %v4806 = vmul.f32 %v2355, %v4618
        %v4807 = vmul.f32 %v1971, %v4620
        %v4808 = vmul.f32 %v1973, %v4622
        %v4809 = vmul.f32 %v2357, %v4624
        %v4810 = vmul.f32 %v2359, %v4626
        %v4811 = vmul.f32 %v1977, %v4628
        %v4812 = vmul.f32 %v1979, %v4630
        %v4813 = vmul.f32 %v2363, %v4632
        %v4814 = vmul.f32 %v2365, %v4634
        %v4815 = vmul.f32 %v1981, %v4636
        %v4816 = vmul.f32 %v1983, %v4638
        %v4817 = vmul.f32 %v2367, %v4640
        %v4818 = vmul.f32 %v2369, %v4642
        %v4819 = vmul.f32 %v1987, %v4644
        %v4820 = vmul.f32 %v1989, %v4646
        %v4821 = vmul.f32 %v2373, %v4648
        %v4822 = vmul.f32 %v2375, %v4650
        %v4823 = vmul.f32 %v1991, %v4652
        %v4824 = vmul.f32 %v1993, %v4654
        %v4825 = vmul.f32 %v2377, %v4656
        %v4826 = vmul.f32 %v2379, %v4658
        %v4827 = vmul.f32 %v1997, %v4660
        %v4828 = vmul.f32 %v1999, %v4662
        %v4829 = vmul.f32 %v2383, %v4664
        %v4830 = vmul.f32 %v2385, %v4666
        %v4831 = vmul.f32 %v2001, %v4668
        %v4832 = vmul.f32 %v2003, %v4670
        %v4833 = vmul.f32 %v2387, %v4672
        %v4834 = vmul.f32 %v2389, %v4674
        %v4835 = vmul.f32 %v2007, %v4676
        %v4836 = vmul.f32 %v2009, %v4678
        %v4837 = vmul.f32 %v2393, %v4680
        %v4838 = vmul.f32 %v2395, %v4682
        %v4839 = vmul.f32 %v2011, %v4684
        %v4840 = vmul.f32 %v2013, %v4686
        %v4841 = vmul.f32 %v2397, %v4688
        %v4842 = vmul.f32 %v2399, %v4690
        %v4843 = vmul.f32 %v2017, %v4692
        %v4844 = vmul.f32 %v2019, %v4694
        %v4845 = vmul.f32 %v2403, %v4696
        %v4846 = vmul.f32 %v2405, %v4698
        %v4847 = vmul.f32 %v2021, %v4700
        %v4848 = vmul.f32 %v2023, %v4702
        %v4849 = vmul.f32 %v2407, %v4704
        %v4850 = vmul.f32 %v2409, %v4706
        %v4851 = vmul.f32 %v2027, %v4708
        %v4852 = vmul.f32 %v2029, %v4710
        %v4853 = vmul.f32 %v2413, %v4712
        %v4854 = vmul.f32 %v2415, %v4714
        %v4855 = vmul.f32 %v2031, %v4716
        %v4856 = vmul.f32 %v2033, %v4718
        %v4857 = vmul.f32 %v2417, %v4720
        %v4858 = vmul.f32 %v2419, %v4722
        %v4859 = vmul.f32 %v2037, %v4724
        %v4860 = vmul.f32 %v2039, %v4726
        %v4861 = vmul.f32 %v2423, %v4728
        %v4862 = vmul.f32 %v2425, %v4730
        %v4863 = vmul.f32 %v2041, %v4732
        %v4864 = vmul.f32 %v2043, %v4734
        %v4865 = vmul.f32 %v2427, %v4736
        %v4866 = vmul.f32 %v2429, %v4738
        %v4867 = vpack.c.bf16 %v3431, %v3427
        %v4868 = vpack.c.bf16 %v3433, %v3429
        %v4869 = vpack.c.bf16 %v3817, %v3813
        %v4870 = vpack.c.bf16 %v3819, %v3815
        %v4871 = vpack.c.bf16 %v3441, %v3437
        %v4872 = vpack.c.bf16 %v3443, %v3439
        %v4873 = vpack.c.bf16 %v3827, %v3823
        %v4874 = vpack.c.bf16 %v3829, %v3825
        %v4875 = vpack.c.bf16 %v3451, %v3447
        %v4876 = vpack.c.bf16 %v3453, %v3449
        %v4877 = vpack.c.bf16 %v3837, %v3833
        %v4878 = vpack.c.bf16 %v3839, %v3835
        %v4879 = vpack.c.bf16 %v3461, %v3457
        %v4880 = vpack.c.bf16 %v3463, %v3459
        %v4881 = vpack.c.bf16 %v3847, %v3843
        %v4882 = vpack.c.bf16 %v3849, %v3845
        %v4883 = vpack.c.bf16 %v3471, %v3467
        %v4884 = vpack.c.bf16 %v3473, %v3469
        %v4885 = vpack.c.bf16 %v3857, %v3853
        %v4886 = vpack.c.bf16 %v3859, %v3855
        %v4887 = vpack.c.bf16 %v3481, %v3477
        %v4888 = vpack.c.bf16 %v3483, %v3479
        %v4889 = vpack.c.bf16 %v3867, %v3863
        %v4890 = vpack.c.bf16 %v3869, %v3865
        %v4891 = vpack.c.bf16 %v3491, %v3487
        %v4892 = vpack.c.bf16 %v3493, %v3489
        %v4893 = vpack.c.bf16 %v3877, %v3873
        %v4894 = vpack.c.bf16 %v3879, %v3875
        %v4895 = vpack.c.bf16 %v3501, %v3497
        %v4896 = vpack.c.bf16 %v3503, %v3499
        %v4897 = vpack.c.bf16 %v3887, %v3883
        %v4898 = vpack.c.bf16 %v3889, %v3885
        %v4899 = vpack.c.bf16 %v3511, %v3507
        %v4900 = vpack.c.bf16 %v3513, %v3509
        %v4901 = vpack.c.bf16 %v3897, %v3893
        %v4902 = vpack.c.bf16 %v3899, %v3895
        %v4903 = vpack.c.bf16 %v3521, %v3517
        %v4904 = vpack.c.bf16 %v3523, %v3519
        %v4905 = vpack.c.bf16 %v3907, %v3903
        %v4906 = vpack.c.bf16 %v3909, %v3905
        %v4907 = vpack.c.bf16 %v3531, %v3527
        %v4908 = vpack.c.bf16 %v3533, %v3529
        %v4909 = vpack.c.bf16 %v3917, %v3913
        %v4910 = vpack.c.bf16 %v3919, %v3915
        %v4911 = vpack.c.bf16 %v3541, %v3537
        %v4912 = vpack.c.bf16 %v3543, %v3539
        %v4913 = vpack.c.bf16 %v3927, %v3923
        %v4914 = vpack.c.bf16 %v3929, %v3925
        %v4915 = vpack.c.bf16 %v3551, %v3547
        %v4916 = vpack.c.bf16 %v3553, %v3549
        %v4917 = vpack.c.bf16 %v3937, %v3933
        %v4918 = vpack.c.bf16 %v3939, %v3935
        %v4919 = vpack.c.bf16 %v3561, %v3557
        %v4920 = vpack.c.bf16 %v3563, %v3559
        %v4921 = vpack.c.bf16 %v3947, %v3943
        %v4922 = vpack.c.bf16 %v3949, %v3945
        %v4923 = vpack.c.bf16 %v3571, %v3567
        %v4924 = vpack.c.bf16 %v3573, %v3569
        %v4925 = vpack.c.bf16 %v3957, %v3953
        %v4926 = vpack.c.bf16 %v3959, %v3955
        %v4927 = vpack.c.bf16 %v3581, %v3577
        %v4928 = vpack.c.bf16 %v3583, %v3579
        %v4929 = vpack.c.bf16 %v3967, %v3963
        %v4930 = vpack.c.bf16 %v3969, %v3965
        %v4931 = vld [vmem:[%s370] sm:$0xf]
        %v4932 = vand.u32 2147450879, %v4867
        %v4933 = vand.u32 2147450879, %v4868
        %v4934 = vand.u32 2147450879, %v4869
        %v4935 = vand.u32 2147450879, %v4870
        %v4936 = vand.u32 2147450879, %v4871
        %v4937 = vand.u32 2147450879, %v4872
        %v4938 = vand.u32 2147450879, %v4873
        %v4939 = vand.u32 2147450879, %v4874
        %v4940 = vand.u32 2147450879, %v4875
        %v4941 = vand.u32 2147450879, %v4876
        %v4942 = vand.u32 2147450879, %v4877
        %v4943 = vand.u32 2147450879, %v4878
        %v4944 = vand.u32 2147450879, %v4879
        %v4945 = vand.u32 2147450879, %v4880
        %v4946 = vand.u32 2147450879, %v4881
        %v4947 = vand.u32 2147450879, %v4882
        %v4948 = vand.u32 2147450879, %v4883
        %v4949 = vand.u32 2147450879, %v4884
        %v4950 = vand.u32 2147450879, %v4885
        %v4951 = vand.u32 2147450879, %v4886
        %v4952 = vand.u32 2147450879, %v4887
        %v4953 = vand.u32 2147450879, %v4888
        %v4954 = vand.u32 2147450879, %v4889
        %v4955 = vand.u32 2147450879, %v4890
        %v4956 = vand.u32 2147450879, %v4891
        %v4957 = vand.u32 2147450879, %v4892
        %v4958 = vand.u32 2147450879, %v4893
        %v4959 = vand.u32 2147450879, %v4894
        %v4960 = vand.u32 2147450879, %v4895
        %v4961 = vand.u32 2147450879, %v4896
        %v4962 = vand.u32 2147450879, %v4897
        %v4963 = vand.u32 2147450879, %v4898
        %v4964 = vand.u32 2147450879, %v4899
        %v4965 = vand.u32 2147450879, %v4900
        %v4966 = vand.u32 2147450879, %v4901
        %v4967 = vand.u32 2147450879, %v4902
        %v4968 = vand.u32 2147450879, %v4903
        %v4969 = vand.u32 2147450879, %v4904
        %v4970 = vand.u32 2147450879, %v4905
        %v4971 = vand.u32 2147450879, %v4906
        %v4972 = vand.u32 2147450879, %v4907
        %v4973 = vand.u32 2147450879, %v4908
        %v4974 = vand.u32 2147450879, %v4909
        %v4975 = vand.u32 2147450879, %v4910
        %v4976 = vand.u32 2147450879, %v4911
        %v4977 = vand.u32 2147450879, %v4912
        %v4978 = vand.u32 2147450879, %v4913
        %v4979 = vand.u32 2147450879, %v4914
        %v4980 = vand.u32 2147450879, %v4915
        %v4981 = vand.u32 2147450879, %v4916
        %v4982 = vand.u32 2147450879, %v4917
        %v4983 = vand.u32 2147450879, %v4918
        %v4984 = vand.u32 2147450879, %v4919
        %v4985 = vand.u32 2147450879, %v4920
        %v4986 = vand.u32 2147450879, %v4921
        %v4987 = vand.u32 2147450879, %v4922
        %v4988 = vand.u32 2147450879, %v4923
        %v4989 = vand.u32 2147450879, %v4924
        %v4990 = vand.u32 2147450879, %v4925
        %v4991 = vand.u32 2147450879, %v4926
        %v4992 = vand.u32 2147450879, %v4927
        %v4993 = vand.u32 2147450879, %v4928
        %v4994 = vand.u32 2147450879, %v4929
        %v4995 = vand.u32 2147450879, %v4930
        %v4998 = vunpack.c.l.s4 1966171168
        %v4999 = vunpack.c.0.s8 %v4998
        %v5000 = vlaneseq
        %v5001 = vshrl.u32 %v5000, 7
        %v5002 = vsub.s32 %v4999, %v5001
        %v5003 = vrot.slane %v4931, %v5002
        %v5004 = vcombine.high %v5003, %v5003
        %v5006 = vunpack.c.l.s4 1966171168
        %v5007 = vunpack.c.0.s8 %v5006
        %v5008 = vlaneseq
        %v5009 = vshrl.u32 %v5008, 7
        %v5010 = vsub.s32 %v5007, %v5009
        %v5011 = vrot.slane %v5003, %v5010
        %v5013 = vunpack.c.l.s4 1966171168
        %v5014 = vunpack.c.0.s8 %v5013
        %v5015 = vlaneseq
        %v5016 = vshrl.u32 %v5015, 7
        %v5017 = vsub.s32 %v5014, %v5016
        %v5018 = vrot.slane %v5004, %v5017
        %v5019 = vcombine.high %v5011, %v5011
        %v5020 = vcombine.high %v5018, %v5018
        %v5022 = vpack.i.b16 %v5011, %v5011
        %v5024 = vlaneseq
        %v5025 = vshrl.u32 %v5024, 7
        %v5026 = vsub.s32 0, %v5025
        %v5027 = vrot.slane %v5022, %v5026
        %v5029 = vpack.i.b16 %v5018, %v5018
        %v5031 = vlaneseq
        %v5032 = vshrl.u32 %v5031, 7
        %v5033 = vsub.s32 0, %v5032
        %v5034 = vrot.slane %v5029, %v5033
        %v5036 = vpack.i.b16 %v5019, %v5019
        %v5038 = vlaneseq
        %v5039 = vshrl.u32 %v5038, 7
        %v5040 = vsub.s32 0, %v5039
        %v5041 = vrot.slane %v5036, %v5040
        %v5043 = vpack.i.b16 %v5020, %v5020
        %v5045 = vlaneseq
        %v5046 = vshrl.u32 %v5045, 7
        %v5047 = vsub.s32 0, %v5046
        %v5048 = vrot.slane %v5043, %v5047
        %vm5049 = vcmp.gt.bf16.partialorder %v4932, %v5027
        %vm5050 = vcmp.gt.bf16.partialorder %v4933, %v5034
        %vm5051 = vcmp.gt.bf16.partialorder %v4934, %v5041
        %vm5052 = vcmp.gt.bf16.partialorder %v4935, %v5048
        %vm5053 = vcmp.gt.bf16.partialorder %v4936, %v5027
        %vm5054 = vcmp.gt.bf16.partialorder %v4937, %v5034
        %vm5055 = vcmp.gt.bf16.partialorder %v4938, %v5041
        %vm5056 = vcmp.gt.bf16.partialorder %v4939, %v5048
        %vm5057 = vcmp.gt.bf16.partialorder %v4940, %v5027
        %vm5058 = vcmp.gt.bf16.partialorder %v4941, %v5034
        %vm5059 = vcmp.gt.bf16.partialorder %v4942, %v5041
        %vm5060 = vcmp.gt.bf16.partialorder %v4943, %v5048
        %vm5061 = vcmp.gt.bf16.partialorder %v4944, %v5027
        %vm5062 = vcmp.gt.bf16.partialorder %v4945, %v5034
        %vm5063 = vcmp.gt.bf16.partialorder %v4946, %v5041
        %vm5064 = vcmp.gt.bf16.partialorder %v4947, %v5048
        %vm5065 = vcmp.gt.bf16.partialorder %v4948, %v5027
        %vm5066 = vcmp.gt.bf16.partialorder %v4949, %v5034
        %vm5067 = vcmp.gt.bf16.partialorder %v4950, %v5041
        %vm5068 = vcmp.gt.bf16.partialorder %v4951, %v5048
        %vm5069 = vcmp.gt.bf16.partialorder %v4952, %v5027
        %vm5070 = vcmp.gt.bf16.partialorder %v4953, %v5034
        %vm5071 = vcmp.gt.bf16.partialorder %v4954, %v5041
        %vm5072 = vcmp.gt.bf16.partialorder %v4955, %v5048
        %vm5073 = vcmp.gt.bf16.partialorder %v4956, %v5027
        %vm5074 = vcmp.gt.bf16.partialorder %v4957, %v5034
        %vm5075 = vcmp.gt.bf16.partialorder %v4958, %v5041
        %vm5076 = vcmp.gt.bf16.partialorder %v4959, %v5048
        %vm5077 = vcmp.gt.bf16.partialorder %v4960, %v5027
        %vm5078 = vcmp.gt.bf16.partialorder %v4961, %v5034
        %vm5079 = vcmp.gt.bf16.partialorder %v4962, %v5041
        %vm5080 = vcmp.gt.bf16.partialorder %v4963, %v5048
        %vm5081 = vcmp.gt.bf16.partialorder %v4964, %v5027
        %vm5082 = vcmp.gt.bf16.partialorder %v4965, %v5034
        %vm5083 = vcmp.gt.bf16.partialorder %v4966, %v5041
        %vm5084 = vcmp.gt.bf16.partialorder %v4967, %v5048
        %vm5085 = vcmp.gt.bf16.partialorder %v4968, %v5027
        %vm5086 = vcmp.gt.bf16.partialorder %v4969, %v5034
        %vm5087 = vcmp.gt.bf16.partialorder %v4970, %v5041
        %vm5088 = vcmp.gt.bf16.partialorder %v4971, %v5048
        %vm5089 = vcmp.gt.bf16.partialorder %v4972, %v5027
        %vm5090 = vcmp.gt.bf16.partialorder %v4973, %v5034
        %vm5091 = vcmp.gt.bf16.partialorder %v4974, %v5041
        %vm5092 = vcmp.gt.bf16.partialorder %v4975, %v5048
        %vm5093 = vcmp.gt.bf16.partialorder %v4976, %v5027
        %vm5094 = vcmp.gt.bf16.partialorder %v4977, %v5034
        %vm5095 = vcmp.gt.bf16.partialorder %v4978, %v5041
        %vm5096 = vcmp.gt.bf16.partialorder %v4979, %v5048
        %vm5097 = vcmp.gt.bf16.partialorder %v4980, %v5027
        %vm5098 = vcmp.gt.bf16.partialorder %v4981, %v5034
        %vm5099 = vcmp.gt.bf16.partialorder %v4982, %v5041
        %vm5100 = vcmp.gt.bf16.partialorder %v4983, %v5048
        %vm5101 = vcmp.gt.bf16.partialorder %v4984, %v5027
        %vm5102 = vcmp.gt.bf16.partialorder %v4985, %v5034
        %vm5103 = vcmp.gt.bf16.partialorder %v4986, %v5041
        %vm5104 = vcmp.gt.bf16.partialorder %v4987, %v5048
        %vm5105 = vcmp.gt.bf16.partialorder %v4988, %v5027
        %vm5106 = vcmp.gt.bf16.partialorder %v4989, %v5034
        %vm5107 = vcmp.gt.bf16.partialorder %v4990, %v5041
        %vm5108 = vcmp.gt.bf16.partialorder %v4991, %v5048
        %vm5109 = vcmp.gt.bf16.partialorder %v4992, %v5027
        %vm5110 = vcmp.gt.bf16.partialorder %v4993, %v5034
        %vm5111 = vcmp.gt.bf16.partialorder %v4994, %v5041
        %vm5112 = vcmp.gt.bf16.partialorder %v4995, %v5048
        %v5113 = vsel %vm5049, %v4867, 0
        %v5114 = vsel %vm5050, %v4868, 0
        %v5115 = vsel %vm5051, %v4869, 0
        %v5116 = vsel %vm5052, %v4870, 0
        %v5117 = vsel %vm5053, %v4871, 0
        %v5118 = vsel %vm5054, %v4872, 0
        %v5119 = vsel %vm5055, %v4873, 0
        %v5120 = vsel %vm5056, %v4874, 0
        %v5121 = vsel %vm5057, %v4875, 0
        %v5122 = vsel %vm5058, %v4876, 0
        %v5123 = vsel %vm5059, %v4877, 0
        %v5124 = vsel %vm5060, %v4878, 0
        %v5125 = vsel %vm5061, %v4879, 0
        %v5126 = vsel %vm5062, %v4880, 0
        %v5127 = vsel %vm5063, %v4881, 0
        %v5128 = vsel %vm5064, %v4882, 0
        %v5129 = vsel %vm5065, %v4883, 0
        %v5130 = vsel %vm5066, %v4884, 0
        %v5131 = vsel %vm5067, %v4885, 0
        %v5132 = vsel %vm5068, %v4886, 0
        %v5133 = vsel %vm5069, %v4887, 0
        %v5134 = vsel %vm5070, %v4888, 0
        %v5135 = vsel %vm5071, %v4889, 0
        %v5136 = vsel %vm5072, %v4890, 0
        %v5137 = vsel %vm5073, %v4891, 0
        %v5138 = vsel %vm5074, %v4892, 0
        %v5139 = vsel %vm5075, %v4893, 0
        %v5140 = vsel %vm5076, %v4894, 0
        %v5141 = vsel %vm5077, %v4895, 0
        %v5142 = vsel %vm5078, %v4896, 0
        %v5143 = vsel %vm5079, %v4897, 0
        %v5144 = vsel %vm5080, %v4898, 0
        %v5145 = vsel %vm5081, %v4899, 0
        %v5146 = vsel %vm5082, %v4900, 0
        %v5147 = vsel %vm5083, %v4901, 0
        %v5148 = vsel %vm5084, %v4902, 0
        %v5149 = vsel %vm5085, %v4903, 0
        %v5150 = vsel %vm5086, %v4904, 0
        %v5151 = vsel %vm5087, %v4905, 0
        %v5152 = vsel %vm5088, %v4906, 0
        %v5153 = vsel %vm5089, %v4907, 0
        %v5154 = vsel %vm5090, %v4908, 0
        %v5155 = vsel %vm5091, %v4909, 0
        %v5156 = vsel %vm5092, %v4910, 0
        %v5157 = vsel %vm5093, %v4911, 0
        %v5158 = vsel %vm5094, %v4912, 0
        %v5159 = vsel %vm5095, %v4913, 0
        %v5160 = vsel %vm5096, %v4914, 0
        %v5161 = vsel %vm5097, %v4915, 0
        %v5162 = vsel %vm5098, %v4916, 0
        %v5163 = vsel %vm5099, %v4917, 0
        %v5164 = vsel %vm5100, %v4918, 0
        %v5165 = vsel %vm5101, %v4919, 0
        %v5166 = vsel %vm5102, %v4920, 0
        %v5167 = vsel %vm5103, %v4921, 0
        %v5168 = vsel %vm5104, %v4922, 0
        %v5169 = vsel %vm5105, %v4923, 0
        %v5170 = vsel %vm5106, %v4924, 0
        %v5171 = vsel %vm5107, %v4925, 0
        %v5172 = vsel %vm5108, %v4926, 0
        %v5173 = vsel %vm5109, %v4927, 0
        %v5174 = vsel %vm5110, %v4928, 0
        %v5175 = vsel %vm5111, %v4929, 0
        %v5176 = vsel %vm5112, %v4930, 0
        %v5177 = vunpack.c.l.bf16 %v5113
        %v5178 = vunpack.c.l.bf16 %v5114
        %v5179 = vunpack.c.l.bf16 %v5115
        %v5180 = vunpack.c.l.bf16 %v5116
        %v5181 = vunpack.c.h.bf16 %v5113
        %v5182 = vunpack.c.h.bf16 %v5114
        %v5183 = vunpack.c.h.bf16 %v5115
        %v5184 = vunpack.c.h.bf16 %v5116
        %v5185 = vunpack.c.l.bf16 %v5117
        %v5186 = vunpack.c.l.bf16 %v5118
        %v5187 = vunpack.c.l.bf16 %v5119
        %v5188 = vunpack.c.l.bf16 %v5120
        %v5189 = vunpack.c.h.bf16 %v5117
        %v5190 = vunpack.c.h.bf16 %v5118
        %v5191 = vunpack.c.h.bf16 %v5119
        %v5192 = vunpack.c.h.bf16 %v5120
        %v5193 = vunpack.c.l.bf16 %v5121
        %v5194 = vunpack.c.l.bf16 %v5122
        %v5195 = vunpack.c.l.bf16 %v5123
        %v5196 = vunpack.c.l.bf16 %v5124
        %v5197 = vunpack.c.h.bf16 %v5121
        %v5198 = vunpack.c.h.bf16 %v5122
        %v5199 = vunpack.c.h.bf16 %v5123
        %v5200 = vunpack.c.h.bf16 %v5124
        %v5201 = vunpack.c.l.bf16 %v5125
        %v5202 = vunpack.c.l.bf16 %v5126
        %v5203 = vunpack.c.l.bf16 %v5127
        %v5204 = vunpack.c.l.bf16 %v5128
        %v5205 = vunpack.c.h.bf16 %v5125
        %v5206 = vunpack.c.h.bf16 %v5126
        %v5207 = vunpack.c.h.bf16 %v5127
        %v5208 = vunpack.c.h.bf16 %v5128
        %v5209 = vunpack.c.l.bf16 %v5129
        %v5210 = vunpack.c.l.bf16 %v5130
        %v5211 = vunpack.c.l.bf16 %v5131
        %v5212 = vunpack.c.l.bf16 %v5132
        %v5213 = vunpack.c.h.bf16 %v5129
        %v5214 = vunpack.c.h.bf16 %v5130
        %v5215 = vunpack.c.h.bf16 %v5131
        %v5216 = vunpack.c.h.bf16 %v5132
        %v5217 = vunpack.c.l.bf16 %v5133
        %v5218 = vunpack.c.l.bf16 %v5134
        %v5219 = vunpack.c.l.bf16 %v5135
        %v5220 = vunpack.c.l.bf16 %v5136
        %v5221 = vunpack.c.h.bf16 %v5133
        %v5222 = vunpack.c.h.bf16 %v5134
        %v5223 = vunpack.c.h.bf16 %v5135
        %v5224 = vunpack.c.h.bf16 %v5136
        %v5225 = vunpack.c.l.bf16 %v5137
        %v5226 = vunpack.c.l.bf16 %v5138
        %v5227 = vunpack.c.l.bf16 %v5139
        %v5228 = vunpack.c.l.bf16 %v5140
        %v5229 = vunpack.c.h.bf16 %v5137
        %v5230 = vunpack.c.h.bf16 %v5138
        %v5231 = vunpack.c.h.bf16 %v5139
        %v5232 = vunpack.c.h.bf16 %v5140
        %v5233 = vunpack.c.l.bf16 %v5141
        %v5234 = vunpack.c.l.bf16 %v5142
        %v5235 = vunpack.c.l.bf16 %v5143
        %v5236 = vunpack.c.l.bf16 %v5144
        %v5237 = vunpack.c.h.bf16 %v5141
        %v5238 = vunpack.c.h.bf16 %v5142
        %v5239 = vunpack.c.h.bf16 %v5143
        %v5240 = vunpack.c.h.bf16 %v5144
        %v5241 = vunpack.c.l.bf16 %v5145
        %v5242 = vunpack.c.l.bf16 %v5146
        %v5243 = vunpack.c.l.bf16 %v5147
        %v5244 = vunpack.c.l.bf16 %v5148
        %v5245 = vunpack.c.h.bf16 %v5145
        %v5246 = vunpack.c.h.bf16 %v5146
        %v5247 = vunpack.c.h.bf16 %v5147
        %v5248 = vunpack.c.h.bf16 %v5148
        %v5249 = vunpack.c.l.bf16 %v5149
        %v5250 = vunpack.c.l.bf16 %v5150
        %v5251 = vunpack.c.l.bf16 %v5151
        %v5252 = vunpack.c.l.bf16 %v5152
        %v5253 = vunpack.c.h.bf16 %v5149
        %v5254 = vunpack.c.h.bf16 %v5150
        %v5255 = vunpack.c.h.bf16 %v5151
        %v5256 = vunpack.c.h.bf16 %v5152
        %v5257 = vunpack.c.l.bf16 %v5153
        %v5258 = vunpack.c.l.bf16 %v5154
        %v5259 = vunpack.c.l.bf16 %v5155
        %v5260 = vunpack.c.l.bf16 %v5156
        %v5261 = vunpack.c.h.bf16 %v5153
        %v5262 = vunpack.c.h.bf16 %v5154
        %v5263 = vunpack.c.h.bf16 %v5155
        %v5264 = vunpack.c.h.bf16 %v5156
        %v5265 = vunpack.c.l.bf16 %v5157
        %v5266 = vunpack.c.l.bf16 %v5158
        %v5267 = vunpack.c.l.bf16 %v5159
        %v5268 = vunpack.c.l.bf16 %v5160
        %v5269 = vunpack.c.h.bf16 %v5157
        %v5270 = vunpack.c.h.bf16 %v5158
        %v5271 = vunpack.c.h.bf16 %v5159
        %v5272 = vunpack.c.h.bf16 %v5160
        %v5273 = vunpack.c.l.bf16 %v5161
        %v5274 = vunpack.c.l.bf16 %v5162
        %v5275 = vunpack.c.l.bf16 %v5163
        %v5276 = vunpack.c.l.bf16 %v5164
        %v5277 = vunpack.c.h.bf16 %v5161
        %v5278 = vunpack.c.h.bf16 %v5162
        %v5279 = vunpack.c.h.bf16 %v5163
        %v5280 = vunpack.c.h.bf16 %v5164
        %v5281 = vunpack.c.l.bf16 %v5165
        %v5282 = vunpack.c.l.bf16 %v5166
        %v5283 = vunpack.c.l.bf16 %v5167
        %v5284 = vunpack.c.l.bf16 %v5168
        %v5285 = vunpack.c.h.bf16 %v5165
        %v5286 = vunpack.c.h.bf16 %v5166
        %v5287 = vunpack.c.h.bf16 %v5167
        %v5288 = vunpack.c.h.bf16 %v5168
        %v5289 = vunpack.c.l.bf16 %v5169
        %v5290 = vunpack.c.l.bf16 %v5170
        %v5291 = vunpack.c.l.bf16 %v5171
        %v5292 = vunpack.c.l.bf16 %v5172
        %v5293 = vunpack.c.h.bf16 %v5169
        %v5294 = vunpack.c.h.bf16 %v5170
        %v5295 = vunpack.c.h.bf16 %v5171
        %v5296 = vunpack.c.h.bf16 %v5172
        %v5297 = vunpack.c.l.bf16 %v5173
        %v5298 = vunpack.c.l.bf16 %v5174
        %v5299 = vunpack.c.l.bf16 %v5175
        %v5300 = vunpack.c.l.bf16 %v5176
        %v5301 = vunpack.c.h.bf16 %v5173
        %v5302 = vunpack.c.h.bf16 %v5174
        %v5303 = vunpack.c.h.bf16 %v5175
        %v5304 = vunpack.c.h.bf16 %v5176
        %v5305 = vmul.f32 %v5177, %v4739
        %v5306 = vmul.f32 %v5178, %v4740
        %v5307 = vmul.f32 %v5179, %v4741
        %v5308 = vmul.f32 %v5180, %v4742
        %v5309 = vmul.f32 %v5181, %v4743
        %v5310 = vmul.f32 %v5182, %v4744
        %v5311 = vmul.f32 %v5183, %v4745
        %v5312 = vmul.f32 %v5184, %v4746
        %v5313 = vmul.f32 %v5185, %v4747
        %v5314 = vmul.f32 %v5186, %v4748
        %v5315 = vmul.f32 %v5187, %v4749
        %v5316 = vmul.f32 %v5188, %v4750
        %v5317 = vmul.f32 %v5189, %v4751
        %v5318 = vmul.f32 %v5190, %v4752
        %v5319 = vmul.f32 %v5191, %v4753
        %v5320 = vmul.f32 %v5192, %v4754
        %v5321 = vmul.f32 %v5193, %v4755
        %v5322 = vmul.f32 %v5194, %v4756
        %v5323 = vmul.f32 %v5195, %v4757
        %v5324 = vmul.f32 %v5196, %v4758
        %v5325 = vmul.f32 %v5197, %v4759
        %v5326 = vmul.f32 %v5198, %v4760
        %v5327 = vmul.f32 %v5199, %v4761
        %v5328 = vmul.f32 %v5200, %v4762
        %v5329 = vmul.f32 %v5201, %v4763
        %v5330 = vmul.f32 %v5202, %v4764
        %v5331 = vmul.f32 %v5203, %v4765
        %v5332 = vmul.f32 %v5204, %v4766
        %v5333 = vmul.f32 %v5205, %v4767
        %v5334 = vmul.f32 %v5206, %v4768
        %v5335 = vmul.f32 %v5207, %v4769
        %v5336 = vmul.f32 %v5208, %v4770
        %v5337 = vmul.f32 %v5209, %v4771
        %v5338 = vmul.f32 %v5210, %v4772
        %v5339 = vmul.f32 %v5211, %v4773
        %v5340 = vmul.f32 %v5212, %v4774
        %v5341 = vmul.f32 %v5213, %v4775
        %v5342 = vmul.f32 %v5214, %v4776
        %v5343 = vmul.f32 %v5215, %v4777
        %v5344 = vmul.f32 %v5216, %v4778
        %v5345 = vmul.f32 %v5217, %v4779
        %v5346 = vmul.f32 %v5218, %v4780
        %v5347 = vmul.f32 %v5219, %v4781
        %v5348 = vmul.f32 %v5220, %v4782
        %v5349 = vmul.f32 %v5221, %v4783
        %v5350 = vmul.f32 %v5222, %v4784
        %v5351 = vmul.f32 %v5223, %v4785
        %v5352 = vmul.f32 %v5224, %v4786
        %v5353 = vmul.f32 %v5225, %v4787
        %v5354 = vmul.f32 %v5226, %v4788
        %v5355 = vmul.f32 %v5227, %v4789
        %v5356 = vmul.f32 %v5228, %v4790
        %v5357 = vmul.f32 %v5229, %v4791
        %v5358 = vmul.f32 %v5230, %v4792
        %v5359 = vmul.f32 %v5231, %v4793
        %v5360 = vmul.f32 %v5232, %v4794
        %v5361 = vmul.f32 %v5233, %v4795
        %v5362 = vmul.f32 %v5234, %v4796
        %v5363 = vmul.f32 %v5235, %v4797
        %v5364 = vmul.f32 %v5236, %v4798
        %v5365 = vmul.f32 %v5237, %v4799
        %v5366 = vmul.f32 %v5238, %v4800
        %v5367 = vmul.f32 %v5239, %v4801
        %v5368 = vmul.f32 %v5240, %v4802
        %v5369 = vmul.f32 %v5241, %v4803
        %v5370 = vmul.f32 %v5242, %v4804
        %v5371 = vmul.f32 %v5243, %v4805
        %v5372 = vmul.f32 %v5244, %v4806
        %v5373 = vmul.f32 %v5245, %v4807
        %v5374 = vmul.f32 %v5246, %v4808
        %v5375 = vmul.f32 %v5247, %v4809
        %v5376 = vmul.f32 %v5248, %v4810
        %v5377 = vmul.f32 %v5249, %v4811
        %v5378 = vmul.f32 %v5250, %v4812
        %v5379 = vmul.f32 %v5251, %v4813
        %v5380 = vmul.f32 %v5252, %v4814
        %v5381 = vmul.f32 %v5253, %v4815
        %v5382 = vmul.f32 %v5254, %v4816
        %v5383 = vmul.f32 %v5255, %v4817
        %v5384 = vmul.f32 %v5256, %v4818
        %v5385 = vmul.f32 %v5257, %v4819
        %v5386 = vmul.f32 %v5258, %v4820
        %v5387 = vmul.f32 %v5259, %v4821
        %v5388 = vmul.f32 %v5260, %v4822
        %v5389 = vmul.f32 %v5261, %v4823
        %v5390 = vmul.f32 %v5262, %v4824
        %v5391 = vmul.f32 %v5263, %v4825
        %v5392 = vmul.f32 %v5264, %v4826
        %v5393 = vmul.f32 %v5265, %v4827
        %v5394 = vmul.f32 %v5266, %v4828
        %v5395 = vmul.f32 %v5267, %v4829
        %v5396 = vmul.f32 %v5268, %v4830
        %v5397 = vmul.f32 %v5269, %v4831
        %v5398 = vmul.f32 %v5270, %v4832
        %v5399 = vmul.f32 %v5271, %v4833
        %v5400 = vmul.f32 %v5272, %v4834
        %v5401 = vmul.f32 %v5273, %v4835
        %v5402 = vmul.f32 %v5274, %v4836
        %v5403 = vmul.f32 %v5275, %v4837
        %v5404 = vmul.f32 %v5276, %v4838
        %v5405 = vmul.f32 %v5277, %v4839
        %v5406 = vmul.f32 %v5278, %v4840
        %v5407 = vmul.f32 %v5279, %v4841
        %v5408 = vmul.f32 %v5280, %v4842
        %v5409 = vmul.f32 %v5281, %v4843
        %v5410 = vmul.f32 %v5282, %v4844
        %v5411 = vmul.f32 %v5283, %v4845
        %v5412 = vmul.f32 %v5284, %v4846
        %v5413 = vmul.f32 %v5285, %v4847
        %v5414 = vmul.f32 %v5286, %v4848
        %v5415 = vmul.f32 %v5287, %v4849
        %v5416 = vmul.f32 %v5288, %v4850
        %v5417 = vmul.f32 %v5289, %v4851
        %v5418 = vmul.f32 %v5290, %v4852
        %v5419 = vmul.f32 %v5291, %v4853
        %v5420 = vmul.f32 %v5292, %v4854
        %v5421 = vmul.f32 %v5293, %v4855
        %v5422 = vmul.f32 %v5294, %v4856
        %v5423 = vmul.f32 %v5295, %v4857
        %v5424 = vmul.f32 %v5296, %v4858
        %v5425 = vmul.f32 %v5297, %v4859
        %v5426 = vmul.f32 %v5298, %v4860
        %v5427 = vmul.f32 %v5299, %v4861
        %v5428 = vmul.f32 %v5300, %v4862
        %v5429 = vmul.f32 %v5301, %v4863
        %v5430 = vmul.f32 %v5302, %v4864
        %v5431 = vmul.f32 %v5303, %v4865
        %v5432 = vmul.f32 %v5304, %v4866
        %v5433 = vpack.c.bf16 %v5309, %v5305
        %v5434 = vpack.c.bf16 %v5310, %v5306
        %v5435 = vpack.c.bf16 %v5311, %v5307
        %v5436 = vpack.c.bf16 %v5312, %v5308
        %v5437 = vpack.c.bf16 %v5317, %v5313
        %v5438 = vpack.c.bf16 %v5318, %v5314
        %v5439 = vpack.c.bf16 %v5319, %v5315
        %v5440 = vpack.c.bf16 %v5320, %v5316
        %v5441 = vpack.c.bf16 %v5325, %v5321
        %v5442 = vpack.c.bf16 %v5326, %v5322
        %v5443 = vpack.c.bf16 %v5327, %v5323
        %v5444 = vpack.c.bf16 %v5328, %v5324
        %v5445 = vpack.c.bf16 %v5333, %v5329
        %v5446 = vpack.c.bf16 %v5334, %v5330
        %v5447 = vpack.c.bf16 %v5335, %v5331
        %v5448 = vpack.c.bf16 %v5336, %v5332
        %v5449 = vpack.c.bf16 %v5341, %v5337
        %v5450 = vpack.c.bf16 %v5342, %v5338
        %v5451 = vpack.c.bf16 %v5343, %v5339
        %v5452 = vpack.c.bf16 %v5344, %v5340
        %v5453 = vpack.c.bf16 %v5349, %v5345
        %v5454 = vpack.c.bf16 %v5350, %v5346
        %v5455 = vpack.c.bf16 %v5351, %v5347
        %v5456 = vpack.c.bf16 %v5352, %v5348
        %v5457 = vpack.c.bf16 %v5357, %v5353
        %v5458 = vpack.c.bf16 %v5358, %v5354
        %v5459 = vpack.c.bf16 %v5359, %v5355
        %v5460 = vpack.c.bf16 %v5360, %v5356
        %v5461 = vpack.c.bf16 %v5365, %v5361
        %v5462 = vpack.c.bf16 %v5366, %v5362
        %v5463 = vpack.c.bf16 %v5367, %v5363
        %v5464 = vpack.c.bf16 %v5368, %v5364
        %v5465 = vpack.c.bf16 %v5373, %v5369
        %v5466 = vpack.c.bf16 %v5374, %v5370
        %v5467 = vpack.c.bf16 %v5375, %v5371
        %v5468 = vpack.c.bf16 %v5376, %v5372
        %v5469 = vpack.c.bf16 %v5381, %v5377
        %v5470 = vpack.c.bf16 %v5382, %v5378
        %v5471 = vpack.c.bf16 %v5383, %v5379
        %v5472 = vpack.c.bf16 %v5384, %v5380
        %v5473 = vpack.c.bf16 %v5389, %v5385
        %v5474 = vpack.c.bf16 %v5390, %v5386
        %v5475 = vpack.c.bf16 %v5391, %v5387
        %v5476 = vpack.c.bf16 %v5392, %v5388
        %v5477 = vpack.c.bf16 %v5397, %v5393
        %v5478 = vpack.c.bf16 %v5398, %v5394
        %v5479 = vpack.c.bf16 %v5399, %v5395
        %v5480 = vpack.c.bf16 %v5400, %v5396
        %v5481 = vpack.c.bf16 %v5405, %v5401
        %v5482 = vpack.c.bf16 %v5406, %v5402
        %v5483 = vpack.c.bf16 %v5407, %v5403
        %v5484 = vpack.c.bf16 %v5408, %v5404
        %v5485 = vpack.c.bf16 %v5413, %v5409
        %v5486 = vpack.c.bf16 %v5414, %v5410
        %v5487 = vpack.c.bf16 %v5415, %v5411
        %v5488 = vpack.c.bf16 %v5416, %v5412
        %v5489 = vpack.c.bf16 %v5421, %v5417
        %v5490 = vpack.c.bf16 %v5422, %v5418
        %v5491 = vpack.c.bf16 %v5423, %v5419
        %v5492 = vpack.c.bf16 %v5424, %v5420
        %v5493 = vpack.c.bf16 %v5429, %v5425
        %v5494 = vpack.c.bf16 %v5430, %v5426
        %v5495 = vpack.c.bf16 %v5431, %v5427
        %v5496 = vpack.c.bf16 %v5432, %v5428
        %v5497 = vld [vmem:[#allocation2] sm:$0xff]
        %v5498 = vld [vmem:[#allocation2 + $0x8] sm:$0xff]
        %v5499 = vld [vmem:[#allocation2 + $0x10] sm:$0xff]
        %v5500 = vld [vmem:[#allocation2 + $0x18] sm:$0xff]
        %v5501 = vld [vmem:[#allocation2 + $0x20] sm:$0xff]
        %v5502 = vld [vmem:[#allocation2 + $0x28] sm:$0xff]
        %v5503 = vld [vmem:[#allocation2 + $0x30] sm:$0xff]
        %v5504 = vld [vmem:[#allocation2 + $0x38] sm:$0xff]
        %v5505 = vld [vmem:[#allocation2 + $0x40] sm:$0xff]
        %v5506 = vld [vmem:[#allocation2 + $0x48] sm:$0xff]
        %v5507 = vld [vmem:[#allocation2 + $0x50] sm:$0xff]
        %v5508 = vld [vmem:[#allocation2 + $0x58] sm:$0xff]
        %v5509 = vld [vmem:[#allocation2 + $0x60] sm:$0xff]
        %v5510 = vld [vmem:[#allocation2 + $0x68] sm:$0xff]
        %v5511 = vld [vmem:[#allocation2 + $0x70] sm:$0xff]
        %v5512 = vld [vmem:[#allocation2 + $0x78] sm:$0xff]
        %v5513 = vld [vmem:[#allocation2 + $0x80] sm:$0xff]
        %v5514 = vld [vmem:[#allocation2 + $0x88] sm:$0xff]
        %v5515 = vld [vmem:[#allocation2 + $0x90] sm:$0xff]
        %v5516 = vld [vmem:[#allocation2 + $0x98] sm:$0xff]
        %v5517 = vld [vmem:[#allocation2 + $0xa0] sm:$0xff]
        %v5518 = vld [vmem:[#allocation2 + $0xa8] sm:$0xff]
        %v5519 = vld [vmem:[#allocation2 + $0xb0] sm:$0xff]
        %v5520 = vld [vmem:[#allocation2 + $0xb8] sm:$0xff]
        %v5521 = vld [vmem:[#allocation2 + $0xc0] sm:$0xff]
        %v5522 = vld [vmem:[#allocation2 + $0xc8] sm:$0xff]
        %v5523 = vld [vmem:[#allocation2 + $0xd0] sm:$0xff]
        %v5524 = vld [vmem:[#allocation2 + $0xd8] sm:$0xff]
        %v5525 = vld [vmem:[#allocation2 + $0xe0] sm:$0xff]
        %v5526 = vld [vmem:[#allocation2 + $0xe8] sm:$0xff]
        %v5527 = vld [vmem:[#allocation2 + $0xf0] sm:$0xff]
        %v5528 = vld [vmem:[#allocation2 + $0xf8] sm:$0xff]
        %v5529 = vld [vmem:[#allocation2 + $0x100] sm:$0xff]
        %v5530 = vld [vmem:[#allocation2 + $0x108] sm:$0xff]
        %v5531 = vld [vmem:[#allocation2 + $0x110] sm:$0xff]
        %v5532 = vld [vmem:[#allocation2 + $0x118] sm:$0xff]
        %v5533 = vld [vmem:[#allocation2 + $0x120] sm:$0xff]
        %v5534 = vld [vmem:[#allocation2 + $0x128] sm:$0xff]
        %v5535 = vld [vmem:[#allocation2 + $0x130] sm:$0xff]
        %v5536 = vld [vmem:[#allocation2 + $0x138] sm:$0xff]
        %v5537 = vld [vmem:[#allocation2 + $0x140] sm:$0xff]
        %v5538 = vld [vmem:[#allocation2 + $0x148] sm:$0xff]
        %v5539 = vld [vmem:[#allocation2 + $0x150] sm:$0xff]
        %v5540 = vld [vmem:[#allocation2 + $0x158] sm:$0xff]
        %v5541 = vld [vmem:[#allocation2 + $0x160] sm:$0xff]
        %v5542 = vld [vmem:[#allocation2 + $0x168] sm:$0xff]
        %v5543 = vld [vmem:[#allocation2 + $0x170] sm:$0xff]
        %v5544 = vld [vmem:[#allocation2 + $0x178] sm:$0xff]
        %v5545 = vld [vmem:[#allocation2 + $0x180] sm:$0xff]
        %v5546 = vld [vmem:[#allocation2 + $0x188] sm:$0xff]
        %v5547 = vld [vmem:[#allocation2 + $0x190] sm:$0xff]
        %v5548 = vld [vmem:[#allocation2 + $0x198] sm:$0xff]
        %v5549 = vld [vmem:[#allocation2 + $0x1a0] sm:$0xff]
        %v5550 = vld [vmem:[#allocation2 + $0x1a8] sm:$0xff]
        %v5551 = vld [vmem:[#allocation2 + $0x1b0] sm:$0xff]
        %v5552 = vld [vmem:[#allocation2 + $0x1b8] sm:$0xff]
        %v5553 = vld [vmem:[#allocation2 + $0x1c0] sm:$0xff]
        %v5554 = vld [vmem:[#allocation2 + $0x1c8] sm:$0xff]
        %v5555 = vld [vmem:[#allocation2 + $0x1d0] sm:$0xff]
        %v5556 = vld [vmem:[#allocation2 + $0x1d8] sm:$0xff]
        %v5557 = vld [vmem:[#allocation2 + $0x1e0] sm:$0xff]
        %v5558 = vld [vmem:[#allocation2 + $0x1e8] sm:$0xff]
        %v5559 = vld [vmem:[#allocation2 + $0x1f0] sm:$0xff]
        %v5560 = vld [vmem:[#allocation2 + $0x1f8] sm:$0xff]
        %v5561 = vld [vmem:[#allocation2 + $0x200] sm:$0xff]
        %v5562 = vld [vmem:[#allocation2 + $0x208] sm:$0xff]
        %v5563 = vld [vmem:[#allocation2 + $0x210] sm:$0xff]
        %v5564 = vld [vmem:[#allocation2 + $0x218] sm:$0xff]
        %v5565 = vld [vmem:[#allocation2 + $0x220] sm:$0xff]
        %v5566 = vld [vmem:[#allocation2 + $0x228] sm:$0xff]
        %v5567 = vld [vmem:[#allocation2 + $0x230] sm:$0xff]
        %v5568 = vld [vmem:[#allocation2 + $0x238] sm:$0xff]
        %v5569 = vld [vmem:[#allocation2 + $0x240] sm:$0xff]
        %v5570 = vld [vmem:[#allocation2 + $0x248] sm:$0xff]
        %v5571 = vld [vmem:[#allocation2 + $0x250] sm:$0xff]
        %v5572 = vld [vmem:[#allocation2 + $0x258] sm:$0xff]
        %v5573 = vld [vmem:[#allocation2 + $0x260] sm:$0xff]
        %v5574 = vld [vmem:[#allocation2 + $0x268] sm:$0xff]
        %v5575 = vld [vmem:[#allocation2 + $0x270] sm:$0xff]
        %v5576 = vld [vmem:[#allocation2 + $0x278] sm:$0xff]
        %v5577 = vld [vmem:[#allocation2 + $0x280] sm:$0xff]
        %v5578 = vld [vmem:[#allocation2 + $0x288] sm:$0xff]
        %v5579 = vld [vmem:[#allocation2 + $0x290] sm:$0xff]
        %v5580 = vld [vmem:[#allocation2 + $0x298] sm:$0xff]
        %v5581 = vld [vmem:[#allocation2 + $0x2a0] sm:$0xff]
        %v5582 = vld [vmem:[#allocation2 + $0x2a8] sm:$0xff]
        %v5583 = vld [vmem:[#allocation2 + $0x2b0] sm:$0xff]
        %v5584 = vld [vmem:[#allocation2 + $0x2b8] sm:$0xff]
        %v5585 = vld [vmem:[#allocation2 + $0x2c0] sm:$0xff]
        %v5586 = vld [vmem:[#allocation2 + $0x2c8] sm:$0xff]
        %v5587 = vld [vmem:[#allocation2 + $0x2d0] sm:$0xff]
        %v5588 = vld [vmem:[#allocation2 + $0x2d8] sm:$0xff]
        %v5589 = vld [vmem:[#allocation2 + $0x2e0] sm:$0xff]
        %v5590 = vld [vmem:[#allocation2 + $0x2e8] sm:$0xff]
        %v5591 = vld [vmem:[#allocation2 + $0x2f0] sm:$0xff]
        %v5592 = vld [vmem:[#allocation2 + $0x2f8] sm:$0xff]
        %v5593 = vld [vmem:[#allocation2 + $0x300] sm:$0xff]
        %v5594 = vld [vmem:[#allocation2 + $0x308] sm:$0xff]
        %v5595 = vld [vmem:[#allocation2 + $0x310] sm:$0xff]
        %v5596 = vld [vmem:[#allocation2 + $0x318] sm:$0xff]
        %v5597 = vld [vmem:[#allocation2 + $0x320] sm:$0xff]
        %v5598 = vld [vmem:[#allocation2 + $0x328] sm:$0xff]
        %v5599 = vld [vmem:[#allocation2 + $0x330] sm:$0xff]
        %v5600 = vld [vmem:[#allocation2 + $0x338] sm:$0xff]
        %v5601 = vld [vmem:[#allocation2 + $0x340] sm:$0xff]
        %v5602 = vld [vmem:[#allocation2 + $0x348] sm:$0xff]
        %v5603 = vld [vmem:[#allocation2 + $0x350] sm:$0xff]
        %v5604 = vld [vmem:[#allocation2 + $0x358] sm:$0xff]
        %v5605 = vld [vmem:[#allocation2 + $0x360] sm:$0xff]
        %v5606 = vld [vmem:[#allocation2 + $0x368] sm:$0xff]
        %v5607 = vld [vmem:[#allocation2 + $0x370] sm:$0xff]
        %v5608 = vld [vmem:[#allocation2 + $0x378] sm:$0xff]
        %v5609 = vld [vmem:[#allocation2 + $0x380] sm:$0xff]
        %v5610 = vld [vmem:[#allocation2 + $0x388] sm:$0xff]
        %v5611 = vld [vmem:[#allocation2 + $0x390] sm:$0xff]
        %v5612 = vld [vmem:[#allocation2 + $0x398] sm:$0xff]
        %v5613 = vld [vmem:[#allocation2 + $0x3a0] sm:$0xff]
        %v5614 = vld [vmem:[#allocation2 + $0x3a8] sm:$0xff]
        %v5615 = vld [vmem:[#allocation2 + $0x3b0] sm:$0xff]
        %v5616 = vld [vmem:[#allocation2 + $0x3b8] sm:$0xff]
        %v5617 = vld [vmem:[#allocation2 + $0x3c0] sm:$0xff]
        %v5618 = vld [vmem:[#allocation2 + $0x3c8] sm:$0xff]
        %v5619 = vld [vmem:[#allocation2 + $0x3d0] sm:$0xff]
        %v5620 = vld [vmem:[#allocation2 + $0x3d8] sm:$0xff]
        %v5621 = vld [vmem:[#allocation2 + $0x3e0] sm:$0xff]
        %v5622 = vld [vmem:[#allocation2 + $0x3e8] sm:$0xff]
        %v5623 = vld [vmem:[#allocation2 + $0x3f0] sm:$0xff]
        %v5624 = vld [vmem:[#allocation2 + $0x3f8] sm:$0xff]
        %v5625 = vld [vmem:[%s328] sm:$0xff]
        %v5626 = vld [vmem:[%s328 + $0x8] sm:$0xff]
        %v5627 = vld [vmem:[%s328 + $0x10] sm:$0xff]
        %v5628 = vld [vmem:[%s328 + $0x18] sm:$0xff]
        %v5629 = vld [vmem:[%s328 + $0x20] sm:$0xff]
        %v5630 = vld [vmem:[%s328 + $0x28] sm:$0xff]
        %v5631 = vld [vmem:[%s328 + $0x30] sm:$0xff]
        %v5632 = vld [vmem:[%s328 + $0x38] sm:$0xff]
        %v5633 = vld [vmem:[%s328 + $0x40] sm:$0xff]
        %v5634 = vld [vmem:[%s328 + $0x48] sm:$0xff]
        %v5635 = vld [vmem:[%s328 + $0x50] sm:$0xff]
        %v5636 = vld [vmem:[%s328 + $0x58] sm:$0xff]
        %v5637 = vld [vmem:[%s328 + $0x60] sm:$0xff]
        %v5638 = vld [vmem:[%s328 + $0x68] sm:$0xff]
        %v5639 = vld [vmem:[%s328 + $0x70] sm:$0xff]
        %v5640 = vld [vmem:[%s328 + $0x78] sm:$0xff]
        %v5641 = vld [vmem:[%s328 + $0x80] sm:$0xff]
        %v5642 = vld [vmem:[%s328 + $0x88] sm:$0xff]
        %v5643 = vld [vmem:[%s328 + $0x90] sm:$0xff]
        %v5644 = vld [vmem:[%s328 + $0x98] sm:$0xff]
        %v5645 = vld [vmem:[%s328 + $0xa0] sm:$0xff]
        %v5646 = vld [vmem:[%s328 + $0xa8] sm:$0xff]
        %v5647 = vld [vmem:[%s328 + $0xb0] sm:$0xff]
        %v5648 = vld [vmem:[%s328 + $0xb8] sm:$0xff]
        %v5649 = vld [vmem:[%s328 + $0xc0] sm:$0xff]
        %v5650 = vld [vmem:[%s328 + $0xc8] sm:$0xff]
        %v5651 = vld [vmem:[%s328 + $0xd0] sm:$0xff]
        %v5652 = vld [vmem:[%s328 + $0xd8] sm:$0xff]
        %v5653 = vld [vmem:[%s328 + $0xe0] sm:$0xff]
        %v5654 = vld [vmem:[%s328 + $0xe8] sm:$0xff]
        %v5655 = vld [vmem:[%s328 + $0xf0] sm:$0xff]
        %v5656 = vld [vmem:[%s328 + $0xf8] sm:$0xff]
        %v5657 = vld [vmem:[%s328 + $0x100] sm:$0xff]
        %v5658 = vld [vmem:[%s328 + $0x108] sm:$0xff]
        %v5659 = vld [vmem:[%s328 + $0x110] sm:$0xff]
        %v5660 = vld [vmem:[%s328 + $0x118] sm:$0xff]
        %v5661 = vld [vmem:[%s328 + $0x120] sm:$0xff]
        %v5662 = vld [vmem:[%s328 + $0x128] sm:$0xff]
        %v5663 = vld [vmem:[%s328 + $0x130] sm:$0xff]
        %v5664 = vld [vmem:[%s328 + $0x138] sm:$0xff]
        %v5665 = vld [vmem:[%s328 + $0x140] sm:$0xff]
        %v5666 = vld [vmem:[%s328 + $0x148] sm:$0xff]
        %v5667 = vld [vmem:[%s328 + $0x150] sm:$0xff]
        %v5668 = vld [vmem:[%s328 + $0x158] sm:$0xff]
        %v5669 = vld [vmem:[%s328 + $0x160] sm:$0xff]
        %v5670 = vld [vmem:[%s328 + $0x168] sm:$0xff]
        %v5671 = vld [vmem:[%s328 + $0x170] sm:$0xff]
        %v5672 = vld [vmem:[%s328 + $0x178] sm:$0xff]
        %v5673 = vld [vmem:[%s328 + $0x180] sm:$0xff]
        %v5674 = vld [vmem:[%s328 + $0x188] sm:$0xff]
        %v5675 = vld [vmem:[%s328 + $0x190] sm:$0xff]
        %v5676 = vld [vmem:[%s328 + $0x198] sm:$0xff]
        %v5677 = vld [vmem:[%s328 + $0x1a0] sm:$0xff]
        %v5678 = vld [vmem:[%s328 + $0x1a8] sm:$0xff]
        %v5679 = vld [vmem:[%s328 + $0x1b0] sm:$0xff]
        %v5680 = vld [vmem:[%s328 + $0x1b8] sm:$0xff]
        %v5681 = vld [vmem:[%s328 + $0x1c0] sm:$0xff]
        %v5682 = vld [vmem:[%s328 + $0x1c8] sm:$0xff]
        %v5683 = vld [vmem:[%s328 + $0x1d0] sm:$0xff]
        %v5684 = vld [vmem:[%s328 + $0x1d8] sm:$0xff]
        %v5685 = vld [vmem:[%s328 + $0x1e0] sm:$0xff]
        %v5686 = vld [vmem:[%s328 + $0x1e8] sm:$0xff]
        %v5687 = vld [vmem:[%s328 + $0x1f0] sm:$0xff]
        %v5688 = vld [vmem:[%s328 + $0x1f8] sm:$0xff]
        %v5689 = vld [vmem:[%s328 + $0x200] sm:$0xff]
        %v5690 = vld [vmem:[%s328 + $0x208] sm:$0xff]
        %v5691 = vld [vmem:[%s328 + $0x210] sm:$0xff]
        %v5692 = vld [vmem:[%s328 + $0x218] sm:$0xff]
        %v5693 = vld [vmem:[%s328 + $0x220] sm:$0xff]
        %v5694 = vld [vmem:[%s328 + $0x228] sm:$0xff]
        %v5695 = vld [vmem:[%s328 + $0x230] sm:$0xff]
        %v5696 = vld [vmem:[%s328 + $0x238] sm:$0xff]
        %v5697 = vld [vmem:[%s328 + $0x240] sm:$0xff]
        %v5698 = vld [vmem:[%s328 + $0x248] sm:$0xff]
        %v5699 = vld [vmem:[%s328 + $0x250] sm:$0xff]
        %v5700 = vld [vmem:[%s328 + $0x258] sm:$0xff]
        %v5701 = vld [vmem:[%s328 + $0x260] sm:$0xff]
        %v5702 = vld [vmem:[%s328 + $0x268] sm:$0xff]
        %v5703 = vld [vmem:[%s328 + $0x270] sm:$0xff]
        %v5704 = vld [vmem:[%s328 + $0x278] sm:$0xff]
        %v5705 = vld [vmem:[%s328 + $0x280] sm:$0xff]
        %v5706 = vld [vmem:[%s328 + $0x288] sm:$0xff]
        %v5707 = vld [vmem:[%s328 + $0x290] sm:$0xff]
        %v5708 = vld [vmem:[%s328 + $0x298] sm:$0xff]
        %v5709 = vld [vmem:[%s328 + $0x2a0] sm:$0xff]
        %v5710 = vld [vmem:[%s328 + $0x2a8] sm:$0xff]
        %v5711 = vld [vmem:[%s328 + $0x2b0] sm:$0xff]
        %v5712 = vld [vmem:[%s328 + $0x2b8] sm:$0xff]
        %v5713 = vld [vmem:[%s328 + $0x2c0] sm:$0xff]
        %v5714 = vld [vmem:[%s328 + $0x2c8] sm:$0xff]
        %v5715 = vld [vmem:[%s328 + $0x2d0] sm:$0xff]
        %v5716 = vld [vmem:[%s328 + $0x2d8] sm:$0xff]
        %v5717 = vld [vmem:[%s328 + $0x2e0] sm:$0xff]
        %v5718 = vld [vmem:[%s328 + $0x2e8] sm:$0xff]
        %v5719 = vld [vmem:[%s328 + $0x2f0] sm:$0xff]
        %v5720 = vld [vmem:[%s328 + $0x2f8] sm:$0xff]
        %v5721 = vld [vmem:[%s328 + $0x300] sm:$0xff]
        %v5722 = vld [vmem:[%s328 + $0x308] sm:$0xff]
        %v5723 = vld [vmem:[%s328 + $0x310] sm:$0xff]
        %v5724 = vld [vmem:[%s328 + $0x318] sm:$0xff]
        %v5725 = vld [vmem:[%s328 + $0x320] sm:$0xff]
        %v5726 = vld [vmem:[%s328 + $0x328] sm:$0xff]
        %v5727 = vld [vmem:[%s328 + $0x330] sm:$0xff]
        %v5728 = vld [vmem:[%s328 + $0x338] sm:$0xff]
        %v5729 = vld [vmem:[%s328 + $0x340] sm:$0xff]
        %v5730 = vld [vmem:[%s328 + $0x348] sm:$0xff]
        %v5731 = vld [vmem:[%s328 + $0x350] sm:$0xff]
        %v5732 = vld [vmem:[%s328 + $0x358] sm:$0xff]
        %v5733 = vld [vmem:[%s328 + $0x360] sm:$0xff]
        %v5734 = vld [vmem:[%s328 + $0x368] sm:$0xff]
        %v5735 = vld [vmem:[%s328 + $0x370] sm:$0xff]
        %v5736 = vld [vmem:[%s328 + $0x378] sm:$0xff]
        %v5737 = vld [vmem:[%s328 + $0x380] sm:$0xff]
        %v5738 = vld [vmem:[%s328 + $0x388] sm:$0xff]
        %v5739 = vld [vmem:[%s328 + $0x390] sm:$0xff]
        %v5740 = vld [vmem:[%s328 + $0x398] sm:$0xff]
        %v5741 = vld [vmem:[%s328 + $0x3a0] sm:$0xff]
        %v5742 = vld [vmem:[%s328 + $0x3a8] sm:$0xff]
        %v5743 = vld [vmem:[%s328 + $0x3b0] sm:$0xff]
        %v5744 = vld [vmem:[%s328 + $0x3b8] sm:$0xff]
        %v5745 = vld [vmem:[%s328 + $0x3c0] sm:$0xff]
        %v5746 = vld [vmem:[%s328 + $0x3c8] sm:$0xff]
        %v5747 = vld [vmem:[%s328 + $0x3d0] sm:$0xff]
        %v5748 = vld [vmem:[%s328 + $0x3d8] sm:$0xff]
        %v5749 = vld [vmem:[%s328 + $0x3e0] sm:$0xff]
        %v5750 = vld [vmem:[%s328 + $0x3e8] sm:$0xff]
        %v5751 = vld [vmem:[%s328 + $0x3f0] sm:$0xff]
        %v5752 = vld [vmem:[%s328 + $0x3f8] sm:$0xff]
        %v5881 = vunpack.c.l.b16 %v5625
        %v5882 = vunpack.c.h.b16 %v5625
        %v5883 = vunpack.c.l.b16 %v5626
        %v5884 = vunpack.c.h.b16 %v5626
        %v5885 = vunpack.c.l.b16 %v5627
        %v5886 = vunpack.c.h.b16 %v5627
        %v5887 = vunpack.c.l.b16 %v5628
        %v5888 = vunpack.c.h.b16 %v5628
        %v5889 = vunpack.c.l.b16 %v5629
        %v5890 = vunpack.c.h.b16 %v5629
        %v5891 = vunpack.c.l.b16 %v5630
        %v5892 = vunpack.c.h.b16 %v5630
        %v5893 = vunpack.c.l.b16 %v5631
        %v5894 = vunpack.c.h.b16 %v5631
        %v5895 = vunpack.c.l.b16 %v5632
        %v5896 = vunpack.c.h.b16 %v5632
        %v5897 = vunpack.c.l.b16 %v5633
        %v5898 = vunpack.c.h.b16 %v5633
        %v5899 = vunpack.c.l.b16 %v5634
        %v5900 = vunpack.c.h.b16 %v5634
        %v5901 = vunpack.c.l.b16 %v5635
        %v5902 = vunpack.c.h.b16 %v5635
        %v5903 = vunpack.c.l.b16 %v5636
        %v5904 = vunpack.c.h.b16 %v5636
        %v5905 = vunpack.c.l.b16 %v5637
        %v5906 = vunpack.c.h.b16 %v5637
        %v5907 = vunpack.c.l.b16 %v5638
        %v5908 = vunpack.c.h.b16 %v5638
        %v5909 = vunpack.c.l.b16 %v5639
        %v5910 = vunpack.c.h.b16 %v5639
        %v5911 = vunpack.c.l.b16 %v5640
        %v5912 = vunpack.c.h.b16 %v5640
        %v5913 = vunpack.c.l.b16 %v5641
        %v5914 = vunpack.c.h.b16 %v5641
        %v5915 = vunpack.c.l.b16 %v5642
        %v5916 = vunpack.c.h.b16 %v5642
        %v5917 = vunpack.c.l.b16 %v5643
        %v5918 = vunpack.c.h.b16 %v5643
        %v5919 = vunpack.c.l.b16 %v5644
        %v5920 = vunpack.c.h.b16 %v5644
        %v5921 = vunpack.c.l.b16 %v5645
        %v5922 = vunpack.c.h.b16 %v5645
        %v5923 = vunpack.c.l.b16 %v5646
        %v5924 = vunpack.c.h.b16 %v5646
        %v5925 = vunpack.c.l.b16 %v5647
        %v5926 = vunpack.c.h.b16 %v5647
        %v5927 = vunpack.c.l.b16 %v5648
        %v5928 = vunpack.c.h.b16 %v5648
        %v5929 = vunpack.c.l.b16 %v5649
        %v5930 = vunpack.c.h.b16 %v5649
        %v5931 = vunpack.c.l.b16 %v5650
        %v5932 = vunpack.c.h.b16 %v5650
        %v5933 = vunpack.c.l.b16 %v5651
        %v5934 = vunpack.c.h.b16 %v5651
        %v5935 = vunpack.c.l.b16 %v5652
        %v5936 = vunpack.c.h.b16 %v5652
        %v5937 = vunpack.c.l.b16 %v5653
        %v5938 = vunpack.c.h.b16 %v5653
        %v5939 = vunpack.c.l.b16 %v5654
        %v5940 = vunpack.c.h.b16 %v5654
        %v5941 = vunpack.c.l.b16 %v5655
        %v5942 = vunpack.c.h.b16 %v5655
        %v5943 = vunpack.c.l.b16 %v5656
        %v5944 = vunpack.c.h.b16 %v5656
        %v5945 = vunpack.c.l.b16 %v5657
        %v5946 = vunpack.c.h.b16 %v5657
        %v5947 = vunpack.c.l.b16 %v5658
        %v5948 = vunpack.c.h.b16 %v5658
        %v5949 = vunpack.c.l.b16 %v5659
        %v5950 = vunpack.c.h.b16 %v5659
        %v5951 = vunpack.c.l.b16 %v5660
        %v5952 = vunpack.c.h.b16 %v5660
        %v5953 = vunpack.c.l.b16 %v5661
        %v5954 = vunpack.c.h.b16 %v5661
        %v5955 = vunpack.c.l.b16 %v5662
        %v5956 = vunpack.c.h.b16 %v5662
        %v5957 = vunpack.c.l.b16 %v5663
        %v5958 = vunpack.c.h.b16 %v5663
        %v5959 = vunpack.c.l.b16 %v5664
        %v5960 = vunpack.c.h.b16 %v5664
        %v5961 = vunpack.c.l.b16 %v5665
        %v5962 = vunpack.c.h.b16 %v5665
        %v5963 = vunpack.c.l.b16 %v5666
        %v5964 = vunpack.c.h.b16 %v5666
        %v5965 = vunpack.c.l.b16 %v5667
        %v5966 = vunpack.c.h.b16 %v5667
        %v5967 = vunpack.c.l.b16 %v5668
        %v5968 = vunpack.c.h.b16 %v5668
        %v5969 = vunpack.c.l.b16 %v5669
        %v5970 = vunpack.c.h.b16 %v5669
        %v5971 = vunpack.c.l.b16 %v5670
        %v5972 = vunpack.c.h.b16 %v5670
        %v5973 = vunpack.c.l.b16 %v5671
        %v5974 = vunpack.c.h.b16 %v5671
        %v5975 = vunpack.c.l.b16 %v5672
        %v5976 = vunpack.c.h.b16 %v5672
        %v5977 = vunpack.c.l.b16 %v5673
        %v5978 = vunpack.c.h.b16 %v5673
        %v5979 = vunpack.c.l.b16 %v5674
        %v5980 = vunpack.c.h.b16 %v5674
        %v5981 = vunpack.c.l.b16 %v5675
        %v5982 = vunpack.c.h.b16 %v5675
        %v5983 = vunpack.c.l.b16 %v5676
        %v5984 = vunpack.c.h.b16 %v5676
        %v5985 = vunpack.c.l.b16 %v5677
        %v5986 = vunpack.c.h.b16 %v5677
        %v5987 = vunpack.c.l.b16 %v5678
        %v5988 = vunpack.c.h.b16 %v5678
        %v5989 = vunpack.c.l.b16 %v5679
        %v5990 = vunpack.c.h.b16 %v5679
        %v5991 = vunpack.c.l.b16 %v5680
        %v5992 = vunpack.c.h.b16 %v5680
        %v5993 = vunpack.c.l.b16 %v5681
        %v5994 = vunpack.c.h.b16 %v5681
        %v5995 = vunpack.c.l.b16 %v5682
        %v5996 = vunpack.c.h.b16 %v5682
        %v5997 = vunpack.c.l.b16 %v5683
        %v5998 = vunpack.c.h.b16 %v5683
        %v5999 = vunpack.c.l.b16 %v5684
        %v6000 = vunpack.c.h.b16 %v5684
        %v6001 = vunpack.c.l.b16 %v5685
        %v6002 = vunpack.c.h.b16 %v5685
        %v6003 = vunpack.c.l.b16 %v5686
        %v6004 = vunpack.c.h.b16 %v5686
        %v6005 = vunpack.c.l.b16 %v5687
        %v6006 = vunpack.c.h.b16 %v5687
        %v6007 = vunpack.c.l.b16 %v5688
        %v6008 = vunpack.c.h.b16 %v5688
        %v6009 = vunpack.c.l.b16 %v5689
        %v6010 = vunpack.c.h.b16 %v5689
        %v6011 = vunpack.c.l.b16 %v5690
        %v6012 = vunpack.c.h.b16 %v5690
        %v6013 = vunpack.c.l.b16 %v5691
        %v6014 = vunpack.c.h.b16 %v5691
        %v6015 = vunpack.c.l.b16 %v5692
        %v6016 = vunpack.c.h.b16 %v5692
        %v6017 = vunpack.c.l.b16 %v5693
        %v6018 = vunpack.c.h.b16 %v5693
        %v6019 = vunpack.c.l.b16 %v5694
        %v6020 = vunpack.c.h.b16 %v5694
        %v6021 = vunpack.c.l.b16 %v5695
        %v6022 = vunpack.c.h.b16 %v5695
        %v6023 = vunpack.c.l.b16 %v5696
        %v6024 = vunpack.c.h.b16 %v5696
        %v6025 = vunpack.c.l.b16 %v5697
        %v6026 = vunpack.c.h.b16 %v5697
        %v6027 = vunpack.c.l.b16 %v5698
        %v6028 = vunpack.c.h.b16 %v5698
        %v6029 = vunpack.c.l.b16 %v5699
        %v6030 = vunpack.c.h.b16 %v5699
        %v6031 = vunpack.c.l.b16 %v5700
        %v6032 = vunpack.c.h.b16 %v5700
        %v6033 = vunpack.c.l.b16 %v5701
        %v6034 = vunpack.c.h.b16 %v5701
        %v6035 = vunpack.c.l.b16 %v5702
        %v6036 = vunpack.c.h.b16 %v5702
        %v6037 = vunpack.c.l.b16 %v5703
        %v6038 = vunpack.c.h.b16 %v5703
        %v6039 = vunpack.c.l.b16 %v5704
        %v6040 = vunpack.c.h.b16 %v5704
        %v6041 = vunpack.c.l.b16 %v5705
        %v6042 = vunpack.c.h.b16 %v5705
        %v6043 = vunpack.c.l.b16 %v5706
        %v6044 = vunpack.c.h.b16 %v5706
        %v6045 = vunpack.c.l.b16 %v5707
        %v6046 = vunpack.c.h.b16 %v5707
        %v6047 = vunpack.c.l.b16 %v5708
        %v6048 = vunpack.c.h.b16 %v5708
        %v6049 = vunpack.c.l.b16 %v5709
        %v6050 = vunpack.c.h.b16 %v5709
        %v6051 = vunpack.c.l.b16 %v5710
        %v6052 = vunpack.c.h.b16 %v5710
        %v6053 = vunpack.c.l.b16 %v5711
        %v6054 = vunpack.c.h.b16 %v5711
        %v6055 = vunpack.c.l.b16 %v5712
        %v6056 = vunpack.c.h.b16 %v5712
        %v6057 = vunpack.c.l.b16 %v5713
        %v6058 = vunpack.c.h.b16 %v5713
        %v6059 = vunpack.c.l.b16 %v5714
        %v6060 = vunpack.c.h.b16 %v5714
        %v6061 = vunpack.c.l.b16 %v5715
        %v6062 = vunpack.c.h.b16 %v5715
        %v6063 = vunpack.c.l.b16 %v5716
        %v6064 = vunpack.c.h.b16 %v5716
        %v6065 = vunpack.c.l.b16 %v5717
        %v6066 = vunpack.c.h.b16 %v5717
        %v6067 = vunpack.c.l.b16 %v5718
        %v6068 = vunpack.c.h.b16 %v5718
        %v6069 = vunpack.c.l.b16 %v5719
        %v6070 = vunpack.c.h.b16 %v5719
        %v6071 = vunpack.c.l.b16 %v5720
        %v6072 = vunpack.c.h.b16 %v5720
        %v6073 = vunpack.c.l.b16 %v5721
        %v6074 = vunpack.c.h.b16 %v5721
        %v6075 = vunpack.c.l.b16 %v5722
        %v6076 = vunpack.c.h.b16 %v5722
        %v6077 = vunpack.c.l.b16 %v5723
        %v6078 = vunpack.c.h.b16 %v5723
        %v6079 = vunpack.c.l.b16 %v5724
        %v6080 = vunpack.c.h.b16 %v5724
        %v6081 = vunpack.c.l.b16 %v5725
        %v6082 = vunpack.c.h.b16 %v5725
        %v6083 = vunpack.c.l.b16 %v5726
        %v6084 = vunpack.c.h.b16 %v5726
        %v6085 = vunpack.c.l.b16 %v5727
        %v6086 = vunpack.c.h.b16 %v5727
        %v6087 = vunpack.c.l.b16 %v5728
        %v6088 = vunpack.c.h.b16 %v5728
        %v6089 = vunpack.c.l.b16 %v5729
        %v6090 = vunpack.c.h.b16 %v5729
        %v6091 = vunpack.c.l.b16 %v5730
        %v6092 = vunpack.c.h.b16 %v5730
        %v6093 = vunpack.c.l.b16 %v5731
        %v6094 = vunpack.c.h.b16 %v5731
        %v6095 = vunpack.c.l.b16 %v5732
        %v6096 = vunpack.c.h.b16 %v5732
        %v6097 = vunpack.c.l.b16 %v5733
        %v6098 = vunpack.c.h.b16 %v5733
        %v6099 = vunpack.c.l.b16 %v5734
        %v6100 = vunpack.c.h.b16 %v5734
        %v6101 = vunpack.c.l.b16 %v5735
        %v6102 = vunpack.c.h.b16 %v5735
        %v6103 = vunpack.c.l.b16 %v5736
        %v6104 = vunpack.c.h.b16 %v5736
        %v6105 = vunpack.c.l.b16 %v5737
        %v6106 = vunpack.c.h.b16 %v5737
        %v6107 = vunpack.c.l.b16 %v5738
        %v6108 = vunpack.c.h.b16 %v5738
        %v6109 = vunpack.c.l.b16 %v5739
        %v6110 = vunpack.c.h.b16 %v5739
        %v6111 = vunpack.c.l.b16 %v5740
        %v6112 = vunpack.c.h.b16 %v5740
        %v6113 = vunpack.c.l.b16 %v5741
        %v6114 = vunpack.c.h.b16 %v5741
        %v6115 = vunpack.c.l.b16 %v5742
        %v6116 = vunpack.c.h.b16 %v5742
        %v6117 = vunpack.c.l.b16 %v5743
        %v6118 = vunpack.c.h.b16 %v5743
        %v6119 = vunpack.c.l.b16 %v5744
        %v6120 = vunpack.c.h.b16 %v5744
        %v6121 = vunpack.c.l.b16 %v5745
        %v6122 = vunpack.c.h.b16 %v5745
        %v6123 = vunpack.c.l.b16 %v5746
        %v6124 = vunpack.c.h.b16 %v5746
        %v6125 = vunpack.c.l.b16 %v5747
        %v6126 = vunpack.c.h.b16 %v5747
        %v6127 = vunpack.c.l.b16 %v5748
        %v6128 = vunpack.c.h.b16 %v5748
        %v6129 = vunpack.c.l.b16 %v5749
        %v6130 = vunpack.c.h.b16 %v5749
        %v6131 = vunpack.c.l.b16 %v5750
        %v6132 = vunpack.c.h.b16 %v5750
        %v6133 = vunpack.c.l.b16 %v5751
        %v6134 = vunpack.c.h.b16 %v5751
        %v6135 = vunpack.c.l.b16 %v5752
        %v6136 = vunpack.c.h.b16 %v5752
        %v6137 = vpack.c.b16 %v5885, %v5881
        %v6138 = vpack.c.b16 %v5886, %v5882
        %v6139 = vpack.c.b16 %v5887, %v5883
        %v6140 = vpack.c.b16 %v5888, %v5884
        %v6141 = vpack.c.b16 %v5893, %v5889
        %v6142 = vpack.c.b16 %v5894, %v5890
        %v6143 = vpack.c.b16 %v5895, %v5891
        %v6144 = vpack.c.b16 %v5896, %v5892
        %v6145 = vpack.c.b16 %v5901, %v5897
        %v6146 = vpack.c.b16 %v5902, %v5898
        %v6147 = vpack.c.b16 %v5903, %v5899
        %v6148 = vpack.c.b16 %v5904, %v5900
        %v6149 = vpack.c.b16 %v5909, %v5905
        %v6150 = vpack.c.b16 %v5910, %v5906
        %v6151 = vpack.c.b16 %v5911, %v5907
        %v6152 = vpack.c.b16 %v5912, %v5908
        %v6153 = vpack.c.b16 %v5917, %v5913
        %v6154 = vpack.c.b16 %v5918, %v5914
        %v6155 = vpack.c.b16 %v5919, %v5915
        %v6156 = vpack.c.b16 %v5920, %v5916
        %v6157 = vpack.c.b16 %v5925, %v5921
        %v6158 = vpack.c.b16 %v5926, %v5922
        %v6159 = vpack.c.b16 %v5927, %v5923
        %v6160 = vpack.c.b16 %v5928, %v5924
        %v6161 = vpack.c.b16 %v5933, %v5929
        %v6162 = vpack.c.b16 %v5934, %v5930
        %v6163 = vpack.c.b16 %v5935, %v5931
        %v6164 = vpack.c.b16 %v5936, %v5932
        %v6165 = vpack.c.b16 %v5941, %v5937
        %v6166 = vpack.c.b16 %v5942, %v5938
        %v6167 = vpack.c.b16 %v5943, %v5939
        %v6168 = vpack.c.b16 %v5944, %v5940
        %v6169 = vpack.c.b16 %v5949, %v5945
        %v6170 = vpack.c.b16 %v5950, %v5946
        %v6171 = vpack.c.b16 %v5951, %v5947
        %v6172 = vpack.c.b16 %v5952, %v5948
        %v6173 = vpack.c.b16 %v5957, %v5953
        %v6174 = vpack.c.b16 %v5958, %v5954
        %v6175 = vpack.c.b16 %v5959, %v5955
        %v6176 = vpack.c.b16 %v5960, %v5956
        %v6177 = vpack.c.b16 %v5965, %v5961
        %v6178 = vpack.c.b16 %v5966, %v5962
        %v6179 = vpack.c.b16 %v5967, %v5963
        %v6180 = vpack.c.b16 %v5968, %v5964
        %v6181 = vpack.c.b16 %v5973, %v5969
        %v6182 = vpack.c.b16 %v5974, %v5970
        %v6183 = vpack.c.b16 %v5975, %v5971
        %v6184 = vpack.c.b16 %v5976, %v5972
        %v6185 = vpack.c.b16 %v5981, %v5977
        %v6186 = vpack.c.b16 %v5982, %v5978
        %v6187 = vpack.c.b16 %v5983, %v5979
        %v6188 = vpack.c.b16 %v5984, %v5980
        %v6189 = vpack.c.b16 %v5989, %v5985
        %v6190 = vpack.c.b16 %v5990, %v5986
        %v6191 = vpack.c.b16 %v5991, %v5987
        %v6192 = vpack.c.b16 %v5992, %v5988
        %v6193 = vpack.c.b16 %v5997, %v5993
        %v6194 = vpack.c.b16 %v5998, %v5994
        %v6195 = vpack.c.b16 %v5999, %v5995
        %v6196 = vpack.c.b16 %v6000, %v5996
        %v6197 = vpack.c.b16 %v6005, %v6001
        %v6198 = vpack.c.b16 %v6006, %v6002
        %v6199 = vpack.c.b16 %v6007, %v6003
        %v6200 = vpack.c.b16 %v6008, %v6004
        %v6201 = vpack.c.b16 %v6013, %v6009
        %v6202 = vpack.c.b16 %v6014, %v6010
        %v6203 = vpack.c.b16 %v6015, %v6011
        %v6204 = vpack.c.b16 %v6016, %v6012
        %v6205 = vpack.c.b16 %v6021, %v6017
        %v6206 = vpack.c.b16 %v6022, %v6018
        %v6207 = vpack.c.b16 %v6023, %v6019
        %v6208 = vpack.c.b16 %v6024, %v6020
        %v6209 = vpack.c.b16 %v6029, %v6025
        %v6210 = vpack.c.b16 %v6030, %v6026
        %v6211 = vpack.c.b16 %v6031, %v6027
        %v6212 = vpack.c.b16 %v6032, %v6028
        %v6213 = vpack.c.b16 %v6037, %v6033
        %v6214 = vpack.c.b16 %v6038, %v6034
        %v6215 = vpack.c.b16 %v6039, %v6035
        %v6216 = vpack.c.b16 %v6040, %v6036
        %v6217 = vpack.c.b16 %v6045, %v6041
        %v6218 = vpack.c.b16 %v6046, %v6042
        %v6219 = vpack.c.b16 %v6047, %v6043
        %v6220 = vpack.c.b16 %v6048, %v6044
        %v6221 = vpack.c.b16 %v6053, %v6049
        %v6222 = vpack.c.b16 %v6054, %v6050
        %v6223 = vpack.c.b16 %v6055, %v6051
        %v6224 = vpack.c.b16 %v6056, %v6052
        %v6225 = vpack.c.b16 %v6061, %v6057
        %v6226 = vpack.c.b16 %v6062, %v6058
        %v6227 = vpack.c.b16 %v6063, %v6059
        %v6228 = vpack.c.b16 %v6064, %v6060
        %v6229 = vpack.c.b16 %v6069, %v6065
        %v6230 = vpack.c.b16 %v6070, %v6066
        %v6231 = vpack.c.b16 %v6071, %v6067
        %v6232 = vpack.c.b16 %v6072, %v6068
        %v6233 = vpack.c.b16 %v6077, %v6073
        %v6234 = vpack.c.b16 %v6078, %v6074
        %v6235 = vpack.c.b16 %v6079, %v6075
        %v6236 = vpack.c.b16 %v6080, %v6076
        %v6237 = vpack.c.b16 %v6085, %v6081
        %v6238 = vpack.c.b16 %v6086, %v6082
        %v6239 = vpack.c.b16 %v6087, %v6083
        %v6240 = vpack.c.b16 %v6088, %v6084
        %v6241 = vpack.c.b16 %v6093, %v6089
        %v6242 = vpack.c.b16 %v6094, %v6090
        %v6243 = vpack.c.b16 %v6095, %v6091
        %v6244 = vpack.c.b16 %v6096, %v6092
        %v6245 = vpack.c.b16 %v6101, %v6097
        %v6246 = vpack.c.b16 %v6102, %v6098
        %v6247 = vpack.c.b16 %v6103, %v6099
        %v6248 = vpack.c.b16 %v6104, %v6100
        %v6249 = vpack.c.b16 %v6109, %v6105
        %v6250 = vpack.c.b16 %v6110, %v6106
        %v6251 = vpack.c.b16 %v6111, %v6107
        %v6252 = vpack.c.b16 %v6112, %v6108
        %v6253 = vpack.c.b16 %v6117, %v6113
        %v6254 = vpack.c.b16 %v6118, %v6114
        %v6255 = vpack.c.b16 %v6119, %v6115
        %v6256 = vpack.c.b16 %v6120, %v6116
        %v6257 = vpack.c.b16 %v6125, %v6121
        %v6258 = vpack.c.b16 %v6126, %v6122
        %v6259 = vpack.c.b16 %v6127, %v6123
        %v6260 = vpack.c.b16 %v6128, %v6124
        %v6261 = vpack.c.b16 %v6133, %v6129
        %v6262 = vpack.c.b16 %v6134, %v6130
        %v6263 = vpack.c.b16 %v6135, %v6131
        %v6264 = vpack.c.b16 %v6136, %v6132
        %6393 = vmatprep.subr.bf16.mxu0 %v6138
        %6394 = vmatpush1.bf16.msra.mxu0 %v6137
        %6395 = vmatprep.subr.bf16.mxu0 %v6142
        %6396 = vmatpush1.bf16.msra.mxu0 %v6141
        %6397 = vmatprep.subr.bf16.mxu0 %v6146
        %6398 = vmatpush1.bf16.msra.mxu0 %v6145
        %6399 = vmatprep.subr.bf16.mxu0 %v6150
        %6400 = vmatpush1.bf16.msra.mxu0 %v6149
        %6401 = vmatprep.subr.bf16.mxu0 %v6154
        %6402 = vmatpush1.bf16.msra.mxu0 %v6153
        %6403 = vmatprep.subr.bf16.mxu0 %v6158
        %6404 = vmatpush1.bf16.msra.mxu0 %v6157
        %6405 = vmatprep.subr.bf16.mxu0 %v6162
        %6406 = vmatpush1.bf16.msra.mxu0 %v6161
        %6407 = vmatprep.subr.bf16.mxu0 %v6166
        %6408 = vmatpush1.bf16.msra.mxu0 %v6165
        %6409 = vmatprep.subr.bf16.mxu0 %v6170
        %6410 = vmatpush1.bf16.msra.mxu0 %v6169
        %6411 = vmatprep.subr.bf16.mxu0 %v6174
        %6412 = vmatpush1.bf16.msra.mxu0 %v6173
        %6413 = vmatprep.subr.bf16.mxu0 %v6178
        %6414 = vmatpush1.bf16.msra.mxu0 %v6177
        %6415 = vmatprep.subr.bf16.mxu0 %v6182
        %6416 = vmatpush1.bf16.msra.mxu0 %v6181
        %6417 = vmatprep.subr.bf16.mxu0 %v6186
        %6418 = vmatpush1.bf16.msra.mxu0 %v6185
        %6419 = vmatprep.subr.bf16.mxu0 %v6190
        %6420 = vmatpush1.bf16.msra.mxu0 %v6189
        %6421 = vmatprep.subr.bf16.mxu0 %v6194
        %6422 = vmatpush1.bf16.msra.mxu0 %v6193
        %6423 = vmatprep.subr.bf16.mxu0 %v6198
        %6424 = vmatpush1.bf16.msra.mxu0 %v6197
        %6425 = vmatprep.mubr.bf16.mxu0 %v5434
        %6426 = vmatmul.mubr.bf16.gmra.mrb[0].mxu0 %v5433
        %v6427 = vpop.f32.mrb[0].mxu0
        %v6428 = vadd.f32 0.0, %v6427
        %v6429 = vpop.f32.mrb[0].mxu0
        %v6430 = vadd.f32 0.0, %v6429
        %v6431 = vpop.f32.mrb[0].mxu0
        %v6432 = vadd.f32 0.0, %v6431
        %v6433 = vpop.f32.mrb[0].mxu0
        %v6434 = vadd.f32 0.0, %v6433
        %6435 = vmatprep.mubr.bf16.mxu0 %v5438
        %6436 = vmatmul.mubr.bf16.gmra.mrb[0].mxu0 %v5437
        %v6437 = vpop.f32.mrb[0].mxu0
        %v6438 = vadd.f32 0.0, %v6437
        %v6439 = vpop.f32.mrb[0].mxu0
        %v6440 = vadd.f32 0.0, %v6439
        %v6441 = vpop.f32.mrb[0].mxu0
        %v6442 = vadd.f32 0.0, %v6441
        %v6443 = vpop.f32.mrb[0].mxu0
        %v6444 = vadd.f32 0.0, %v6443
        %6445 = vmatprep.mubr.bf16.mxu0 %v5442
        %6446 = vmatmul.mubr.bf16.gmra.mrb[0].mxu0 %v5441
        %v6447 = vpop.f32.mrb[0].mxu0
        %v6448 = vadd.f32 0.0, %v6447
        %v6449 = vpop.f32.mrb[0].mxu0
        %v6450 = vadd.f32 0.0, %v6449
        %v6451 = vpop.f32.mrb[0].mxu0
        %v6452 = vadd.f32 0.0, %v6451
        %v6453 = vpop.f32.mrb[0].mxu0
        %v6454 = vadd.f32 0.0, %v6453
        %6455 = vmatprep.mubr.bf16.mxu0 %v5446
        %6456 = vmatmul.mubr.bf16.gmra.mrb[0].mxu0 %v5445
        %v6457 = vpop.f32.mrb[0].mxu0
        %v6458 = vadd.f32 0.0, %v6457
        %v6459 = vpop.f32.mrb[0].mxu0
        %v6460 = vadd.f32 0.0, %v6459
        %v6461 = vpop.f32.mrb[0].mxu0
        %v6462 = vadd.f32 0.0, %v6461
        %v6463 = vpop.f32.mrb[0].mxu0
        %v6464 = vadd.f32 0.0, %v6463
        %6465 = vmatprep.mubr.bf16.mxu0 %v5450
        %6466 = vmatmul.mubr.bf16.gmra.mrb[0].mxu0 %v5449
        %v6467 = vpop.f32.mrb[0].mxu0
        %v6468 = vadd.f32 0.0, %v6467
        %v6469 = vpop.f32.mrb[0].mxu0
        %v6470 = vadd.f32 0.0, %v6469
        %v6471 = vpop.f32.mrb[0].mxu0
        %v6472 = vadd.f32 0.0, %v6471
        %v6473 = vpop.f32.mrb[0].mxu0
        %v6474 = vadd.f32 0.0, %v6473
        %6475 = vmatprep.mubr.bf16.mxu0 %v5454
        %6476 = vmatmul.mubr.bf16.gmra.mrb[0].mxu0 %v5453
        %v6477 = vpop.f32.mrb[0].mxu0
        %v6478 = vadd.f32 0.0, %v6477
        %v6479 = vpop.f32.mrb[0].mxu0
        %v6480 = vadd.f32 0.0, %v6479
        %v6481 = vpop.f32.mrb[0].mxu0
        %v6482 = vadd.f32 0.0, %v6481
        %v6483 = vpop.f32.mrb[0].mxu0
        %v6484 = vadd.f32 0.0, %v6483
        %6485 = vmatprep.mubr.bf16.mxu0 %v5458
        %6486 = vmatmul.mubr.bf16.gmra.mrb[0].mxu0 %v5457
        %v6487 = vpop.f32.mrb[0].mxu0
        %v6488 = vadd.f32 0.0, %v6487
        %v6489 = vpop.f32.mrb[0].mxu0
        %v6490 = vadd.f32 0.0, %v6489
        %v6491 = vpop.f32.mrb[0].mxu0
        %v6492 = vadd.f32 0.0, %v6491
        %v6493 = vpop.f32.mrb[0].mxu0
        %v6494 = vadd.f32 0.0, %v6493
        %6495 = vmatprep.mubr.bf16.mxu0 %v5462
        %6496 = vmatmul.mubr.bf16.gmra.mrb[0].mxu0 %v5461
        %v6497 = vpop.f32.mrb[0].mxu0
        %v6498 = vadd.f32 0.0, %v6497
        %v6499 = vpop.f32.mrb[0].mxu0
        %v6500 = vadd.f32 0.0, %v6499
        %v6501 = vpop.f32.mrb[0].mxu0
        %v6502 = vadd.f32 0.0, %v6501
        %v6503 = vpop.f32.mrb[0].mxu0
        %v6504 = vadd.f32 0.0, %v6503
        %6505 = vmatprep.mubr.bf16.mxu0 %v5466
        %6506 = vmatmul.mubr.bf16.gmra.mrb[0].mxu0 %v5465
        %v6507 = vpop.f32.mrb[0].mxu0
        %v6508 = vadd.f32 0.0, %v6507
        %v6509 = vpop.f32.mrb[0].mxu0
        %v6510 = vadd.f32 0.0, %v6509
        %v6511 = vpop.f32.mrb[0].mxu0
        %v6512 = vadd.f32 0.0, %v6511
        %v6513 = vpop.f32.mrb[0].mxu0
        %v6514 = vadd.f32 0.0, %v6513
        %6515 = vmatprep.mubr.bf16.mxu0 %v5470
        %6516 = vmatmul.mubr.bf16.gmra.mrb[0].mxu0 %v5469
        %v6517 = vpop.f32.mrb[0].mxu0
        %v6518 = vadd.f32 0.0, %v6517
        %v6519 = vpop.f32.mrb[0].mxu0
        %v6520 = vadd.f32 0.0, %v6519
        %v6521 = vpop.f32.mrb[0].mxu0
        %v6522 = vadd.f32 0.0, %v6521
        %v6523 = vpop.f32.mrb[0].mxu0
        %v6524 = vadd.f32 0.0, %v6523
        %6525 = vmatprep.mubr.bf16.mxu0 %v5474
        %6526 = vmatmul.mubr.bf16.gmra.mrb[0].mxu0 %v5473
        %v6527 = vpop.f32.mrb[0].mxu0
        %v6528 = vadd.f32 0.0, %v6527
        %v6529 = vpop.f32.mrb[0].mxu0
        %v6530 = vadd.f32 0.0, %v6529
        %v6531 = vpop.f32.mrb[0].mxu0
        %v6532 = vadd.f32 0.0, %v6531
        %v6533 = vpop.f32.mrb[0].mxu0
        %v6534 = vadd.f32 0.0, %v6533
        %6535 = vmatprep.mubr.bf16.mxu0 %v5478
        %6536 = vmatmul.mubr.bf16.gmra.mrb[0].mxu0 %v5477
        %v6537 = vpop.f32.mrb[0].mxu0
        %v6538 = vadd.f32 0.0, %v6537
        %v6539 = vpop.f32.mrb[0].mxu0
        %v6540 = vadd.f32 0.0, %v6539
        %v6541 = vpop.f32.mrb[0].mxu0
        %v6542 = vadd.f32 0.0, %v6541
        %v6543 = vpop.f32.mrb[0].mxu0
        %v6544 = vadd.f32 0.0, %v6543
        %6545 = vmatprep.mubr.bf16.mxu0 %v5482
        %6546 = vmatmul.mubr.bf16.gmra.mrb[0].mxu0 %v5481
        %v6547 = vpop.f32.mrb[0].mxu0
        %v6548 = vadd.f32 0.0, %v6547
        %v6549 = vpop.f32.mrb[0].mxu0
        %v6550 = vadd.f32 0.0, %v6549
        %v6551 = vpop.f32.mrb[0].mxu0
        %v6552 = vadd.f32 0.0, %v6551
        %v6553 = vpop.f32.mrb[0].mxu0
        %v6554 = vadd.f32 0.0, %v6553
        %6555 = vmatprep.mubr.bf16.mxu0 %v5486
        %6556 = vmatmul.mubr.bf16.gmra.mrb[0].mxu0 %v5485
        %v6557 = vpop.f32.mrb[0].mxu0
        %v6558 = vadd.f32 0.0, %v6557
        %v6559 = vpop.f32.mrb[0].mxu0
        %v6560 = vadd.f32 0.0, %v6559
        %v6561 = vpop.f32.mrb[0].mxu0
        %v6562 = vadd.f32 0.0, %v6561
        %v6563 = vpop.f32.mrb[0].mxu0
        %v6564 = vadd.f32 0.0, %v6563
        %6565 = vmatprep.mubr.bf16.mxu0 %v5490
        %6566 = vmatmul.mubr.bf16.gmra.mrb[0].mxu0 %v5489
        %v6567 = vpop.f32.mrb[0].mxu0
        %v6568 = vadd.f32 0.0, %v6567
        %v6569 = vpop.f32.mrb[0].mxu0
        %v6570 = vadd.f32 0.0, %v6569
        %v6571 = vpop.f32.mrb[0].mxu0
        %v6572 = vadd.f32 0.0, %v6571
        %v6573 = vpop.f32.mrb[0].mxu0
        %v6574 = vadd.f32 0.0, %v6573
        %6575 = vmatprep.mubr.bf16.mxu0 %v5494
        %6576 = vmatmul.mubr.bf16.gmra.mrb[0].mxu0 %v5493
        %v6577 = vpop.f32.mrb[0].mxu0
        %v6578 = vadd.f32 0.0, %v6577
        %v6579 = vpop.f32.mrb[0].mxu0
        %v6580 = vadd.f32 0.0, %v6579
        %v6581 = vpop.f32.mrb[0].mxu0
        %v6582 = vadd.f32 0.0, %v6581
        %v6583 = vpop.f32.mrb[0].mxu0
        %v6584 = vadd.f32 0.0, %v6583
        %6585 = vdwg.mxu0
        %6586 = vmatprep.subr.bf16.mxu0 %v6202
        %6587 = vmatpush1.bf16.msra.mxu0 %v6201
        %6588 = vmatprep.subr.bf16.mxu0 %v6206
        %6589 = vmatpush1.bf16.msra.mxu0 %v6205
        %6590 = vmatprep.subr.bf16.mxu0 %v6210
        %6591 = vmatpush1.bf16.msra.mxu0 %v6209
        %6592 = vmatprep.subr.bf16.mxu0 %v6214
        %6593 = vmatpush1.bf16.msra.mxu0 %v6213
        %6594 = vmatprep.subr.bf16.mxu0 %v6218
        %6595 = vmatpush1.bf16.msra.mxu0 %v6217
        %6596 = vmatprep.subr.bf16.mxu0 %v6222
        %6597 = vmatpush1.bf16.msra.mxu0 %v6221
        %6598 = vmatprep.subr.bf16.mxu0 %v6226
        %6599 = vmatpush1.bf16.msra.mxu0 %v6225
        %6600 = vmatprep.subr.bf16.mxu0 %v6230
        %6601 = vmatpush1.bf16.msra.mxu0 %v6229
        %6602 = vmatprep.subr.bf16.mxu0 %v6234
        %6603 = vmatpush1.bf16.msra.mxu0 %v6233
        %6604 = vmatprep.subr.bf16.mxu0 %v6238
        %6605 = vmatpush1.bf16.msra.mxu0 %v6237
        %6606 = vmatprep.subr.bf16.mxu0 %v6242
        %6607 = vmatpush1.bf16.msra.mxu0 %v6241
        %6608 = vmatprep.subr.bf16.mxu0 %v6246
        %6609 = vmatpush1.bf16.msra.mxu0 %v6245
        %6610 = vmatprep.subr.bf16.mxu0 %v6250
        %6611 = vmatpush1.bf16.msra.mxu0 %v6249
        %6612 = vmatprep.subr.bf16.mxu0 %v6254
        %6613 = vmatpush1.bf16.msra.mxu0 %v6253
        %6614 = vmatprep.subr.bf16.mxu0 %v6258
        %6615 = vmatpush1.bf16.msra.mxu0 %v6257
        %6616 = vmatprep.subr.bf16.mxu0 %v6262
        %6617 = vmatpush1.bf16.msra.mxu0 %v6261
        %6618 = vmatprep.mubr.bf16.mxu0 %v5436
        %6619 = vmatmul.mubr.bf16.gmra.mrb[0].mxu0 %v5435
        %v6620 = vpop.f32.mrb[0].mxu0
        %v6621 = vadd.f32 %v6428, %v6620
        %v6622 = vpop.f32.mrb[0].mxu0
        %v6623 = vadd.f32 %v6430, %v6622
        %v6624 = vpop.f32.mrb[0].mxu0
        %v6625 = vadd.f32 %v6432, %v6624
        %v6626 = vpop.f32.mrb[0].mxu0
        %v6627 = vadd.f32 %v6434, %v6626
        %6628 = vmatprep.mubr.bf16.mxu0 %v5440
        %6629 = vmatmul.mubr.bf16.gmra.mrb[0].mxu0 %v5439
        %v6630 = vpop.f32.mrb[0].mxu0
        %v6631 = vadd.f32 %v6438, %v6630
        %v6632 = vpop.f32.mrb[0].mxu0
        %v6633 = vadd.f32 %v6440, %v6632
        %v6634 = vpop.f32.mrb[0].mxu0
        %v6635 = vadd.f32 %v6442, %v6634
        %v6636 = vpop.f32.mrb[0].mxu0
        %v6637 = vadd.f32 %v6444, %v6636
        %6638 = vmatprep.mubr.bf16.mxu0 %v5444
        %6639 = vmatmul.mubr.bf16.gmra.mrb[0].mxu0 %v5443
        %v6640 = vpop.f32.mrb[0].mxu0
        %v6641 = vadd.f32 %v6448, %v6640
        %v6642 = vpop.f32.mrb[0].mxu0
        %v6643 = vadd.f32 %v6450, %v6642
        %v6644 = vpop.f32.mrb[0].mxu0
        %v6645 = vadd.f32 %v6452, %v6644
        %v6646 = vpop.f32.mrb[0].mxu0
        %v6647 = vadd.f32 %v6454, %v6646
        %6648 = vmatprep.mubr.bf16.mxu0 %v5448
        %6649 = vmatmul.mubr.bf16.gmra.mrb[0].mxu0 %v5447
        %v6650 = vpop.f32.mrb[0].mxu0
        %v6651 = vadd.f32 %v6458, %v6650
        %v6652 = vpop.f32.mrb[0].mxu0
        %v6653 = vadd.f32 %v6460, %v6652
        %v6654 = vpop.f32.mrb[0].mxu0
        %v6655 = vadd.f32 %v6462, %v6654
        %v6656 = vpop.f32.mrb[0].mxu0
        %v6657 = vadd.f32 %v6464, %v6656
        %6658 = vmatprep.mubr.bf16.mxu0 %v5452
        %6659 = vmatmul.mubr.bf16.gmra.mrb[0].mxu0 %v5451
        %v6660 = vpop.f32.mrb[0].mxu0
        %v6661 = vadd.f32 %v6468, %v6660
        %v6662 = vpop.f32.mrb[0].mxu0
        %v6663 = vadd.f32 %v6470, %v6662
        %v6664 = vpop.f32.mrb[0].mxu0
        %v6665 = vadd.f32 %v6472, %v6664
        %v6666 = vpop.f32.mrb[0].mxu0
        %v6667 = vadd.f32 %v6474, %v6666
        %6668 = vmatprep.mubr.bf16.mxu0 %v5456
        %6669 = vmatmul.mubr.bf16.gmra.mrb[0].mxu0 %v5455
        %v6670 = vpop.f32.mrb[0].mxu0
        %v6671 = vadd.f32 %v6478, %v6670
        %v6672 = vpop.f32.mrb[0].mxu0
        %v6673 = vadd.f32 %v6480, %v6672
        %v6674 = vpop.f32.mrb[0].mxu0
        %v6675 = vadd.f32 %v6482, %v6674
        %v6676 = vpop.f32.mrb[0].mxu0
        %v6677 = vadd.f32 %v6484, %v6676
        %6678 = vmatprep.mubr.bf16.mxu0 %v5460
        %6679 = vmatmul.mubr.bf16.gmra.mrb[0].mxu0 %v5459
        %v6680 = vpop.f32.mrb[0].mxu0
        %v6681 = vadd.f32 %v6488, %v6680
        %v6682 = vpop.f32.mrb[0].mxu0
        %v6683 = vadd.f32 %v6490, %v6682
        %v6684 = vpop.f32.mrb[0].mxu0
        %v6685 = vadd.f32 %v6492, %v6684
        %v6686 = vpop.f32.mrb[0].mxu0
        %v6687 = vadd.f32 %v6494, %v6686
        %6688 = vmatprep.mubr.bf16.mxu0 %v5464
        %6689 = vmatmul.mubr.bf16.gmra.mrb[0].mxu0 %v5463
        %v6690 = vpop.f32.mrb[0].mxu0
        %v6691 = vadd.f32 %v6498, %v6690
        %v6692 = vpop.f32.mrb[0].mxu0
        %v6693 = vadd.f32 %v6500, %v6692
        %v6694 = vpop.f32.mrb[0].mxu0
        %v6695 = vadd.f32 %v6502, %v6694
        %v6696 = vpop.f32.mrb[0].mxu0
        %v6697 = vadd.f32 %v6504, %v6696
        %6698 = vmatprep.mubr.bf16.mxu0 %v5468
        %6699 = vmatmul.mubr.bf16.gmra.mrb[0].mxu0 %v5467
        %v6700 = vpop.f32.mrb[0].mxu0
        %v6701 = vadd.f32 %v6508, %v6700
        %v6702 = vpop.f32.mrb[0].mxu0
        %v6703 = vadd.f32 %v6510, %v6702
        %v6704 = vpop.f32.mrb[0].mxu0
        %v6705 = vadd.f32 %v6512, %v6704
        %v6706 = vpop.f32.mrb[0].mxu0
        %v6707 = vadd.f32 %v6514, %v6706
        %6708 = vmatprep.mubr.bf16.mxu0 %v5472
        %6709 = vmatmul.mubr.bf16.gmra.mrb[0].mxu0 %v5471
        %v6710 = vpop.f32.mrb[0].mxu0
        %v6711 = vadd.f32 %v6518, %v6710
        %v6712 = vpop.f32.mrb[0].mxu0
        %v6713 = vadd.f32 %v6520, %v6712
        %v6714 = vpop.f32.mrb[0].mxu0
        %v6715 = vadd.f32 %v6522, %v6714
        %v6716 = vpop.f32.mrb[0].mxu0
        %v6717 = vadd.f32 %v6524, %v6716
        %6718 = vmatprep.mubr.bf16.mxu0 %v5476
        %6719 = vmatmul.mubr.bf16.gmra.mrb[0].mxu0 %v5475
        %v6720 = vpop.f32.mrb[0].mxu0
        %v6721 = vadd.f32 %v6528, %v6720
        %v6722 = vpop.f32.mrb[0].mxu0
        %v6723 = vadd.f32 %v6530, %v6722
        %v6724 = vpop.f32.mrb[0].mxu0
        %v6725 = vadd.f32 %v6532, %v6724
        %v6726 = vpop.f32.mrb[0].mxu0
        %v6727 = vadd.f32 %v6534, %v6726
        %6728 = vmatprep.mubr.bf16.mxu0 %v5480
        %6729 = vmatmul.mubr.bf16.gmra.mrb[0].mxu0 %v5479
        %v6730 = vpop.f32.mrb[0].mxu0
        %v6731 = vadd.f32 %v6538, %v6730
        %v6732 = vpop.f32.mrb[0].mxu0
        %v6733 = vadd.f32 %v6540, %v6732
        %v6734 = vpop.f32.mrb[0].mxu0
        %v6735 = vadd.f32 %v6542, %v6734
        %v6736 = vpop.f32.mrb[0].mxu0
        %v6737 = vadd.f32 %v6544, %v6736
        %6738 = vmatprep.mubr.bf16.mxu0 %v5484
        %6739 = vmatmul.mubr.bf16.gmra.mrb[0].mxu0 %v5483
        %v6740 = vpop.f32.mrb[0].mxu0
        %v6741 = vadd.f32 %v6548, %v6740
        %v6742 = vpop.f32.mrb[0].mxu0
        %v6743 = vadd.f32 %v6550, %v6742
        %v6744 = vpop.f32.mrb[0].mxu0
        %v6745 = vadd.f32 %v6552, %v6744
        %v6746 = vpop.f32.mrb[0].mxu0
        %v6747 = vadd.f32 %v6554, %v6746
        %6748 = vmatprep.mubr.bf16.mxu0 %v5488
        %6749 = vmatmul.mubr.bf16.gmra.mrb[0].mxu0 %v5487
        %v6750 = vpop.f32.mrb[0].mxu0
        %v6751 = vadd.f32 %v6558, %v6750
        %v6752 = vpop.f32.mrb[0].mxu0
        %v6753 = vadd.f32 %v6560, %v6752
        %v6754 = vpop.f32.mrb[0].mxu0
        %v6755 = vadd.f32 %v6562, %v6754
        %v6756 = vpop.f32.mrb[0].mxu0
        %v6757 = vadd.f32 %v6564, %v6756
        %6758 = vmatprep.mubr.bf16.mxu0 %v5492
        %6759 = vmatmul.mubr.bf16.gmra.mrb[0].mxu0 %v5491
        %v6760 = vpop.f32.mrb[0].mxu0
        %v6761 = vadd.f32 %v6568, %v6760
        %v6762 = vpop.f32.mrb[0].mxu0
        %v6763 = vadd.f32 %v6570, %v6762
        %v6764 = vpop.f32.mrb[0].mxu0
        %v6765 = vadd.f32 %v6572, %v6764
        %v6766 = vpop.f32.mrb[0].mxu0
        %v6767 = vadd.f32 %v6574, %v6766
        %6768 = vmatprep.mubr.bf16.mxu0 %v5496
        %6769 = vmatmul.mubr.bf16.gmra.mrb[0].mxu0 %v5495
        %v6770 = vpop.f32.mrb[0].mxu0
        %v6771 = vadd.f32 %v6578, %v6770
        %v6772 = vpop.f32.mrb[0].mxu0
        %v6773 = vadd.f32 %v6580, %v6772
        %v6774 = vpop.f32.mrb[0].mxu0
        %v6775 = vadd.f32 %v6582, %v6774
        %v6776 = vpop.f32.mrb[0].mxu0
        %v6777 = vadd.f32 %v6584, %v6776
        %6778 = vdwg.mxu0
        %6779 = vmatprep.subr.bf16.mxu0 %v6140
        %6780 = vmatpush1.bf16.msra.mxu0 %v6139
        %6781 = vmatprep.subr.bf16.mxu0 %v6144
        %6782 = vmatpush1.bf16.msra.mxu0 %v6143
        %6783 = vmatprep.subr.bf16.mxu0 %v6148
        %6784 = vmatpush1.bf16.msra.mxu0 %v6147
        %6785 = vmatprep.subr.bf16.mxu0 %v6152
        %6786 = vmatpush1.bf16.msra.mxu0 %v6151
        %6787 = vmatprep.subr.bf16.mxu0 %v6156
        %6788 = vmatpush1.bf16.msra.mxu0 %v6155
        %6789 = vmatprep.subr.bf16.mxu0 %v6160
        %6790 = vmatpush1.bf16.msra.mxu0 %v6159
        %6791 = vmatprep.subr.bf16.mxu0 %v6164
        %6792 = vmatpush1.bf16.msra.mxu0 %v6163
        %6793 = vmatprep.subr.bf16.mxu0 %v6168
        %6794 = vmatpush1.bf16.msra.mxu0 %v6167
        %6795 = vmatprep.subr.bf16.mxu0 %v6172
        %6796 = vmatpush1.bf16.msra.mxu0 %v6171
        %6797 = vmatprep.subr.bf16.mxu0 %v6176
        %6798 = vmatpush1.bf16.msra.mxu0 %v6175
        %6799 = vmatprep.subr.bf16.mxu0 %v6180
        %6800 = vmatpush1.bf16.msra.mxu0 %v6179
        %6801 = vmatprep.subr.bf16.mxu0 %v6184
        %6802 = vmatpush1.bf16.msra.mxu0 %v6183
        %6803 = vmatprep.subr.bf16.mxu0 %v6188
        %6804 = vmatpush1.bf16.msra.mxu0 %v6187
        %6805 = vmatprep.subr.bf16.mxu0 %v6192
        %6806 = vmatpush1.bf16.msra.mxu0 %v6191
        %6807 = vmatprep.subr.bf16.mxu0 %v6196
        %6808 = vmatpush1.bf16.msra.mxu0 %v6195
        %6809 = vmatprep.subr.bf16.mxu0 %v6200
        %6810 = vmatpush1.bf16.msra.mxu0 %v6199
        %6811 = vmatprep.mubr.bf16.mxu0 %v5434
        %6812 = vmatmul.mubr.bf16.gmra.mrb[0].mxu0 %v5433
        %v6813 = vpop.f32.mrb[0].mxu0
        %v6814 = vadd.f32 0.0, %v6813
        %v6815 = vpop.f32.mrb[0].mxu0
        %v6816 = vadd.f32 0.0, %v6815
        %v6817 = vpop.f32.mrb[0].mxu0
        %v6818 = vadd.f32 0.0, %v6817
        %v6819 = vpop.f32.mrb[0].mxu0
        %v6820 = vadd.f32 0.0, %v6819
        %6821 = vmatprep.mubr.bf16.mxu0 %v5438
        %6822 = vmatmul.mubr.bf16.gmra.mrb[0].mxu0 %v5437
        %v6823 = vpop.f32.mrb[0].mxu0
        %v6824 = vadd.f32 0.0, %v6823
        %v6825 = vpop.f32.mrb[0].mxu0
        %v6826 = vadd.f32 0.0, %v6825
        %v6827 = vpop.f32.mrb[0].mxu0
        %v6828 = vadd.f32 0.0, %v6827
        %v6829 = vpop.f32.mrb[0].mxu0
        %v6830 = vadd.f32 0.0, %v6829
        %6831 = vmatprep.mubr.bf16.mxu0 %v5442
        %6832 = vmatmul.mubr.bf16.gmra.mrb[0].mxu0 %v5441
        %v6833 = vpop.f32.mrb[0].mxu0
        %v6834 = vadd.f32 0.0, %v6833
        %v6835 = vpop.f32.mrb[0].mxu0
        %v6836 = vadd.f32 0.0, %v6835
        %v6837 = vpop.f32.mrb[0].mxu0
        %v6838 = vadd.f32 0.0, %v6837
        %v6839 = vpop.f32.mrb[0].mxu0
        %v6840 = vadd.f32 0.0, %v6839
        %6841 = vmatprep.mubr.bf16.mxu0 %v5446
        %6842 = vmatmul.mubr.bf16.gmra.mrb[0].mxu0 %v5445
        %v6843 = vpop.f32.mrb[0].mxu0
        %v6844 = vadd.f32 0.0, %v6843
        %v6845 = vpop.f32.mrb[0].mxu0
        %v6846 = vadd.f32 0.0, %v6845
        %v6847 = vpop.f32.mrb[0].mxu0
        %v6848 = vadd.f32 0.0, %v6847
        %v6849 = vpop.f32.mrb[0].mxu0
        %v6850 = vadd.f32 0.0, %v6849
        %6851 = vmatprep.mubr.bf16.mxu0 %v5450
        %6852 = vmatmul.mubr.bf16.gmra.mrb[0].mxu0 %v5449
        %v6853 = vpop.f32.mrb[0].mxu0
        %v6854 = vadd.f32 0.0, %v6853
        %v6855 = vpop.f32.mrb[0].mxu0
        %v6856 = vadd.f32 0.0, %v6855
        %v6857 = vpop.f32.mrb[0].mxu0
        %v6858 = vadd.f32 0.0, %v6857
        %v6859 = vpop.f32.mrb[0].mxu0
        %v6860 = vadd.f32 0.0, %v6859
        %6861 = vmatprep.mubr.bf16.mxu0 %v5454
        %6862 = vmatmul.mubr.bf16.gmra.mrb[0].mxu0 %v5453
        %v6863 = vpop.f32.mrb[0].mxu0
        %v6864 = vadd.f32 0.0, %v6863
        %v6865 = vpop.f32.mrb[0].mxu0
        %v6866 = vadd.f32 0.0, %v6865
        %v6867 = vpop.f32.mrb[0].mxu0
        %v6868 = vadd.f32 0.0, %v6867
        %v6869 = vpop.f32.mrb[0].mxu0
        %v6870 = vadd.f32 0.0, %v6869
        %6871 = vmatprep.mubr.bf16.mxu0 %v5458
        %6872 = vmatmul.mubr.bf16.gmra.mrb[0].mxu0 %v5457
        %v6873 = vpop.f32.mrb[0].mxu0
        %v6874 = vadd.f32 0.0, %v6873
        %v6875 = vpop.f32.mrb[0].mxu0
        %v6876 = vadd.f32 0.0, %v6875
        %v6877 = vpop.f32.mrb[0].mxu0
        %v6878 = vadd.f32 0.0, %v6877
        %v6879 = vpop.f32.mrb[0].mxu0
        %v6880 = vadd.f32 0.0, %v6879
        %6881 = vmatprep.mubr.bf16.mxu0 %v5462
        %6882 = vmatmul.mubr.bf16.gmra.mrb[0].mxu0 %v5461
        %v6883 = vpop.f32.mrb[0].mxu0
        %v6884 = vadd.f32 0.0, %v6883
        %v6885 = vpop.f32.mrb[0].mxu0
        %v6886 = vadd.f32 0.0, %v6885
        %v6887 = vpop.f32.mrb[0].mxu0
        %v6888 = vadd.f32 0.0, %v6887
        %v6889 = vpop.f32.mrb[0].mxu0
        %v6890 = vadd.f32 0.0, %v6889
        %6891 = vmatprep.mubr.bf16.mxu0 %v5466
        %6892 = vmatmul.mubr.bf16.gmra.mrb[0].mxu0 %v5465
        %v6893 = vpop.f32.mrb[0].mxu0
        %v6894 = vadd.f32 0.0, %v6893
        %v6895 = vpop.f32.mrb[0].mxu0
        %v6896 = vadd.f32 0.0, %v6895
        %v6897 = vpop.f32.mrb[0].mxu0
        %v6898 = vadd.f32 0.0, %v6897
        %v6899 = vpop.f32.mrb[0].mxu0
        %v6900 = vadd.f32 0.0, %v6899
        %6901 = vmatprep.mubr.bf16.mxu0 %v5470
        %6902 = vmatmul.mubr.bf16.gmra.mrb[0].mxu0 %v5469
        %v6903 = vpop.f32.mrb[0].mxu0
        %v6904 = vadd.f32 0.0, %v6903
        %v6905 = vpop.f32.mrb[0].mxu0
        %v6906 = vadd.f32 0.0, %v6905
        %v6907 = vpop.f32.mrb[0].mxu0
        %v6908 = vadd.f32 0.0, %v6907
        %v6909 = vpop.f32.mrb[0].mxu0
        %v6910 = vadd.f32 0.0, %v6909
        %6911 = vmatprep.mubr.bf16.mxu0 %v5474
        %6912 = vmatmul.mubr.bf16.gmra.mrb[0].mxu0 %v5473
        %v6913 = vpop.f32.mrb[0].mxu0
        %v6914 = vadd.f32 0.0, %v6913
        %v6915 = vpop.f32.mrb[0].mxu0
        %v6916 = vadd.f32 0.0, %v6915
        %v6917 = vpop.f32.mrb[0].mxu0
        %v6918 = vadd.f32 0.0, %v6917
        %v6919 = vpop.f32.mrb[0].mxu0
        %v6920 = vadd.f32 0.0, %v6919
        %6921 = vmatprep.mubr.bf16.mxu0 %v5478
        %6922 = vmatmul.mubr.bf16.gmra.mrb[0].mxu0 %v5477
        %v6923 = vpop.f32.mrb[0].mxu0
        %v6924 = vadd.f32 0.0, %v6923
        %v6925 = vpop.f32.mrb[0].mxu0
        %v6926 = vadd.f32 0.0, %v6925
        %v6927 = vpop.f32.mrb[0].mxu0
        %v6928 = vadd.f32 0.0, %v6927
        %v6929 = vpop.f32.mrb[0].mxu0
        %v6930 = vadd.f32 0.0, %v6929
        %6931 = vmatprep.mubr.bf16.mxu0 %v5482
        %6932 = vmatmul.mubr.bf16.gmra.mrb[0].mxu0 %v5481
        %v6933 = vpop.f32.mrb[0].mxu0
        %v6934 = vadd.f32 0.0, %v6933
        %v6935 = vpop.f32.mrb[0].mxu0
        %v6936 = vadd.f32 0.0, %v6935
        %v6937 = vpop.f32.mrb[0].mxu0
        %v6938 = vadd.f32 0.0, %v6937
        %v6939 = vpop.f32.mrb[0].mxu0
        %v6940 = vadd.f32 0.0, %v6939
        %6941 = vmatprep.mubr.bf16.mxu0 %v5486
        %6942 = vmatmul.mubr.bf16.gmra.mrb[0].mxu0 %v5485
        %v6943 = vpop.f32.mrb[0].mxu0
        %v6944 = vadd.f32 0.0, %v6943
        %v6945 = vpop.f32.mrb[0].mxu0
        %v6946 = vadd.f32 0.0, %v6945
        %v6947 = vpop.f32.mrb[0].mxu0
        %v6948 = vadd.f32 0.0, %v6947
        %v6949 = vpop.f32.mrb[0].mxu0
        %v6950 = vadd.f32 0.0, %v6949
        %6951 = vmatprep.mubr.bf16.mxu0 %v5490
        %6952 = vmatmul.mubr.bf16.gmra.mrb[0].mxu0 %v5489
        %v6953 = vpop.f32.mrb[0].mxu0
        %v6954 = vadd.f32 0.0, %v6953
        %v6955 = vpop.f32.mrb[0].mxu0
        %v6956 = vadd.f32 0.0, %v6955
        %v6957 = vpop.f32.mrb[0].mxu0
        %v6958 = vadd.f32 0.0, %v6957
        %v6959 = vpop.f32.mrb[0].mxu0
        %v6960 = vadd.f32 0.0, %v6959
        %6961 = vmatprep.mubr.bf16.mxu0 %v5494
        %6962 = vmatmul.mubr.bf16.gmra.mrb[0].mxu0 %v5493
        %v6963 = vpop.f32.mrb[0].mxu0
        %v6964 = vadd.f32 0.0, %v6963
        %v6965 = vpop.f32.mrb[0].mxu0
        %v6966 = vadd.f32 0.0, %v6965
        %v6967 = vpop.f32.mrb[0].mxu0
        %v6968 = vadd.f32 0.0, %v6967
        %v6969 = vpop.f32.mrb[0].mxu0
        %v6970 = vadd.f32 0.0, %v6969
        %6971 = vdwg.mxu0
        %6972 = vmatprep.subr.bf16.mxu0 %v6204
        %6973 = vmatpush1.bf16.msra.mxu0 %v6203
        %6974 = vmatprep.subr.bf16.mxu0 %v6208
        %6975 = vmatpush1.bf16.msra.mxu0 %v6207
        %6976 = vmatprep.subr.bf16.mxu0 %v6212
        %6977 = vmatpush1.bf16.msra.mxu0 %v6211
        %6978 = vmatprep.subr.bf16.mxu0 %v6216
        %6979 = vmatpush1.bf16.msra.mxu0 %v6215
        %6980 = vmatprep.subr.bf16.mxu0 %v6220
        %6981 = vmatpush1.bf16.msra.mxu0 %v6219
        %6982 = vmatprep.subr.bf16.mxu0 %v6224
        %6983 = vmatpush1.bf16.msra.mxu0 %v6223
        %6984 = vmatprep.subr.bf16.mxu0 %v6228
        %6985 = vmatpush1.bf16.msra.mxu0 %v6227
        %6986 = vmatprep.subr.bf16.mxu0 %v6232
        %6987 = vmatpush1.bf16.msra.mxu0 %v6231
        %6988 = vmatprep.subr.bf16.mxu0 %v6236
        %6989 = vmatpush1.bf16.msra.mxu0 %v6235
        %6990 = vmatprep.subr.bf16.mxu0 %v6240
        %6991 = vmatpush1.bf16.msra.mxu0 %v6239
        %6992 = vmatprep.subr.bf16.mxu0 %v6244
        %6993 = vmatpush1.bf16.msra.mxu0 %v6243
        %6994 = vmatprep.subr.bf16.mxu0 %v6248
        %6995 = vmatpush1.bf16.msra.mxu0 %v6247
        %6996 = vmatprep.subr.bf16.mxu0 %v6252
        %6997 = vmatpush1.bf16.msra.mxu0 %v6251
        %6998 = vmatprep.subr.bf16.mxu0 %v6256
        %6999 = vmatpush1.bf16.msra.mxu0 %v6255
        %7000 = vmatprep.subr.bf16.mxu0 %v6260
        %7001 = vmatpush1.bf16.msra.mxu0 %v6259
        %7002 = vmatprep.subr.bf16.mxu0 %v6264
        %7003 = vmatpush1.bf16.msra.mxu0 %v6263
        %7004 = vmatprep.mubr.bf16.mxu0 %v5436
        %7005 = vmatmul.mubr.bf16.gmra.mrb[0].mxu0 %v5435
        %v7006 = vpop.f32.mrb[0].mxu0
        %v7007 = vadd.f32 %v6814, %v7006
        %v7008 = vpop.f32.mrb[0].mxu0
        %v7009 = vadd.f32 %v6816, %v7008
        %v7010 = vpop.f32.mrb[0].mxu0
        %v7011 = vadd.f32 %v6818, %v7010
        %v7012 = vpop.f32.mrb[0].mxu0
        %v7013 = vadd.f32 %v6820, %v7012
        %7014 = vmatprep.mubr.bf16.mxu0 %v5440
        %7015 = vmatmul.mubr.bf16.gmra.mrb[0].mxu0 %v5439
        %v7016 = vpop.f32.mrb[0].mxu0
        %v7017 = vadd.f32 %v6824, %v7016
        %v7018 = vpop.f32.mrb[0].mxu0
        %v7019 = vadd.f32 %v6826, %v7018
        %v7020 = vpop.f32.mrb[0].mxu0
        %v7021 = vadd.f32 %v6828, %v7020
        %v7022 = vpop.f32.mrb[0].mxu0
        %v7023 = vadd.f32 %v6830, %v7022
        %7024 = vmatprep.mubr.bf16.mxu0 %v5444
        %7025 = vmatmul.mubr.bf16.gmra.mrb[0].mxu0 %v5443
        %v7026 = vpop.f32.mrb[0].mxu0
        %v7027 = vadd.f32 %v6834, %v7026
        %v7028 = vpop.f32.mrb[0].mxu0
        %v7029 = vadd.f32 %v6836, %v7028
        %v7030 = vpop.f32.mrb[0].mxu0
        %v7031 = vadd.f32 %v6838, %v7030
        %v7032 = vpop.f32.mrb[0].mxu0
        %v7033 = vadd.f32 %v6840, %v7032
        %7034 = vmatprep.mubr.bf16.mxu0 %v5448
        %7035 = vmatmul.mubr.bf16.gmra.mrb[0].mxu0 %v5447
        %v7036 = vpop.f32.mrb[0].mxu0
        %v7037 = vadd.f32 %v6844, %v7036
        %v7038 = vpop.f32.mrb[0].mxu0
        %v7039 = vadd.f32 %v6846, %v7038
        %v7040 = vpop.f32.mrb[0].mxu0
        %v7041 = vadd.f32 %v6848, %v7040
        %v7042 = vpop.f32.mrb[0].mxu0
        %v7043 = vadd.f32 %v6850, %v7042
        %7044 = vmatprep.mubr.bf16.mxu0 %v5452
        %7045 = vmatmul.mubr.bf16.gmra.mrb[0].mxu0 %v5451
        %v7046 = vpop.f32.mrb[0].mxu0
        %v7047 = vadd.f32 %v6854, %v7046
        %v7048 = vpop.f32.mrb[0].mxu0
        %v7049 = vadd.f32 %v6856, %v7048
        %v7050 = vpop.f32.mrb[0].mxu0
        %v7051 = vadd.f32 %v6858, %v7050
        %v7052 = vpop.f32.mrb[0].mxu0
        %v7053 = vadd.f32 %v6860, %v7052
        %7054 = vmatprep.mubr.bf16.mxu0 %v5456
        %7055 = vmatmul.mubr.bf16.gmra.mrb[0].mxu0 %v5455
        %v7056 = vpop.f32.mrb[0].mxu0
        %v7057 = vadd.f32 %v6864, %v7056
        %v7058 = vpop.f32.mrb[0].mxu0
        %v7059 = vadd.f32 %v6866, %v7058
        %v7060 = vpop.f32.mrb[0].mxu0
        %v7061 = vadd.f32 %v6868, %v7060
        %v7062 = vpop.f32.mrb[0].mxu0
        %v7063 = vadd.f32 %v6870, %v7062
        %7064 = vmatprep.mubr.bf16.mxu0 %v5460
        %7065 = vmatmul.mubr.bf16.gmra.mrb[0].mxu0 %v5459
        %v7066 = vpop.f32.mrb[0].mxu0
        %v7067 = vadd.f32 %v6874, %v7066
        %v7068 = vpop.f32.mrb[0].mxu0
        %v7069 = vadd.f32 %v6876, %v7068
        %v7070 = vpop.f32.mrb[0].mxu0
        %v7071 = vadd.f32 %v6878, %v7070
        %v7072 = vpop.f32.mrb[0].mxu0
        %v7073 = vadd.f32 %v6880, %v7072
        %7074 = vmatprep.mubr.bf16.mxu0 %v5464
        %7075 = vmatmul.mubr.bf16.gmra.mrb[0].mxu0 %v5463
        %v7076 = vpop.f32.mrb[0].mxu0
        %v7077 = vadd.f32 %v6884, %v7076
        %v7078 = vpop.f32.mrb[0].mxu0
        %v7079 = vadd.f32 %v6886, %v7078
        %v7080 = vpop.f32.mrb[0].mxu0
        %v7081 = vadd.f32 %v6888, %v7080
        %v7082 = vpop.f32.mrb[0].mxu0
        %v7083 = vadd.f32 %v6890, %v7082
        %7084 = vmatprep.mubr.bf16.mxu0 %v5468
        %7085 = vmatmul.mubr.bf16.gmra.mrb[0].mxu0 %v5467
        %v7086 = vpop.f32.mrb[0].mxu0
        %v7087 = vadd.f32 %v6894, %v7086
        %v7088 = vpop.f32.mrb[0].mxu0
        %v7089 = vadd.f32 %v6896, %v7088
        %v7090 = vpop.f32.mrb[0].mxu0
        %v7091 = vadd.f32 %v6898, %v7090
        %v7092 = vpop.f32.mrb[0].mxu0
        %v7093 = vadd.f32 %v6900, %v7092
        %7094 = vmatprep.mubr.bf16.mxu0 %v5472
        %7095 = vmatmul.mubr.bf16.gmra.mrb[0].mxu0 %v5471
        %v7096 = vpop.f32.mrb[0].mxu0
        %v7097 = vadd.f32 %v6904, %v7096
        %v7098 = vpop.f32.mrb[0].mxu0
        %v7099 = vadd.f32 %v6906, %v7098
        %v7100 = vpop.f32.mrb[0].mxu0
        %v7101 = vadd.f32 %v6908, %v7100
        %v7102 = vpop.f32.mrb[0].mxu0
        %v7103 = vadd.f32 %v6910, %v7102
        %7104 = vmatprep.mubr.bf16.mxu0 %v5476
        %7105 = vmatmul.mubr.bf16.gmra.mrb[0].mxu0 %v5475
        %v7106 = vpop.f32.mrb[0].mxu0
        %v7107 = vadd.f32 %v6914, %v7106
        %v7108 = vpop.f32.mrb[0].mxu0
        %v7109 = vadd.f32 %v6916, %v7108
        %v7110 = vpop.f32.mrb[0].mxu0
        %v7111 = vadd.f32 %v6918, %v7110
        %v7112 = vpop.f32.mrb[0].mxu0
        %v7113 = vadd.f32 %v6920, %v7112
        %7114 = vmatprep.mubr.bf16.mxu0 %v5480
        %7115 = vmatmul.mubr.bf16.gmra.mrb[0].mxu0 %v5479
        %v7116 = vpop.f32.mrb[0].mxu0
        %v7117 = vadd.f32 %v6924, %v7116
        %v7118 = vpop.f32.mrb[0].mxu0
        %v7119 = vadd.f32 %v6926, %v7118
        %v7120 = vpop.f32.mrb[0].mxu0
        %v7121 = vadd.f32 %v6928, %v7120
        %v7122 = vpop.f32.mrb[0].mxu0
        %v7123 = vadd.f32 %v6930, %v7122
        %7124 = vmatprep.mubr.bf16.mxu0 %v5484
        %7125 = vmatmul.mubr.bf16.gmra.mrb[0].mxu0 %v5483
        %v7126 = vpop.f32.mrb[0].mxu0
        %v7127 = vadd.f32 %v6934, %v7126
        %v7128 = vpop.f32.mrb[0].mxu0
        %v7129 = vadd.f32 %v6936, %v7128
        %v7130 = vpop.f32.mrb[0].mxu0
        %v7131 = vadd.f32 %v6938, %v7130
        %v7132 = vpop.f32.mrb[0].mxu0
        %v7133 = vadd.f32 %v6940, %v7132
        %7134 = vmatprep.mubr.bf16.mxu0 %v5488
        %7135 = vmatmul.mubr.bf16.gmra.mrb[0].mxu0 %v5487
        %v7136 = vpop.f32.mrb[0].mxu0
        %v7137 = vadd.f32 %v6944, %v7136
        %v7138 = vpop.f32.mrb[0].mxu0
        %v7139 = vadd.f32 %v6946, %v7138
        %v7140 = vpop.f32.mrb[0].mxu0
        %v7141 = vadd.f32 %v6948, %v7140
        %v7142 = vpop.f32.mrb[0].mxu0
        %v7143 = vadd.f32 %v6950, %v7142
        %7144 = vmatprep.mubr.bf16.mxu0 %v5492
        %7145 = vmatmul.mubr.bf16.gmra.mrb[0].mxu0 %v5491
        %v7146 = vpop.f32.mrb[0].mxu0
        %v7147 = vadd.f32 %v6954, %v7146
        %v7148 = vpop.f32.mrb[0].mxu0
        %v7149 = vadd.f32 %v6956, %v7148
        %v7150 = vpop.f32.mrb[0].mxu0
        %v7151 = vadd.f32 %v6958, %v7150
        %v7152 = vpop.f32.mrb[0].mxu0
        %v7153 = vadd.f32 %v6960, %v7152
        %7154 = vmatprep.mubr.bf16.mxu0 %v5496
        %7155 = vmatmul.mubr.bf16.gmra.mrb[0].mxu0 %v5495
        %v7156 = vpop.f32.mrb[0].mxu0
        %v7157 = vadd.f32 %v6964, %v7156
        %v7158 = vpop.f32.mrb[0].mxu0
        %v7159 = vadd.f32 %v6966, %v7158
        %v7160 = vpop.f32.mrb[0].mxu0
        %v7161 = vadd.f32 %v6968, %v7160
        %v7162 = vpop.f32.mrb[0].mxu0
        %v7163 = vadd.f32 %v6970, %v7162
        %7164 = vdwg.mxu0
        %v7165 = vadd.f32 %v5497, %v6621
        %v7166 = vadd.f32 %v5498, %v6623
        %v7167 = vadd.f32 %v5499, %v7007
        %v7168 = vadd.f32 %v5500, %v7009
        %v7169 = vadd.f32 %v5501, %v6625
        %v7170 = vadd.f32 %v5502, %v6627
        %v7171 = vadd.f32 %v5503, %v7011
        %v7172 = vadd.f32 %v5504, %v7013
        %v7173 = vadd.f32 %v5505, %v6631
        %v7174 = vadd.f32 %v5506, %v6633
        %v7175 = vadd.f32 %v5507, %v7017
        %v7176 = vadd.f32 %v5508, %v7019
        %v7177 = vadd.f32 %v5509, %v6635
        %v7178 = vadd.f32 %v5510, %v6637
        %v7179 = vadd.f32 %v5511, %v7021
        %v7180 = vadd.f32 %v5512, %v7023
        %v7181 = vadd.f32 %v5513, %v6641
        %v7182 = vadd.f32 %v5514, %v6643
        %v7183 = vadd.f32 %v5515, %v7027
        %v7184 = vadd.f32 %v5516, %v7029
        %v7185 = vadd.f32 %v5517, %v6645
        %v7186 = vadd.f32 %v5518, %v6647
        %v7187 = vadd.f32 %v5519, %v7031
        %v7188 = vadd.f32 %v5520, %v7033
        %v7189 = vadd.f32 %v5521, %v6651
        %v7190 = vadd.f32 %v5522, %v6653
        %v7191 = vadd.f32 %v5523, %v7037
        %v7192 = vadd.f32 %v5524, %v7039
        %v7193 = vadd.f32 %v5525, %v6655
        %v7194 = vadd.f32 %v5526, %v6657
        %v7195 = vadd.f32 %v5527, %v7041
        %v7196 = vadd.f32 %v5528, %v7043
        %v7197 = vadd.f32 %v5529, %v6661
        %v7198 = vadd.f32 %v5530, %v6663
        %v7199 = vadd.f32 %v5531, %v7047
        %v7200 = vadd.f32 %v5532, %v7049
        %v7201 = vadd.f32 %v5533, %v6665
        %v7202 = vadd.f32 %v5534, %v6667
        %v7203 = vadd.f32 %v5535, %v7051
        %v7204 = vadd.f32 %v5536, %v7053
        %v7205 = vadd.f32 %v5537, %v6671
        %v7206 = vadd.f32 %v5538, %v6673
        %v7207 = vadd.f32 %v5539, %v7057
        %v7208 = vadd.f32 %v5540, %v7059
        %v7209 = vadd.f32 %v5541, %v6675
        %v7210 = vadd.f32 %v5542, %v6677
        %v7211 = vadd.f32 %v5543, %v7061
        %v7212 = vadd.f32 %v5544, %v7063
        %v7213 = vadd.f32 %v5545, %v6681
        %v7214 = vadd.f32 %v5546, %v6683
        %v7215 = vadd.f32 %v5547, %v7067
        %v7216 = vadd.f32 %v5548, %v7069
        %v7217 = vadd.f32 %v5549, %v6685
        %v7218 = vadd.f32 %v5550, %v6687
        %v7219 = vadd.f32 %v5551, %v7071
        %v7220 = vadd.f32 %v5552, %v7073
        %v7221 = vadd.f32 %v5553, %v6691
        %v7222 = vadd.f32 %v5554, %v6693
        %v7223 = vadd.f32 %v5555, %v7077
        %v7224 = vadd.f32 %v5556, %v7079
        %v7225 = vadd.f32 %v5557, %v6695
        %v7226 = vadd.f32 %v5558, %v6697
        %v7227 = vadd.f32 %v5559, %v7081
        %v7228 = vadd.f32 %v5560, %v7083
        %v7229 = vadd.f32 %v5561, %v6701
        %v7230 = vadd.f32 %v5562, %v6703
        %v7231 = vadd.f32 %v5563, %v7087
        %v7232 = vadd.f32 %v5564, %v7089
        %v7233 = vadd.f32 %v5565, %v6705
        %v7234 = vadd.f32 %v5566, %v6707
        %v7235 = vadd.f32 %v5567, %v7091
        %v7236 = vadd.f32 %v5568, %v7093
        %v7237 = vadd.f32 %v5569, %v6711
        %v7238 = vadd.f32 %v5570, %v6713
        %v7239 = vadd.f32 %v5571, %v7097
        %v7240 = vadd.f32 %v5572, %v7099
        %v7241 = vadd.f32 %v5573, %v6715
        %v7242 = vadd.f32 %v5574, %v6717
        %v7243 = vadd.f32 %v5575, %v7101
        %v7244 = vadd.f32 %v5576, %v7103
        %v7245 = vadd.f32 %v5577, %v6721
        %v7246 = vadd.f32 %v5578, %v6723
        %v7247 = vadd.f32 %v5579, %v7107
        %v7248 = vadd.f32 %v5580, %v7109
        %v7249 = vadd.f32 %v5581, %v6725
        %v7250 = vadd.f32 %v5582, %v6727
        %v7251 = vadd.f32 %v5583, %v7111
        %v7252 = vadd.f32 %v5584, %v7113
        %v7253 = vadd.f32 %v5585, %v6731
        %v7254 = vadd.f32 %v5586, %v6733
        %v7255 = vadd.f32 %v5587, %v7117
        %v7256 = vadd.f32 %v5588, %v7119
        %v7257 = vadd.f32 %v5589, %v6735
        %v7258 = vadd.f32 %v5590, %v6737
        %v7259 = vadd.f32 %v5591, %v7121
        %v7260 = vadd.f32 %v5592, %v7123
        %v7261 = vadd.f32 %v5593, %v6741
        %v7262 = vadd.f32 %v5594, %v6743
        %v7263 = vadd.f32 %v5595, %v7127
        %v7264 = vadd.f32 %v5596, %v7129
        %v7265 = vadd.f32 %v5597, %v6745
        %v7266 = vadd.f32 %v5598, %v6747
        %v7267 = vadd.f32 %v5599, %v7131
        %v7268 = vadd.f32 %v5600, %v7133
        %v7269 = vadd.f32 %v5601, %v6751
        %v7270 = vadd.f32 %v5602, %v6753
        %v7271 = vadd.f32 %v5603, %v7137
        %v7272 = vadd.f32 %v5604, %v7139
        %v7273 = vadd.f32 %v5605, %v6755
        %v7274 = vadd.f32 %v5606, %v6757
        %v7275 = vadd.f32 %v5607, %v7141
        %v7276 = vadd.f32 %v5608, %v7143
        %v7277 = vadd.f32 %v5609, %v6761
        %v7278 = vadd.f32 %v5610, %v6763
        %v7279 = vadd.f32 %v5611, %v7147
        %v7280 = vadd.f32 %v5612, %v7149
        %v7281 = vadd.f32 %v5613, %v6765
        %v7282 = vadd.f32 %v5614, %v6767
        %v7283 = vadd.f32 %v5615, %v7151
        %v7284 = vadd.f32 %v5616, %v7153
        %v7285 = vadd.f32 %v5617, %v6771
        %v7286 = vadd.f32 %v5618, %v6773
        %v7287 = vadd.f32 %v5619, %v7157
        %v7288 = vadd.f32 %v5620, %v7159
        %v7289 = vadd.f32 %v5621, %v6775
        %v7290 = vadd.f32 %v5622, %v6777
        %v7291 = vadd.f32 %v5623, %v7161
        %v7292 = vadd.f32 %v5624, %v7163
        %7293 = vst [vmem:[#allocation2] sm:$0xff] %v7165
        %7294 = vst [vmem:[#allocation2 + $0x8] sm:$0xff] %v7166
        %7295 = vst [vmem:[#allocation2 + $0x10] sm:$0xff] %v7167
        %7296 = vst [vmem:[#allocation2 + $0x18] sm:$0xff] %v7168
        %7297 = vst [vmem:[#allocation2 + $0x20] sm:$0xff] %v7169
        %7298 = vst [vmem:[#allocation2 + $0x28] sm:$0xff] %v7170
        %7299 = vst [vmem:[#allocation2 + $0x30] sm:$0xff] %v7171
        %7300 = vst [vmem:[#allocation2 + $0x38] sm:$0xff] %v7172
        %7301 = vst [vmem:[#allocation2 + $0x40] sm:$0xff] %v7173
        %7302 = vst [vmem:[#allocation2 + $0x48] sm:$0xff] %v7174
        %7303 = vst [vmem:[#allocation2 + $0x50] sm:$0xff] %v7175
        %7304 = vst [vmem:[#allocation2 + $0x58] sm:$0xff] %v7176
        %7305 = vst [vmem:[#allocation2 + $0x60] sm:$0xff] %v7177
        %7306 = vst [vmem:[#allocation2 + $0x68] sm:$0xff] %v7178
        %7307 = vst [vmem:[#allocation2 + $0x70] sm:$0xff] %v7179
        %7308 = vst [vmem:[#allocation2 + $0x78] sm:$0xff] %v7180
        %7309 = vst [vmem:[#allocation2 + $0x80] sm:$0xff] %v7181
        %7310 = vst [vmem:[#allocation2 + $0x88] sm:$0xff] %v7182
        %7311 = vst [vmem:[#allocation2 + $0x90] sm:$0xff] %v7183
        %7312 = vst [vmem:[#allocation2 + $0x98] sm:$0xff] %v7184
        %7313 = vst [vmem:[#allocation2 + $0xa0] sm:$0xff] %v7185
        %7314 = vst [vmem:[#allocation2 + $0xa8] sm:$0xff] %v7186
        %7315 = vst [vmem:[#allocation2 + $0xb0] sm:$0xff] %v7187
        %7316 = vst [vmem:[#allocation2 + $0xb8] sm:$0xff] %v7188
        %7317 = vst [vmem:[#allocation2 + $0xc0] sm:$0xff] %v7189
        %7318 = vst [vmem:[#allocation2 + $0xc8] sm:$0xff] %v7190
        %7319 = vst [vmem:[#allocation2 + $0xd0] sm:$0xff] %v7191
        %7320 = vst [vmem:[#allocation2 + $0xd8] sm:$0xff] %v7192
        %7321 = vst [vmem:[#allocation2 + $0xe0] sm:$0xff] %v7193
        %7322 = vst [vmem:[#allocation2 + $0xe8] sm:$0xff] %v7194
        %7323 = vst [vmem:[#allocation2 + $0xf0] sm:$0xff] %v7195
        %7324 = vst [vmem:[#allocation2 + $0xf8] sm:$0xff] %v7196
        %7325 = vst [vmem:[#allocation2 + $0x100] sm:$0xff] %v7197
        %7326 = vst [vmem:[#allocation2 + $0x108] sm:$0xff] %v7198
        %7327 = vst [vmem:[#allocation2 + $0x110] sm:$0xff] %v7199
        %7328 = vst [vmem:[#allocation2 + $0x118] sm:$0xff] %v7200
        %7329 = vst [vmem:[#allocation2 + $0x120] sm:$0xff] %v7201
        %7330 = vst [vmem:[#allocation2 + $0x128] sm:$0xff] %v7202
        %7331 = vst [vmem:[#allocation2 + $0x130] sm:$0xff] %v7203
        %7332 = vst [vmem:[#allocation2 + $0x138] sm:$0xff] %v7204
        %7333 = vst [vmem:[#allocation2 + $0x140] sm:$0xff] %v7205
        %7334 = vst [vmem:[#allocation2 + $0x148] sm:$0xff] %v7206
        %7335 = vst [vmem:[#allocation2 + $0x150] sm:$0xff] %v7207
        %7336 = vst [vmem:[#allocation2 + $0x158] sm:$0xff] %v7208
        %7337 = vst [vmem:[#allocation2 + $0x160] sm:$0xff] %v7209
        %7338 = vst [vmem:[#allocation2 + $0x168] sm:$0xff] %v7210
        %7339 = vst [vmem:[#allocation2 + $0x170] sm:$0xff] %v7211
        %7340 = vst [vmem:[#allocation2 + $0x178] sm:$0xff] %v7212
        %7341 = vst [vmem:[#allocation2 + $0x180] sm:$0xff] %v7213
        %7342 = vst [vmem:[#allocation2 + $0x188] sm:$0xff] %v7214
        %7343 = vst [vmem:[#allocation2 + $0x190] sm:$0xff] %v7215
        %7344 = vst [vmem:[#allocation2 + $0x198] sm:$0xff] %v7216
        %7345 = vst [vmem:[#allocation2 + $0x1a0] sm:$0xff] %v7217
        %7346 = vst [vmem:[#allocation2 + $0x1a8] sm:$0xff] %v7218
        %7347 = vst [vmem:[#allocation2 + $0x1b0] sm:$0xff] %v7219
        %7348 = vst [vmem:[#allocation2 + $0x1b8] sm:$0xff] %v7220
        %7349 = vst [vmem:[#allocation2 + $0x1c0] sm:$0xff] %v7221
        %7350 = vst [vmem:[#allocation2 + $0x1c8] sm:$0xff] %v7222
        %7351 = vst [vmem:[#allocation2 + $0x1d0] sm:$0xff] %v7223
        %7352 = vst [vmem:[#allocation2 + $0x1d8] sm:$0xff] %v7224
        %7353 = vst [vmem:[#allocation2 + $0x1e0] sm:$0xff] %v7225
        %7354 = vst [vmem:[#allocation2 + $0x1e8] sm:$0xff] %v7226
        %7355 = vst [vmem:[#allocation2 + $0x1f0] sm:$0xff] %v7227
        %7356 = vst [vmem:[#allocation2 + $0x1f8] sm:$0xff] %v7228
        %7357 = vst [vmem:[#allocation2 + $0x200] sm:$0xff] %v7229
        %7358 = vst [vmem:[#allocation2 + $0x208] sm:$0xff] %v7230
        %7359 = vst [vmem:[#allocation2 + $0x210] sm:$0xff] %v7231
        %7360 = vst [vmem:[#allocation2 + $0x218] sm:$0xff] %v7232
        %7361 = vst [vmem:[#allocation2 + $0x220] sm:$0xff] %v7233
        %7362 = vst [vmem:[#allocation2 + $0x228] sm:$0xff] %v7234
        %7363 = vst [vmem:[#allocation2 + $0x230] sm:$0xff] %v7235
        %7364 = vst [vmem:[#allocation2 + $0x238] sm:$0xff] %v7236
        %7365 = vst [vmem:[#allocation2 + $0x240] sm:$0xff] %v7237
        %7366 = vst [vmem:[#allocation2 + $0x248] sm:$0xff] %v7238
        %7367 = vst [vmem:[#allocation2 + $0x250] sm:$0xff] %v7239
        %7368 = vst [vmem:[#allocation2 + $0x258] sm:$0xff] %v7240
        %7369 = vst [vmem:[#allocation2 + $0x260] sm:$0xff] %v7241
        %7370 = vst [vmem:[#allocation2 + $0x268] sm:$0xff] %v7242
        %7371 = vst [vmem:[#allocation2 + $0x270] sm:$0xff] %v7243
        %7372 = vst [vmem:[#allocation2 + $0x278] sm:$0xff] %v7244
        %7373 = vst [vmem:[#allocation2 + $0x280] sm:$0xff] %v7245
        %7374 = vst [vmem:[#allocation2 + $0x288] sm:$0xff] %v7246
        %7375 = vst [vmem:[#allocation2 + $0x290] sm:$0xff] %v7247
        %7376 = vst [vmem:[#allocation2 + $0x298] sm:$0xff] %v7248
        %7377 = vst [vmem:[#allocation2 + $0x2a0] sm:$0xff] %v7249
        %7378 = vst [vmem:[#allocation2 + $0x2a8] sm:$0xff] %v7250
        %7379 = vst [vmem:[#allocation2 + $0x2b0] sm:$0xff] %v7251
        %7380 = vst [vmem:[#allocation2 + $0x2b8] sm:$0xff] %v7252
        %7381 = vst [vmem:[#allocation2 + $0x2c0] sm:$0xff] %v7253
        %7382 = vst [vmem:[#allocation2 + $0x2c8] sm:$0xff] %v7254
        %7383 = vst [vmem:[#allocation2 + $0x2d0] sm:$0xff] %v7255
        %7384 = vst [vmem:[#allocation2 + $0x2d8] sm:$0xff] %v7256
        %7385 = vst [vmem:[#allocation2 + $0x2e0] sm:$0xff] %v7257
        %7386 = vst [vmem:[#allocation2 + $0x2e8] sm:$0xff] %v7258
        %7387 = vst [vmem:[#allocation2 + $0x2f0] sm:$0xff] %v7259
        %7388 = vst [vmem:[#allocation2 + $0x2f8] sm:$0xff] %v7260
        %7389 = vst [vmem:[#allocation2 + $0x300] sm:$0xff] %v7261
        %7390 = vst [vmem:[#allocation2 + $0x308] sm:$0xff] %v7262
        %7391 = vst [vmem:[#allocation2 + $0x310] sm:$0xff] %v7263
        %7392 = vst [vmem:[#allocation2 + $0x318] sm:$0xff] %v7264
        %7393 = vst [vmem:[#allocation2 + $0x320] sm:$0xff] %v7265
        %7394 = vst [vmem:[#allocation2 + $0x328] sm:$0xff] %v7266
        %7395 = vst [vmem:[#allocation2 + $0x330] sm:$0xff] %v7267
        %7396 = vst [vmem:[#allocation2 + $0x338] sm:$0xff] %v7268
        %7397 = vst [vmem:[#allocation2 + $0x340] sm:$0xff] %v7269
        %7398 = vst [vmem:[#allocation2 + $0x348] sm:$0xff] %v7270
        %7399 = vst [vmem:[#allocation2 + $0x350] sm:$0xff] %v7271
        %7400 = vst [vmem:[#allocation2 + $0x358] sm:$0xff] %v7272
        %7401 = vst [vmem:[#allocation2 + $0x360] sm:$0xff] %v7273
        %7402 = vst [vmem:[#allocation2 + $0x368] sm:$0xff] %v7274
        %7403 = vst [vmem:[#allocation2 + $0x370] sm:$0xff] %v7275
        %7404 = vst [vmem:[#allocation2 + $0x378] sm:$0xff] %v7276
        %7405 = vst [vmem:[#allocation2 + $0x380] sm:$0xff] %v7277
        %7406 = vst [vmem:[#allocation2 + $0x388] sm:$0xff] %v7278
        %7407 = vst [vmem:[#allocation2 + $0x390] sm:$0xff] %v7279
        %7408 = vst [vmem:[#allocation2 + $0x398] sm:$0xff] %v7280
        %7409 = vst [vmem:[#allocation2 + $0x3a0] sm:$0xff] %v7281
        %7410 = vst [vmem:[#allocation2 + $0x3a8] sm:$0xff] %v7282
        %7411 = vst [vmem:[#allocation2 + $0x3b0] sm:$0xff] %v7283
        %7412 = vst [vmem:[#allocation2 + $0x3b8] sm:$0xff] %v7284
        %7413 = vst [vmem:[#allocation2 + $0x3c0] sm:$0xff] %v7285
        %7414 = vst [vmem:[#allocation2 + $0x3c8] sm:$0xff] %v7286
        %7415 = vst [vmem:[#allocation2 + $0x3d0] sm:$0xff] %v7287
        %7416 = vst [vmem:[#allocation2 + $0x3d8] sm:$0xff] %v7288
        %7417 = vst [vmem:[#allocation2 + $0x3e0] sm:$0xff] %v7289
        %7418 = vst [vmem:[#allocation2 + $0x3e8] sm:$0xff] %v7290
        %7419 = vst [vmem:[#allocation2 + $0x3f0] sm:$0xff] %v7291
        %7420 = vst [vmem:[#allocation2 + $0x3f8] sm:$0xff] %v7292
        %p7421 = scmp.eq.s32.totalorder %s29, 1
        // Predicated region
        $region61: #{tpu_custom_call.1} parent=39 // pred_check
          %p7422 = pneg %p7421
        $region62: #{tpu_custom_call.1} parent=39 // pred_check_branch
          %7424 = sbr.rel (%p7422) target = $region64
        $region63: #{tpu_custom_call.1} parent=39 // pred_region
          %v7425 = vld [vmem:[#allocation2] sm:$0xff]
          %v7426 = vld [vmem:[#allocation2 + $0x8] sm:$0xff]
          %v7427 = vld [vmem:[#allocation2 + $0x10] sm:$0xff]
          %v7428 = vld [vmem:[#allocation2 + $0x18] sm:$0xff]
          %v7429 = vld [vmem:[#allocation2 + $0x20] sm:$0xff]
          %v7430 = vld [vmem:[#allocation2 + $0x28] sm:$0xff]
          %v7431 = vld [vmem:[#allocation2 + $0x30] sm:$0xff]
          %v7432 = vld [vmem:[#allocation2 + $0x38] sm:$0xff]
          %v7433 = vld [vmem:[#allocation2 + $0x40] sm:$0xff]
          %v7434 = vld [vmem:[#allocation2 + $0x48] sm:$0xff]
          %v7435 = vld [vmem:[#allocation2 + $0x50] sm:$0xff]
          %v7436 = vld [vmem:[#allocation2 + $0x58] sm:$0xff]
          %v7437 = vld [vmem:[#allocation2 + $0x60] sm:$0xff]
          %v7438 = vld [vmem:[#allocation2 + $0x68] sm:$0xff]
          %v7439 = vld [vmem:[#allocation2 + $0x70] sm:$0xff]
          %v7440 = vld [vmem:[#allocation2 + $0x78] sm:$0xff]
          %v7441 = vld [vmem:[#allocation2 + $0x80] sm:$0xff]
          %v7442 = vld [vmem:[#allocation2 + $0x88] sm:$0xff]
          %v7443 = vld [vmem:[#allocation2 + $0x90] sm:$0xff]
          %v7444 = vld [vmem:[#allocation2 + $0x98] sm:$0xff]
          %v7445 = vld [vmem:[#allocation2 + $0xa0] sm:$0xff]
          %v7446 = vld [vmem:[#allocation2 + $0xa8] sm:$0xff]
          %v7447 = vld [vmem:[#allocation2 + $0xb0] sm:$0xff]
          %v7448 = vld [vmem:[#allocation2 + $0xb8] sm:$0xff]
          %v7449 = vld [vmem:[#allocation2 + $0xc0] sm:$0xff]
          %v7450 = vld [vmem:[#allocation2 + $0xc8] sm:$0xff]
          %v7451 = vld [vmem:[#allocation2 + $0xd0] sm:$0xff]
          %v7452 = vld [vmem:[#allocation2 + $0xd8] sm:$0xff]
          %v7453 = vld [vmem:[#allocation2 + $0xe0] sm:$0xff]
          %v7454 = vld [vmem:[#allocation2 + $0xe8] sm:$0xff]
          %v7455 = vld [vmem:[#allocation2 + $0xf0] sm:$0xff]
          %v7456 = vld [vmem:[#allocation2 + $0xf8] sm:$0xff]
          %v7457 = vld [vmem:[#allocation2 + $0x100] sm:$0xff]
          %v7458 = vld [vmem:[#allocation2 + $0x108] sm:$0xff]
          %v7459 = vld [vmem:[#allocation2 + $0x110] sm:$0xff]
          %v7460 = vld [vmem:[#allocation2 + $0x118] sm:$0xff]
          %v7461 = vld [vmem:[#allocation2 + $0x120] sm:$0xff]
          %v7462 = vld [vmem:[#allocation2 + $0x128] sm:$0xff]
          %v7463 = vld [vmem:[#allocation2 + $0x130] sm:$0xff]
          %v7464 = vld [vmem:[#allocation2 + $0x138] sm:$0xff]
          %v7465 = vld [vmem:[#allocation2 + $0x140] sm:$0xff]
          %v7466 = vld [vmem:[#allocation2 + $0x148] sm:$0xff]
          %v7467 = vld [vmem:[#allocation2 + $0x150] sm:$0xff]
          %v7468 = vld [vmem:[#allocation2 + $0x158] sm:$0xff]
          %v7469 = vld [vmem:[#allocation2 + $0x160] sm:$0xff]
          %v7470 = vld [vmem:[#allocation2 + $0x168] sm:$0xff]
          %v7471 = vld [vmem:[#allocation2 + $0x170] sm:$0xff]
          %v7472 = vld [vmem:[#allocation2 + $0x178] sm:$0xff]
          %v7473 = vld [vmem:[#allocation2 + $0x180] sm:$0xff]
          %v7474 = vld [vmem:[#allocation2 + $0x188] sm:$0xff]
          %v7475 = vld [vmem:[#allocation2 + $0x190] sm:$0xff]
          %v7476 = vld [vmem:[#allocation2 + $0x198] sm:$0xff]
          %v7477 = vld [vmem:[#allocation2 + $0x1a0] sm:$0xff]
          %v7478 = vld [vmem:[#allocation2 + $0x1a8] sm:$0xff]
          %v7479 = vld [vmem:[#allocation2 + $0x1b0] sm:$0xff]
          %v7480 = vld [vmem:[#allocation2 + $0x1b8] sm:$0xff]
          %v7481 = vld [vmem:[#allocation2 + $0x1c0] sm:$0xff]
          %v7482 = vld [vmem:[#allocation2 + $0x1c8] sm:$0xff]
          %v7483 = vld [vmem:[#allocation2 + $0x1d0] sm:$0xff]
          %v7484 = vld [vmem:[#allocation2 + $0x1d8] sm:$0xff]
          %v7485 = vld [vmem:[#allocation2 + $0x1e0] sm:$0xff]
          %v7486 = vld [vmem:[#allocation2 + $0x1e8] sm:$0xff]
          %v7487 = vld [vmem:[#allocation2 + $0x1f0] sm:$0xff]
          %v7488 = vld [vmem:[#allocation2 + $0x1f8] sm:$0xff]
          %v7489 = vld [vmem:[#allocation2 + $0x200] sm:$0xff]
          %v7490 = vld [vmem:[#allocation2 + $0x208] sm:$0xff]
          %v7491 = vld [vmem:[#allocation2 + $0x210] sm:$0xff]
          %v7492 = vld [vmem:[#allocation2 + $0x218] sm:$0xff]
          %v7493 = vld [vmem:[#allocation2 + $0x220] sm:$0xff]
          %v7494 = vld [vmem:[#allocation2 + $0x228] sm:$0xff]
          %v7495 = vld [vmem:[#allocation2 + $0x230] sm:$0xff]
          %v7496 = vld [vmem:[#allocation2 + $0x238] sm:$0xff]
          %v7497 = vld [vmem:[#allocation2 + $0x240] sm:$0xff]
          %v7498 = vld [vmem:[#allocation2 + $0x248] sm:$0xff]
          %v7499 = vld [vmem:[#allocation2 + $0x250] sm:$0xff]
          %v7500 = vld [vmem:[#allocation2 + $0x258] sm:$0xff]
          %v7501 = vld [vmem:[#allocation2 + $0x260] sm:$0xff]
          %v7502 = vld [vmem:[#allocation2 + $0x268] sm:$0xff]
          %v7503 = vld [vmem:[#allocation2 + $0x270] sm:$0xff]
          %v7504 = vld [vmem:[#allocation2 + $0x278] sm:$0xff]
          %v7505 = vld [vmem:[#allocation2 + $0x280] sm:$0xff]
          %v7506 = vld [vmem:[#allocation2 + $0x288] sm:$0xff]
          %v7507 = vld [vmem:[#allocation2 + $0x290] sm:$0xff]
          %v7508 = vld [vmem:[#allocation2 + $0x298] sm:$0xff]
          %v7509 = vld [vmem:[#allocation2 + $0x2a0] sm:$0xff]
          %v7510 = vld [vmem:[#allocation2 + $0x2a8] sm:$0xff]
          %v7511 = vld [vmem:[#allocation2 + $0x2b0] sm:$0xff]
          %v7512 = vld [vmem:[#allocation2 + $0x2b8] sm:$0xff]
          %v7513 = vld [vmem:[#allocation2 + $0x2c0] sm:$0xff]
          %v7514 = vld [vmem:[#allocation2 + $0x2c8] sm:$0xff]
          %v7515 = vld [vmem:[#allocation2 + $0x2d0] sm:$0xff]
          %v7516 = vld [vmem:[#allocation2 + $0x2d8] sm:$0xff]
          %v7517 = vld [vmem:[#allocation2 + $0x2e0] sm:$0xff]
          %v7518 = vld [vmem:[#allocation2 + $0x2e8] sm:$0xff]
          %v7519 = vld [vmem:[#allocation2 + $0x2f0] sm:$0xff]
          %v7520 = vld [vmem:[#allocation2 + $0x2f8] sm:$0xff]
          %v7521 = vld [vmem:[#allocation2 + $0x300] sm:$0xff]
          %v7522 = vld [vmem:[#allocation2 + $0x308] sm:$0xff]
          %v7523 = vld [vmem:[#allocation2 + $0x310] sm:$0xff]
          %v7524 = vld [vmem:[#allocation2 + $0x318] sm:$0xff]
          %v7525 = vld [vmem:[#allocation2 + $0x320] sm:$0xff]
          %v7526 = vld [vmem:[#allocation2 + $0x328] sm:$0xff]
          %v7527 = vld [vmem:[#allocation2 + $0x330] sm:$0xff]
          %v7528 = vld [vmem:[#allocation2 + $0x338] sm:$0xff]
          %v7529 = vld [vmem:[#allocation2 + $0x340] sm:$0xff]
          %v7530 = vld [vmem:[#allocation2 + $0x348] sm:$0xff]
          %v7531 = vld [vmem:[#allocation2 + $0x350] sm:$0xff]
          %v7532 = vld [vmem:[#allocation2 + $0x358] sm:$0xff]
          %v7533 = vld [vmem:[#allocation2 + $0x360] sm:$0xff]
          %v7534 = vld [vmem:[#allocation2 + $0x368] sm:$0xff]
          %v7535 = vld [vmem:[#allocation2 + $0x370] sm:$0xff]
          %v7536 = vld [vmem:[#allocation2 + $0x378] sm:$0xff]
          %v7537 = vld [vmem:[#allocation2 + $0x380] sm:$0xff]
          %v7538 = vld [vmem:[#allocation2 + $0x388] sm:$0xff]
          %v7539 = vld [vmem:[#allocation2 + $0x390] sm:$0xff]
          %v7540 = vld [vmem:[#allocation2 + $0x398] sm:$0xff]
          %v7541 = vld [vmem:[#allocation2 + $0x3a0] sm:$0xff]
          %v7542 = vld [vmem:[#allocation2 + $0x3a8] sm:$0xff]
          %v7543 = vld [vmem:[#allocation2 + $0x3b0] sm:$0xff]
          %v7544 = vld [vmem:[#allocation2 + $0x3b8] sm:$0xff]
          %v7545 = vld [vmem:[#allocation2 + $0x3c0] sm:$0xff]
          %v7546 = vld [vmem:[#allocation2 + $0x3c8] sm:$0xff]
          %v7547 = vld [vmem:[#allocation2 + $0x3d0] sm:$0xff]
          %v7548 = vld [vmem:[#allocation2 + $0x3d8] sm:$0xff]
          %v7549 = vld [vmem:[#allocation2 + $0x3e0] sm:$0xff]
          %v7550 = vld [vmem:[#allocation2 + $0x3e8] sm:$0xff]
          %v7551 = vld [vmem:[#allocation2 + $0x3f0] sm:$0xff]
          %v7552 = vld [vmem:[#allocation2 + $0x3f8] sm:$0xff]
          %v7553 = vpack.c.bf16 %v7429, %v7425
          %v7554 = vpack.c.bf16 %v7430, %v7426
          %v7555 = vpack.c.bf16 %v7431, %v7427
          %v7556 = vpack.c.bf16 %v7432, %v7428
          %v7557 = vpack.c.bf16 %v7437, %v7433
          %v7558 = vpack.c.bf16 %v7438, %v7434
          %v7559 = vpack.c.bf16 %v7439, %v7435
          %v7560 = vpack.c.bf16 %v7440, %v7436
          %v7561 = vpack.c.bf16 %v7445, %v7441
          %v7562 = vpack.c.bf16 %v7446, %v7442
          %v7563 = vpack.c.bf16 %v7447, %v7443
          %v7564 = vpack.c.bf16 %v7448, %v7444
          %v7565 = vpack.c.bf16 %v7453, %v7449
          %v7566 = vpack.c.bf16 %v7454, %v7450
          %v7567 = vpack.c.bf16 %v7455, %v7451
          %v7568 = vpack.c.bf16 %v7456, %v7452
          %v7569 = vpack.c.bf16 %v7461, %v7457
          %v7570 = vpack.c.bf16 %v7462, %v7458
          %v7571 = vpack.c.bf16 %v7463, %v7459
          %v7572 = vpack.c.bf16 %v7464, %v7460
          %v7573 = vpack.c.bf16 %v7469, %v7465
          %v7574 = vpack.c.bf16 %v7470, %v7466
          %v7575 = vpack.c.bf16 %v7471, %v7467
          %v7576 = vpack.c.bf16 %v7472, %v7468
          %v7577 = vpack.c.bf16 %v7477, %v7473
          %v7578 = vpack.c.bf16 %v7478, %v7474
          %v7579 = vpack.c.bf16 %v7479, %v7475
          %v7580 = vpack.c.bf16 %v7480, %v7476
          %v7581 = vpack.c.bf16 %v7485, %v7481
          %v7582 = vpack.c.bf16 %v7486, %v7482
          %v7583 = vpack.c.bf16 %v7487, %v7483
          %v7584 = vpack.c.bf16 %v7488, %v7484
          %v7585 = vpack.c.bf16 %v7493, %v7489
          %v7586 = vpack.c.bf16 %v7494, %v7490
          %v7587 = vpack.c.bf16 %v7495, %v7491
          %v7588 = vpack.c.bf16 %v7496, %v7492
          %v7589 = vpack.c.bf16 %v7501, %v7497
          %v7590 = vpack.c.bf16 %v7502, %v7498
          %v7591 = vpack.c.bf16 %v7503, %v7499
          %v7592 = vpack.c.bf16 %v7504, %v7500
          %v7593 = vpack.c.bf16 %v7509, %v7505
          %v7594 = vpack.c.bf16 %v7510, %v7506
          %v7595 = vpack.c.bf16 %v7511, %v7507
          %v7596 = vpack.c.bf16 %v7512, %v7508
          %v7597 = vpack.c.bf16 %v7517, %v7513
          %v7598 = vpack.c.bf16 %v7518, %v7514
          %v7599 = vpack.c.bf16 %v7519, %v7515
          %v7600 = vpack.c.bf16 %v7520, %v7516
          %v7601 = vpack.c.bf16 %v7525, %v7521
          %v7602 = vpack.c.bf16 %v7526, %v7522
          %v7603 = vpack.c.bf16 %v7527, %v7523
          %v7604 = vpack.c.bf16 %v7528, %v7524
          %v7605 = vpack.c.bf16 %v7533, %v7529
          %v7606 = vpack.c.bf16 %v7534, %v7530
          %v7607 = vpack.c.bf16 %v7535, %v7531
          %v7608 = vpack.c.bf16 %v7536, %v7532
          %v7609 = vpack.c.bf16 %v7541, %v7537
          %v7610 = vpack.c.bf16 %v7542, %v7538
          %v7611 = vpack.c.bf16 %v7543, %v7539
          %v7612 = vpack.c.bf16 %v7544, %v7540
          %v7613 = vpack.c.bf16 %v7549, %v7545
          %v7614 = vpack.c.bf16 %v7550, %v7546
          %v7615 = vpack.c.bf16 %v7551, %v7547
          %v7616 = vpack.c.bf16 %v7552, %v7548
          %v7681 = vunpack.c.l.b16 %v7553
          %v7682 = vunpack.c.l.b16 %v7554
          %v7683 = vunpack.c.l.b16 %v7555
          %v7684 = vunpack.c.l.b16 %v7556
          %v7685 = vunpack.c.h.b16 %v7553
          %v7686 = vunpack.c.h.b16 %v7554
          %v7687 = vunpack.c.h.b16 %v7555
          %v7688 = vunpack.c.h.b16 %v7556
          %v7689 = vunpack.c.l.b16 %v7557
          %v7690 = vunpack.c.l.b16 %v7558
          %v7691 = vunpack.c.l.b16 %v7559
          %v7692 = vunpack.c.l.b16 %v7560
          %v7693 = vunpack.c.h.b16 %v7557
          %v7694 = vunpack.c.h.b16 %v7558
          %v7695 = vunpack.c.h.b16 %v7559
          %v7696 = vunpack.c.h.b16 %v7560
          %v7697 = vunpack.c.l.b16 %v7561
          %v7698 = vunpack.c.l.b16 %v7562
          %v7699 = vunpack.c.l.b16 %v7563
          %v7700 = vunpack.c.l.b16 %v7564
          %v7701 = vunpack.c.h.b16 %v7561
          %v7702 = vunpack.c.h.b16 %v7562
          %v7703 = vunpack.c.h.b16 %v7563
          %v7704 = vunpack.c.h.b16 %v7564
          %v7705 = vunpack.c.l.b16 %v7565
          %v7706 = vunpack.c.l.b16 %v7566
          %v7707 = vunpack.c.l.b16 %v7567
          %v7708 = vunpack.c.l.b16 %v7568
          %v7709 = vunpack.c.h.b16 %v7565
          %v7710 = vunpack.c.h.b16 %v7566
          %v7711 = vunpack.c.h.b16 %v7567
          %v7712 = vunpack.c.h.b16 %v7568
          %v7713 = vunpack.c.l.b16 %v7569
          %v7714 = vunpack.c.l.b16 %v7570
          %v7715 = vunpack.c.l.b16 %v7571
          %v7716 = vunpack.c.l.b16 %v7572
          %v7717 = vunpack.c.h.b16 %v7569
          %v7718 = vunpack.c.h.b16 %v7570
          %v7719 = vunpack.c.h.b16 %v7571
          %v7720 = vunpack.c.h.b16 %v7572
          %v7721 = vunpack.c.l.b16 %v7573
          %v7722 = vunpack.c.l.b16 %v7574
          %v7723 = vunpack.c.l.b16 %v7575
          %v7724 = vunpack.c.l.b16 %v7576
          %v7725 = vunpack.c.h.b16 %v7573
          %v7726 = vunpack.c.h.b16 %v7574
          %v7727 = vunpack.c.h.b16 %v7575
          %v7728 = vunpack.c.h.b16 %v7576
          %v7729 = vunpack.c.l.b16 %v7577
          %v7730 = vunpack.c.l.b16 %v7578
          %v7731 = vunpack.c.l.b16 %v7579
          %v7732 = vunpack.c.l.b16 %v7580
          %v7733 = vunpack.c.h.b16 %v7577
          %v7734 = vunpack.c.h.b16 %v7578
          %v7735 = vunpack.c.h.b16 %v7579
          %v7736 = vunpack.c.h.b16 %v7580
          %v7737 = vunpack.c.l.b16 %v7581
          %v7738 = vunpack.c.l.b16 %v7582
          %v7739 = vunpack.c.l.b16 %v7583
          %v7740 = vunpack.c.l.b16 %v7584
          %v7741 = vunpack.c.h.b16 %v7581
          %v7742 = vunpack.c.h.b16 %v7582
          %v7743 = vunpack.c.h.b16 %v7583
          %v7744 = vunpack.c.h.b16 %v7584
          %v7745 = vunpack.c.l.b16 %v7585
          %v7746 = vunpack.c.l.b16 %v7586
          %v7747 = vunpack.c.l.b16 %v7587
          %v7748 = vunpack.c.l.b16 %v7588
          %v7749 = vunpack.c.h.b16 %v7585
          %v7750 = vunpack.c.h.b16 %v7586
          %v7751 = vunpack.c.h.b16 %v7587
          %v7752 = vunpack.c.h.b16 %v7588
          %v7753 = vunpack.c.l.b16 %v7589
          %v7754 = vunpack.c.l.b16 %v7590
          %v7755 = vunpack.c.l.b16 %v7591
          %v7756 = vunpack.c.l.b16 %v7592
          %v7757 = vunpack.c.h.b16 %v7589
          %v7758 = vunpack.c.h.b16 %v7590
          %v7759 = vunpack.c.h.b16 %v7591
          %v7760 = vunpack.c.h.b16 %v7592
          %v7761 = vunpack.c.l.b16 %v7593
          %v7762 = vunpack.c.l.b16 %v7594
          %v7763 = vunpack.c.l.b16 %v7595
          %v7764 = vunpack.c.l.b16 %v7596
          %v7765 = vunpack.c.h.b16 %v7593
          %v7766 = vunpack.c.h.b16 %v7594
          %v7767 = vunpack.c.h.b16 %v7595
          %v7768 = vunpack.c.h.b16 %v7596
          %v7769 = vunpack.c.l.b16 %v7597
          %v7770 = vunpack.c.l.b16 %v7598
          %v7771 = vunpack.c.l.b16 %v7599
          %v7772 = vunpack.c.l.b16 %v7600
          %v7773 = vunpack.c.h.b16 %v7597
          %v7774 = vunpack.c.h.b16 %v7598
          %v7775 = vunpack.c.h.b16 %v7599
          %v7776 = vunpack.c.h.b16 %v7600
          %v7777 = vunpack.c.l.b16 %v7601
          %v7778 = vunpack.c.l.b16 %v7602
          %v7779 = vunpack.c.l.b16 %v7603
          %v7780 = vunpack.c.l.b16 %v7604
          %v7781 = vunpack.c.h.b16 %v7601
          %v7782 = vunpack.c.h.b16 %v7602
          %v7783 = vunpack.c.h.b16 %v7603
          %v7784 = vunpack.c.h.b16 %v7604
          %v7785 = vunpack.c.l.b16 %v7605
          %v7786 = vunpack.c.l.b16 %v7606
          %v7787 = vunpack.c.l.b16 %v7607
          %v7788 = vunpack.c.l.b16 %v7608
          %v7789 = vunpack.c.h.b16 %v7605
          %v7790 = vunpack.c.h.b16 %v7606
          %v7791 = vunpack.c.h.b16 %v7607
          %v7792 = vunpack.c.h.b16 %v7608
          %v7793 = vunpack.c.l.b16 %v7609
          %v7794 = vunpack.c.l.b16 %v7610
          %v7795 = vunpack.c.l.b16 %v7611
          %v7796 = vunpack.c.l.b16 %v7612
          %v7797 = vunpack.c.h.b16 %v7609
          %v7798 = vunpack.c.h.b16 %v7610
          %v7799 = vunpack.c.h.b16 %v7611
          %v7800 = vunpack.c.h.b16 %v7612
          %v7801 = vunpack.c.l.b16 %v7613
          %v7802 = vunpack.c.l.b16 %v7614
          %v7803 = vunpack.c.l.b16 %v7615
          %v7804 = vunpack.c.l.b16 %v7616
          %v7805 = vunpack.c.h.b16 %v7613
          %v7806 = vunpack.c.h.b16 %v7614
          %v7807 = vunpack.c.h.b16 %v7615
          %v7808 = vunpack.c.h.b16 %v7616
          %v7809 = vpack.c.b16 %v7682, %v7681
          %v7810 = vpack.c.b16 %v7684, %v7683
          %v7811 = vpack.c.b16 %v7686, %v7685
          %v7812 = vpack.c.b16 %v7688, %v7687
          %v7813 = vpack.c.b16 %v7690, %v7689
          %v7814 = vpack.c.b16 %v7692, %v7691
          %v7815 = vpack.c.b16 %v7694, %v7693
          %v7816 = vpack.c.b16 %v7696, %v7695
          %v7817 = vpack.c.b16 %v7698, %v7697
          %v7818 = vpack.c.b16 %v7700, %v7699
          %v7819 = vpack.c.b16 %v7702, %v7701
          %v7820 = vpack.c.b16 %v7704, %v7703
          %v7821 = vpack.c.b16 %v7706, %v7705
          %v7822 = vpack.c.b16 %v7708, %v7707
          %v7823 = vpack.c.b16 %v7710, %v7709
          %v7824 = vpack.c.b16 %v7712, %v7711
          %v7825 = vpack.c.b16 %v7714, %v7713
          %v7826 = vpack.c.b16 %v7716, %v7715
          %v7827 = vpack.c.b16 %v7718, %v7717
          %v7828 = vpack.c.b16 %v7720, %v7719
          %v7829 = vpack.c.b16 %v7722, %v7721
          %v7830 = vpack.c.b16 %v7724, %v7723
          %v7831 = vpack.c.b16 %v7726, %v7725
          %v7832 = vpack.c.b16 %v7728, %v7727
          %v7833 = vpack.c.b16 %v7730, %v7729
          %v7834 = vpack.c.b16 %v7732, %v7731
          %v7835 = vpack.c.b16 %v7734, %v7733
          %v7836 = vpack.c.b16 %v7736, %v7735
          %v7837 = vpack.c.b16 %v7738, %v7737
          %v7838 = vpack.c.b16 %v7740, %v7739
          %v7839 = vpack.c.b16 %v7742, %v7741
          %v7840 = vpack.c.b16 %v7744, %v7743
          %v7841 = vpack.c.b16 %v7746, %v7745
          %v7842 = vpack.c.b16 %v7748, %v7747
          %v7843 = vpack.c.b16 %v7750, %v7749
          %v7844 = vpack.c.b16 %v7752, %v7751
          %v7845 = vpack.c.b16 %v7754, %v7753
          %v7846 = vpack.c.b16 %v7756, %v7755
          %v7847 = vpack.c.b16 %v7758, %v7757
          %v7848 = vpack.c.b16 %v7760, %v7759
          %v7849 = vpack.c.b16 %v7762, %v7761
          %v7850 = vpack.c.b16 %v7764, %v7763
          %v7851 = vpack.c.b16 %v7766, %v7765
          %v7852 = vpack.c.b16 %v7768, %v7767
          %v7853 = vpack.c.b16 %v7770, %v7769
          %v7854 = vpack.c.b16 %v7772, %v7771
          %v7855 = vpack.c.b16 %v7774, %v7773
          %v7856 = vpack.c.b16 %v7776, %v7775
          %v7857 = vpack.c.b16 %v7778, %v7777
          %v7858 = vpack.c.b16 %v7780, %v7779
          %v7859 = vpack.c.b16 %v7782, %v7781
          %v7860 = vpack.c.b16 %v7784, %v7783
          %v7861 = vpack.c.b16 %v7786, %v7785
          %v7862 = vpack.c.b16 %v7788, %v7787
          %v7863 = vpack.c.b16 %v7790, %v7789
          %v7864 = vpack.c.b16 %v7792, %v7791
          %v7865 = vpack.c.b16 %v7794, %v7793
          %v7866 = vpack.c.b16 %v7796, %v7795
          %v7867 = vpack.c.b16 %v7798, %v7797
          %v7868 = vpack.c.b16 %v7800, %v7799
          %v7869 = vpack.c.b16 %v7802, %v7801
          %v7870 = vpack.c.b16 %v7804, %v7803
          %v7871 = vpack.c.b16 %v7806, %v7805
          %v7872 = vpack.c.b16 %v7808, %v7807
          %7937 = vst [vmem:[#allocation11] sm:$0xff] %v7809
          %7938 = vst [vmem:[#allocation11 + $0x8] sm:$0xff] %v7810
          %7939 = vst [vmem:[#allocation11 + $0x10] sm:$0xff] %v7811
          %7940 = vst [vmem:[#allocation11 + $0x18] sm:$0xff] %v7812
          %7941 = vst [vmem:[#allocation11 + $0x20] sm:$0xff] %v7813
          %7942 = vst [vmem:[#allocation11 + $0x28] sm:$0xff] %v7814
          %7943 = vst [vmem:[#allocation11 + $0x30] sm:$0xff] %v7815
          %7944 = vst [vmem:[#allocation11 + $0x38] sm:$0xff] %v7816
          %7945 = vst [vmem:[#allocation11 + $0x40] sm:$0xff] %v7817
          %7946 = vst [vmem:[#allocation11 + $0x48] sm:$0xff] %v7818
          %7947 = vst [vmem:[#allocation11 + $0x50] sm:$0xff] %v7819
          %7948 = vst [vmem:[#allocation11 + $0x58] sm:$0xff] %v7820
          %7949 = vst [vmem:[#allocation11 + $0x60] sm:$0xff] %v7821
          %7950 = vst [vmem:[#allocation11 + $0x68] sm:$0xff] %v7822
          %7951 = vst [vmem:[#allocation11 + $0x70] sm:$0xff] %v7823
          %7952 = vst [vmem:[#allocation11 + $0x78] sm:$0xff] %v7824
          %7953 = vst [vmem:[#allocation11 + $0x80] sm:$0xff] %v7825
          %7954 = vst [vmem:[#allocation11 + $0x88] sm:$0xff] %v7826
          %7955 = vst [vmem:[#allocation11 + $0x90] sm:$0xff] %v7827
          %7956 = vst [vmem:[#allocation11 + $0x98] sm:$0xff] %v7828
          %7957 = vst [vmem:[#allocation11 + $0xa0] sm:$0xff] %v7829
          %7958 = vst [vmem:[#allocation11 + $0xa8] sm:$0xff] %v7830
          %7959 = vst [vmem:[#allocation11 + $0xb0] sm:$0xff] %v7831
          %7960 = vst [vmem:[#allocation11 + $0xb8] sm:$0xff] %v7832
          %7961 = vst [vmem:[#allocation11 + $0xc0] sm:$0xff] %v7833
          %7962 = vst [vmem:[#allocation11 + $0xc8] sm:$0xff] %v7834
          %7963 = vst [vmem:[#allocation11 + $0xd0] sm:$0xff] %v7835
          %7964 = vst [vmem:[#allocation11 + $0xd8] sm:$0xff] %v7836
          %7965 = vst [vmem:[#allocation11 + $0xe0] sm:$0xff] %v7837
          %7966 = vst [vmem:[#allocation11 + $0xe8] sm:$0xff] %v7838
          %7967 = vst [vmem:[#allocation11 + $0xf0] sm:$0xff] %v7839
          %7968 = vst [vmem:[#allocation11 + $0xf8] sm:$0xff] %v7840
          %7969 = vst [vmem:[#allocation11 + $0x100] sm:$0xff] %v7841
          %7970 = vst [vmem:[#allocation11 + $0x108] sm:$0xff] %v7842
          %7971 = vst [vmem:[#allocation11 + $0x110] sm:$0xff] %v7843
          %7972 = vst [vmem:[#allocation11 + $0x118] sm:$0xff] %v7844
          %7973 = vst [vmem:[#allocation11 + $0x120] sm:$0xff] %v7845
          %7974 = vst [vmem:[#allocation11 + $0x128] sm:$0xff] %v7846
          %7975 = vst [vmem:[#allocation11 + $0x130] sm:$0xff] %v7847
          %7976 = vst [vmem:[#allocation11 + $0x138] sm:$0xff] %v7848
          %7977 = vst [vmem:[#allocation11 + $0x140] sm:$0xff] %v7849
          %7978 = vst [vmem:[#allocation11 + $0x148] sm:$0xff] %v7850
          %7979 = vst [vmem:[#allocation11 + $0x150] sm:$0xff] %v7851
          %7980 = vst [vmem:[#allocation11 + $0x158] sm:$0xff] %v7852
          %7981 = vst [vmem:[#allocation11 + $0x160] sm:$0xff] %v7853
          %7982 = vst [vmem:[#allocation11 + $0x168] sm:$0xff] %v7854
          %7983 = vst [vmem:[#allocation11 + $0x170] sm:$0xff] %v7855
          %7984 = vst [vmem:[#allocation11 + $0x178] sm:$0xff] %v7856
          %7985 = vst [vmem:[#allocation11 + $0x180] sm:$0xff] %v7857
          %7986 = vst [vmem:[#allocation11 + $0x188] sm:$0xff] %v7858
          %7987 = vst [vmem:[#allocation11 + $0x190] sm:$0xff] %v7859
          %7988 = vst [vmem:[#allocation11 + $0x198] sm:$0xff] %v7860
          %7989 = vst [vmem:[#allocation11 + $0x1a0] sm:$0xff] %v7861
          %7990 = vst [vmem:[#allocation11 + $0x1a8] sm:$0xff] %v7862
          %7991 = vst [vmem:[#allocation11 + $0x1b0] sm:$0xff] %v7863
          %7992 = vst [vmem:[#allocation11 + $0x1b8] sm:$0xff] %v7864
          %7993 = vst [vmem:[#allocation11 + $0x1c0] sm:$0xff] %v7865
          %7994 = vst [vmem:[#allocation11 + $0x1c8] sm:$0xff] %v7866
          %7995 = vst [vmem:[#allocation11 + $0x1d0] sm:$0xff] %v7867
          %7996 = vst [vmem:[#allocation11 + $0x1d8] sm:$0xff] %v7868
          %7997 = vst [vmem:[#allocation11 + $0x1e0] sm:$0xff] %v7869
          %7998 = vst [vmem:[#allocation11 + $0x1e8] sm:$0xff] %v7870
          %7999 = vst [vmem:[#allocation11 + $0x1f0] sm:$0xff] %v7871
          %8000 = vst [vmem:[#allocation11 + $0x1f8] sm:$0xff] %v7872
        $region64: #{tpu_custom_call.1} parent=39 // pred_fallthru
          _
        // Predicated region
        $region65: #{tpu_custom_call.1} parent=39 // pred_check
          %p8001 = pneg %p184
        $region66: #{tpu_custom_call.1} parent=39 // pred_check_branch
          %8003 = sbr.rel (%p8001) target = $region68
        $region67: #{tpu_custom_call.1} parent=39 // pred_region
          %s8004 = smul.u32 32, %s28
          %s8006 = ssub.s32 8192, 8192
          %8007 = vsyncadd [#allocation5], %s8006
          %s8008 = smul.addr %s8004, 4
          %s8009 = smul.addr %s8008, 64
          %s8010 = scalar_lea.hbm %s5, %s8009
          %s8011 = sshll.u32 [#allocation11], 4
          %s8012 = int_to_ptr.vmem [resolvable:$true] %s8011
          %8017 = dma.vmem_to_hbm [thread:$0]  %s8012, 8192, %s8010, [#allocation5], 256, 256, 16
        $region68: #{tpu_custom_call.1} parent=39 // pred_fallthru
          _
        // Predicated region
        $region69: #{tpu_custom_call.1} parent=39 // pred_check
          %p8018 = pneg %p184
        $region70: #{tpu_custom_call.1} parent=39 // pred_check_branch
          %8020 = sbr.rel (%p8018) target = $region72
        $region71: #{tpu_custom_call.1} parent=39 // pred_region
          %8021 = dma.done [#allocation5], 8192
        $region72: #{tpu_custom_call.1} parent=39 // pred_fallthru
          _
      $region40: #{tpu_custom_call.1} parent=5 // pred_fallthru
        _
      %p8022 = scmp.le.s32.totalorder 2, %s19
      // Predicated region
      $region73: #{tpu_custom_call.1} parent=5 // pred_check
        %p8023 = pneg %p8022
      $region74: #{tpu_custom_call.1} parent=5 // pred_check_branch
        %8025 = sbr.rel (%p8023) target = $region76
      $region75: #{tpu_custom_call.1} parent=5 // pred_region
        %s8026 = ssub.s32 %s19, 2
      $region76: #{tpu_custom_call.1} parent=5 // pred_fallthru
        _
    $region6: #{tpu_custom_call.1} parent=1 // loop_footer
      %s23 = sadd.s32 1, %s19
    $region7: #{tpu_custom_call.1} parent=1 // loop_footer_branch
      %18 = sbr.rel target = $region3
    $region8: #{tpu_custom_call.1} parent=1 // loop_exit
      _
    %8027 = vsyncpa [#allocation4], 1
    %s8028 = scalar_lea.sflag [#allocation4], 1
    %8029 = vsyncpa %s8028, 1
    %8030 = vsyncpa [#allocation7], 1
    %s8031 = scalar_lea.sflag [#allocation7], 1
    %8032 = vsyncpa %s8031, 1
    %8033 = vsyncpa [#allocation10], 1
    %s8034 = scalar_lea.sflag [#allocation10], 1
    %8035 = vsyncpa %s8034, 1
    %8036 = vsyncpa [#allocation5], 1
    %s8037 = scalar_lea.sflag [#allocation5], 1
    %8038 = vsyncpa %s8037, 1

</llo_original>
